<compile_context>
chip_gen: v6e
topology: v6e:2x2x1
jax: 0.10.0
libtpu: 0.0.40
codegen_flags: <defaults>
</compile_context>

<pallas_src>
import math
import functools

import jax
import jax.numpy as jnp
from jax import lax
from jax.experimental import pallas as pl
from jax.experimental.pallas import tpu as pltpu


# ----------------------------- small helpers -----------------------------

def _round_up(x, m):
    return (x + m - 1) // m * m


_VMEM_LIMIT = 48 * 1024 * 1024     # explicit scoped-VMEM budget (fits v5e/v6e/v7x)

# pltpu.roll direction is probed once at startup; 0 = slice/concat shifts (safe fallback),
# +1 = pltpu.roll matches jnp.roll, -1 = opposite direction.
_ROLL_MODE = 0


def _detect_roll_mode():
    """Probe the hardware pltpu.roll direction with a tiny kernel so the in-kernel
    k-tap conv can use the (cheap) XLU rotate instead of slice+concat copies."""
    global _ROLL_MODE
    try:
        def _probe(x_ref, o_ref):
            o_ref[...] = pltpu.roll(x_ref[...], 1, axis=0)

        x = jnp.arange(64 * 64, dtype=jnp.float32).reshape(64, 64)
        y = jax.device_get(pl.pallas_call(
            _probe, out_shape=jax.ShapeDtypeStruct((64, 64), jnp.float32))(x))
        fwd = jax.device_get(jnp.roll(x, 1, axis=0))
        bwd = jax.device_get(jnp.roll(x, -1, axis=0))
        if (y == fwd).all():
            _ROLL_MODE = 1
        elif (y == bwd).all():
            _ROLL_MODE = -1
        else:
            _ROLL_MODE = 0
    except Exception:
        _ROLL_MODE = 0


# ----------------------------- in-kernel building blocks -----------------------------

def _saln(x, g, b):
    mu = jnp.mean(x, axis=-1, keepdims=True)
    var = jnp.mean(jnp.square(x - mu), axis=-1, keepdims=True)
    xn = (x - mu) * lax.rsqrt(var + 1e-5)
    return xn * (1.0 + g) + b


def _plain_ln(x, g, b):
    mu = jnp.mean(x, axis=-1, keepdims=True)
    var = jnp.mean(jnp.square(x - mu), axis=-1, keepdims=True)
    return (x - mu) * lax.rsqrt(var + 1e-5) * g + b


def _shift_rows(y, shift):
    """shifted[t] = y[t - shift] with zero fill (shift>0 pushes rows toward larger t)."""
    if shift == 0:
        return y
    T = y.shape[0]
    if _ROLL_MODE == 0:
        zeros = jnp.zeros((abs(shift),) + y.shape[1:], y.dtype)
        if shift > 0:
            return jnp.concatenate([zeros, y[:T - shift]], axis=0)
        return jnp.concatenate([y[-shift:], zeros], axis=0)
    r = pltpu.roll(y, (shift * _ROLL_MODE) % T, axis=0)
    row = lax.broadcasted_iota(jnp.int32, y.shape, 0)
    valid = (row >= shift) if shift > 0 else (row < T + shift)
    return jnp.where(valid, r, jnp.zeros_like(r))


def _conv_wide(h, w_wide, b, k):
    """Same-padded k-tap 1D conv over time for one (T, Cin) block.

    One wide bf16 MXU matmul h @ [W_0|..|W_{k-1}] -> (T, k*Cout), then tap-combining with
    sublane shifts (XLU roll, or slice fallback) + boundary masking.
    Weight layout: w_wide = (Cin, k*Cout) with tap j at columns [j*Cout, (j+1)*Cout).
    From a PyTorch Conv1d weight (Cout, Cin, k) this is w.permute(1, 2, 0).reshape(Cin, k*Cout).
    """
    T, cin = h.shape
    cout = w_wide.shape[-1] // k
    y = jnp.dot(h.astype(jnp.bfloat16), w_wide, preferred_element_type=jnp.float32)
    pad = (k - 1) // 2
    acc = None
    for j in range(k):
        tap = _shift_rows(y[:, j * cout:(j + 1) * cout], pad - j)
        acc = tap if acc is None else acc + tap
    if b is not None:
        acc = acc + b
    return acc


# ----------------------------- Linear (small fallback + tiled MXU path) ----------------

def _mm_kernel(x_ref, w_ref, b_ref, o_ref, acc_ref, *, act):
    @pl.when(pl.program_id(2) == 0)
    def _init():
        acc_ref[...] = jnp.zeros_like(acc_ref)

    acc_ref[...] += jnp.dot(x_ref[...], w_ref[...], preferred_element_type=jnp.float32)

    @pl.when(pl.program_id(2) == pl.num_programs(2) - 1)
    def _fin():
        y = acc_ref[...] + b_ref[...]
        if act == 'relu':
            y = jnp.maximum(y, 0.0)
        elif act == 'tanh':
            y = jnp.tanh(y)
        o_ref[...] = y


def matmul_bias_act(x, w, b, act=None):
    """(M,K)@(K,N)+b with optional fused activation.

    Small shapes go straight to XLA's fused dot (pallas launch/pipeline overhead dominates
    there); large shapes take the tiled/pipelined bf16 MXU path with f32 VMEM accumulation.
    """
    M, K = x.shape
    N = w.shape[1]
    if M < 256 or (M * K * N) < (1 << 21):
        y = jnp.dot(x.astype(jnp.float32), w.astype(jnp.float32),
                    preferred_element_type=jnp.float32) + b.reshape(1, N).astype(jnp.float32)
        if act == 'relu':
            y = jnp.maximum(y, 0.0)
        elif act == 'tanh':
            y = jnp.tanh(y)
        return y

    tm = 256
    Mp = _round_up(M, tm)
    Kp = _round_up(K, 128)
    tk = 512 if Kp % 512 == 0 else (256 if Kp % 256 == 0 else 128)
    Np = _round_up(N, 128)
    tn = 512 if Np % 512 == 0 else (256 if Np % 256 == 0 else 128)

    xp = jnp.pad(x.astype(jnp.bfloat16), ((0, Mp - M), (0, Kp - K)))
    wp = jnp.pad(w.astype(jnp.bfloat16), ((0, Kp - K), (0, Np - N)))
    bp = jnp.pad(b.reshape(1, N).astype(jnp.float32), ((0, 0), (0, Np - N)))

    out = pl.pallas_call(
        functools.partial(_mm_kernel, act=act),
        grid=(Mp // tm, Np // tn, Kp // tk),
        in_specs=[pl.BlockSpec((tm, tk), lambda i, j, k: (i, k)),
                  pl.BlockSpec((tk, tn), lambda i, j, k: (k, j)),
                  pl.BlockSpec((1, tn), lambda i, j, k: (0, j))],
        out_specs=pl.BlockSpec((tm, tn), lambda i, j, k: (i, j)),
        out_shape=jax.ShapeDtypeStruct((Mp, Np), jnp.float32),
        scratch_shapes=[pltpu.VMEM((tm, tn), jnp.float32)],
        compiler_params=pltpu.CompilerParams(
            dimension_semantics=("parallel", "parallel", "arbitrary"),
            vmem_limit_bytes=_VMEM_LIMIT),
    )(xp, wp, bp)
    return out[:M, :N]


def apply_linear(x, p, act=None):
    shp = x.shape
    y = matmul_bias_act(x.reshape(-1, shp[-1]), p['w'], p['b'], act=act)
    return y.reshape(*shp[:-1], y.shape[-1])


# ----------------------------- fused transformer stack -----------------------------

def _stack_kernel(x_ref, mrow_ref, mcol_ref, aff_ref,
                  wqkv_ref, bqkv_ref, wo_ref, bo_ref,
                  w1_ref, b1_ref, w2_ref, b2_ref,
                  o_ref, h_scr, *, nH, k):
    l = pl.program_id(1)

    @pl.when(l == 0)
    def _():
        h_scr[...] = x_ref[...].astype(jnp.float32)

    x = h_scr[...]                             # (T, H) f32 residual stream (VMEM resident)
    T, H = x.shape
    mrow = mrow_ref[...]                       # (1, T) key mask
    mcol = mcol_ref[...]                       # (T, 1) time mask
    aff = aff_ref[...]                         # (4, H) SALN affine for this layer
    g1, bt1, g2, bt2 = aff[0:1, :], aff[1:2, :], aff[2:3, :], aff[3:4, :]

    # --- self-attention: SALN -> fused QKV -> per-head softmax attn -> accumulate via Wo ---
    h = _saln(x, g1, bt1)
    qkv = jnp.dot(h.astype(jnp.bfloat16), wqkv_ref[...],
                  preferred_element_type=jnp.float32) + bqkv_ref[...]
    Dh = H // nH
    scale = 1.0 / math.sqrt(Dh)
    wo = wo_ref[...]
    attn_out = jnp.zeros((T, H), jnp.float32)
    # NOTE: head slices are sub-128-lane at small H; for big H pad each head's Q/K/V block
    # to a 128-lane boundary in the packed weight.  Fully-masked rows softmax uniformly
    # over -1e9 scores; that is benign (the row is zeroed by mcol below), do NOT turn the
    # fill value into -inf.
    for hd in range(nH):
        q = qkv[:, hd * Dh:(hd + 1) * Dh].astype(jnp.bfloat16)
        kk = qkv[:, H + hd * Dh:H + (hd + 1) * Dh].astype(jnp.bfloat16)
        v = qkv[:, 2 * H + hd * Dh:2 * H + (hd + 1) * Dh].astype(jnp.bfloat16)
        sc = lax.dot_general(q, kk, (((1,), (1,)), ((), ())),
                             preferred_element_type=jnp.float32) * scale
        sc = jnp.where(mrow > 0.5, sc, -1e9)
        sc = sc - jnp.max(sc, axis=-1, keepdims=True)
        p = jnp.exp(sc)
        # approx reciprocal runs on the EUP slot; small systematic error vs exact softmax.
        p = p * pl.reciprocal(jnp.sum(p, axis=-1, keepdims=True), approx=True)
        ctx = jnp.dot(p.astype(jnp.bfloat16), v, preferred_element_type=jnp.float32)
        attn_out = attn_out + jnp.dot(ctx.astype(jnp.bfloat16),
                                      wo[hd * Dh:(hd + 1) * Dh, :],
                                      preferred_element_type=jnp.float32)
    x = x + attn_out + bo_ref[...]

    # --- conv FFN: SALN -> conv(k) -> ReLU -> conv(k) -> residual -> mask ---
    h = _saln(x, g2, bt2)
    h = jnp.maximum(_conv_wide(h, w1_ref[...], b1_ref[...], k), 0.0)
    h = _conv_wide(h, w2_ref[...], b2_ref[...], k)
    x = (x + h) * mcol
    h_scr[...] = x

    @pl.when(l == pl.num_programs(1) - 1)
    def _():
        o_ref[...] = x.astype(o_ref.dtype)


def fastspeech_stack(x_bf16, mask, s, sp, nH, kconv):
    """Run a full L-layer SALN transformer stack in ONE pallas_call.

    grid = (batch, layer); the residual stream lives in a VMEM scratch across layers.
    """
    B, T, H = x_bf16.shape
    L = sp['wqkv'].shape[0]
    F = sp['b1'].shape[-1]
    # SALN affine for all layers from the style vector (tiny matmul -> jnp.dot).
    aff = (jnp.dot(s, sp['saln_w'], preferred_element_type=jnp.float32)
           + sp['saln_b']).reshape(B, L, 4, H)
    mask_row = mask[:, None, :].astype(jnp.float32)
    mask_col = mask[:, :, None].astype(jnp.float32)

    return pl.pallas_call(
        functools.partial(_stack_kernel, nH=nH, k=kconv),
        grid=(B, L),
        in_specs=[
            pl.BlockSpec((None, T, H), lambda b, l: (b, 0, 0)),            # x (bf16)
            pl.BlockSpec((None, 1, T), lambda b, l: (b, 0, 0)),            # key mask
            pl.BlockSpec((None, T, 1), lambda b, l: (b, 0, 0)),            # time mask
            pl.BlockSpec((None, None, 4, H), lambda b, l: (b, l, 0, 0)),   # SALN affine
            pl.BlockSpec((None, H, 3 * H), lambda b, l: (l, 0, 0)),        # wqkv
            pl.BlockSpec((None, 1, 3 * H), lambda b, l: (l, 0, 0)),        # bqkv
            pl.BlockSpec((None, H, H), lambda b, l: (l, 0, 0)),            # wo
            pl.BlockSpec((None, 1, H), lambda b, l: (l, 0, 0)),            # bo
            pl.BlockSpec((None, H, kconv * F), lambda b, l: (l, 0, 0)),    # ffn conv1 (wide)
            pl.BlockSpec((None, 1, F), lambda b, l: (l, 0, 0)),            # b1
            pl.BlockSpec((None, F, kconv * H), lambda b, l: (l, 0, 0)),    # ffn conv2 (wide)
            pl.BlockSpec((None, 1, H), lambda b, l: (l, 0, 0)),            # b2
        ],
        out_specs=pl.BlockSpec((None, T, H), lambda b, l: (b, 0, 0)),
        out_shape=jax.ShapeDtypeStruct((B, T, H), jnp.bfloat16),
        scratch_shapes=[pltpu.VMEM((T, H), jnp.float32)],
        compiler_params=pltpu.CompilerParams(
            dimension_semantics=("parallel", "arbitrary"),
            vmem_limit_bytes=_VMEM_LIMIT),
    )(x_bf16, mask_row, mask_col, aff,
      sp['wqkv'], sp['bqkv'], sp['wo'], sp['bo'],
      sp['w1'], sp['b1'], sp['w2'], sp['b2'])


# ----------------------------- fused pitch + energy predictor -----------------------------

def _dual_pred_kernel(x_ref, w_ref, b_ref, g_ref, lb_ref, wc_ref, bc_ref, o_ref, *, L, k):
    x = x_ref[...].astype(jnp.float32)                     # (T, H)
    h = jnp.concatenate([x, x], axis=-1)                   # (T, 2H): [pitch | energy] lanes
    H = x.shape[-1]
    for l in range(L):
        h = jnp.maximum(_conv_wide(h, w_ref[l], b_ref[l], k), 0.0)
        g = g_ref[l]
        lb = lb_ref[l]
        h = jnp.concatenate([_plain_ln(h[:, :H], g[:, :H], lb[:, :H]),
                             _plain_ln(h[:, H:], g[:, H:], lb[:, H:])], axis=-1)
    # tiny combined head: column 0 = pitch, column 1 = energy
    o_ref[...] = jnp.dot(h.astype(jnp.bfloat16), wc_ref[...],
                         preferred_element_type=jnp.float32) + bc_ref[...]


def dual_variance_predictor(x_bf16, dp, kconv):
    B, T, H = x_bf16.shape
    L = dp['w'].shape[0]
    full = lambda shape: pl.BlockSpec(tuple(shape), lambda b: (0,) * len(shape))
    out = pl.pallas_call(
        functools.partial(_dual_pred_kernel, L=L, k=kconv),
        grid=(B,),
        in_specs=[pl.BlockSpec((None, T, H), lambda b: (b, 0, 0)),
                  full((L, 2 * H, kconv * 2 * H)), full((L, 1, 2 * H)),
                  full((L, 1, 2 * H)), full((L, 1, 2 * H)),
                  full((2 * H, 2)), full((1, 2))],
        out_specs=pl.BlockSpec((None, T, 2), lambda b: (b, 0, 0)),
        out_shape=jax.ShapeDtypeStruct((B, T, 2), jnp.float32),
        compiler_params=pltpu.CompilerParams(dimension_semantics=("parallel",)),
    )(x_bf16, dp['w'], dp['b'], dp['ln_g'], dp['ln_b'], dp['wc'], dp['bc'])
    return out[:, :, 0], out[:, :, 1]


# ----------------------------- duration predictor (infer) -----------------------------

def _dur_kernel(x_ref, s_ref, w1_ref, b1_ref, w2_ref, b2_ref, wo_ref, bo_ref, o_ref, *, k):
    x = x_ref[...].astype(jnp.float32)
    T = x.shape[0]
    sv = s_ref[...]
    h = jnp.concatenate([x, jnp.broadcast_to(sv, (T, sv.shape[-1]))], axis=-1)
    h = jnp.maximum(_conv_wide(h, w1_ref[...], b1_ref[...], k), 0.0)
    h = jnp.maximum(_conv_wide(h, w2_ref[...], b2_ref[...], k), 0.0)
    o_ref[...] = jnp.dot(h.astype(jnp.bfloat16), wo_ref[...],
                         preferred_element_type=jnp.float32) + bo_ref[...]


def dur_predictor_infer(z_dur, x_bf16, s, dp, kconv=3):
    # TODO(synk): full DAP normalizing-flow duration model not implemented; conv/linear
    #             regressor with z_dur entering as an additive latent perturbation.
    B, T, H = x_bf16.shape
    spk = s.shape[-1]
    full = lambda shape: pl.BlockSpec(tuple(shape), lambda b: (0,) * len(shape))
    out = pl.pallas_call(
        functools.partial(_dur_kernel, k=kconv),
        grid=(B,),
        in_specs=[pl.BlockSpec((None, T, H), lambda b: (b, 0, 0)),
                  pl.BlockSpec((None, 1, spk), lambda b: (b, 0, 0)),
                  full((H + spk, kconv * H)), full((1, H)),
                  full((H, kconv * H)), full((1, H)),
                  full((H, 1)), full((1, 1))],
        out_specs=pl.BlockSpec((None, T, 1), lambda b: (b, 0, 0)),
        out_shape=jax.ShapeDtypeStruct((B, T, 1), jnp.float32),
        compiler_params=pltpu.CompilerParams(dimension_semantics=("parallel",)),
    )(x_bf16, s.reshape(B, 1, spk).astype(jnp.float32),
      dp['w1'], dp['b1'], dp['w2'], dp['b2'], dp['wo'], dp['bo'])
    logd = out[:, :, 0] + 0.1 * z_dur[:, 0, :]
    return jnp.exp(logd)[:, None, :]                       # (B, 1, T)


# ----------------------------- diffusion (all Euler steps in one kernel) ----------------

def _diffusion_kernel(z_ref, mu_ref, xf_ref, s_ref, m_ref, fr_ref,
                      w1s_ref, w1f_ref, b1_ref, w2_ref, b2_ref, wo_ref, bo_ref,
                      o_ref, xt_scr, fix_scr, *, n_steps, k, beta_min, beta_max, pe_scale):
    # TODO(synk): GradLogPEstimator2d U-Net replaced with a small conditional conv score
    #             net; stochastic (stoc=True) reverse-SDE branch not implemented (ODE only).
    i = pl.program_id(1)
    mask = m_ref[...]                          # (T, 1)
    mu = mu_ref[...]                           # (T, C)
    T = mu.shape[0]

    @pl.when(i == 0)
    def _():
        xt_scr[...] = z_ref[...] * mask
        # time-invariant conv1 contribution (mu, x_f, speaker) — computed once per batch
        sv = s_ref[...]
        fixed = jnp.concatenate(
            [mu, xf_ref[...], jnp.broadcast_to(sv, (T, sv.shape[-1]))], axis=-1)
        fix_scr[...] = _conv_wide(fixed, w1f_ref[...], b1_ref[...], k)

    xt = xt_scr[...]
    h_step = 1.0 / n_steps
    t = 1.0 - (i.astype(jnp.float32) + 0.5) * h_step
    beta_t = beta_min + (beta_max - beta_min) * t

    args = t * pe_scale * fr_ref[...]                                   # (1, half)
    temb = jnp.concatenate([jnp.sin(args), jnp.cos(args)], axis=-1)     # (1, 2*half)
    step_in = jnp.concatenate(
        [xt, jnp.broadcast_to(temb, (T, temb.shape[-1]))], axis=-1)     # (T, C + 2*half)

    h1 = jnp.maximum(fix_scr[...] + _conv_wide(step_in, w1s_ref[...], None, k), 0.0)
    h2 = jnp.maximum(_conv_wide(h1, w2_ref[...], b2_ref[...], k), 0.0)
    score = (jnp.dot(h2.astype(jnp.bfloat16), wo_ref[...],
                     preferred_element_type=jnp.float32) + bo_ref[...]) * mask

    dxt = 0.5 * (mu - xt - score) * (beta_t * h_step)
    xt_new = (xt - dxt) * mask
    xt_scr[...] = xt_new

    @pl.when(i == pl.num_programs(1) - 1)
    def _():
        o_ref[...] = xt_new


def diffusion_reverse(z, mask, mu, x_f, s, n_timesteps, dp, hp):
    B, T, C = z.shape
    spk = s.shape[-1]
    k = 3
    half = 8
    freqs = jnp.exp(-math.log(10000.0) *
                    jnp.arange(half, dtype=jnp.float32) / half).reshape(1, half)
    dd = dp['b1'].shape[-1]
    full = lambda shape: pl.BlockSpec(tuple(shape), lambda b, i: (0,) * len(shape))
    per_b = lambda shape: pl.BlockSpec((None,) + tuple(shape),
                                       lambda b, i: (b,) + (0,) * len(shape))
    kern = functools.partial(_diffusion_kernel, n_steps=n_timesteps, k=k,
                             beta_min=hp['beta_min'], beta_max=hp['beta_max'],
                             pe_scale=float(hp['pe_scale']))
    return pl.pallas_call(
        kern,
        grid=(B, n_timesteps),
        in_specs=[per_b((T, C)), per_b((T, C)), per_b((T, C)),
                  per_b((1, spk)), per_b((T, 1)), full((1, half)),
                  full((C + 2 * half, k * dd)), full((2 * C + spk, k * dd)), full((1, dd)),
                  full((dd, k * dd)), full((1, dd)),
                  full((dd, C)), full((1, C))],
        out_specs=per_b((T, C)),
        out_shape=jax.ShapeDtypeStruct((B, T, C), jnp.float32),
        scratch_shapes=[pltpu.VMEM((T, C), jnp.float32),
                        pltpu.VMEM((T, dd), jnp.float32)],
        compiler_params=pltpu.CompilerParams(
            dimension_semantics=("parallel", "arbitrary"),
            vmem_limit_bytes=_VMEM_LIMIT),
    )(z.astype(jnp.float32), mu.astype(jnp.float32), x_f.astype(jnp.float32),
      s.reshape(B, 1, spk).astype(jnp.float32), mask.astype(jnp.float32), freqs,
      dp['w1_step'], dp['w1_fix'], dp['b1'], dp['w2'], dp['b2'], dp['wo'], dp['bo'])


# ----------------------------- plain-JAX glue -----------------------------

def sequence_mask(lengths, max_len):
    return (jnp.arange(max_len)[None, :] < lengths[:, None]).astype(jnp.float32)


def fix_len_compatibility(length, num_downsamplings=2):
    factor = 2 ** num_downsamplings
    return int(math.ceil(length / factor) * factor)


def generate_path(duration, mask):
    cum = jnp.cumsum(duration, axis=1)
    T_y = mask.shape[-1]
    frame = jnp.arange(T_y, dtype=jnp.float32)[None, None, :]
    le = (frame < cum[:, :, None]).astype(jnp.float32)
    path = le - jnp.pad(le, ((0, 0), (1, 0), (0, 0)))[:, :-1, :]
    return path * mask


def sinusoid_pe(T, D):
    pos = jnp.arange(T, dtype=jnp.float32)[:, None]
    i = jnp.arange(D, dtype=jnp.float32)[None, :]
    angle = pos / jnp.power(10000.0, 2.0 * jnp.floor(i / 2.0) / D)
    return jnp.where(i % 2 == 0, jnp.sin(angle), jnp.cos(angle))


F0_MIN, F0_MAX = 80.0, 750.0
F0_MEL_MIN = 1127.0 * math.log(1.0 + F0_MIN / 700.0)
F0_MEL_MAX = 1127.0 * math.log(1.0 + F0_MAX / 700.0)


def denorm_f0(f0):
    return jnp.power(2.0, f0)


def f0_to_coarse(f0):
    f0_mel = 1127.0 * jnp.log(1.0 + f0 / 700.0)
    f0_mel = jnp.where(
        f0_mel > 0,
        (f0_mel - F0_MEL_MIN) * 254.0 / (F0_MEL_MAX - F0_MEL_MIN) + 1.0,
        f0_mel)
    return jnp.clip(jnp.rint(f0_mel), 1, 255).astype(jnp.int32)


def style_encoder(y, y_mask, fc1, fc2):
    pooled = jnp.sum(y * y_mask, axis=-1) / jnp.maximum(jnp.sum(y_mask, axis=-1), 1.0)
    h = apply_linear(pooled, fc1, act='relu')
    return apply_linear(h, fc2, act='tanh')


# ----------------------------- full forward (infer path) -----------------------------

def stableform_tts_forward(pp, x_tokens, x_length, y, y_length, rng, *, hp,
                           temperature=1.5, n_timesteps=4, length_scale=1.0,
                           sigma_dur=0.8):
    ret = {}
    B, T_x = x_tokens.shape
    H = hp['hidden_size']

    # ---- style encoder ----
    y_mask = sequence_mask(y_length, y.shape[-1])[:, None, :]
    s = style_encoder(y, y_mask, pp['style_fc1'], pp['style_fc2'])

    # ---- text encoder (one fused stack kernel) ----
    x_mask = sequence_mask(x_length, T_x)
    x = jnp.take(pp['embed'], x_tokens, axis=0) * math.sqrt(H)
    x = (x + sinusoid_pe(T_x, H)[None]) * x_mask[:, :, None]
    x = fastspeech_stack(x.astype(jnp.bfloat16), x_mask, s, pp['encoder'],
                         hp['num_heads'], hp['encoder_ffn_kernel_size'])     # bf16
    ret['x_mask'] = x_mask

    # ---- duration prediction / alignment path ----
    k_dur, k_noise = jax.random.split(rng)
    z_dur = jax.random.normal(k_dur, (B, 1, T_x), jnp.float32) * sigma_dur
    dur = dur_predictor_infer(z_dur, x, s, pp['dur'], kconv=3)
    # reference: (dur + 0.5).floor().int() * length_scale
    dur = jnp.floor(dur[:, 0] + 0.5) * jnp.float32(length_scale)
    max_dur = hp.get('max_frames_per_token', 8)
    # TODO(synk): per-token duration capped at a static bound so mel length is static and
    #             no host sync is needed; the reference model's durations are unbounded.
    dur = jnp.clip(dur, 0.0, float(max_dur)) * x_mask
    y_length_pred = jnp.maximum(jnp.sum(dur, axis=1), 1.0)
    y_max_cap = fix_len_compatibility(T_x * max_dur)               # static frame length
    y_mask_dec = sequence_mask(y_length_pred, y_max_cap)           # (B, T_cap)
    ret['y_length_pred'] = y_length_pred

    # path kept only for ret['attn']; expansion itself uses the gather below
    attn_mask = x_mask[:, :, None] * y_mask_dec[:, None, :]
    path = generate_path(dur, attn_mask)
    ret['attn'] = jnp.transpose(path, (0, 2, 1))

    # ---- pitch / energy (one fused dual-predictor kernel) ----
    pitch_pred, energy_pred = dual_variance_predictor(x, pp['dual'], hp['predictor_kernel'])
    ret['f0_pred'] = pitch_pred
    ret['energy_pred'] = energy_pred
    pitch_ids = f0_to_coarse(denorm_f0(pitch_pred))
    pitch_embed = jnp.take(pp['pitch_embed'], pitch_ids, axis=0)
    energy_ids = jnp.clip(jnp.floor(energy_pred * 256.0 / 4.0), 0, 255).astype(jnp.int32)
    energy_embed = jnp.take(pp['energy_embed'], energy_ids, axis=0)

    # ---- length regulation: exact f32 gather (replaces the one-hot bmm) ----
    cum = jnp.cumsum(dur, axis=1)                                   # (B, T_x)
    frame = jnp.arange(y_max_cap, dtype=jnp.float32)
    idx = jnp.sum((frame[None, None, :] >= cum[:, :, None]).astype(jnp.int32), axis=1)
    idx = jnp.minimum(idx, T_x - 1)                                 # (B, T_cap)
    x_e_tok = x.astype(jnp.float32) + pitch_embed + energy_embed
    x_f_tok = x.astype(jnp.float32)
    pe_dec = sinusoid_pe(y_max_cap, H)[None]
    ymaskc = y_mask_dec[:, :, None]
    x_e_inp = ((jnp.take_along_axis(x_e_tok, idx[:, :, None], axis=1) + pe_dec)
               * ymaskc).astype(jnp.bfloat16)
    x_f_inp = ((jnp.take_along_axis(x_f_tok, idx[:, :, None], axis=1) + pe_dec)
               * ymaskc).astype(jnp.bfloat16)

    # ---- excitation / formant generators (one fused stack kernel each) ----
    x_e = fastspeech_stack(x_e_inp, y_mask_dec, s, pp['excitation'],
                           hp['num_heads'], hp['decoder_ffn_kernel_size'])
    x_f = fastspeech_stack(x_f_inp, y_mask_dec, s, pp['formant'],
                           hp['num_heads'], hp['decoder_ffn_kernel_size'])
    x_e = apply_linear(x_e, pp['proj_excitation'])                 # (B, T_cap, n_mels) f32
    x_f = apply_linear(x_f, pp['proj_formant'])
    ret['x_e'] = x_e
    ret['x_f'] = x_f

    # ---- diffusion refinement (all Euler steps inside one kernel) ----
    noise = jax.random.normal(k_noise, x_e.shape, jnp.float32) / temperature
    ret['z'] = noise
    z = x_e + noise
    x_e_prime = diffusion_reverse(z, ymaskc, x_e, x_f, s, n_timesteps, pp['diff'], hp)
    ret['x_e_prime'] = x_e_prime
    # TODO(synk): mel is returned at the static padded length (masked) instead of slicing
    #             to the dynamic y_max_length, which would require a host sync.
    ret['mel_out'] = (x_e_prime + x_f) * ymaskc
    return ret


# ----------------------------- parameter construction / packing -----------------------------

class ParamGen:
    def __init__(self, seed=0):
        self.key = jax.random.PRNGKey(seed)

    def _next(self):
        self.key, sub = jax.random.split(self.key)
        return sub

    def dense(self, din, dout):
        w = jax.random.normal(self._next(), (din, dout), jnp.float32) / math.sqrt(din)
        return {'w': w, 'b': jnp.zeros((dout,), jnp.float32)}

    def embedding(self, num, dim):
        return jax.random.normal(self._next(), (num, dim), jnp.float32) * 0.02


def make_transformer_layer(pg, H, ffn_kernel, ffn_hidden, saln_dim):
    saln = pg.dense(saln_dim, 4 * H)            # fused [g1|b1|g2|b2] SALN affine
    qkv = pg.dense(H, 3 * H)                    # fused QKV
    out = pg.dense(H, H)
    ffn1 = pg.dense(ffn_kernel * H, ffn_hidden)         # tap-major conv weight (k*Cin, Cout)
    ffn2 = pg.dense(ffn_kernel * ffn_hidden, H)
    return dict(saln_w=saln['w'], saln_b=saln['b'],
                wqkv=qkv['w'], bqkv=qkv['b'], wo=out['w'], bo=out['b'],
                w1=ffn1['w'], b1=ffn1['b'], w2=ffn2['w'], b2=ffn2['b'])


def build_params(hp, dict_size, out_dims, seed=0):
    pg = ParamGen(seed)
    H = hp['hidden_size']
    spk = hp['spk_emb_dim']
    ffn_hidden = 2 * H

    def layers(n, k):
        return [make_transformer_layer(pg, H, k, ffn_hidden, spk) for _ in range(n)]

    def predictor(n_layers, k):
        convs = [dict(conv=pg.dense(k * H, H),
                      ln_g=jnp.ones((H,), jnp.float32),
                      ln_b=jnp.zeros((H,), jnp.float32)) for _ in range(n_layers)]
        return dict(convs=convs, out=pg.dense(H, 1))

    dd = hp['dec_dim'] * 4
    return dict(
        style_encoder=dict(fc1=pg.dense(out_dims, H), fc2=pg.dense(H, spk)),
        text_encoder=dict(embed=pg.embedding(dict_size, H),
                          layers=layers(hp['encoder_layers'], hp['encoder_ffn_kernel_size'])),
        excitation_generator=dict(layers=layers(hp['decoder_layers'],
                                                hp['decoder_ffn_kernel_size'])),
        formant_generator=dict(layers=layers(hp['decoder_layers'],
                                             hp['decoder_ffn_kernel_size'])),
        pitch_embed=pg.embedding(256, H),
        energy_embed=pg.embedding(256, H),
        pitch_predictor=predictor(hp['predictor_layers'], hp['predictor_kernel']),
        energy_predictor=predictor(hp['predictor_layers'], hp['predictor_kernel']),
        dur_predictor=dict(conv1=pg.dense(3 * (H + spk), H),
                           conv2=pg.dense(3 * H, H),
                           out=pg.dense(H, 1)),
        proj_excitation=pg.dense(H, out_dims),
        proj_formant=pg.dense(H, out_dims),
        diffusion=dict(conv1_step=pg.dense(3 * (out_dims + 16), dd),   # [xt | time-emb] taps
                       conv1_fix=pg.dense(3 * (2 * out_dims + spk), dd),  # [mu | x_f | spk] taps
                       conv2=pg.dense(3 * dd, dd),
                       out=pg.dense(dd, out_dims)),
    )


def _to_wide(w, k):
    """Tap-major conv weight (k*Cin, Cout) -> kernel 'wide' layout (Cin, k*Cout).
    NOTE: from a PyTorch Conv1d weight (Cout, Cin, k) the wide layout is
          w.permute(1, 2, 0).reshape(Cin, k*Cout)."""
    kc, cout = w.shape
    cin = kc // k
    return jnp.concatenate([w[j * cin:(j + 1) * cin, :] for j in range(k)], axis=1)


def _prep_stack(layers, k):
    return dict(
        saln_w=jnp.concatenate([lp['saln_w'] for lp in layers], axis=1).astype(jnp.float32),
        saln_b=jnp.concatenate([lp['saln_b'] for lp in layers], axis=0).astype(jnp.float32),
        wqkv=jnp.stack([lp['wqkv'] for lp in layers]).astype(jnp.bfloat16),
        bqkv=jnp.stack([lp['bqkv'].reshape(1, -1) for lp in layers]).astype(jnp.float32),
        wo=jnp.stack([lp['wo'] for lp in layers]).astype(jnp.bfloat16),
        bo=jnp.stack([lp['bo'].reshape(1, -1) for lp in layers]).astype(jnp.float32),
        w1=jnp.stack([_to_wide(lp['w1'], k) for lp in layers]).astype(jnp.bfloat16),
        b1=jnp.stack([lp['b1'].reshape(1, -1) for lp in layers]).astype(jnp.float32),
        w2=jnp.stack([_to_wide(lp['w2'], k) for lp in layers]).astype(jnp.bfloat16),
        b2=jnp.stack([lp['b2'].reshape(1, -1) for lp in layers]).astype(jnp.float32),
    )


def _prep_dual(pitch_p, energy_p, k):
    """Fuse pitch+energy predictors: block-diagonal stacked conv weights so each layer is
    a single wider matmul over the concatenated [pitch | energy] hidden."""
    L = len(pitch_p['convs'])
    H = pitch_p['convs'][0]['ln_g'].shape[0]
    ws, bs, gs, zs = [], [], [], []
    for l in range(L):
        wp = _to_wide(pitch_p['convs'][l]['conv']['w'], k)      # (H, k*H)
        we = _to_wide(energy_p['convs'][l]['conv']['w'], k)
        wbd = jnp.zeros((2 * H, k * 2 * H), jnp.float32)
        for j in range(k):
            wbd = wbd.at[:H, j * 2 * H:j * 2 * H + H].set(wp[:, j * H:(j + 1) * H])
            wbd = wbd.at[H:, j * 2 * H + H:(j + 1) * 2 * H].set(we[:, j * H:(j + 1) * H])
        ws.append(wbd)
        bs.append(jnp.concatenate([pitch_p['convs'][l]['conv']['b'],
                                   energy_p['convs'][l]['conv']['b']]).reshape(1, -1))
        gs.append(jnp.concatenate([pitch_p['convs'][l]['ln_g'],
                                   energy_p['convs'][l]['ln_g']]).reshape(1, -1))
        zs.append(jnp.concatenate([pitch_p['convs'][l]['ln_b'],
                                   energy_p['convs'][l]['ln_b']]).reshape(1, -1))
    wc = jnp.zeros((2 * H, 2), jnp.float32)
    wc = wc.at[:H, 0].set(pitch_p['out']['w'][:, 0])
    wc = wc.at[H:, 1].set(energy_p['out']['w'][:, 0])
    bc = jnp.array([[pitch_p['out']['b'][0], energy_p['out']['b'][0]]], jnp.float32)
    return dict(w=jnp.stack(ws).astype(jnp.bfloat16),
                b=jnp.stack(bs).astype(jnp.float32),
                ln_g=jnp.stack(gs).astype(jnp.float32),
                ln_b=jnp.stack(zs).astype(jnp.float32),
                wc=wc.astype(jnp.bfloat16), bc=bc)


def prepare_params(p, hp):
    """One-time (outside jit) packing of weights into bf16 kernel layouts."""
    ke = hp['encoder_ffn_kernel_size']
    kd = hp['decoder_ffn_kernel_size']
    kp = hp['predictor_kernel']
    return dict(
        style_fc1=p['style_encoder']['fc1'], style_fc2=p['style_encoder']['fc2'],
        embed=p['text_encoder']['embed'],
        encoder=_prep_stack(p['text_encoder']['layers'], ke),
        excitation=_prep_stack(p['excitation_generator']['layers'], kd),
        formant=_prep_stack(p['formant_generator']['layers'], kd),
        pitch_embed=p['pitch_embed'], energy_embed=p['energy_embed'],
        dual=_prep_dual(p['pitch_predictor'], p['energy_predictor'], kp),
        dur=dict(
            w1=_to_wide(p['dur_predictor']['conv1']['w'], 3).astype(jnp.bfloat16),
            b1=p['dur_predictor']['conv1']['b'].reshape(1, -1).astype(jnp.float32),
            w2=_to_wide(p['dur_predictor']['conv2']['w'], 3).astype(jnp.bfloat16),
            b2=p['dur_predictor']['conv2']['b'].reshape(1, -1).astype(jnp.float32),
            wo=p['dur_predictor']['out']['w'].astype(jnp.bfloat16),
            bo=p['dur_predictor']['out']['b'].reshape(1, -1).astype(jnp.float32)),
        diff=dict(
            w1_step=_to_wide(p['diffusion']['conv1_step']['w'], 3).astype(jnp.bfloat16),
            w1_fix=_to_wide(p['diffusion']['conv1_fix']['w'], 3).astype(jnp.bfloat16),
            b1=p['diffusion']['conv1_step']['b'].reshape(1, -1).astype(jnp.float32),
            w2=_to_wide(p['diffusion']['conv2']['w'], 3).astype(jnp.bfloat16),
            b2=p['diffusion']['conv2']['b'].reshape(1, -1).astype(jnp.float32),
            wo=p['diffusion']['out']['w'].astype(jnp.bfloat16),
            bo=p['diffusion']['out']['b'].reshape(1, -1).astype(jnp.float32)),
        proj_excitation=p['proj_excitation'], proj_formant=p['proj_formant'],
    )


# ----------------------------- main -----------------------------

if __name__ == "__main__":
    _detect_roll_mode()

    HP = dict(
        hidden_size=32,
        audio_num_mel_bins=16,
        encoder_layers=2,
        encoder_ffn_kernel_size=3,
        decoder_layers=2,
        decoder_ffn_kernel_size=3,
        num_heads=2,
        spk_emb_dim=16,
        predictor_layers=2,
        predictor_kernel=3,
        predictor_dropout=0.0,
        dec_dim=16,
        num_spk=1,
        beta_min=0.05,
        beta_max=20.0,
        pe_scale=1000,
        max_frames_per_token=8,
    )
    DICT_SIZE = 50
    OUT_DIMS = HP['audio_num_mel_bins']
    B, T_x, T_y = 2, 8, 16

    key = jax.random.PRNGKey(0)
    k_tok, k_y, k_fwd = jax.random.split(key, 3)
    x_tokens = jax.random.randint(k_tok, (B, T_x), 1, DICT_SIZE)
    x_length = jnp.array([T_x, T_x - 2], jnp.int32)
    y = jax.random.normal(k_y, (B, OUT_DIMS, T_y), jnp.float32)
    y_length = jnp.array([T_y, T_y - 4], jnp.int32)

    raw_params = build_params(HP, DICT_SIZE, OUT_DIMS, seed=0)
    pp = prepare_params(raw_params, HP)

    fwd = jax.jit(functools.partial(
        stableform_tts_forward, hp=HP, temperature=1.5, n_timesteps=4,
        length_scale=1.0, sigma_dur=0.8))
    ret = fwd(pp, x_tokens, x_length, y, y_length, k_fwd)
    jax.block_until_ready(ret['mel_out'])
    assert ret['mel_out'].ndim == 3 and ret['mel_out'].shape[-1] == OUT_DIMS
    assert ret['f0_pred'].shape == (B, T_x) and ret['energy_pred'].shape == (B, T_x)
    print("KERNEL_OK")
</pallas_src>

<mosaic_0001>
module attributes {stable_mosaic.version = 11 : i64} {
  func.func @_probe(%arg0: memref<64x64xf32, #tpu.memory_space<vmem>>, %arg1: memref<64x64xf32, #tpu.memory_space<vmem>>) attributes {dimension_semantics = [], scalar_prefetch = 0 : i64, scratch_operands = 0 : i64, tpu.core_type = #tpu.core_type<tc>} {
    %c0 = arith.constant 0 : index
    %c0_0 = arith.constant 0 : index
    %0 = vector.load %arg0[%c0, %c0_0] : memref<64x64xf32, #tpu.memory_space<vmem>>, vector<64x64xf32>
    %c1_i32 = arith.constant 1 : i32
    %1 = tpu.dynamic_rotate %0 by %c1_i32 dim 0 : vector<64x64xf32>, i32 -> vector<64x64xf32>
    %c0_1 = arith.constant 0 : index
    %c0_2 = arith.constant 0 : index
    %2 = vector.load %arg1[%c0_1, %c0_2] : memref<64x64xf32, #tpu.memory_space<vmem>>, vector<64x64xf32>
    tpu.vector_store %arg1[%c0_1, %c0_2], %1 {strides = array<i32>} : memref<64x64xf32, #tpu.memory_space<vmem>>, vector<64x64xf32>,
    return
  }
}

module attributes {stable_mosaic.version = 11 : i64} {
  func.func @_dur_kernel(%arg0: i32, %arg1: memref<1x8x32xbf16, #tpu.memory_space<vmem>>, %arg2: memref<1x1x16xf32, #tpu.memory_space<vmem>>, %arg3: memref<48x96xbf16, #tpu.memory_space<vmem>>, %arg4: memref<1x32xf32, #tpu.memory_space<vmem>>, %arg5: memref<32x96xbf16, #tpu.memory_space<vmem>>, %arg6: memref<1x32xf32, #tpu.memory_space<vmem>>, %arg7: memref<32x1xbf16, #tpu.memory_space<vmem>>, %arg8: memref<1x1xf32, #tpu.memory_space<vmem>>, %arg9: memref<1x8x1xf32, #tpu.memory_space<vmem>>) attributes {dimension_semantics = [#tpu.dimension_semantics<parallel>], iteration_bounds = array<i64: 2>, scalar_prefetch = 0 : i64, scratch_operands = 0 : i64, tpu.core_type = #tpu.core_type<tc>, window_params = [{transform_indices = @transform_0, window_bounds = array<i64: 1, 8, 32>}, {transform_indices = @transform_1, window_bounds = array<i64: 1, 1, 16>}, {pipeline_mode = #tpu.pipeline_mode<synchronous>, transform_indices = @transform_2, window_bounds = array<i64: 48, 96>}, {pipeline_mode = #tpu.pipeline_mode<synchronous>, transform_indices = @transform_3, window_bounds = array<i64: 1, 32>}, {pipeline_mode = #tpu.pipeline_mode<synchronous>, transform_indices = @transform_4, window_bounds = array<i64: 32, 96>}, {pipeline_mode = #tpu.pipeline_mode<synchronous>, transform_indices = @transform_5, window_bounds = array<i64: 1, 32>}, {pipeline_mode = #tpu.pipeline_mode<synchronous>, transform_indices = @transform_6, window_bounds = array<i64: 32, 1>}, {pipeline_mode = #tpu.pipeline_mode<synchronous>, transform_indices = @transform_7, window_bounds = array<i64: 1, 1>}, {transform_indices = @transform_8, window_bounds = array<i64: 1, 8, 1>}]} {
    %c0 = arith.constant 0 : index
    %c0_0 = arith.constant 0 : index
    %c0_1 = arith.constant 0 : index
    %0 = vector.load %arg1[%c0, %c0_0, %c0_1] : memref<1x8x32xbf16, #tpu.memory_space<vmem>>, vector<1x8x32xbf16>
    %1 = vector.shape_cast %0 : vector<1x8x32xbf16> to vector<8x32xbf16>
    %2 = arith.extf %1 : vector<8x32xbf16> to vector<8x32xf32>
    %c0_2 = arith.constant 0 : index
    %c0_3 = arith.constant 0 : index
    %c0_4 = arith.constant 0 : index
    %3 = vector.load %arg2[%c0_2, %c0_3, %c0_4] : memref<1x1x16xf32, #tpu.memory_space<vmem>>, vector<1x1x16xf32>
    %4 = vector.shape_cast %3 : vector<1x1x16xf32> to vector<1x16xf32>
    %5 = vector.shape_cast %4 : vector<1x16xf32> to vector<1x16xf32>
    %6 = vector.broadcast %5 : vector<1x16xf32> to vector<8x16xf32>
    %7 = tpu.concatenate %2, %6 in 1 : vector<8x32xf32>, vector<8x16xf32> -> vector<8x48xf32>
    %c0_5 = arith.constant 0 : index
    %c0_6 = arith.constant 0 : index
    %8 = vector.load %arg3[%c0_5, %c0_6] : memref<48x96xbf16, #tpu.memory_space<vmem>>, vector<48x96xbf16>
    %c0_7 = arith.constant 0 : index
    %c0_8 = arith.constant 0 : index
    %9 = vector.load %arg4[%c0_7, %c0_8] : memref<1x32xf32, #tpu.memory_space<vmem>>, vector<1x32xf32>
    %10 = arith.truncf %7 : vector<8x48xf32> to vector<8x48xbf16>
    %cst = arith.constant dense<0.000000e+00> : vector<8x96xf32>
    %11 = tpu.matmul %10, %8, %cst {dimension_numbers = #tpu.dot_dimension_numbers<[1], [0], [0], [1], [0, 0, 1, 1], [], []>} : vector<8x48xbf16>, vector<48x96xbf16>, vector<8x96xf32> -> vector<8x96xf32>
    %12 = vector.extract_strided_slice %11 {offsets = [0, 0], sizes = [8, 32], strides = [1, 1]} : vector<8x96xf32> to vector<8x32xf32>
    %cst_9 = arith.constant 0.000000e+00 : f32
    %13 = vector.broadcast %cst_9 : f32 to vector<1x32xf32>
    %14 = vector.extract_strided_slice %12 {offsets = [0, 0], sizes = [7, 32], strides = [1, 1]} : vector<8x32xf32> to vector<7x32xf32>
    %15 = tpu.concatenate %13, %14 in 0 : vector<1x32xf32>, vector<7x32xf32> -> vector<8x32xf32>
    %16 = vector.extract_strided_slice %11 {offsets = [0, 32], sizes = [8, 32], strides = [1, 1]} : vector<8x96xf32> to vector<8x32xf32>
    %17 = arith.addf %15, %16 : vector<8x32xf32>
    %18 = vector.extract_strided_slice %11 {offsets = [0, 64], sizes = [8, 32], strides = [1, 1]} : vector<8x96xf32> to vector<8x32xf32>
    %cst_10 = arith.constant 0.000000e+00 : f32
    %19 = vector.broadcast %cst_10 : f32 to vector<1x32xf32>
    %20 = vector.extract_strided_slice %18 {offsets = [1, 0], sizes = [7, 32], strides = [1, 1]} : vector<8x32xf32> to vector<7x32xf32>
    %21 = tpu.concatenate %20, %19 in 0 : vector<7x32xf32>, vector<1x32xf32> -> vector<8x32xf32>
    %22 = arith.addf %17, %21 : vector<8x32xf32>
    %23 = vector.broadcast %9 : vector<1x32xf32> to vector<8x32xf32>
    %24 = arith.addf %22, %23 : vector<8x32xf32>
    %cst_11 = arith.constant 0.000000e+00 : f32
    %25 = vector.broadcast %cst_11 : f32 to vector<8x32xf32>
    %26 = arith.maximumf %24, %25 : vector<8x32xf32>
    %c0_12 = arith.constant 0 : index
    %c0_13 = arith.constant 0 : index
    %27 = vector.load %arg5[%c0_12, %c0_13] : memref<32x96xbf16, #tpu.memory_space<vmem>>, vector<32x96xbf16>
    %c0_14 = arith.constant 0 : index
    %c0_15 = arith.constant 0 : index
    %28 = vector.load %arg6[%c0_14, %c0_15] : memref<1x32xf32, #tpu.memory_space<vmem>>, vector<1x32xf32>
    %29 = arith.truncf %26 : vector<8x32xf32> to vector<8x32xbf16>
    %cst_16 = arith.constant dense<0.000000e+00> : vector<8x96xf32>
    %30 = tpu.matmul %29, %27, %cst_16 {dimension_numbers = #tpu.dot_dimension_numbers<[1], [0], [0], [1], [0, 0, 1, 1], [], []>} : vector<8x32xbf16>, vector<32x96xbf16>, vector<8x96xf32> -> vector<8x96xf32>
    %31 = vector.extract_strided_slice %30 {offsets = [0, 0], sizes = [8, 32], strides = [1, 1]} : vector<8x96xf32> to vector<8x32xf32>
    %cst_17 = arith.constant 0.000000e+00 : f32
    %32 = vector.broadcast %cst_17 : f32 to vector<1x32xf32>
    %33 = vector.extract_strided_slice %31 {offsets = [0, 0], sizes = [7, 32], strides = [1, 1]} : vector<8x32xf32> to vector<7x32xf32>
    %34 = tpu.concatenate %32, %33 in 0 : vector<1x32xf32>, vector<7x32xf32> -> vector<8x32xf32>
    %35 = vector.extract_strided_slice %30 {offsets = [0, 32], sizes = [8, 32], strides = [1, 1]} : vector<8x96xf32> to vector<8x32xf32>
    %36 = arith.addf %34, %35 : vector<8x32xf32>
    %37 = vector.extract_strided_slice %30 {offsets = [0, 64], sizes = [8, 32], strides = [1, 1]} : vector<8x96xf32> to vector<8x32xf32>
    %cst_18 = arith.constant 0.000000e+00 : f32
    %38 = vector.broadcast %cst_18 : f32 to vector<1x32xf32>
    %39 = vector.extract_strided_slice %37 {offsets = [1, 0], sizes = [7, 32], strides = [1, 1]} : vector<8x32xf32> to vector<7x32xf32>
    %40 = tpu.concatenate %39, %38 in 0 : vector<7x32xf32>, vector<1x32xf32> -> vector<8x32xf32>
    %41 = arith.addf %36, %40 : vector<8x32xf32>
    %42 = vector.broadcast %28 : vector<1x32xf32> to vector<8x32xf32>
    %43 = arith.addf %41, %42 : vector<8x32xf32>
    %cst_19 = arith.constant 0.000000e+00 : f32
    %44 = vector.broadcast %cst_19 : f32 to vector<8x32xf32>
    %45 = arith.maximumf %43, %44 : vector<8x32xf32>
    %46 = arith.truncf %45 : vector<8x32xf32> to vector<8x32xbf16>
    %c0_20 = arith.constant 0 : index
    %c0_21 = arith.constant 0 : index
    %47 = vector.load %arg7[%c0_20, %c0_21] : memref<32x1xbf16, #tpu.memory_space<vmem>>, vector<32x1xbf16>
    %cst_22 = arith.constant dense<0.000000e+00> : vector<8x1xf32>
    %48 = tpu.matmul %46, %47, %cst_22 {dimension_numbers = #tpu.dot_dimension_numbers<[1], [0], [0], [1], [0, 0, 1, 1], [], []>} : vector<8x32xbf16>, vector<32x1xbf16>, vector<8x1xf32> -> vector<8x1xf32>
    %c0_23 = arith.constant 0 : index
    %c0_24 = arith.constant 0 : index
    %49 = vector.load %arg8[%c0_23, %c0_24] : memref<1x1xf32, #tpu.memory_space<vmem>>, vector<1x1xf32>
    %50 = vector.broadcast %49 : vector<1x1xf32> to vector<8x1xf32>
    %51 = arith.addf %48, %50 : vector<8x1xf32>
    %c0_25 = arith.constant 0 : index
    %c0_26 = arith.constant 0 : index
    %c0_27 = arith.constant 0 : index
    %52 = vector.load %arg9[%c0_25, %c0_26, %c0_27] : memref<1x8x1xf32, #tpu.memory_space<vmem>>, vector<1x8x1xf32>
    %53 = vector.shape_cast %52 : vector<1x8x1xf32> to vector<8x1xf32>
    %54 = vector.shape_cast %51 : vector<8x1xf32> to vector<1x8x1xf32>
    tpu.vector_store %arg9[%c0_25, %c0_26, %c0_27], %54 {strides = array<i32>} : memref<1x8x1xf32, #tpu.memory_space<vmem>>, vector<1x8x1xf32>,
    return
  }
  func.func @transform_0(%arg0: i32) -> (i32, i32, i32) {
    %c0_i32 = arith.constant 0 : i32
    %c0_i32_0 = arith.constant 0 : i32
    %c0_i32_1 = arith.constant 0 : i32
    return %arg0, %c0_i32, %c0_i32_0 : i32, i32, i32
  }
  func.func @transform_1(%arg0: i32) -> (i32, i32, i32) {
    %c0_i32 = arith.constant 0 : i32
    %c0_i32_0 = arith.constant 0 : i32
    %c0_i32_1 = arith.constant 0 : i32
    return %arg0, %c0_i32, %c0_i32_0 : i32, i32, i32
  }
  func.func @transform_2(%arg0: i32) -> (i32, i32) {
    %c0_i32 = arith.constant 0 : i32
    %c0_i32_0 = arith.constant 0 : i32
    %c0_i32_1 = arith.constant 0 : i32
    return %c0_i32, %c0_i32_0 : i32, i32
  }
  func.func @transform_3(%arg0: i32) -> (i32, i32) {
    %c0_i32 = arith.constant 0 : i32
    %c0_i32_0 = arith.constant 0 : i32
    %c0_i32_1 = arith.constant 0 : i32
    return %c0_i32, %c0_i32_0 : i32, i32
  }
  func.func @transform_4(%arg0: i32) -> (i32, i32) {
    %c0_i32 = arith.constant 0 : i32
    %c0_i32_0 = arith.constant 0 : i32
    %c0_i32_1 = arith.constant 0 : i32
    return %c0_i32, %c0_i32_0 : i32, i32
  }
  func.func @transform_5(%arg0: i32) -> (i32, i32) {
    %c0_i32 = arith.constant 0 : i32
    %c0_i32_0 = arith.constant 0 : i32
    %c0_i32_1 = arith.constant 0 : i32
    return %c0_i32, %c0_i32_0 : i32, i32
  }
  func.func @transform_6(%arg0: i32) -> (i32, i32) {
    %c0_i32 = arith.constant 0 : i32
    %c0_i32_0 = arith.constant 0 : i32
    %c0_i32_1 = arith.constant 0 : i32
    return %c0_i32, %c0_i32_0 : i32, i32
  }
  func.func @transform_7(%arg0: i32) -> (i32, i32) {
    %c0_i32 = arith.constant 0 : i32
    %c0_i32_0 = arith.constant 0 : i32
    %c0_i32_1 = arith.constant 0 : i32
    return %c0_i32, %c0_i32_0 : i32, i32
  }
  func.func @transform_8(%arg0: i32) -> (i32, i32, i32) {
    %c0_i32 = arith.constant 0 : i32
    %c0_i32_0 = arith.constant 0 : i32
    %c0_i32_1 = arith.constant 0 : i32
    return %arg0, %c0_i32, %c0_i32_0 : i32, i32, i32
  }
}

module attributes {stable_mosaic.version = 11 : i64} {
  func.func @_stack_kernel(%arg0: i32, %arg1: i32, %arg2: memref<1x8x32xbf16, #tpu.memory_space<vmem>>, %arg3: memref<1x1x8xf32, #tpu.memory_space<vmem>>, %arg4: memref<1x8x1xf32, #tpu.memory_space<vmem>>, %arg5: memref<1x1x4x32xf32, #tpu.memory_space<vmem>>, %arg6: memref<1x32x96xbf16, #tpu.memory_space<vmem>>, %arg7: memref<1x1x96xf32, #tpu.memory_space<vmem>>, %arg8: memref<1x32x32xbf16, #tpu.memory_space<vmem>>, %arg9: memref<1x1x32xf32, #tpu.memory_space<vmem>>, %arg10: memref<1x32x192xbf16, #tpu.memory_space<vmem>>, %arg11: memref<1x1x64xf32, #tpu.memory_space<vmem>>, %arg12: memref<1x64x96xbf16, #tpu.memory_space<vmem>>, %arg13: memref<1x1x32xf32, #tpu.memory_space<vmem>>, %arg14: memref<1x8x32xbf16, #tpu.memory_space<vmem>>, %arg15: memref<8x32xf32, #tpu.memory_space<vmem>>) attributes {dimension_semantics = [#tpu.dimension_semantics<parallel>, #tpu.dimension_semantics<arbitrary>], iteration_bounds = array<i64: 2, 2>, scalar_prefetch = 0 : i64, scratch_operands = 1 : i64, tpu.core_type = #tpu.core_type<tc>, window_params = [{transform_indices = @transform_0, window_bounds = array<i64: 1, 8, 32>}, {transform_indices = @transform_1, window_bounds = array<i64: 1, 1, 8>}, {transform_indices = @transform_2, window_bounds = array<i64: 1, 8, 1>}, {transform_indices = @transform_3, window_bounds = array<i64: 1, 1, 4, 32>}, {transform_indices = @transform_4, window_bounds = array<i64: 1, 32, 96>}, {transform_indices = @transform_5, window_bounds = array<i64: 1, 1, 96>}, {transform_indices = @transform_6, window_bounds = array<i64: 1, 32, 32>}, {transform_indices = @transform_7, window_bounds = array<i64: 1, 1, 32>}, {transform_indices = @transform_8, window_bounds = array<i64: 1, 32, 192>}, {transform_indices = @transform_9, window_bounds = array<i64: 1, 1, 64>}, {transform_indices = @transform_10, window_bounds = array<i64: 1, 64, 96>}, {transform_indices = @transform_11, window_bounds = array<i64: 1, 1, 32>}, {transform_indices = @transform_12, window_bounds = array<i64: 1, 8, 32>}]} {
    %c0_i32 = arith.constant 0 : i32
    %0 = arith.cmpi eq, %arg1, %c0_i32 : i32
    %1 = arith.extui %0 : i1 to i32
    %c0_i32_0 = arith.constant 0 : i32
    %2 = arith.cmpi ne, %1, %c0_i32_0 : i32
    scf.if %2 {
      %c0_75 = arith.constant 0 : index
      %c0_76 = arith.constant 0 : index
      %c0_77 = arith.constant 0 : index
      %187 = vector.load %arg2[%c0_75, %c0_76, %c0_77] : memref<1x8x32xbf16, #tpu.memory_space<vmem>>, vector<1x8x32xbf16>
      %188 = vector.shape_cast %187 : vector<1x8x32xbf16> to vector<8x32xbf16>
      %189 = arith.extf %188 : vector<8x32xbf16> to vector<8x32xf32>
      %c0_78 = arith.constant 0 : index
      %c0_79 = arith.constant 0 : index
      %190 = vector.load %arg15[%c0_78, %c0_79] : memref<8x32xf32, #tpu.memory_space<vmem>>, vector<8x32xf32>
      tpu.vector_store %arg15[%c0_78, %c0_79], %189 {strides = array<i32>} : memref<8x32xf32, #tpu.memory_space<vmem>>, vector<8x32xf32>,
    } else {
    }
    %c0 = arith.constant 0 : index
    %c0_1 = arith.constant 0 : index
    %3 = vector.load %arg15[%c0, %c0_1] : memref<8x32xf32, #tpu.memory_space<vmem>>, vector<8x32xf32>
    %c0_2 = arith.constant 0 : index
    %c0_3 = arith.constant 0 : index
    %c0_4 = arith.constant 0 : index
    %4 = vector.load %arg3[%c0_2, %c0_3, %c0_4] : memref<1x1x8xf32, #tpu.memory_space<vmem>>, vector<1x1x8xf32>
    %5 = vector.shape_cast %4 : vector<1x1x8xf32> to vector<1x8xf32>
    %c0_5 = arith.constant 0 : index
    %c0_6 = arith.constant 0 : index
    %c0_7 = arith.constant 0 : index
    %6 = vector.load %arg4[%c0_5, %c0_6, %c0_7] : memref<1x8x1xf32, #tpu.memory_space<vmem>>, vector<1x8x1xf32>
    %7 = vector.shape_cast %6 : vector<1x8x1xf32> to vector<8x1xf32>
    %c0_8 = arith.constant 0 : index
    %c0_9 = arith.constant 0 : index
    %c0_10 = arith.constant 0 : index
    %c0_11 = arith.constant 0 : index
    %8 = vector.load %arg5[%c0_8, %c0_9, %c0_10, %c0_11] : memref<1x1x4x32xf32, #tpu.memory_space<vmem>>, vector<1x1x4x32xf32>
    %9 = vector.shape_cast %8 : vector<1x1x4x32xf32> to vector<4x32xf32>
    %10 = vector.extract_strided_slice %9 {offsets = [0, 0], sizes = [1, 32], strides = [1, 1]} : vector<4x32xf32> to vector<1x32xf32>
    %11 = vector.extract_strided_slice %9 {offsets = [1, 0], sizes = [1, 32], strides = [1, 1]} : vector<4x32xf32> to vector<1x32xf32>
    %12 = vector.extract_strided_slice %9 {offsets = [2, 0], sizes = [1, 32], strides = [1, 1]} : vector<4x32xf32> to vector<1x32xf32>
    %13 = vector.extract_strided_slice %9 {offsets = [3, 0], sizes = [1, 32], strides = [1, 1]} : vector<4x32xf32> to vector<1x32xf32>
    %cst = arith.constant dense<0.000000e+00> : vector<8xf32>
    %14 = vector.multi_reduction <add>, %3, %cst [1] : vector<8x32xf32> to vector<8xf32>
    %15 = vector.shape_cast %14 : vector<8xf32> to vector<8x1xf32>
    %cst_12 = arith.constant 3.200000e+01 : f32
    %16 = vector.broadcast %cst_12 : f32 to vector<8x1xf32>
    %17 = arith.divf %15, %16 : vector<8x1xf32>
    %18 = vector.broadcast %17 : vector<8x1xf32> to vector<8x32xf32>
    %19 = arith.subf %3, %18 : vector<8x32xf32>
    %20 = arith.mulf %19, %19 : vector<8x32xf32>
    %cst_13 = arith.constant dense<0.000000e+00> : vector<8xf32>
    %21 = vector.multi_reduction <add>, %20, %cst_13 [1] : vector<8x32xf32> to vector<8xf32>
    %22 = vector.shape_cast %21 : vector<8xf32> to vector<8x1xf32>
    %cst_14 = arith.constant 3.200000e+01 : f32
    %23 = vector.broadcast %cst_14 : f32 to vector<8x1xf32>
    %24 = arith.divf %22, %23 : vector<8x1xf32>
    %25 = vector.broadcast %17 : vector<8x1xf32> to vector<8x32xf32>
    %26 = arith.subf %3, %25 : vector<8x32xf32>
    %cst_15 = arith.constant 9.99999974E-6 : f32
    %27 = vector.broadcast %cst_15 : f32 to vector<8x1xf32>
    %28 = arith.addf %24, %27 : vector<8x1xf32>
    %29 = math.rsqrt %28 : vector<8x1xf32>
    %30 = vector.broadcast %29 : vector<8x1xf32> to vector<8x32xf32>
    %31 = arith.mulf %26, %30 : vector<8x32xf32>
    %cst_16 = arith.constant 1.000000e+00 : f32
    %32 = vector.broadcast %cst_16 : f32 to vector<1x32xf32>
    %33 = arith.addf %32, %10 : vector<1x32xf32>
    %34 = vector.broadcast %33 : vector<1x32xf32> to vector<8x32xf32>
    %35 = arith.mulf %31, %34 : vector<8x32xf32>
    %36 = vector.broadcast %11 : vector<1x32xf32> to vector<8x32xf32>
    %37 = arith.addf %35, %36 : vector<8x32xf32>
    %38 = arith.truncf %37 : vector<8x32xf32> to vector<8x32xbf16>
    %c0_17 = arith.constant 0 : index
    %c0_18 = arith.constant 0 : index
    %c0_19 = arith.constant 0 : index
    %39 = vector.load %arg6[%c0_17, %c0_18, %c0_19] : memref<1x32x96xbf16, #tpu.memory_space<vmem>>, vector<1x32x96xbf16>
    %40 = vector.shape_cast %39 : vector<1x32x96xbf16> to vector<32x96xbf16>
    %cst_20 = arith.constant dense<0.000000e+00> : vector<8x96xf32>
    %41 = tpu.matmul %38, %40, %cst_20 {dimension_numbers = #tpu.dot_dimension_numbers<[1], [0], [0], [1], [0, 0, 1, 1], [], []>} : vector<8x32xbf16>, vector<32x96xbf16>, vector<8x96xf32> -> vector<8x96xf32>
    %c0_21 = arith.constant 0 : index
    %c0_22 = arith.constant 0 : index
    %c0_23 = arith.constant 0 : index
    %42 = vector.load %arg7[%c0_21, %c0_22, %c0_23] : memref<1x1x96xf32, #tpu.memory_space<vmem>>, vector<1x1x96xf32>
    %43 = vector.shape_cast %42 : vector<1x1x96xf32> to vector<1x96xf32>
    %44 = vector.broadcast %43 : vector<1x96xf32> to vector<8x96xf32>
    %45 = arith.addf %41, %44 : vector<8x96xf32>
    %c0_24 = arith.constant 0 : index
    %c0_25 = arith.constant 0 : index
    %c0_26 = arith.constant 0 : index
    %46 = vector.load %arg8[%c0_24, %c0_25, %c0_26] : memref<1x32x32xbf16, #tpu.memory_space<vmem>>, vector<1x32x32xbf16>
    %47 = vector.shape_cast %46 : vector<1x32x32xbf16> to vector<32x32xbf16>
    %cst_27 = arith.constant 0.000000e+00 : f32
    %48 = vector.broadcast %cst_27 : f32 to vector<8x32xf32>
    %49 = vector.extract_strided_slice %45 {offsets = [0, 0], sizes = [8, 16], strides = [1, 1]} : vector<8x96xf32> to vector<8x16xf32>
    %50 = arith.truncf %49 : vector<8x16xf32> to vector<8x16xbf16>
    %51 = vector.extract_strided_slice %45 {offsets = [0, 32], sizes = [8, 16], strides = [1, 1]} : vector<8x96xf32> to vector<8x16xf32>
    %52 = arith.truncf %51 : vector<8x16xf32> to vector<8x16xbf16>
    %53 = vector.extract_strided_slice %45 {offsets = [0, 64], sizes = [8, 16], strides = [1, 1]} : vector<8x96xf32> to vector<8x16xf32>
    %54 = arith.truncf %53 : vector<8x16xf32> to vector<8x16xbf16>
    %cst_28 = arith.constant dense<0.000000e+00> : vector<8x8xf32>
    %55 = tpu.matmul %50, %52, %cst_28 {dimension_numbers = #tpu.dot_dimension_numbers<[1], [1], [0], [0], [0, 0, 1, 0], [], []>} : vector<8x16xbf16>, vector<8x16xbf16>, vector<8x8xf32> -> vector<8x8xf32>
    %cst_29 = arith.constant 2.500000e-01 : f32
    %56 = vector.broadcast %cst_29 : f32 to vector<8x8xf32>
    %57 = arith.mulf %55, %56 : vector<8x8xf32>
    %cst_30 = arith.constant 5.000000e-01 : f32
    %58 = vector.broadcast %cst_30 : f32 to vector<1x8xf32>
    %59 = arith.cmpf ogt, %5, %58 : vector<1x8xf32>
    %cst_31 = arith.constant -1.000000e+09 : f32
    %60 = vector.shape_cast %59 : vector<1x8xi1> to vector<1x8xi1>
    %61 = vector.broadcast %60 : vector<1x8xi1> to vector<8x8xi1>
    %62 = vector.broadcast %cst_31 : f32 to vector<8x8xf32>
    %63 = arith.select %61, %57, %62 : vector<8x8xi1>, vector<8x8xf32>
    %cst_32 = arith.constant dense<0xFF800000> : vector<8xf32>
    %64 = vector.multi_reduction <maximumf>, %63, %cst_32 [1] : vector<8x8xf32> to vector<8xf32>
    %65 = vector.shape_cast %64 : vector<8xf32> to vector<8x1xf32>
    %66 = vector.broadcast %65 : vector<8x1xf32> to vector<8x8xf32>
    %67 = arith.subf %63, %66 : vector<8x8xf32>
    %68 = math.exp %67 : vector<8x8xf32>
    %cst_33 = arith.constant dense<0.000000e+00> : vector<8xf32>
    %69 = vector.multi_reduction <add>, %68, %cst_33 [1] : vector<8x8xf32> to vector<8xf32>
    %70 = vector.shape_cast %69 : vector<8xf32> to vector<8x1xf32>
    %71 = tpu.reciprocal %70 {approx = true} : vector<8x1xf32> -> vector<8x1xf32>
    %72 = vector.broadcast %71 : vector<8x1xf32> to vector<8x8xf32>
    %73 = arith.mulf %68, %72 : vector<8x8xf32>
    %74 = arith.truncf %73 : vector<8x8xf32> to vector<8x8xbf16>
    %cst_34 = arith.constant dense<0.000000e+00> : vector<8x16xf32>
    %75 = tpu.matmul %74, %54, %cst_34 {dimension_numbers = #tpu.dot_dimension_numbers<[1], [0], [0], [1], [0, 0, 1, 1], [], []>} : vector<8x8xbf16>, vector<8x16xbf16>, vector<8x16xf32> -> vector<8x16xf32>
    %76 = arith.truncf %75 : vector<8x16xf32> to vector<8x16xbf16>
    %77 = vector.extract_strided_slice %47 {offsets = [0, 0], sizes = [16, 32], strides = [1, 1]} : vector<32x32xbf16> to vector<16x32xbf16>
    %cst_35 = arith.constant dense<0.000000e+00> : vector<8x32xf32>
    %78 = tpu.matmul %76, %77, %cst_35 {dimension_numbers = #tpu.dot_dimension_numbers<[1], [0], [0], [1], [0, 0, 1, 1], [], []>} : vector<8x16xbf16>, vector<16x32xbf16>, vector<8x32xf32> -> vector<8x32xf32>
    %79 = arith.addf %48, %78 : vector<8x32xf32>
    %80 = vector.extract_strided_slice %45 {offsets = [0, 16], sizes = [8, 16], strides = [1, 1]} : vector<8x96xf32> to vector<8x16xf32>
    %81 = arith.truncf %80 : vector<8x16xf32> to vector<8x16xbf16>
    %82 = vector.extract_strided_slice %45 {offsets = [0, 48], sizes = [8, 16], strides = [1, 1]} : vector<8x96xf32> to vector<8x16xf32>
    %83 = arith.truncf %82 : vector<8x16xf32> to vector<8x16xbf16>
    %84 = vector.extract_strided_slice %45 {offsets = [0, 80], sizes = [8, 16], strides = [1, 1]} : vector<8x96xf32> to vector<8x16xf32>
    %85 = arith.truncf %84 : vector<8x16xf32> to vector<8x16xbf16>
    %cst_36 = arith.constant dense<0.000000e+00> : vector<8x8xf32>
    %86 = tpu.matmul %81, %83, %cst_36 {dimension_numbers = #tpu.dot_dimension_numbers<[1], [1], [0], [0], [0, 0, 1, 0], [], []>} : vector<8x16xbf16>, vector<8x16xbf16>, vector<8x8xf32> -> vector<8x8xf32>
    %cst_37 = arith.constant 2.500000e-01 : f32
    %87 = vector.broadcast %cst_37 : f32 to vector<8x8xf32>
    %88 = arith.mulf %86, %87 : vector<8x8xf32>
    %cst_38 = arith.constant 5.000000e-01 : f32
    %89 = vector.broadcast %cst_38 : f32 to vector<1x8xf32>
    %90 = arith.cmpf ogt, %5, %89 : vector<1x8xf32>
    %cst_39 = arith.constant -1.000000e+09 : f32
    %91 = vector.shape_cast %90 : vector<1x8xi1> to vector<1x8xi1>
    %92 = vector.broadcast %91 : vector<1x8xi1> to vector<8x8xi1>
    %93 = vector.broadcast %cst_39 : f32 to vector<8x8xf32>
    %94 = arith.select %92, %88, %93 : vector<8x8xi1>, vector<8x8xf32>
    %cst_40 = arith.constant dense<0xFF800000> : vector<8xf32>
    %95 = vector.multi_reduction <maximumf>, %94, %cst_40 [1] : vector<8x8xf32> to vector<8xf32>
    %96 = vector.shape_cast %95 : vector<8xf32> to vector<8x1xf32>
    %97 = vector.broadcast %96 : vector<8x1xf32> to vector<8x8xf32>
    %98 = arith.subf %94, %97 : vector<8x8xf32>
    %99 = math.exp %98 : vector<8x8xf32>
    %cst_41 = arith.constant dense<0.000000e+00> : vector<8xf32>
    %100 = vector.multi_reduction <add>, %99, %cst_41 [1] : vector<8x8xf32> to vector<8xf32>
    %101 = vector.shape_cast %100 : vector<8xf32> to vector<8x1xf32>
    %102 = tpu.reciprocal %101 {approx = true} : vector<8x1xf32> -> vector<8x1xf32>
    %103 = vector.broadcast %102 : vector<8x1xf32> to vector<8x8xf32>
    %104 = arith.mulf %99, %103 : vector<8x8xf32>
    %105 = arith.truncf %104 : vector<8x8xf32> to vector<8x8xbf16>
    %cst_42 = arith.constant dense<0.000000e+00> : vector<8x16xf32>
    %106 = tpu.matmul %105, %85, %cst_42 {dimension_numbers = #tpu.dot_dimension_numbers<[1], [0], [0], [1], [0, 0, 1, 1], [], []>} : vector<8x8xbf16>, vector<8x16xbf16>, vector<8x16xf32> -> vector<8x16xf32>
    %107 = arith.truncf %106 : vector<8x16xf32> to vector<8x16xbf16>
    %108 = vector.extract_strided_slice %47 {offsets = [16, 0], sizes = [16, 32], strides = [1, 1]} : vector<32x32xbf16> to vector<16x32xbf16>
    %cst_43 = arith.constant dense<0.000000e+00> : vector<8x32xf32>
    %109 = tpu.matmul %107, %108, %cst_43 {dimension_numbers = #tpu.dot_dimension_numbers<[1], [0], [0], [1], [0, 0, 1, 1], [], []>} : vector<8x16xbf16>, vector<16x32xbf16>, vector<8x32xf32> -> vector<8x32xf32>
    %110 = arith.addf %79, %109 : vector<8x32xf32>
    %111 = arith.addf %3, %110 : vector<8x32xf32>
    %c0_44 = arith.constant 0 : index
    %c0_45 = arith.constant 0 : index
    %c0_46 = arith.constant 0 : index
    %112 = vector.load %arg9[%c0_44, %c0_45, %c0_46] : memref<1x1x32xf32, #tpu.memory_space<vmem>>, vector<1x1x32xf32>
    %113 = vector.shape_cast %112 : vector<1x1x32xf32> to vector<1x32xf32>
    %114 = vector.broadcast %113 : vector<1x32xf32> to vector<8x32xf32>
    %115 = arith.addf %111, %114 : vector<8x32xf32>
    %cst_47 = arith.constant dense<0.000000e+00> : vector<8xf32>
    %116 = vector.multi_reduction <add>, %115, %cst_47 [1] : vector<8x32xf32> to vector<8xf32>
    %117 = vector.shape_cast %116 : vector<8xf32> to vector<8x1xf32>
    %cst_48 = arith.constant 3.200000e+01 : f32
    %118 = vector.broadcast %cst_48 : f32 to vector<8x1xf32>
    %119 = arith.divf %117, %118 : vector<8x1xf32>
    %120 = vector.broadcast %119 : vector<8x1xf32> to vector<8x32xf32>
    %121 = arith.subf %115, %120 : vector<8x32xf32>
    %122 = arith.mulf %121, %121 : vector<8x32xf32>
    %cst_49 = arith.constant dense<0.000000e+00> : vector<8xf32>
    %123 = vector.multi_reduction <add>, %122, %cst_49 [1] : vector<8x32xf32> to vector<8xf32>
    %124 = vector.shape_cast %123 : vector<8xf32> to vector<8x1xf32>
    %cst_50 = arith.constant 3.200000e+01 : f32
    %125 = vector.broadcast %cst_50 : f32 to vector<8x1xf32>
    %126 = arith.divf %124, %125 : vector<8x1xf32>
    %127 = vector.broadcast %119 : vector<8x1xf32> to vector<8x32xf32>
    %128 = arith.subf %115, %127 : vector<8x32xf32>
    %cst_51 = arith.constant 9.99999974E-6 : f32
    %129 = vector.broadcast %cst_51 : f32 to vector<8x1xf32>
    %130 = arith.addf %126, %129 : vector<8x1xf32>
    %131 = math.rsqrt %130 : vector<8x1xf32>
    %132 = vector.broadcast %131 : vector<8x1xf32> to vector<8x32xf32>
    %133 = arith.mulf %128, %132 : vector<8x32xf32>
    %cst_52 = arith.constant 1.000000e+00 : f32
    %134 = vector.broadcast %cst_52 : f32 to vector<1x32xf32>
    %135 = arith.addf %134, %12 : vector<1x32xf32>
    %136 = vector.broadcast %135 : vector<1x32xf32> to vector<8x32xf32>
    %137 = arith.mulf %133, %136 : vector<8x32xf32>
    %138 = vector.broadcast %13 : vector<1x32xf32> to vector<8x32xf32>
    %139 = arith.addf %137, %138 : vector<8x32xf32>
    %c0_53 = arith.constant 0 : index
    %c0_54 = arith.constant 0 : index
    %c0_55 = arith.constant 0 : index
    %140 = vector.load %arg10[%c0_53, %c0_54, %c0_55] : memref<1x32x192xbf16, #tpu.memory_space<vmem>>, vector<1x32x192xbf16>
    %141 = vector.shape_cast %140 : vector<1x32x192xbf16> to vector<32x192xbf16>
    %c0_56 = arith.constant 0 : index
    %c0_57 = arith.constant 0 : index
    %c0_58 = arith.constant 0 : index
    %142 = vector.load %arg11[%c0_56, %c0_57, %c0_58] : memref<1x1x64xf32, #tpu.memory_space<vmem>>, vector<1x1x64xf32>
    %143 = vector.shape_cast %142 : vector<1x1x64xf32> to vector<1x64xf32>
    %144 = arith.truncf %139 : vector<8x32xf32> to vector<8x32xbf16>
    %cst_59 = arith.constant dense<0.000000e+00> : vector<8x192xf32>
    %145 = tpu.matmul %144, %141, %cst_59 {dimension_numbers = #tpu.dot_dimension_numbers<[1], [0], [0], [1], [0, 0, 1, 1], [], []>} : vector<8x32xbf16>, vector<32x192xbf16>, vector<8x192xf32> -> vector<8x192xf32>
    %146 = vector.extract_strided_slice %145 {offsets = [0, 0], sizes = [8, 64], strides = [1, 1]} : vector<8x192xf32> to vector<8x64xf32>
    %cst_60 = arith.constant 0.000000e+00 : f32
    %147 = vector.broadcast %cst_60 : f32 to vector<1x64xf32>
    %148 = vector.extract_strided_slice %146 {offsets = [0, 0], sizes = [7, 64], strides = [1, 1]} : vector<8x64xf32> to vector<7x64xf32>
    %149 = tpu.concatenate %147, %148 in 0 : vector<1x64xf32>, vector<7x64xf32> -> vector<8x64xf32>
    %150 = vector.extract_strided_slice %145 {offsets = [0, 64], sizes = [8, 64], strides = [1, 1]} : vector<8x192xf32> to vector<8x64xf32>
    %151 = arith.addf %149, %150 : vector<8x64xf32>
    %152 = vector.extract_strided_slice %145 {offsets = [0, 128], sizes = [8, 64], strides = [1, 1]} : vector<8x192xf32> to vector<8x64xf32>
    %cst_61 = arith.constant 0.000000e+00 : f32
    %153 = vector.broadcast %cst_61 : f32 to vector<1x64xf32>
    %154 = vector.extract_strided_slice %152 {offsets = [1, 0], sizes = [7, 64], strides = [1, 1]} : vector<8x64xf32> to vector<7x64xf32>
    %155 = tpu.concatenate %154, %153 in 0 : vector<7x64xf32>, vector<1x64xf32> -> vector<8x64xf32>
    %156 = arith.addf %151, %155 : vector<8x64xf32>
    %157 = vector.broadcast %143 : vector<1x64xf32> to vector<8x64xf32>
    %158 = arith.addf %156, %157 : vector<8x64xf32>
    %cst_62 = arith.constant 0.000000e+00 : f32
    %159 = vector.broadcast %cst_62 : f32 to vector<8x64xf32>
    %160 = arith.maximumf %158, %159 : vector<8x64xf32>
    %c0_63 = arith.constant 0 : index
    %c0_64 = arith.constant 0 : index
    %c0_65 = arith.constant 0 : index
    %161 = vector.load %arg12[%c0_63, %c0_64, %c0_65] : memref<1x64x96xbf16, #tpu.memory_space<vmem>>, vector<1x64x96xbf16>
    %162 = vector.shape_cast %161 : vector<1x64x96xbf16> to vector<64x96xbf16>
    %c0_66 = arith.constant 0 : index
    %c0_67 = arith.constant 0 : index
    %c0_68 = arith.constant 0 : index
    %163 = vector.load %arg13[%c0_66, %c0_67, %c0_68] : memref<1x1x32xf32, #tpu.memory_space<vmem>>, vector<1x1x32xf32>
    %164 = vector.shape_cast %163 : vector<1x1x32xf32> to vector<1x32xf32>
    %165 = arith.truncf %160 : vector<8x64xf32> to vector<8x64xbf16>
    %cst_69 = arith.constant dense<0.000000e+00> : vector<8x96xf32>
    %166 = tpu.matmul %165, %162, %cst_69 {dimension_numbers = #tpu.dot_dimension_numbers<[1], [0], [0], [1], [0, 0, 1, 1], [], []>} : vector<8x64xbf16>, vector<64x96xbf16>, vector<8x96xf32> -> vector<8x96xf32>
    %167 = vector.extract_strided_slice %166 {offsets = [0, 0], sizes = [8, 32], strides = [1, 1]} : vector<8x96xf32> to vector<8x32xf32>
    %cst_70 = arith.constant 0.000000e+00 : f32
    %168 = vector.broadcast %cst_70 : f32 to vector<1x32xf32>
    %169 = vector.extract_strided_slice %167 {offsets = [0, 0], sizes = [7, 32], strides = [1, 1]} : vector<8x32xf32> to vector<7x32xf32>
    %170 = tpu.concatenate %168, %169 in 0 : vector<1x32xf32>, vector<7x32xf32> -> vector<8x32xf32>
    %171 = vector.extract_strided_slice %166 {offsets = [0, 32], sizes = [8, 32], strides = [1, 1]} : vector<8x96xf32> to vector<8x32xf32>
    %172 = arith.addf %170, %171 : vector<8x32xf32>
    %173 = vector.extract_strided_slice %166 {offsets = [0, 64], sizes = [8, 32], strides = [1, 1]} : vector<8x96xf32> to vector<8x32xf32>
    %cst_71 = arith.constant 0.000000e+00 : f32
    %174 = vector.broadcast %cst_71 : f32 to vector<1x32xf32>
    %175 = vector.extract_strided_slice %173 {offsets = [1, 0], sizes = [7, 32], strides = [1, 1]} : vector<8x32xf32> to vector<7x32xf32>
    %176 = tpu.concatenate %175, %174 in 0 : vector<7x32xf32>, vector<1x32xf32> -> vector<8x32xf32>
    %177 = arith.addf %172, %176 : vector<8x32xf32>
    %178 = vector.broadcast %164 : vector<1x32xf32> to vector<8x32xf32>
    %179 = arith.addf %177, %178 : vector<8x32xf32>
    %180 = arith.addf %115, %179 : vector<8x32xf32>
    %181 = vector.broadcast %7 : vector<8x1xf32> to vector<8x32xf32>
    %182 = arith.mulf %180, %181 : vector<8x32xf32>
    %c0_72 = arith.constant 0 : index
    %c0_73 = arith.constant 0 : index
    %183 = vector.load %arg15[%c0_72, %c0_73] : memref<8x32xf32, #tpu.memory_space<vmem>>, vector<8x32xf32>
    tpu.vector_store %arg15[%c0_72, %c0_73], %182 {strides = array<i32>} : memref<8x32xf32, #tpu.memory_space<vmem>>, vector<8x32xf32>,
    %c1_i32 = arith.constant 1 : i32
    %184 = arith.cmpi eq, %arg1, %c1_i32 : i32
    %185 = arith.extui %184 : i1 to i32
    %c0_i32_74 = arith.constant 0 : i32
    %186 = arith.cmpi ne, %185, %c0_i32_74 : i32
    scf.if %186 {
      %187 = arith.truncf %182 : vector<8x32xf32> to vector<8x32xbf16>
      %c0_75 = arith.constant 0 : index
      %c0_76 = arith.constant 0 : index
      %c0_77 = arith.constant 0 : index
      %188 = vector.load %arg14[%c0_75, %c0_76, %c0_77] : memref<1x8x32xbf16, #tpu.memory_space<vmem>>, vector<1x8x32xbf16>
      %189 = vector.shape_cast %188 : vector<1x8x32xbf16> to vector<8x32xbf16>
      %190 = vector.shape_cast %187 : vector<8x32xbf16> to vector<1x8x32xbf16>
      tpu.vector_store %arg14[%c0_75, %c0_76, %c0_77], %190 {strides = array<i32>} : memref<1x8x32xbf16, #tpu.memory_space<vmem>>, vector<1x8x32xbf16>,
    } else {
    }
    return
  }
  func.func @transform_0(%arg0: i32, %arg1: i32) -> (i32, i32, i32) {
    %c0_i32 = arith.constant 0 : i32
    %c0_i32_0 = arith.constant 0 : i32
    %c0_i32_1 = arith.constant 0 : i32
    return %arg0, %c0_i32, %c0_i32_0 : i32, i32, i32
  }
  func.func @transform_1(%arg0: i32, %arg1: i32) -> (i32, i32, i32) {
    %c0_i32 = arith.constant 0 : i32
    %c0_i32_0 = arith.constant 0 : i32
    %c0_i32_1 = arith.constant 0 : i32
    return %arg0, %c0_i32, %c0_i32_0 : i32, i32, i32
  }
  func.func @transform_2(%arg0: i32, %arg1: i32) -> (i32, i32, i32) {
    %c0_i32 = arith.constant 0 : i32
    %c0_i32_0 = arith.constant 0 : i32
    %c0_i32_1 = arith.constant 0 : i32
    return %arg0, %c0_i32, %c0_i32_0 : i32, i32, i32
  }
  func.func @transform_3(%arg0: i32, %arg1: i32) -> (i32, i32, i32, i32) {
    %c0_i32 = arith.constant 0 : i32
    %c0_i32_0 = arith.constant 0 : i32
    %c0_i32_1 = arith.constant 0 : i32
    return %arg0, %arg1, %c0_i32, %c0_i32_0 : i32, i32, i32, i32
  }
  func.func @transform_4(%arg0: i32, %arg1: i32) -> (i32, i32, i32) {
    %c0_i32 = arith.constant 0 : i32
    %c0_i32_0 = arith.constant 0 : i32
    %c0_i32_1 = arith.constant 0 : i32
    return %arg1, %c0_i32, %c0_i32_0 : i32, i32, i32
  }
  func.func @transform_5(%arg0: i32, %arg1: i32) -> (i32, i32, i32) {
    %c0_i32 = arith.constant 0 : i32
    %c0_i32_0 = arith.constant 0 : i32
    %c0_i32_1 = arith.constant 0 : i32
    return %arg1, %c0_i32, %c0_i32_0 : i32, i32, i32
  }
  func.func @transform_6(%arg0: i32, %arg1: i32) -> (i32, i32, i32) {
    %c0_i32 = arith.constant 0 : i32
    %c0_i32_0 = arith.constant 0 : i32
    %c0_i32_1 = arith.constant 0 : i32
    return %arg1, %c0_i32, %c0_i32_0 : i32, i32, i32
  }
  func.func @transform_7(%arg0: i32, %arg1: i32) -> (i32, i32, i32) {
    %c0_i32 = arith.constant 0 : i32
    %c0_i32_0 = arith.constant 0 : i32
    %c0_i32_1 = arith.constant 0 : i32
    return %arg1, %c0_i32, %c0_i32_0 : i32, i32, i32
  }
  func.func @transform_8(%arg0: i32, %arg1: i32) -> (i32, i32, i32) {
    %c0_i32 = arith.constant 0 : i32
    %c0_i32_0 = arith.constant 0 : i32
    %c0_i32_1 = arith.constant 0 : i32
    return %arg1, %c0_i32, %c0_i32_0 : i32, i32, i32
  }
  func.func @transform_9(%arg0: i32, %arg1: i32) -> (i32, i32, i32) {
    %c0_i32 = arith.constant 0 : i32
    %c0_i32_0 = arith.constant 0 : i32
    %c0_i32_1 = arith.constant 0 : i32
    return %arg1, %c0_i32, %c0_i32_0 : i32, i32, i32
  }
  func.func @transform_10(%arg0: i32, %arg1: i32) -> (i32, i32, i32) {
    %c0_i32 = arith.constant 0 : i32
    %c0_i32_0 = arith.constant 0 : i32
    %c0_i32_1 = arith.constant 0 : i32
    return %arg1, %c0_i32, %c0_i32_0 : i32, i32, i32
  }
  func.func @transform_11(%arg0: i32, %arg1: i32) -> (i32, i32, i32) {
    %c0_i32 = arith.constant 0 : i32
    %c0_i32_0 = arith.constant 0 : i32
    %c0_i32_1 = arith.constant 0 : i32
    return %arg1, %c0_i32, %c0_i32_0 : i32, i32, i32
  }
  func.func @transform_12(%arg0: i32, %arg1: i32) -> (i32, i32, i32) {
    %c0_i32 = arith.constant 0 : i32
    %c0_i32_0 = arith.constant 0 : i32
    %c0_i32_1 = arith.constant 0 : i32
    return %arg0, %c0_i32, %c0_i32_0 : i32, i32, i32
  }
}

module attributes {stable_mosaic.version = 11 : i64} {
  func.func @_dual_pred_kernel(%arg0: i32, %arg1: memref<1x8x32xbf16, #tpu.memory_space<vmem>>, %arg2: memref<2x64x192xbf16, #tpu.memory_space<vmem>>, %arg3: memref<2x1x64xf32, #tpu.memory_space<vmem>>, %arg4: memref<2x1x64xf32, #tpu.memory_space<vmem>>, %arg5: memref<2x1x64xf32, #tpu.memory_space<vmem>>, %arg6: memref<64x2xbf16, #tpu.memory_space<vmem>>, %arg7: memref<1x2xf32, #tpu.memory_space<vmem>>, %arg8: memref<1x8x2xf32, #tpu.memory_space<vmem>>) attributes {dimension_semantics = [#tpu.dimension_semantics<parallel>], iteration_bounds = array<i64: 2>, scalar_prefetch = 0 : i64, scratch_operands = 0 : i64, tpu.core_type = #tpu.core_type<tc>, window_params = [{transform_indices = @transform_0, window_bounds = array<i64: 1, 8, 32>}, {pipeline_mode = #tpu.pipeline_mode<synchronous>, transform_indices = @transform_1, window_bounds = array<i64: 2, 64, 192>}, {pipeline_mode = #tpu.pipeline_mode<synchronous>, transform_indices = @transform_2, window_bounds = array<i64: 2, 1, 64>}, {pipeline_mode = #tpu.pipeline_mode<synchronous>, transform_indices = @transform_3, window_bounds = array<i64: 2, 1, 64>}, {pipeline_mode = #tpu.pipeline_mode<synchronous>, transform_indices = @transform_4, window_bounds = array<i64: 2, 1, 64>}, {pipeline_mode = #tpu.pipeline_mode<synchronous>, transform_indices = @transform_5, window_bounds = array<i64: 64, 2>}, {pipeline_mode = #tpu.pipeline_mode<synchronous>, transform_indices = @transform_6, window_bounds = array<i64: 1, 2>}, {transform_indices = @transform_7, window_bounds = array<i64: 1, 8, 2>}]} {
    %c0 = arith.constant 0 : index
    %c0_0 = arith.constant 0 : index
    %c0_1 = arith.constant 0 : index
    %0 = vector.load %arg1[%c0, %c0_0, %c0_1] : memref<1x8x32xbf16, #tpu.memory_space<vmem>>, vector<1x8x32xbf16>
    %1 = vector.shape_cast %0 : vector<1x8x32xbf16> to vector<8x32xbf16>
    %2 = arith.extf %1 : vector<8x32xbf16> to vector<8x32xf32>
    %3 = tpu.concatenate %2, %2 in 1 : vector<8x32xf32>, vector<8x32xf32> -> vector<8x64xf32>
    %c0_2 = arith.constant 0 : index
    %c0_3 = arith.constant 0 : index
    %c0_4 = arith.constant 0 : index
    %4 = vector.load %arg2[%c0_2, %c0_3, %c0_4] : memref<2x64x192xbf16, #tpu.memory_space<vmem>>, vector<1x64x192xbf16>
    %5 = vector.shape_cast %4 : vector<1x64x192xbf16> to vector<64x192xbf16>
    %c0_5 = arith.constant 0 : index
    %c0_6 = arith.constant 0 : index
    %c0_7 = arith.constant 0 : index
    %6 = vector.load %arg3[%c0_5, %c0_6, %c0_7] : memref<2x1x64xf32, #tpu.memory_space<vmem>>, vector<1x1x64xf32>
    %7 = vector.shape_cast %6 : vector<1x1x64xf32> to vector<1x64xf32>
    %8 = arith.truncf %3 : vector<8x64xf32> to vector<8x64xbf16>
    %cst = arith.constant dense<0.000000e+00> : vector<8x192xf32>
    %9 = tpu.matmul %8, %5, %cst {dimension_numbers = #tpu.dot_dimension_numbers<[1], [0], [0], [1], [0, 0, 1, 1], [], []>} : vector<8x64xbf16>, vector<64x192xbf16>, vector<8x192xf32> -> vector<8x192xf32>
    %10 = vector.extract_strided_slice %9 {offsets = [0, 0], sizes = [8, 64], strides = [1, 1]} : vector<8x192xf32> to vector<8x64xf32>
    %cst_8 = arith.constant 0.000000e+00 : f32
    %11 = vector.broadcast %cst_8 : f32 to vector<1x64xf32>
    %12 = vector.extract_strided_slice %10 {offsets = [0, 0], sizes = [7, 64], strides = [1, 1]} : vector<8x64xf32> to vector<7x64xf32>
    %13 = tpu.concatenate %11, %12 in 0 : vector<1x64xf32>, vector<7x64xf32> -> vector<8x64xf32>
    %14 = vector.extract_strided_slice %9 {offsets = [0, 64], sizes = [8, 64], strides = [1, 1]} : vector<8x192xf32> to vector<8x64xf32>
    %15 = arith.addf %13, %14 : vector<8x64xf32>
    %16 = vector.extract_strided_slice %9 {offsets = [0, 128], sizes = [8, 64], strides = [1, 1]} : vector<8x192xf32> to vector<8x64xf32>
    %cst_9 = arith.constant 0.000000e+00 : f32
    %17 = vector.broadcast %cst_9 : f32 to vector<1x64xf32>
    %18 = vector.extract_strided_slice %16 {offsets = [1, 0], sizes = [7, 64], strides = [1, 1]} : vector<8x64xf32> to vector<7x64xf32>
    %19 = tpu.concatenate %18, %17 in 0 : vector<7x64xf32>, vector<1x64xf32> -> vector<8x64xf32>
    %20 = arith.addf %15, %19 : vector<8x64xf32>
    %21 = vector.broadcast %7 : vector<1x64xf32> to vector<8x64xf32>
    %22 = arith.addf %20, %21 : vector<8x64xf32>
    %cst_10 = arith.constant 0.000000e+00 : f32
    %23 = vector.broadcast %cst_10 : f32 to vector<8x64xf32>
    %24 = arith.maximumf %22, %23 : vector<8x64xf32>
    %c0_11 = arith.constant 0 : index
    %c0_12 = arith.constant 0 : index
    %c0_13 = arith.constant 0 : index
    %25 = vector.load %arg4[%c0_11, %c0_12, %c0_13] : memref<2x1x64xf32, #tpu.memory_space<vmem>>, vector<1x1x64xf32>
    %26 = vector.shape_cast %25 : vector<1x1x64xf32> to vector<1x64xf32>
    %c0_14 = arith.constant 0 : index
    %c0_15 = arith.constant 0 : index
    %c0_16 = arith.constant 0 : index
    %27 = vector.load %arg5[%c0_14, %c0_15, %c0_16] : memref<2x1x64xf32, #tpu.memory_space<vmem>>, vector<1x1x64xf32>
    %28 = vector.shape_cast %27 : vector<1x1x64xf32> to vector<1x64xf32>
    %29 = vector.extract_strided_slice %24 {offsets = [0, 0], sizes = [8, 32], strides = [1, 1]} : vector<8x64xf32> to vector<8x32xf32>
    %30 = vector.extract_strided_slice %26 {offsets = [0, 0], sizes = [1, 32], strides = [1, 1]} : vector<1x64xf32> to vector<1x32xf32>
    %31 = vector.extract_strided_slice %28 {offsets = [0, 0], sizes = [1, 32], strides = [1, 1]} : vector<1x64xf32> to vector<1x32xf32>
    %cst_17 = arith.constant dense<0.000000e+00> : vector<8xf32>
    %32 = vector.multi_reduction <add>, %29, %cst_17 [1] : vector<8x32xf32> to vector<8xf32>
    %33 = vector.shape_cast %32 : vector<8xf32> to vector<8x1xf32>
    %cst_18 = arith.constant 3.200000e+01 : f32
    %34 = vector.broadcast %cst_18 : f32 to vector<8x1xf32>
    %35 = arith.divf %33, %34 : vector<8x1xf32>
    %36 = vector.broadcast %35 : vector<8x1xf32> to vector<8x32xf32>
    %37 = arith.subf %29, %36 : vector<8x32xf32>
    %38 = arith.mulf %37, %37 : vector<8x32xf32>
    %cst_19 = arith.constant dense<0.000000e+00> : vector<8xf32>
    %39 = vector.multi_reduction <add>, %38, %cst_19 [1] : vector<8x32xf32> to vector<8xf32>
    %40 = vector.shape_cast %39 : vector<8xf32> to vector<8x1xf32>
    %cst_20 = arith.constant 3.200000e+01 : f32
    %41 = vector.broadcast %cst_20 : f32 to vector<8x1xf32>
    %42 = arith.divf %40, %41 : vector<8x1xf32>
    %43 = vector.broadcast %35 : vector<8x1xf32> to vector<8x32xf32>
    %44 = arith.subf %29, %43 : vector<8x32xf32>
    %cst_21 = arith.constant 9.99999974E-6 : f32
    %45 = vector.broadcast %cst_21 : f32 to vector<8x1xf32>
    %46 = arith.addf %42, %45 : vector<8x1xf32>
    %47 = math.rsqrt %46 : vector<8x1xf32>
    %48 = vector.broadcast %47 : vector<8x1xf32> to vector<8x32xf32>
    %49 = arith.mulf %44, %48 : vector<8x32xf32>
    %50 = vector.broadcast %30 : vector<1x32xf32> to vector<8x32xf32>
    %51 = arith.mulf %49, %50 : vector<8x32xf32>
    %52 = vector.broadcast %31 : vector<1x32xf32> to vector<8x32xf32>
    %53 = arith.addf %51, %52 : vector<8x32xf32>
    %54 = vector.extract_strided_slice %24 {offsets = [0, 32], sizes = [8, 32], strides = [1, 1]} : vector<8x64xf32> to vector<8x32xf32>
    %55 = vector.extract_strided_slice %26 {offsets = [0, 32], sizes = [1, 32], strides = [1, 1]} : vector<1x64xf32> to vector<1x32xf32>
    %56 = vector.extract_strided_slice %28 {offsets = [0, 32], sizes = [1, 32], strides = [1, 1]} : vector<1x64xf32> to vector<1x32xf32>
    %cst_22 = arith.constant dense<0.000000e+00> : vector<8xf32>
    %57 = vector.multi_reduction <add>, %54, %cst_22 [1] : vector<8x32xf32> to vector<8xf32>
    %58 = vector.shape_cast %57 : vector<8xf32> to vector<8x1xf32>
    %cst_23 = arith.constant 3.200000e+01 : f32
    %59 = vector.broadcast %cst_23 : f32 to vector<8x1xf32>
    %60 = arith.divf %58, %59 : vector<8x1xf32>
    %61 = vector.broadcast %60 : vector<8x1xf32> to vector<8x32xf32>
    %62 = arith.subf %54, %61 : vector<8x32xf32>
    %63 = arith.mulf %62, %62 : vector<8x32xf32>
    %cst_24 = arith.constant dense<0.000000e+00> : vector<8xf32>
    %64 = vector.multi_reduction <add>, %63, %cst_24 [1] : vector<8x32xf32> to vector<8xf32>
    %65 = vector.shape_cast %64 : vector<8xf32> to vector<8x1xf32>
    %cst_25 = arith.constant 3.200000e+01 : f32
    %66 = vector.broadcast %cst_25 : f32 to vector<8x1xf32>
    %67 = arith.divf %65, %66 : vector<8x1xf32>
    %68 = vector.broadcast %60 : vector<8x1xf32> to vector<8x32xf32>
    %69 = arith.subf %54, %68 : vector<8x32xf32>
    %cst_26 = arith.constant 9.99999974E-6 : f32
    %70 = vector.broadcast %cst_26 : f32 to vector<8x1xf32>
    %71 = arith.addf %67, %70 : vector<8x1xf32>
    %72 = math.rsqrt %71 : vector<8x1xf32>
    %73 = vector.broadcast %72 : vector<8x1xf32> to vector<8x32xf32>
    %74 = arith.mulf %69, %73 : vector<8x32xf32>
    %75 = vector.broadcast %55 : vector<1x32xf32> to vector<8x32xf32>
    %76 = arith.mulf %74, %75 : vector<8x32xf32>
    %77 = vector.broadcast %56 : vector<1x32xf32> to vector<8x32xf32>
    %78 = arith.addf %76, %77 : vector<8x32xf32>
    %79 = tpu.concatenate %53, %78 in 1 : vector<8x32xf32>, vector<8x32xf32> -> vector<8x64xf32>
    %c1 = arith.constant 1 : index
    %c0_27 = arith.constant 0 : index
    %c0_28 = arith.constant 0 : index
    %80 = vector.load %arg2[%c1, %c0_27, %c0_28] : memref<2x64x192xbf16, #tpu.memory_space<vmem>>, vector<1x64x192xbf16>
    %81 = vector.shape_cast %80 : vector<1x64x192xbf16> to vector<64x192xbf16>
    %c1_29 = arith.constant 1 : index
    %c0_30 = arith.constant 0 : index
    %c0_31 = arith.constant 0 : index
    %82 = vector.load %arg3[%c1_29, %c0_30, %c0_31] : memref<2x1x64xf32, #tpu.memory_space<vmem>>, vector<1x1x64xf32>
    %83 = vector.shape_cast %82 : vector<1x1x64xf32> to vector<1x64xf32>
    %84 = arith.truncf %79 : vector<8x64xf32> to vector<8x64xbf16>
    %cst_32 = arith.constant dense<0.000000e+00> : vector<8x192xf32>
    %85 = tpu.matmul %84, %81, %cst_32 {dimension_numbers = #tpu.dot_dimension_numbers<[1], [0], [0], [1], [0, 0, 1, 1], [], []>} : vector<8x64xbf16>, vector<64x192xbf16>, vector<8x192xf32> -> vector<8x192xf32>
    %86 = vector.extract_strided_slice %85 {offsets = [0, 0], sizes = [8, 64], strides = [1, 1]} : vector<8x192xf32> to vector<8x64xf32>
    %cst_33 = arith.constant 0.000000e+00 : f32
    %87 = vector.broadcast %cst_33 : f32 to vector<1x64xf32>
    %88 = vector.extract_strided_slice %86 {offsets = [0, 0], sizes = [7, 64], strides = [1, 1]} : vector<8x64xf32> to vector<7x64xf32>
    %89 = tpu.concatenate %87, %88 in 0 : vector<1x64xf32>, vector<7x64xf32> -> vector<8x64xf32>
    %90 = vector.extract_strided_slice %85 {offsets = [0, 64], sizes = [8, 64], strides = [1, 1]} : vector<8x192xf32> to vector<8x64xf32>
    %91 = arith.addf %89, %90 : vector<8x64xf32>
    %92 = vector.extract_strided_slice %85 {offsets = [0, 128], sizes = [8, 64], strides = [1, 1]} : vector<8x192xf32> to vector<8x64xf32>
    %cst_34 = arith.constant 0.000000e+00 : f32
    %93 = vector.broadcast %cst_34 : f32 to vector<1x64xf32>
    %94 = vector.extract_strided_slice %92 {offsets = [1, 0], sizes = [7, 64], strides = [1, 1]} : vector<8x64xf32> to vector<7x64xf32>
    %95 = tpu.concatenate %94, %93 in 0 : vector<7x64xf32>, vector<1x64xf32> -> vector<8x64xf32>
    %96 = arith.addf %91, %95 : vector<8x64xf32>
    %97 = vector.broadcast %83 : vector<1x64xf32> to vector<8x64xf32>
    %98 = arith.addf %96, %97 : vector<8x64xf32>
    %cst_35 = arith.constant 0.000000e+00 : f32
    %99 = vector.broadcast %cst_35 : f32 to vector<8x64xf32>
    %100 = arith.maximumf %98, %99 : vector<8x64xf32>
    %c1_36 = arith.constant 1 : index
    %c0_37 = arith.constant 0 : index
    %c0_38 = arith.constant 0 : index
    %101 = vector.load %arg4[%c1_36, %c0_37, %c0_38] : memref<2x1x64xf32, #tpu.memory_space<vmem>>, vector<1x1x64xf32>
    %102 = vector.shape_cast %101 : vector<1x1x64xf32> to vector<1x64xf32>
    %c1_39 = arith.constant 1 : index
    %c0_40 = arith.constant 0 : index
    %c0_41 = arith.constant 0 : index
    %103 = vector.load %arg5[%c1_39, %c0_40, %c0_41] : memref<2x1x64xf32, #tpu.memory_space<vmem>>, vector<1x1x64xf32>
    %104 = vector.shape_cast %103 : vector<1x1x64xf32> to vector<1x64xf32>
    %105 = vector.extract_strided_slice %100 {offsets = [0, 0], sizes = [8, 32], strides = [1, 1]} : vector<8x64xf32> to vector<8x32xf32>
    %106 = vector.extract_strided_slice %102 {offsets = [0, 0], sizes = [1, 32], strides = [1, 1]} : vector<1x64xf32> to vector<1x32xf32>
    %107 = vector.extract_strided_slice %104 {offsets = [0, 0], sizes = [1, 32], strides = [1, 1]} : vector<1x64xf32> to vector<1x32xf32>
    %cst_42 = arith.constant dense<0.000000e+00> : vector<8xf32>
    %108 = vector.multi_reduction <add>, %105, %cst_42 [1] : vector<8x32xf32> to vector<8xf32>
    %109 = vector.shape_cast %108 : vector<8xf32> to vector<8x1xf32>
    %cst_43 = arith.constant 3.200000e+01 : f32
    %110 = vector.broadcast %cst_43 : f32 to vector<8x1xf32>
    %111 = arith.divf %109, %110 : vector<8x1xf32>
    %112 = vector.broadcast %111 : vector<8x1xf32> to vector<8x32xf32>
    %113 = arith.subf %105, %112 : vector<8x32xf32>
    %114 = arith.mulf %113, %113 : vector<8x32xf32>
    %cst_44 = arith.constant dense<0.000000e+00> : vector<8xf32>
    %115 = vector.multi_reduction <add>, %114, %cst_44 [1] : vector<8x32xf32> to vector<8xf32>
    %116 = vector.shape_cast %115 : vector<8xf32> to vector<8x1xf32>
    %cst_45 = arith.constant 3.200000e+01 : f32
    %117 = vector.broadcast %cst_45 : f32 to vector<8x1xf32>
    %118 = arith.divf %116, %117 : vector<8x1xf32>
    %119 = vector.broadcast %111 : vector<8x1xf32> to vector<8x32xf32>
    %120 = arith.subf %105, %119 : vector<8x32xf32>
    %cst_46 = arith.constant 9.99999974E-6 : f32
    %121 = vector.broadcast %cst_46 : f32 to vector<8x1xf32>
    %122 = arith.addf %118, %121 : vector<8x1xf32>
    %123 = math.rsqrt %122 : vector<8x1xf32>
    %124 = vector.broadcast %123 : vector<8x1xf32> to vector<8x32xf32>
    %125 = arith.mulf %120, %124 : vector<8x32xf32>
    %126 = vector.broadcast %106 : vector<1x32xf32> to vector<8x32xf32>
    %127 = arith.mulf %125, %126 : vector<8x32xf32>
    %128 = vector.broadcast %107 : vector<1x32xf32> to vector<8x32xf32>
    %129 = arith.addf %127, %128 : vector<8x32xf32>
    %130 = vector.extract_strided_slice %100 {offsets = [0, 32], sizes = [8, 32], strides = [1, 1]} : vector<8x64xf32> to vector<8x32xf32>
    %131 = vector.extract_strided_slice %102 {offsets = [0, 32], sizes = [1, 32], strides = [1, 1]} : vector<1x64xf32> to vector<1x32xf32>
    %132 = vector.extract_strided_slice %104 {offsets = [0, 32], sizes = [1, 32], strides = [1, 1]} : vector<1x64xf32> to vector<1x32xf32>
    %cst_47 = arith.constant dense<0.000000e+00> : vector<8xf32>
    %133 = vector.multi_reduction <add>, %130, %cst_47 [1] : vector<8x32xf32> to vector<8xf32>
    %134 = vector.shape_cast %133 : vector<8xf32> to vector<8x1xf32>
    %cst_48 = arith.constant 3.200000e+01 : f32
    %135 = vector.broadcast %cst_48 : f32 to vector<8x1xf32>
    %136 = arith.divf %134, %135 : vector<8x1xf32>
    %137 = vector.broadcast %136 : vector<8x1xf32> to vector<8x32xf32>
    %138 = arith.subf %130, %137 : vector<8x32xf32>
    %139 = arith.mulf %138, %138 : vector<8x32xf32>
    %cst_49 = arith.constant dense<0.000000e+00> : vector<8xf32>
    %140 = vector.multi_reduction <add>, %139, %cst_49 [1] : vector<8x32xf32> to vector<8xf32>
    %141 = vector.shape_cast %140 : vector<8xf32> to vector<8x1xf32>
    %cst_50 = arith.constant 3.200000e+01 : f32
    %142 = vector.broadcast %cst_50 : f32 to vector<8x1xf32>
    %143 = arith.divf %141, %142 : vector<8x1xf32>
    %144 = vector.broadcast %136 : vector<8x1xf32> to vector<8x32xf32>
    %145 = arith.subf %130, %144 : vector<8x32xf32>
    %cst_51 = arith.constant 9.99999974E-6 : f32
    %146 = vector.broadcast %cst_51 : f32 to vector<8x1xf32>
    %147 = arith.addf %143, %146 : vector<8x1xf32>
    %148 = math.rsqrt %147 : vector<8x1xf32>
    %149 = vector.broadcast %148 : vector<8x1xf32> to vector<8x32xf32>
    %150 = arith.mulf %145, %149 : vector<8x32xf32>
    %151 = vector.broadcast %131 : vector<1x32xf32> to vector<8x32xf32>
    %152 = arith.mulf %150, %151 : vector<8x32xf32>
    %153 = vector.broadcast %132 : vector<1x32xf32> to vector<8x32xf32>
    %154 = arith.addf %152, %153 : vector<8x32xf32>
    %155 = tpu.concatenate %129, %154 in 1 : vector<8x32xf32>, vector<8x32xf32> -> vector<8x64xf32>
    %156 = arith.truncf %155 : vector<8x64xf32> to vector<8x64xbf16>
    %c0_52 = arith.constant 0 : index
    %c0_53 = arith.constant 0 : index
    %157 = vector.load %arg6[%c0_52, %c0_53] : memref<64x2xbf16, #tpu.memory_space<vmem>>, vector<64x2xbf16>
    %cst_54 = arith.constant dense<0.000000e+00> : vector<8x2xf32>
    %158 = tpu.matmul %156, %157, %cst_54 {dimension_numbers = #tpu.dot_dimension_numbers<[1], [0], [0], [1], [0, 0, 1, 1], [], []>} : vector<8x64xbf16>, vector<64x2xbf16>, vector<8x2xf32> -> vector<8x2xf32>
    %c0_55 = arith.constant 0 : index
    %c0_56 = arith.constant 0 : index
    %159 = vector.load %arg7[%c0_55, %c0_56] : memref<1x2xf32, #tpu.memory_space<vmem>>, vector<1x2xf32>
    %160 = vector.broadcast %159 : vector<1x2xf32> to vector<8x2xf32>
    %161 = arith.addf %158, %160 : vector<8x2xf32>
    %c0_57 = arith.constant 0 : index
    %c0_58 = arith.constant 0 : index
    %c0_59 = arith.constant 0 : index
    %162 = vector.load %arg8[%c0_57, %c0_58, %c0_59] : memref<1x8x2xf32, #tpu.memory_space<vmem>>, vector<1x8x2xf32>
    %163 = vector.shape_cast %162 : vector<1x8x2xf32> to vector<8x2xf32>
    %164 = vector.shape_cast %161 : vector<8x2xf32> to vector<1x8x2xf32>
    tpu.vector_store %arg8[%c0_57, %c0_58, %c0_59], %164 {strides = array<i32>} : memref<1x8x2xf32, #tpu.memory_space<vmem>>, vector<1x8x2xf32>,
    return
  }
  func.func @transform_0(%arg0: i32) -> (i32, i32, i32) {
    %c0_i32 = arith.constant 0 : i32
    %c0_i32_0 = arith.constant 0 : i32
    %c0_i32_1 = arith.constant 0 : i32
    return %arg0, %c0_i32, %c0_i32_0 : i32, i32, i32
  }
  func.func @transform_1(%arg0: i32) -> (i32, i32, i32) {
    %c0_i32 = arith.constant 0 : i32
    %c0_i32_0 = arith.constant 0 : i32
    %c0_i32_1 = arith.constant 0 : i32
    %c0_i32_2 = arith.constant 0 : i32
    return %c0_i32, %c0_i32_0, %c0_i32_1 : i32, i32, i32
  }
  func.func @transform_2(%arg0: i32) -> (i32, i32, i32) {
    %c0_i32 = arith.constant 0 : i32
    %c0_i32_0 = arith.constant 0 : i32
    %c0_i32_1 = arith.constant 0 : i32
    %c0_i32_2 = arith.constant 0 : i32
    return %c0_i32, %c0_i32_0, %c0_i32_1 : i32, i32, i32
  }
  func.func @transform_3(%arg0: i32) -> (i32, i32, i32) {
    %c0_i32 = arith.constant 0 : i32
    %c0_i32_0 = arith.constant 0 : i32
    %c0_i32_1 = arith.constant 0 : i32
    %c0_i32_2 = arith.constant 0 : i32
    return %c0_i32, %c0_i32_0, %c0_i32_1 : i32, i32, i32
  }
  func.func @transform_4(%arg0: i32) -> (i32, i32, i32) {
    %c0_i32 = arith.constant 0 : i32
    %c0_i32_0 = arith.constant 0 : i32
    %c0_i32_1 = arith.constant 0 : i32
    %c0_i32_2 = arith.constant 0 : i32
    return %c0_i32, %c0_i32_0, %c0_i32_1 : i32, i32, i32
  }
  func.func @transform_5(%arg0: i32) -> (i32, i32) {
    %c0_i32 = arith.constant 0 : i32
    %c0_i32_0 = arith.constant 0 : i32
    %c0_i32_1 = arith.constant 0 : i32
    return %c0_i32, %c0_i32_0 : i32, i32
  }
  func.func @transform_6(%arg0: i32) -> (i32, i32) {
    %c0_i32 = arith.constant 0 : i32
    %c0_i32_0 = arith.constant 0 : i32
    %c0_i32_1 = arith.constant 0 : i32
    return %c0_i32, %c0_i32_0 : i32, i32
  }
  func.func @transform_7(%arg0: i32) -> (i32, i32, i32) {
    %c0_i32 = arith.constant 0 : i32
    %c0_i32_0 = arith.constant 0 : i32
    %c0_i32_1 = arith.constant 0 : i32
    return %arg0, %c0_i32, %c0_i32_0 : i32, i32, i32
  }
}

module attributes {stable_mosaic.version = 11 : i64} {
  func.func @_stack_kernel(%arg0: i32, %arg1: i32, %arg2: memref<1x64x32xbf16, #tpu.memory_space<vmem>>, %arg3: memref<1x1x64xf32, #tpu.memory_space<vmem>>, %arg4: memref<1x64x1xf32, #tpu.memory_space<vmem>>, %arg5: memref<1x1x4x32xf32, #tpu.memory_space<vmem>>, %arg6: memref<1x32x96xbf16, #tpu.memory_space<vmem>>, %arg7: memref<1x1x96xf32, #tpu.memory_space<vmem>>, %arg8: memref<1x32x32xbf16, #tpu.memory_space<vmem>>, %arg9: memref<1x1x32xf32, #tpu.memory_space<vmem>>, %arg10: memref<1x32x192xbf16, #tpu.memory_space<vmem>>, %arg11: memref<1x1x64xf32, #tpu.memory_space<vmem>>, %arg12: memref<1x64x96xbf16, #tpu.memory_space<vmem>>, %arg13: memref<1x1x32xf32, #tpu.memory_space<vmem>>, %arg14: memref<1x64x32xbf16, #tpu.memory_space<vmem>>, %arg15: memref<64x32xf32, #tpu.memory_space<vmem>>) attributes {dimension_semantics = [#tpu.dimension_semantics<parallel>, #tpu.dimension_semantics<arbitrary>], iteration_bounds = array<i64: 2, 2>, scalar_prefetch = 0 : i64, scratch_operands = 1 : i64, tpu.core_type = #tpu.core_type<tc>, window_params = [{transform_indices = @transform_0, window_bounds = array<i64: 1, 64, 32>}, {transform_indices = @transform_1, window_bounds = array<i64: 1, 1, 64>}, {transform_indices = @transform_2, window_bounds = array<i64: 1, 64, 1>}, {transform_indices = @transform_3, window_bounds = array<i64: 1, 1, 4, 32>}, {transform_indices = @transform_4, window_bounds = array<i64: 1, 32, 96>}, {transform_indices = @transform_5, window_bounds = array<i64: 1, 1, 96>}, {transform_indices = @transform_6, window_bounds = array<i64: 1, 32, 32>}, {transform_indices = @transform_7, window_bounds = array<i64: 1, 1, 32>}, {transform_indices = @transform_8, window_bounds = array<i64: 1, 32, 192>}, {transform_indices = @transform_9, window_bounds = array<i64: 1, 1, 64>}, {transform_indices = @transform_10, window_bounds = array<i64: 1, 64, 96>}, {transform_indices = @transform_11, window_bounds = array<i64: 1, 1, 32>}, {transform_indices = @transform_12, window_bounds = array<i64: 1, 64, 32>}]} {
    %c0_i32 = arith.constant 0 : i32
    %0 = arith.cmpi eq, %arg1, %c0_i32 : i32
    %1 = arith.extui %0 : i1 to i32
    %c0_i32_0 = arith.constant 0 : i32
    %2 = arith.cmpi ne, %1, %c0_i32_0 : i32
    scf.if %2 {
      %c0_75 = arith.constant 0 : index
      %c0_76 = arith.constant 0 : index
      %c0_77 = arith.constant 0 : index
      %187 = vector.load %arg2[%c0_75, %c0_76, %c0_77] : memref<1x64x32xbf16, #tpu.memory_space<vmem>>, vector<1x64x32xbf16>
      %188 = vector.shape_cast %187 : vector<1x64x32xbf16> to vector<64x32xbf16>
      %189 = arith.extf %188 : vector<64x32xbf16> to vector<64x32xf32>
      %c0_78 = arith.constant 0 : index
      %c0_79 = arith.constant 0 : index
      %190 = vector.load %arg15[%c0_78, %c0_79] : memref<64x32xf32, #tpu.memory_space<vmem>>, vector<64x32xf32>
      tpu.vector_store %arg15[%c0_78, %c0_79], %189 {strides = array<i32>} : memref<64x32xf32, #tpu.memory_space<vmem>>, vector<64x32xf32>,
    } else {
    }
    %c0 = arith.constant 0 : index
    %c0_1 = arith.constant 0 : index
    %3 = vector.load %arg15[%c0, %c0_1] : memref<64x32xf32, #tpu.memory_space<vmem>>, vector<64x32xf32>
    %c0_2 = arith.constant 0 : index
    %c0_3 = arith.constant 0 : index
    %c0_4 = arith.constant 0 : index
    %4 = vector.load %arg3[%c0_2, %c0_3, %c0_4] : memref<1x1x64xf32, #tpu.memory_space<vmem>>, vector<1x1x64xf32>
    %5 = vector.shape_cast %4 : vector<1x1x64xf32> to vector<1x64xf32>
    %c0_5 = arith.constant 0 : index
    %c0_6 = arith.constant 0 : index
    %c0_7 = arith.constant 0 : index
    %6 = vector.load %arg4[%c0_5, %c0_6, %c0_7] : memref<1x64x1xf32, #tpu.memory_space<vmem>>, vector<1x64x1xf32>
    %7 = vector.shape_cast %6 : vector<1x64x1xf32> to vector<64x1xf32>
    %c0_8 = arith.constant 0 : index
    %c0_9 = arith.constant 0 : index
    %c0_10 = arith.constant 0 : index
    %c0_11 = arith.constant 0 : index
    %8 = vector.load %arg5[%c0_8, %c0_9, %c0_10, %c0_11] : memref<1x1x4x32xf32, #tpu.memory_space<vmem>>, vector<1x1x4x32xf32>
    %9 = vector.shape_cast %8 : vector<1x1x4x32xf32> to vector<4x32xf32>
    %10 = vector.extract_strided_slice %9 {offsets = [0, 0], sizes = [1, 32], strides = [1, 1]} : vector<4x32xf32> to vector<1x32xf32>
    %11 = vector.extract_strided_slice %9 {offsets = [1, 0], sizes = [1, 32], strides = [1, 1]} : vector<4x32xf32> to vector<1x32xf32>
    %12 = vector.extract_strided_slice %9 {offsets = [2, 0], sizes = [1, 32], strides = [1, 1]} : vector<4x32xf32> to vector<1x32xf32>
    %13 = vector.extract_strided_slice %9 {offsets = [3, 0], sizes = [1, 32], strides = [1, 1]} : vector<4x32xf32> to vector<1x32xf32>
    %cst = arith.constant dense<0.000000e+00> : vector<64xf32>
    %14 = vector.multi_reduction <add>, %3, %cst [1] : vector<64x32xf32> to vector<64xf32>
    %15 = vector.shape_cast %14 : vector<64xf32> to vector<64x1xf32>
    %cst_12 = arith.constant 3.200000e+01 : f32
    %16 = vector.broadcast %cst_12 : f32 to vector<64x1xf32>
    %17 = arith.divf %15, %16 : vector<64x1xf32>
    %18 = vector.broadcast %17 : vector<64x1xf32> to vector<64x32xf32>
    %19 = arith.subf %3, %18 : vector<64x32xf32>
    %20 = arith.mulf %19, %19 : vector<64x32xf32>
    %cst_13 = arith.constant dense<0.000000e+00> : vector<64xf32>
    %21 = vector.multi_reduction <add>, %20, %cst_13 [1] : vector<64x32xf32> to vector<64xf32>
    %22 = vector.shape_cast %21 : vector<64xf32> to vector<64x1xf32>
    %cst_14 = arith.constant 3.200000e+01 : f32
    %23 = vector.broadcast %cst_14 : f32 to vector<64x1xf32>
    %24 = arith.divf %22, %23 : vector<64x1xf32>
    %25 = vector.broadcast %17 : vector<64x1xf32> to vector<64x32xf32>
    %26 = arith.subf %3, %25 : vector<64x32xf32>
    %cst_15 = arith.constant 9.99999974E-6 : f32
    %27 = vector.broadcast %cst_15 : f32 to vector<64x1xf32>
    %28 = arith.addf %24, %27 : vector<64x1xf32>
    %29 = math.rsqrt %28 : vector<64x1xf32>
    %30 = vector.broadcast %29 : vector<64x1xf32> to vector<64x32xf32>
    %31 = arith.mulf %26, %30 : vector<64x32xf32>
    %cst_16 = arith.constant 1.000000e+00 : f32
    %32 = vector.broadcast %cst_16 : f32 to vector<1x32xf32>
    %33 = arith.addf %32, %10 : vector<1x32xf32>
    %34 = vector.broadcast %33 : vector<1x32xf32> to vector<64x32xf32>
    %35 = arith.mulf %31, %34 : vector<64x32xf32>
    %36 = vector.broadcast %11 : vector<1x32xf32> to vector<64x32xf32>
    %37 = arith.addf %35, %36 : vector<64x32xf32>
    %38 = arith.truncf %37 : vector<64x32xf32> to vector<64x32xbf16>
    %c0_17 = arith.constant 0 : index
    %c0_18 = arith.constant 0 : index
    %c0_19 = arith.constant 0 : index
    %39 = vector.load %arg6[%c0_17, %c0_18, %c0_19] : memref<1x32x96xbf16, #tpu.memory_space<vmem>>, vector<1x32x96xbf16>
    %40 = vector.shape_cast %39 : vector<1x32x96xbf16> to vector<32x96xbf16>
    %cst_20 = arith.constant dense<0.000000e+00> : vector<64x96xf32>
    %41 = tpu.matmul %38, %40, %cst_20 {dimension_numbers = #tpu.dot_dimension_numbers<[1], [0], [0], [1], [0, 0, 1, 1], [], []>} : vector<64x32xbf16>, vector<32x96xbf16>, vector<64x96xf32> -> vector<64x96xf32>
    %c0_21 = arith.constant 0 : index
    %c0_22 = arith.constant 0 : index
    %c0_23 = arith.constant 0 : index
    %42 = vector.load %arg7[%c0_21, %c0_22, %c0_23] : memref<1x1x96xf32, #tpu.memory_space<vmem>>, vector<1x1x96xf32>
    %43 = vector.shape_cast %42 : vector<1x1x96xf32> to vector<1x96xf32>
    %44 = vector.broadcast %43 : vector<1x96xf32> to vector<64x96xf32>
    %45 = arith.addf %41, %44 : vector<64x96xf32>
    %c0_24 = arith.constant 0 : index
    %c0_25 = arith.constant 0 : index
    %c0_26 = arith.constant 0 : index
    %46 = vector.load %arg8[%c0_24, %c0_25, %c0_26] : memref<1x32x32xbf16, #tpu.memory_space<vmem>>, vector<1x32x32xbf16>
    %47 = vector.shape_cast %46 : vector<1x32x32xbf16> to vector<32x32xbf16>
    %cst_27 = arith.constant 0.000000e+00 : f32
    %48 = vector.broadcast %cst_27 : f32 to vector<64x32xf32>
    %49 = vector.extract_strided_slice %45 {offsets = [0, 0], sizes = [64, 16], strides = [1, 1]} : vector<64x96xf32> to vector<64x16xf32>
    %50 = arith.truncf %49 : vector<64x16xf32> to vector<64x16xbf16>
    %51 = vector.extract_strided_slice %45 {offsets = [0, 32], sizes = [64, 16], strides = [1, 1]} : vector<64x96xf32> to vector<64x16xf32>
    %52 = arith.truncf %51 : vector<64x16xf32> to vector<64x16xbf16>
    %53 = vector.extract_strided_slice %45 {offsets = [0, 64], sizes = [64, 16], strides = [1, 1]} : vector<64x96xf32> to vector<64x16xf32>
    %54 = arith.truncf %53 : vector<64x16xf32> to vector<64x16xbf16>
    %cst_28 = arith.constant dense<0.000000e+00> : vector<64x64xf32>
    %55 = tpu.matmul %50, %52, %cst_28 {dimension_numbers = #tpu.dot_dimension_numbers<[1], [1], [0], [0], [0, 0, 1, 0], [], []>} : vector<64x16xbf16>, vector<64x16xbf16>, vector<64x64xf32> -> vector<64x64xf32>
    %cst_29 = arith.constant 2.500000e-01 : f32
    %56 = vector.broadcast %cst_29 : f32 to vector<64x64xf32>
    %57 = arith.mulf %55, %56 : vector<64x64xf32>
    %cst_30 = arith.constant 5.000000e-01 : f32
    %58 = vector.broadcast %cst_30 : f32 to vector<1x64xf32>
    %59 = arith.cmpf ogt, %5, %58 : vector<1x64xf32>
    %cst_31 = arith.constant -1.000000e+09 : f32
    %60 = vector.shape_cast %59 : vector<1x64xi1> to vector<1x64xi1>
    %61 = vector.broadcast %60 : vector<1x64xi1> to vector<64x64xi1>
    %62 = vector.broadcast %cst_31 : f32 to vector<64x64xf32>
    %63 = arith.select %61, %57, %62 : vector<64x64xi1>, vector<64x64xf32>
    %cst_32 = arith.constant dense<0xFF800000> : vector<64xf32>
    %64 = vector.multi_reduction <maximumf>, %63, %cst_32 [1] : vector<64x64xf32> to vector<64xf32>
    %65 = vector.shape_cast %64 : vector<64xf32> to vector<64x1xf32>
    %66 = vector.broadcast %65 : vector<64x1xf32> to vector<64x64xf32>
    %67 = arith.subf %63, %66 : vector<64x64xf32>
    %68 = math.exp %67 : vector<64x64xf32>
    %cst_33 = arith.constant dense<0.000000e+00> : vector<64xf32>
    %69 = vector.multi_reduction <add>, %68, %cst_33 [1] : vector<64x64xf32> to vector<64xf32>
    %70 = vector.shape_cast %69 : vector<64xf32> to vector<64x1xf32>
    %71 = tpu.reciprocal %70 {approx = true} : vector<64x1xf32> -> vector<64x1xf32>
    %72 = vector.broadcast %71 : vector<64x1xf32> to vector<64x64xf32>
    %73 = arith.mulf %68, %72 : vector<64x64xf32>
    %74 = arith.truncf %73 : vector<64x64xf32> to vector<64x64xbf16>
    %cst_34 = arith.constant dense<0.000000e+00> : vector<64x16xf32>
    %75 = tpu.matmul %74, %54, %cst_34 {dimension_numbers = #tpu.dot_dimension_numbers<[1], [0], [0], [1], [0, 0, 1, 1], [], []>} : vector<64x64xbf16>, vector<64x16xbf16>, vector<64x16xf32> -> vector<64x16xf32>
    %76 = arith.truncf %75 : vector<64x16xf32> to vector<64x16xbf16>
    %77 = vector.extract_strided_slice %47 {offsets = [0, 0], sizes = [16, 32], strides = [1, 1]} : vector<32x32xbf16> to vector<16x32xbf16>
    %cst_35 = arith.constant dense<0.000000e+00> : vector<64x32xf32>
    %78 = tpu.matmul %76, %77, %cst_35 {dimension_numbers = #tpu.dot_dimension_numbers<[1], [0], [0], [1], [0, 0, 1, 1], [], []>} : vector<64x16xbf16>, vector<16x32xbf16>, vector<64x32xf32> -> vector<64x32xf32>
    %79 = arith.addf %48, %78 : vector<64x32xf32>
    %80 = vector.extract_strided_slice %45 {offsets = [0, 16], sizes = [64, 16], strides = [1, 1]} : vector<64x96xf32> to vector<64x16xf32>
    %81 = arith.truncf %80 : vector<64x16xf32> to vector<64x16xbf16>
    %82 = vector.extract_strided_slice %45 {offsets = [0, 48], sizes = [64, 16], strides = [1, 1]} : vector<64x96xf32> to vector<64x16xf32>
    %83 = arith.truncf %82 : vector<64x16xf32> to vector<64x16xbf16>
    %84 = vector.extract_strided_slice %45 {offsets = [0, 80], sizes = [64, 16], strides = [1, 1]} : vector<64x96xf32> to vector<64x16xf32>
    %85 = arith.truncf %84 : vector<64x16xf32> to vector<64x16xbf16>
    %cst_36 = arith.constant dense<0.000000e+00> : vector<64x64xf32>
    %86 = tpu.matmul %81, %83, %cst_36 {dimension_numbers = #tpu.dot_dimension_numbers<[1], [1], [0], [0], [0, 0, 1, 0], [], []>} : vector<64x16xbf16>, vector<64x16xbf16>, vector<64x64xf32> -> vector<64x64xf32>
    %cst_37 = arith.constant 2.500000e-01 : f32
    %87 = vector.broadcast %cst_37 : f32 to vector<64x64xf32>
    %88 = arith.mulf %86, %87 : vector<64x64xf32>
    %cst_38 = arith.constant 5.000000e-01 : f32
    %89 = vector.broadcast %cst_38 : f32 to vector<1x64xf32>
    %90 = arith.cmpf ogt, %5, %89 : vector<1x64xf32>
    %cst_39 = arith.constant -1.000000e+09 : f32
    %91 = vector.shape_cast %90 : vector<1x64xi1> to vector<1x64xi1>
    %92 = vector.broadcast %91 : vector<1x64xi1> to vector<64x64xi1>
    %93 = vector.broadcast %cst_39 : f32 to vector<64x64xf32>
    %94 = arith.select %92, %88, %93 : vector<64x64xi1>, vector<64x64xf32>
    %cst_40 = arith.constant dense<0xFF800000> : vector<64xf32>
    %95 = vector.multi_reduction <maximumf>, %94, %cst_40 [1] : vector<64x64xf32> to vector<64xf32>
    %96 = vector.shape_cast %95 : vector<64xf32> to vector<64x1xf32>
    %97 = vector.broadcast %96 : vector<64x1xf32> to vector<64x64xf32>
    %98 = arith.subf %94, %97 : vector<64x64xf32>
    %99 = math.exp %98 : vector<64x64xf32>
    %cst_41 = arith.constant dense<0.000000e+00> : vector<64xf32>
    %100 = vector.multi_reduction <add>, %99, %cst_41 [1] : vector<64x64xf32> to vector<64xf32>
    %101 = vector.shape_cast %100 : vector<64xf32> to vector<64x1xf32>
    %102 = tpu.reciprocal %101 {approx = true} : vector<64x1xf32> -> vector<64x1xf32>
    %103 = vector.broadcast %102 : vector<64x1xf32> to vector<64x64xf32>
    %104 = arith.mulf %99, %103 : vector<64x64xf32>
    %105 = arith.truncf %104 : vector<64x64xf32> to vector<64x64xbf16>
    %cst_42 = arith.constant dense<0.000000e+00> : vector<64x16xf32>
    %106 = tpu.matmul %105, %85, %cst_42 {dimension_numbers = #tpu.dot_dimension_numbers<[1], [0], [0], [1], [0, 0, 1, 1], [], []>} : vector<64x64xbf16>, vector<64x16xbf16>, vector<64x16xf32> -> vector<64x16xf32>
    %107 = arith.truncf %106 : vector<64x16xf32> to vector<64x16xbf16>
    %108 = vector.extract_strided_slice %47 {offsets = [16, 0], sizes = [16, 32], strides = [1, 1]} : vector<32x32xbf16> to vector<16x32xbf16>
    %cst_43 = arith.constant dense<0.000000e+00> : vector<64x32xf32>
    %109 = tpu.matmul %107, %108, %cst_43 {dimension_numbers = #tpu.dot_dimension_numbers<[1], [0], [0], [1], [0, 0, 1, 1], [], []>} : vector<64x16xbf16>, vector<16x32xbf16>, vector<64x32xf32> -> vector<64x32xf32>
    %110 = arith.addf %79, %109 : vector<64x32xf32>
    %111 = arith.addf %3, %110 : vector<64x32xf32>
    %c0_44 = arith.constant 0 : index
    %c0_45 = arith.constant 0 : index
    %c0_46 = arith.constant 0 : index
    %112 = vector.load %arg9[%c0_44, %c0_45, %c0_46] : memref<1x1x32xf32, #tpu.memory_space<vmem>>, vector<1x1x32xf32>
    %113 = vector.shape_cast %112 : vector<1x1x32xf32> to vector<1x32xf32>
    %114 = vector.broadcast %113 : vector<1x32xf32> to vector<64x32xf32>
    %115 = arith.addf %111, %114 : vector<64x32xf32>
    %cst_47 = arith.constant dense<0.000000e+00> : vector<64xf32>
    %116 = vector.multi_reduction <add>, %115, %cst_47 [1] : vector<64x32xf32> to vector<64xf32>
    %117 = vector.shape_cast %116 : vector<64xf32> to vector<64x1xf32>
    %cst_48 = arith.constant 3.200000e+01 : f32
    %118 = vector.broadcast %cst_48 : f32 to vector<64x1xf32>
    %119 = arith.divf %117, %118 : vector<64x1xf32>
    %120 = vector.broadcast %119 : vector<64x1xf32> to vector<64x32xf32>
    %121 = arith.subf %115, %120 : vector<64x32xf32>
    %122 = arith.mulf %121, %121 : vector<64x32xf32>
    %cst_49 = arith.constant dense<0.000000e+00> : vector<64xf32>
    %123 = vector.multi_reduction <add>, %122, %cst_49 [1] : vector<64x32xf32> to vector<64xf32>
    %124 = vector.shape_cast %123 : vector<64xf32> to vector<64x1xf32>
    %cst_50 = arith.constant 3.200000e+01 : f32
    %125 = vector.broadcast %cst_50 : f32 to vector<64x1xf32>
    %126 = arith.divf %124, %125 : vector<64x1xf32>
    %127 = vector.broadcast %119 : vector<64x1xf32> to vector<64x32xf32>
    %128 = arith.subf %115, %127 : vector<64x32xf32>
    %cst_51 = arith.constant 9.99999974E-6 : f32
    %129 = vector.broadcast %cst_51 : f32 to vector<64x1xf32>
    %130 = arith.addf %126, %129 : vector<64x1xf32>
    %131 = math.rsqrt %130 : vector<64x1xf32>
    %132 = vector.broadcast %131 : vector<64x1xf32> to vector<64x32xf32>
    %133 = arith.mulf %128, %132 : vector<64x32xf32>
    %cst_52 = arith.constant 1.000000e+00 : f32
    %134 = vector.broadcast %cst_52 : f32 to vector<1x32xf32>
    %135 = arith.addf %134, %12 : vector<1x32xf32>
    %136 = vector.broadcast %135 : vector<1x32xf32> to vector<64x32xf32>
    %137 = arith.mulf %133, %136 : vector<64x32xf32>
    %138 = vector.broadcast %13 : vector<1x32xf32> to vector<64x32xf32>
    %139 = arith.addf %137, %138 : vector<64x32xf32>
    %c0_53 = arith.constant 0 : index
    %c0_54 = arith.constant 0 : index
    %c0_55 = arith.constant 0 : index
    %140 = vector.load %arg10[%c0_53, %c0_54, %c0_55] : memref<1x32x192xbf16, #tpu.memory_space<vmem>>, vector<1x32x192xbf16>
    %141 = vector.shape_cast %140 : vector<1x32x192xbf16> to vector<32x192xbf16>
    %c0_56 = arith.constant 0 : index
    %c0_57 = arith.constant 0 : index
    %c0_58 = arith.constant 0 : index
    %142 = vector.load %arg11[%c0_56, %c0_57, %c0_58] : memref<1x1x64xf32, #tpu.memory_space<vmem>>, vector<1x1x64xf32>
    %143 = vector.shape_cast %142 : vector<1x1x64xf32> to vector<1x64xf32>
    %144 = arith.truncf %139 : vector<64x32xf32> to vector<64x32xbf16>
    %cst_59 = arith.constant dense<0.000000e+00> : vector<64x192xf32>
    %145 = tpu.matmul %144, %141, %cst_59 {dimension_numbers = #tpu.dot_dimension_numbers<[1], [0], [0], [1], [0, 0, 1, 1], [], []>} : vector<64x32xbf16>, vector<32x192xbf16>, vector<64x192xf32> -> vector<64x192xf32>
    %146 = vector.extract_strided_slice %145 {offsets = [0, 0], sizes = [64, 64], strides = [1, 1]} : vector<64x192xf32> to vector<64x64xf32>
    %cst_60 = arith.constant 0.000000e+00 : f32
    %147 = vector.broadcast %cst_60 : f32 to vector<1x64xf32>
    %148 = vector.extract_strided_slice %146 {offsets = [0, 0], sizes = [63, 64], strides = [1, 1]} : vector<64x64xf32> to vector<63x64xf32>
    %149 = tpu.concatenate %147, %148 in 0 : vector<1x64xf32>, vector<63x64xf32> -> vector<64x64xf32>
    %150 = vector.extract_strided_slice %145 {offsets = [0, 64], sizes = [64, 64], strides = [1, 1]} : vector<64x192xf32> to vector<64x64xf32>
    %151 = arith.addf %149, %150 : vector<64x64xf32>
    %152 = vector.extract_strided_slice %145 {offsets = [0, 128], sizes = [64, 64], strides = [1, 1]} : vector<64x192xf32> to vector<64x64xf32>
    %cst_61 = arith.constant 0.000000e+00 : f32
    %153 = vector.broadcast %cst_61 : f32 to vector<1x64xf32>
    %154 = vector.extract_strided_slice %152 {offsets = [1, 0], sizes = [63, 64], strides = [1, 1]} : vector<64x64xf32> to vector<63x64xf32>
    %155 = tpu.concatenate %154, %153 in 0 : vector<63x64xf32>, vector<1x64xf32> -> vector<64x64xf32>
    %156 = arith.addf %151, %155 : vector<64x64xf32>
    %157 = vector.broadcast %143 : vector<1x64xf32> to vector<64x64xf32>
    %158 = arith.addf %156, %157 : vector<64x64xf32>
    %cst_62 = arith.constant 0.000000e+00 : f32
    %159 = vector.broadcast %cst_62 : f32 to vector<64x64xf32>
    %160 = arith.maximumf %158, %159 : vector<64x64xf32>
    %c0_63 = arith.constant 0 : index
    %c0_64 = arith.constant 0 : index
    %c0_65 = arith.constant 0 : index
    %161 = vector.load %arg12[%c0_63, %c0_64, %c0_65] : memref<1x64x96xbf16, #tpu.memory_space<vmem>>, vector<1x64x96xbf16>
    %162 = vector.shape_cast %161 : vector<1x64x96xbf16> to vector<64x96xbf16>
    %c0_66 = arith.constant 0 : index
    %c0_67 = arith.constant 0 : index
    %c0_68 = arith.constant 0 : index
    %163 = vector.load %arg13[%c0_66, %c0_67, %c0_68] : memref<1x1x32xf32, #tpu.memory_space<vmem>>, vector<1x1x32xf32>
    %164 = vector.shape_cast %163 : vector<1x1x32xf32> to vector<1x32xf32>
    %165 = arith.truncf %160 : vector<64x64xf32> to vector<64x64xbf16>
    %cst_69 = arith.constant dense<0.000000e+00> : vector<64x96xf32>
    %166 = tpu.matmul %165, %162, %cst_69 {dimension_numbers = #tpu.dot_dimension_numbers<[1], [0], [0], [1], [0, 0, 1, 1], [], []>} : vector<64x64xbf16>, vector<64x96xbf16>, vector<64x96xf32> -> vector<64x96xf32>
    %167 = vector.extract_strided_slice %166 {offsets = [0, 0], sizes = [64, 32], strides = [1, 1]} : vector<64x96xf32> to vector<64x32xf32>
    %cst_70 = arith.constant 0.000000e+00 : f32
    %168 = vector.broadcast %cst_70 : f32 to vector<1x32xf32>
    %169 = vector.extract_strided_slice %167 {offsets = [0, 0], sizes = [63, 32], strides = [1, 1]} : vector<64x32xf32> to vector<63x32xf32>
    %170 = tpu.concatenate %168, %169 in 0 : vector<1x32xf32>, vector<63x32xf32> -> vector<64x32xf32>
    %171 = vector.extract_strided_slice %166 {offsets = [0, 32], sizes = [64, 32], strides = [1, 1]} : vector<64x96xf32> to vector<64x32xf32>
    %172 = arith.addf %170, %171 : vector<64x32xf32>
    %173 = vector.extract_strided_slice %166 {offsets = [0, 64], sizes = [64, 32], strides = [1, 1]} : vector<64x96xf32> to vector<64x32xf32>
    %cst_71 = arith.constant 0.000000e+00 : f32
    %174 = vector.broadcast %cst_71 : f32 to vector<1x32xf32>
    %175 = vector.extract_strided_slice %173 {offsets = [1, 0], sizes = [63, 32], strides = [1, 1]} : vector<64x32xf32> to vector<63x32xf32>
    %176 = tpu.concatenate %175, %174 in 0 : vector<63x32xf32>, vector<1x32xf32> -> vector<64x32xf32>
    %177 = arith.addf %172, %176 : vector<64x32xf32>
    %178 = vector.broadcast %164 : vector<1x32xf32> to vector<64x32xf32>
    %179 = arith.addf %177, %178 : vector<64x32xf32>
    %180 = arith.addf %115, %179 : vector<64x32xf32>
    %181 = vector.broadcast %7 : vector<64x1xf32> to vector<64x32xf32>
    %182 = arith.mulf %180, %181 : vector<64x32xf32>
    %c0_72 = arith.constant 0 : index
    %c0_73 = arith.constant 0 : index
    %183 = vector.load %arg15[%c0_72, %c0_73] : memref<64x32xf32, #tpu.memory_space<vmem>>, vector<64x32xf32>
    tpu.vector_store %arg15[%c0_72, %c0_73], %182 {strides = array<i32>} : memref<64x32xf32, #tpu.memory_space<vmem>>, vector<64x32xf32>,
    %c1_i32 = arith.constant 1 : i32
    %184 = arith.cmpi eq, %arg1, %c1_i32 : i32
    %185 = arith.extui %184 : i1 to i32
    %c0_i32_74 = arith.constant 0 : i32
    %186 = arith.cmpi ne, %185, %c0_i32_74 : i32
    scf.if %186 {
      %187 = arith.truncf %182 : vector<64x32xf32> to vector<64x32xbf16>
      %c0_75 = arith.constant 0 : index
      %c0_76 = arith.constant 0 : index
      %c0_77 = arith.constant 0 : index
      %188 = vector.load %arg14[%c0_75, %c0_76, %c0_77] : memref<1x64x32xbf16, #tpu.memory_space<vmem>>, vector<1x64x32xbf16>
      %189 = vector.shape_cast %188 : vector<1x64x32xbf16> to vector<64x32xbf16>
      %190 = vector.shape_cast %187 : vector<64x32xbf16> to vector<1x64x32xbf16>
      tpu.vector_store %arg14[%c0_75, %c0_76, %c0_77], %190 {strides = array<i32>} : memref<1x64x32xbf16, #tpu.memory_space<vmem>>, vector<1x64x32xbf16>,
    } else {
    }
    return
  }
  func.func @transform_0(%arg0: i32, %arg1: i32) -> (i32, i32, i32) {
    %c0_i32 = arith.constant 0 : i32
    %c0_i32_0 = arith.constant 0 : i32
    %c0_i32_1 = arith.constant 0 : i32
    return %arg0, %c0_i32, %c0_i32_0 : i32, i32, i32
  }
  func.func @transform_1(%arg0: i32, %arg1: i32) -> (i32, i32, i32) {
    %c0_i32 = arith.constant 0 : i32
    %c0_i32_0 = arith.constant 0 : i32
    %c0_i32_1 = arith.constant 0 : i32
    return %arg0, %c0_i32, %c0_i32_0 : i32, i32, i32
  }
  func.func @transform_2(%arg0: i32, %arg1: i32) -> (i32, i32, i32) {
    %c0_i32 = arith.constant 0 : i32
    %c0_i32_0 = arith.constant 0 : i32
    %c0_i32_1 = arith.constant 0 : i32
    return %arg0, %c0_i32, %c0_i32_0 : i32, i32, i32
  }
  func.func @transform_3(%arg0: i32, %arg1: i32) -> (i32, i32, i32, i32) {
    %c0_i32 = arith.constant 0 : i32
    %c0_i32_0 = arith.constant 0 : i32
    %c0_i32_1 = arith.constant 0 : i32
    return %arg0, %arg1, %c0_i32, %c0_i32_0 : i32, i32, i32, i32
  }
  func.func @transform_4(%arg0: i32, %arg1: i32) -> (i32, i32, i32) {
    %c0_i32 = arith.constant 0 : i32
    %c0_i32_0 = arith.constant 0 : i32
    %c0_i32_1 = arith.constant 0 : i32
    return %arg1, %c0_i32, %c0_i32_0 : i32, i32, i32
  }
  func.func @transform_5(%arg0: i32, %arg1: i32) -> (i32, i32, i32) {
    %c0_i32 = arith.constant 0 : i32
    %c0_i32_0 = arith.constant 0 : i32
    %c0_i32_1 = arith.constant 0 : i32
    return %arg1, %c0_i32, %c0_i32_0 : i32, i32, i32
  }
  func.func @transform_6(%arg0: i32, %arg1: i32) -> (i32, i32, i32) {
    %c0_i32 = arith.constant 0 : i32
    %c0_i32_0 = arith.constant 0 : i32
    %c0_i32_1 = arith.constant 0 : i32
    return %arg1, %c0_i32, %c0_i32_0 : i32, i32, i32
  }
  func.func @transform_7(%arg0: i32, %arg1: i32) -> (i32, i32, i32) {
    %c0_i32 = arith.constant 0 : i32
    %c0_i32_0 = arith.constant 0 : i32
    %c0_i32_1 = arith.constant 0 : i32
    return %arg1, %c0_i32, %c0_i32_0 : i32, i32, i32
  }
  func.func @transform_8(%arg0: i32, %arg1: i32) -> (i32, i32, i32) {
    %c0_i32 = arith.constant 0 : i32
    %c0_i32_0 = arith.constant 0 : i32
    %c0_i32_1 = arith.constant 0 : i32
    return %arg1, %c0_i32, %c0_i32_0 : i32, i32, i32
  }
  func.func @transform_9(%arg0: i32, %arg1: i32) -> (i32, i32, i32) {
    %c0_i32 = arith.constant 0 : i32
    %c0_i32_0 = arith.constant 0 : i32
    %c0_i32_1 = arith.constant 0 : i32
    return %arg1, %c0_i32, %c0_i32_0 : i32, i32, i32
  }
  func.func @transform_10(%arg0: i32, %arg1: i32) -> (i32, i32, i32) {
    %c0_i32 = arith.constant 0 : i32
    %c0_i32_0 = arith.constant 0 : i32
    %c0_i32_1 = arith.constant 0 : i32
    return %arg1, %c0_i32, %c0_i32_0 : i32, i32, i32
  }
  func.func @transform_11(%arg0: i32, %arg1: i32) -> (i32, i32, i32) {
    %c0_i32 = arith.constant 0 : i32
    %c0_i32_0 = arith.constant 0 : i32
    %c0_i32_1 = arith.constant 0 : i32
    return %arg1, %c0_i32, %c0_i32_0 : i32, i32, i32
  }
  func.func @transform_12(%arg0: i32, %arg1: i32) -> (i32, i32, i32) {
    %c0_i32 = arith.constant 0 : i32
    %c0_i32_0 = arith.constant 0 : i32
    %c0_i32_1 = arith.constant 0 : i32
    return %arg0, %c0_i32, %c0_i32_0 : i32, i32, i32
  }
}

module attributes {stable_mosaic.version = 11 : i64} {
  func.func @_diffusion_kernel(%arg0: i32, %arg1: i32, %arg2: memref<1x64x16xf32, #tpu.memory_space<vmem>>, %arg3: memref<1x64x16xf32, #tpu.memory_space<vmem>>, %arg4: memref<1x64x16xf32, #tpu.memory_space<vmem>>, %arg5: memref<1x1x16xf32, #tpu.memory_space<vmem>>, %arg6: memref<1x64x1xf32, #tpu.memory_space<vmem>>, %arg7: memref<1x8xf32, #tpu.memory_space<vmem>>, %arg8: memref<32x192xbf16, #tpu.memory_space<vmem>>, %arg9: memref<48x192xbf16, #tpu.memory_space<vmem>>, %arg10: memref<1x64xf32, #tpu.memory_space<vmem>>, %arg11: memref<64x192xbf16, #tpu.memory_space<vmem>>, %arg12: memref<1x64xf32, #tpu.memory_space<vmem>>, %arg13: memref<64x16xbf16, #tpu.memory_space<vmem>>, %arg14: memref<1x16xf32, #tpu.memory_space<vmem>>, %arg15: memref<1x64x16xf32, #tpu.memory_space<vmem>>, %arg16: memref<64x16xf32, #tpu.memory_space<vmem>>, %arg17: memref<64x64xf32, #tpu.memory_space<vmem>>) attributes {dimension_semantics = [#tpu.dimension_semantics<parallel>, #tpu.dimension_semantics<arbitrary>], iteration_bounds = array<i64: 2, 4>, scalar_prefetch = 0 : i64, scratch_operands = 2 : i64, tpu.core_type = #tpu.core_type<tc>, window_params = [{transform_indices = @transform_0, window_bounds = array<i64: 1, 64, 16>}, {transform_indices = @transform_1, window_bounds = array<i64: 1, 64, 16>}, {transform_indices = @transform_2, window_bounds = array<i64: 1, 64, 16>}, {transform_indices = @transform_3, window_bounds = array<i64: 1, 1, 16>}, {transform_indices = @transform_4, window_bounds = array<i64: 1, 64, 1>}, {pipeline_mode = #tpu.pipeline_mode<synchronous>, transform_indices = @transform_5, window_bounds = array<i64: 1, 8>}, {pipeline_mode = #tpu.pipeline_mode<synchronous>, transform_indices = @transform_6, window_bounds = array<i64: 32, 192>}, {pipeline_mode = #tpu.pipeline_mode<synchronous>, transform_indices = @transform_7, window_bounds = array<i64: 48, 192>}, {pipeline_mode = #tpu.pipeline_mode<synchronous>, transform_indices = @transform_8, window_bounds = array<i64: 1, 64>}, {pipeline_mode = #tpu.pipeline_mode<synchronous>, transform_indices = @transform_9, window_bounds = array<i64: 64, 192>}, {pipeline_mode = #tpu.pipeline_mode<synchronous>, transform_indices = @transform_10, window_bounds = array<i64: 1, 64>}, {pipeline_mode = #tpu.pipeline_mode<synchronous>, transform_indices = @transform_11, window_bounds = array<i64: 64, 16>}, {pipeline_mode = #tpu.pipeline_mode<synchronous>, transform_indices = @transform_12, window_bounds = array<i64: 1, 16>}, {transform_indices = @transform_13, window_bounds = array<i64: 1, 64, 16>}]} {
    %c0 = arith.constant 0 : index
    %c0_0 = arith.constant 0 : index
    %c0_1 = arith.constant 0 : index
    %0 = vector.load %arg6[%c0, %c0_0, %c0_1] : memref<1x64x1xf32, #tpu.memory_space<vmem>>, vector<1x64x1xf32>
    %1 = vector.shape_cast %0 : vector<1x64x1xf32> to vector<64x1xf32>
    %c0_2 = arith.constant 0 : index
    %c0_3 = arith.constant 0 : index
    %c0_4 = arith.constant 0 : index
    %2 = vector.load %arg3[%c0_2, %c0_3, %c0_4] : memref<1x64x16xf32, #tpu.memory_space<vmem>>, vector<1x64x16xf32>
    %3 = vector.shape_cast %2 : vector<1x64x16xf32> to vector<64x16xf32>
    %c0_i32 = arith.constant 0 : i32
    %4 = arith.cmpi eq, %arg1, %c0_i32 : i32
    %5 = arith.extui %4 : i1 to i32
    %c0_i32_5 = arith.constant 0 : i32
    %6 = arith.cmpi ne, %5, %c0_i32_5 : i32
    scf.if %6 {
      %c0_41 = arith.constant 0 : index
      %c0_42 = arith.constant 0 : index
      %c0_43 = arith.constant 0 : index
      %83 = vector.load %arg2[%c0_41, %c0_42, %c0_43] : memref<1x64x16xf32, #tpu.memory_space<vmem>>, vector<1x64x16xf32>
      %84 = vector.shape_cast %83 : vector<1x64x16xf32> to vector<64x16xf32>
      %85 = vector.broadcast %1 : vector<64x1xf32> to vector<64x16xf32>
      %86 = arith.mulf %84, %85 : vector<64x16xf32>
      %c0_44 = arith.constant 0 : index
      %c0_45 = arith.constant 0 : index
      %87 = vector.load %arg16[%c0_44, %c0_45] : memref<64x16xf32, #tpu.memory_space<vmem>>, vector<64x16xf32>
      tpu.vector_store %arg16[%c0_44, %c0_45], %86 {strides = array<i32>} : memref<64x16xf32, #tpu.memory_space<vmem>>, vector<64x16xf32>,
      %c0_46 = arith.constant 0 : index
      %c0_47 = arith.constant 0 : index
      %c0_48 = arith.constant 0 : index
      %88 = vector.load %arg5[%c0_46, %c0_47, %c0_48] : memref<1x1x16xf32, #tpu.memory_space<vmem>>, vector<1x1x16xf32>
      %89 = vector.shape_cast %88 : vector<1x1x16xf32> to vector<1x16xf32>
      %c0_49 = arith.constant 0 : index
      %c0_50 = arith.constant 0 : index
      %c0_51 = arith.constant 0 : index
      %90 = vector.load %arg4[%c0_49, %c0_50, %c0_51] : memref<1x64x16xf32, #tpu.memory_space<vmem>>, vector<1x64x16xf32>
      %91 = vector.shape_cast %90 : vector<1x64x16xf32> to vector<64x16xf32>
      %92 = vector.shape_cast %89 : vector<1x16xf32> to vector<1x16xf32>
      %93 = vector.broadcast %92 : vector<1x16xf32> to vector<64x16xf32>
      %94 = tpu.concatenate %3, %91, %93 in 1 : vector<64x16xf32>, vector<64x16xf32>, vector<64x16xf32> -> vector<64x48xf32>
      %c0_52 = arith.constant 0 : index
      %c0_53 = arith.constant 0 : index
      %95 = vector.load %arg9[%c0_52, %c0_53] : memref<48x192xbf16, #tpu.memory_space<vmem>>, vector<48x192xbf16>
      %c0_54 = arith.constant 0 : index
      %c0_55 = arith.constant 0 : index
      %96 = vector.load %arg10[%c0_54, %c0_55] : memref<1x64xf32, #tpu.memory_space<vmem>>, vector<1x64xf32>
      %97 = arith.truncf %94 : vector<64x48xf32> to vector<64x48xbf16>
      %cst_56 = arith.constant dense<0.000000e+00> : vector<64x192xf32>
      %98 = tpu.matmul %97, %95, %cst_56 {dimension_numbers = #tpu.dot_dimension_numbers<[1], [0], [0], [1], [0, 0, 1, 1], [], []>} : vector<64x48xbf16>, vector<48x192xbf16>, vector<64x192xf32> -> vector<64x192xf32>
      %99 = vector.extract_strided_slice %98 {offsets = [0, 0], sizes = [64, 64], strides = [1, 1]} : vector<64x192xf32> to vector<64x64xf32>
      %cst_57 = arith.constant 0.000000e+00 : f32
      %100 = vector.broadcast %cst_57 : f32 to vector<1x64xf32>
      %101 = vector.extract_strided_slice %99 {offsets = [0, 0], sizes = [63, 64], strides = [1, 1]} : vector<64x64xf32> to vector<63x64xf32>
      %102 = tpu.concatenate %100, %101 in 0 : vector<1x64xf32>, vector<63x64xf32> -> vector<64x64xf32>
      %103 = vector.extract_strided_slice %98 {offsets = [0, 64], sizes = [64, 64], strides = [1, 1]} : vector<64x192xf32> to vector<64x64xf32>
      %104 = arith.addf %102, %103 : vector<64x64xf32>
      %105 = vector.extract_strided_slice %98 {offsets = [0, 128], sizes = [64, 64], strides = [1, 1]} : vector<64x192xf32> to vector<64x64xf32>
      %cst_58 = arith.constant 0.000000e+00 : f32
      %106 = vector.broadcast %cst_58 : f32 to vector<1x64xf32>
      %107 = vector.extract_strided_slice %105 {offsets = [1, 0], sizes = [63, 64], strides = [1, 1]} : vector<64x64xf32> to vector<63x64xf32>
      %108 = tpu.concatenate %107, %106 in 0 : vector<63x64xf32>, vector<1x64xf32> -> vector<64x64xf32>
      %109 = arith.addf %104, %108 : vector<64x64xf32>
      %110 = vector.broadcast %96 : vector<1x64xf32> to vector<64x64xf32>
      %111 = arith.addf %109, %110 : vector<64x64xf32>
      %c0_59 = arith.constant 0 : index
      %c0_60 = arith.constant 0 : index
      %112 = vector.load %arg17[%c0_59, %c0_60] : memref<64x64xf32, #tpu.memory_space<vmem>>, vector<64x64xf32>
      tpu.vector_store %arg17[%c0_59, %c0_60], %111 {strides = array<i32>} : memref<64x64xf32, #tpu.memory_space<vmem>>, vector<64x64xf32>,
    } else {
    }
    %c0_6 = arith.constant 0 : index
    %c0_7 = arith.constant 0 : index
    %7 = vector.load %arg16[%c0_6, %c0_7] : memref<64x16xf32, #tpu.memory_space<vmem>>, vector<64x16xf32>
    %8 = arith.sitofp %arg1 : i32 to f32
    %cst = arith.constant 5.000000e-01 : f32
    %9 = arith.addf %8, %cst : f32
    %cst_8 = arith.constant 2.500000e-01 : f32
    %10 = arith.mulf %9, %cst_8 : f32
    %cst_9 = arith.constant 1.000000e+00 : f32
    %11 = arith.subf %cst_9, %10 : f32
    %cst_10 = arith.constant 1.995000e+01 : f32
    %12 = arith.mulf %cst_10, %11 : f32
    %cst_11 = arith.constant 5.000000e-02 : f32
    %13 = arith.addf %cst_11, %12 : f32
    %cst_12 = arith.constant 1.000000e+03 : f32
    %14 = arith.mulf %11, %cst_12 : f32
    %c0_13 = arith.constant 0 : index
    %c0_14 = arith.constant 0 : index
    %15 = vector.load %arg7[%c0_13, %c0_14] : memref<1x8xf32, #tpu.memory_space<vmem>>, vector<1x8xf32>
    %16 = vector.broadcast %14 : f32 to vector<1x8xf32>
    %17 = arith.mulf %16, %15 : vector<1x8xf32>
    %18 = math.sin %17 : vector<1x8xf32>
    %19 = math.cos %17 : vector<1x8xf32>
    %20 = tpu.concatenate %18, %19 in 1 : vector<1x8xf32>, vector<1x8xf32> -> vector<1x16xf32>
    %21 = vector.shape_cast %20 : vector<1x16xf32> to vector<1x16xf32>
    %22 = vector.broadcast %21 : vector<1x16xf32> to vector<64x16xf32>
    %23 = tpu.concatenate %7, %22 in 1 : vector<64x16xf32>, vector<64x16xf32> -> vector<64x32xf32>
    %c0_15 = arith.constant 0 : index
    %c0_16 = arith.constant 0 : index
    %24 = vector.load %arg17[%c0_15, %c0_16] : memref<64x64xf32, #tpu.memory_space<vmem>>, vector<64x64xf32>
    %c0_17 = arith.constant 0 : index
    %c0_18 = arith.constant 0 : index
    %25 = vector.load %arg8[%c0_17, %c0_18] : memref<32x192xbf16, #tpu.memory_space<vmem>>, vector<32x192xbf16>
    %26 = arith.truncf %23 : vector<64x32xf32> to vector<64x32xbf16>
    %cst_19 = arith.constant dense<0.000000e+00> : vector<64x192xf32>
    %27 = tpu.matmul %26, %25, %cst_19 {dimension_numbers = #tpu.dot_dimension_numbers<[1], [0], [0], [1], [0, 0, 1, 1], [], []>} : vector<64x32xbf16>, vector<32x192xbf16>, vector<64x192xf32> -> vector<64x192xf32>
    %28 = vector.extract_strided_slice %27 {offsets = [0, 0], sizes = [64, 64], strides = [1, 1]} : vector<64x192xf32> to vector<64x64xf32>
    %cst_20 = arith.constant 0.000000e+00 : f32
    %29 = vector.broadcast %cst_20 : f32 to vector<1x64xf32>
    %30 = vector.extract_strided_slice %28 {offsets = [0, 0], sizes = [63, 64], strides = [1, 1]} : vector<64x64xf32> to vector<63x64xf32>
    %31 = tpu.concatenate %29, %30 in 0 : vector<1x64xf32>, vector<63x64xf32> -> vector<64x64xf32>
    %32 = vector.extract_strided_slice %27 {offsets = [0, 64], sizes = [64, 64], strides = [1, 1]} : vector<64x192xf32> to vector<64x64xf32>
    %33 = arith.addf %31, %32 : vector<64x64xf32>
    %34 = vector.extract_strided_slice %27 {offsets = [0, 128], sizes = [64, 64], strides = [1, 1]} : vector<64x192xf32> to vector<64x64xf32>
    %cst_21 = arith.constant 0.000000e+00 : f32
    %35 = vector.broadcast %cst_21 : f32 to vector<1x64xf32>
    %36 = vector.extract_strided_slice %34 {offsets = [1, 0], sizes = [63, 64], strides = [1, 1]} : vector<64x64xf32> to vector<63x64xf32>
    %37 = tpu.concatenate %36, %35 in 0 : vector<63x64xf32>, vector<1x64xf32> -> vector<64x64xf32>
    %38 = arith.addf %33, %37 : vector<64x64xf32>
    %39 = arith.addf %24, %38 : vector<64x64xf32>
    %cst_22 = arith.constant 0.000000e+00 : f32
    %40 = vector.broadcast %cst_22 : f32 to vector<64x64xf32>
    %41 = arith.maximumf %39, %40 : vector<64x64xf32>
    %c0_23 = arith.constant 0 : index
    %c0_24 = arith.constant 0 : index
    %42 = vector.load %arg11[%c0_23, %c0_24] : memref<64x192xbf16, #tpu.memory_space<vmem>>, vector<64x192xbf16>
    %c0_25 = arith.constant 0 : index
    %c0_26 = arith.constant 0 : index
    %43 = vector.load %arg12[%c0_25, %c0_26] : memref<1x64xf32, #tpu.memory_space<vmem>>, vector<1x64xf32>
    %44 = arith.truncf %41 : vector<64x64xf32> to vector<64x64xbf16>
    %cst_27 = arith.constant dense<0.000000e+00> : vector<64x192xf32>
    %45 = tpu.matmul %44, %42, %cst_27 {dimension_numbers = #tpu.dot_dimension_numbers<[1], [0], [0], [1], [0, 0, 1, 1], [], []>} : vector<64x64xbf16>, vector<64x192xbf16>, vector<64x192xf32> -> vector<64x192xf32>
    %46 = vector.extract_strided_slice %45 {offsets = [0, 0], sizes = [64, 64], strides = [1, 1]} : vector<64x192xf32> to vector<64x64xf32>
    %cst_28 = arith.constant 0.000000e+00 : f32
    %47 = vector.broadcast %cst_28 : f32 to vector<1x64xf32>
    %48 = vector.extract_strided_slice %46 {offsets = [0, 0], sizes = [63, 64], strides = [1, 1]} : vector<64x64xf32> to vector<63x64xf32>
    %49 = tpu.concatenate %47, %48 in 0 : vector<1x64xf32>, vector<63x64xf32> -> vector<64x64xf32>
    %50 = vector.extract_strided_slice %45 {offsets = [0, 64], sizes = [64, 64], strides = [1, 1]} : vector<64x192xf32> to vector<64x64xf32>
    %51 = arith.addf %49, %50 : vector<64x64xf32>
    %52 = vector.extract_strided_slice %45 {offsets = [0, 128], sizes = [64, 64], strides = [1, 1]} : vector<64x192xf32> to vector<64x64xf32>
    %cst_29 = arith.constant 0.000000e+00 : f32
    %53 = vector.broadcast %cst_29 : f32 to vector<1x64xf32>
    %54 = vector.extract_strided_slice %52 {offsets = [1, 0], sizes = [63, 64], strides = [1, 1]} : vector<64x64xf32> to vector<63x64xf32>
    %55 = tpu.concatenate %54, %53 in 0 : vector<63x64xf32>, vector<1x64xf32> -> vector<64x64xf32>
    %56 = arith.addf %51, %55 : vector<64x64xf32>
    %57 = vector.broadcast %43 : vector<1x64xf32> to vector<64x64xf32>
    %58 = arith.addf %56, %57 : vector<64x64xf32>
    %cst_30 = arith.constant 0.000000e+00 : f32
    %59 = vector.broadcast %cst_30 : f32 to vector<64x64xf32>
    %60 = arith.maximumf %58, %59 : vector<64x64xf32>
    %61 = arith.truncf %60 : vector<64x64xf32> to vector<64x64xbf16>
    %c0_31 = arith.constant 0 : index
    %c0_32 = arith.constant 0 : index
    %62 = vector.load %arg13[%c0_31, %c0_32] : memref<64x16xbf16, #tpu.memory_space<vmem>>, vector<64x16xbf16>
    %cst_33 = arith.constant dense<0.000000e+00> : vector<64x16xf32>
    %63 = tpu.matmul %61, %62, %cst_33 {dimension_numbers = #tpu.dot_dimension_numbers<[1], [0], [0], [1], [0, 0, 1, 1], [], []>} : vector<64x64xbf16>, vector<64x16xbf16>, vector<64x16xf32> -> vector<64x16xf32>
    %c0_34 = arith.constant 0 : index
    %c0_35 = arith.constant 0 : index
    %64 = vector.load %arg14[%c0_34, %c0_35] : memref<1x16xf32, #tpu.memory_space<vmem>>, vector<1x16xf32>
    %65 = vector.broadcast %64 : vector<1x16xf32> to vector<64x16xf32>
    %66 = arith.addf %63, %65 : vector<64x16xf32>
    %67 = vector.broadcast %1 : vector<64x1xf32> to vector<64x16xf32>
    %68 = arith.mulf %66, %67 : vector<64x16xf32>
    %69 = arith.subf %3, %7 : vector<64x16xf32>
    %70 = arith.subf %69, %68 : vector<64x16xf32>
    %cst_36 = arith.constant 5.000000e-01 : f32
    %71 = vector.broadcast %cst_36 : f32 to vector<64x16xf32>
    %72 = arith.mulf %71, %70 : vector<64x16xf32>
    %cst_37 = arith.constant 2.500000e-01 : f32
    %73 = arith.mulf %13, %cst_37 : f32
    %74 = vector.broadcast %73 : f32 to vector<64x16xf32>
    %75 = arith.mulf %72, %74 : vector<64x16xf32>
    %76 = arith.subf %7, %75 : vector<64x16xf32>
    %77 = vector.broadcast %1 : vector<64x1xf32> to vector<64x16xf32>
    %78 = arith.mulf %76, %77 : vector<64x16xf32>
    %c0_38 = arith.constant 0 : index
    %c0_39 = arith.constant 0 : index
    %79 = vector.load %arg16[%c0_38, %c0_39] : memref<64x16xf32, #tpu.memory_space<vmem>>, vector<64x16xf32>
    tpu.vector_store %arg16[%c0_38, %c0_39], %78 {strides = array<i32>} : memref<64x16xf32, #tpu.memory_space<vmem>>, vector<64x16xf32>,
    %c3_i32 = arith.constant 3 : i32
    %80 = arith.cmpi eq, %arg1, %c3_i32 : i32
    %81 = arith.extui %80 : i1 to i32
    %c0_i32_40 = arith.constant 0 : i32
    %82 = arith.cmpi ne, %81, %c0_i32_40 : i32
    scf.if %82 {
      %c0_41 = arith.constant 0 : index
      %c0_42 = arith.constant 0 : index
      %c0_43 = arith.constant 0 : index
      %83 = vector.load %arg15[%c0_41, %c0_42, %c0_43] : memref<1x64x16xf32, #tpu.memory_space<vmem>>, vector<1x64x16xf32>
      %84 = vector.shape_cast %83 : vector<1x64x16xf32> to vector<64x16xf32>
      %85 = vector.shape_cast %78 : vector<64x16xf32> to vector<1x64x16xf32>
      tpu.vector_store %arg15[%c0_41, %c0_42, %c0_43], %85 {strides = array<i32>} : memref<1x64x16xf32, #tpu.memory_space<vmem>>, vector<1x64x16xf32>,
    } else {
    }
    return
  }
  func.func @transform_0(%arg0: i32, %arg1: i32) -> (i32, i32, i32) {
    %c0_i32 = arith.constant 0 : i32
    %c0_i32_0 = arith.constant 0 : i32
    %c0_i32_1 = arith.constant 0 : i32
    return %arg0, %c0_i32, %c0_i32_0 : i32, i32, i32
  }
  func.func @transform_1(%arg0: i32, %arg1: i32) -> (i32, i32, i32) {
    %c0_i32 = arith.constant 0 : i32
    %c0_i32_0 = arith.constant 0 : i32
    %c0_i32_1 = arith.constant 0 : i32
    return %arg0, %c0_i32, %c0_i32_0 : i32, i32, i32
  }
  func.func @transform_2(%arg0: i32, %arg1: i32) -> (i32, i32, i32) {
    %c0_i32 = arith.constant 0 : i32
    %c0_i32_0 = arith.constant 0 : i32
    %c0_i32_1 = arith.constant 0 : i32
    return %arg0, %c0_i32, %c0_i32_0 : i32, i32, i32
  }
  func.func @transform_3(%arg0: i32, %arg1: i32) -> (i32, i32, i32) {
    %c0_i32 = arith.constant 0 : i32
    %c0_i32_0 = arith.constant 0 : i32
    %c0_i32_1 = arith.constant 0 : i32
    return %arg0, %c0_i32, %c0_i32_0 : i32, i32, i32
  }
  func.func @transform_4(%arg0: i32, %arg1: i32) -> (i32, i32, i32) {
    %c0_i32 = arith.constant 0 : i32
    %c0_i32_0 = arith.constant 0 : i32
    %c0_i32_1 = arith.constant 0 : i32
    return %arg0, %c0_i32, %c0_i32_0 : i32, i32, i32
  }
  func.func @transform_5(%arg0: i32, %arg1: i32) -> (i32, i32) {
    %c0_i32 = arith.constant 0 : i32
    %c0_i32_0 = arith.constant 0 : i32
    %c0_i32_1 = arith.constant 0 : i32
    return %c0_i32, %c0_i32_0 : i32, i32
  }
  func.func @transform_6(%arg0: i32, %arg1: i32) -> (i32, i32) {
    %c0_i32 = arith.constant 0 : i32
    %c0_i32_0 = arith.constant 0 : i32
    %c0_i32_1 = arith.constant 0 : i32
    return %c0_i32, %c0_i32_0 : i32, i32
  }
  func.func @transform_7(%arg0: i32, %arg1: i32) -> (i32, i32) {
    %c0_i32 = arith.constant 0 : i32
    %c0_i32_0 = arith.constant 0 : i32
    %c0_i32_1 = arith.constant 0 : i32
    return %c0_i32, %c0_i32_0 : i32, i32
  }
  func.func @transform_8(%arg0: i32, %arg1: i32) -> (i32, i32) {
    %c0_i32 = arith.constant 0 : i32
    %c0_i32_0 = arith.constant 0 : i32
    %c0_i32_1 = arith.constant 0 : i32
    return %c0_i32, %c0_i32_0 : i32, i32
  }
  func.func @transform_9(%arg0: i32, %arg1: i32) -> (i32, i32) {
    %c0_i32 = arith.constant 0 : i32
    %c0_i32_0 = arith.constant 0 : i32
    %c0_i32_1 = arith.constant 0 : i32
    return %c0_i32, %c0_i32_0 : i32, i32
  }
  func.func @transform_10(%arg0: i32, %arg1: i32) -> (i32, i32) {
    %c0_i32 = arith.constant 0 : i32
    %c0_i32_0 = arith.constant 0 : i32
    %c0_i32_1 = arith.constant 0 : i32
    return %c0_i32, %c0_i32_0 : i32, i32
  }
  func.func @transform_11(%arg0: i32, %arg1: i32) -> (i32, i32) {
    %c0_i32 = arith.constant 0 : i32
    %c0_i32_0 = arith.constant 0 : i32
    %c0_i32_1 = arith.constant 0 : i32
    return %c0_i32, %c0_i32_0 : i32, i32
  }
  func.func @transform_12(%arg0: i32, %arg1: i32) -> (i32, i32) {
    %c0_i32 = arith.constant 0 : i32
    %c0_i32_0 = arith.constant 0 : i32
    %c0_i32_1 = arith.constant 0 : i32
    return %c0_i32, %c0_i32_0 : i32, i32
  }
  func.func @transform_13(%arg0: i32, %arg1: i32) -> (i32, i32, i32) {
    %c0_i32 = arith.constant 0 : i32
    %c0_i32_0 = arith.constant 0 : i32
    %c0_i32_1 = arith.constant 0 : i32
    return %arg0, %c0_i32, %c0_i32_0 : i32, i32, i32
  }
}

</mosaic_0001>

<llo_original>
// kernel: tpu_custom_call.1
$region0: #{tpu_custom_call.1}
  #allocation0 [shape = 'u32[]', space=smem, size = 0x4, offset = 0x4, fixed_abs, tag = 'smem constant byte address 0x4 - core index']
  #allocation1 [shape = 'u32[144,128]{1,0:T(1,128)}', space=vmem, size = 0x12000, scoped, tag = 'internal scratch']
  %s0 = inlined_call_operand.hbm [shape: f32[64,64], index: 0, kind: input, shape index: {}]
  %s1 = inlined_call_operand.hbm [shape: f32[64,64], index: 1, kind: output, shape index: {}]
  %s2 = sld [smem:[#allocation0]]
  $region18: #{tpu_custom_call.1} parent=0
    _
  %s4 = ssub.s32 1, %s2
  %s5 = scalar_select 0, %s4, %s2
  $region1: #{tpu_custom_call.1} parent=0
    #allocation2 [shape = 'u8[32768]{0}', space=vmem, size = 0x8000, scoped, tag = 'input window, operand 0, single buffered']
    #allocation3 [shape = 's32[1]{0}', space=sflag, size = 0x4, scoped, tag = 'scoped memory for tpu_custom_call.1']
    #allocation4 [shape = 's32[1]{0}', space=sflag, size = 0x4, scoped, tag = 'scoped memory for tpu_custom_call.1']
    #allocation5 [shape = 'u8[32768]{0}', space=vmem, size = 0x8000, scoped, tag = 'output window, operand 0, single buffered']
    %6 = vsyncpa [#allocation3], 0
    %7 = vsyncpa [#allocation4], 0
    // Predicated region
    $region2: #{tpu_custom_call.1} parent=1 // pred_check
      _
    $region3: #{tpu_custom_call.1} parent=1 // pred_check_branch
      %9 = sbr.rel (0) target = $region5
    $region4: #{tpu_custom_call.1} parent=1 // pred_region
      %s11 = ssub.s32 1024, 1024
      %12 = vsyncadd [#allocation3], %s11
      %s13 = sshll.u32 [#allocation2], 4
      %s14 = int_to_ptr.vmem [resolvable:$true] %s13
      %19 = dma.hbm_to_vmem [thread:$0]  %s0, 1024, %s14, [#allocation3], 128, 128, 8
    $region5: #{tpu_custom_call.1} parent=1 // pred_fallthru
      _
    // Predicated region
    $region6: #{tpu_custom_call.1} parent=1 // pred_check
      _
    $region7: #{tpu_custom_call.1} parent=1 // pred_check_branch
      %21 = sbr.rel (0) target = $region9
    $region8: #{tpu_custom_call.1} parent=1 // pred_region
      %22 = dma.done [#allocation3], 1024
    $region9: #{tpu_custom_call.1} parent=1 // pred_fallthru
      _
    %v23 = vld [vmem:[#allocation2] sm:$0xff]
    %v24 = vld [vmem:[#allocation2 + $0x8] sm:$0xff]
    %v25 = vld [vmem:[#allocation2 + $0x10] sm:$0xff]
    %v26 = vld [vmem:[#allocation2 + $0x18] sm:$0xff]
    %v27 = vld [vmem:[#allocation2 + $0x20] sm:$0xff]
    %v28 = vld [vmem:[#allocation2 + $0x28] sm:$0xff]
    %v29 = vld [vmem:[#allocation2 + $0x30] sm:$0xff]
    %v30 = vld [vmem:[#allocation2 + $0x38] sm:$0xff]
    %v31 = vrot.slane %v23, 7
    %v32 = vrot.slane %v24, 7
    %v33 = vrot.slane %v25, 7
    %v34 = vrot.slane %v26, 7
    %v35 = vrot.slane %v27, 7
    %v36 = vrot.slane %v28, 7
    %v37 = vrot.slane %v29, 7
    %v38 = vrot.slane %v30, 7
    %v39 = vlaneseq
    %v40 = vshrl.u32 %v39, 7
    %vm41 = vcmp.lt.s32.totalorder %v40, 1
    %v42 = vsel %vm41, %v37, %v38
    %v43 = vsel %vm41, %v36, %v37
    %v44 = vsel %vm41, %v35, %v36
    %v45 = vsel %vm41, %v34, %v35
    %v46 = vsel %vm41, %v33, %v34
    %v47 = vsel %vm41, %v32, %v33
    %v48 = vsel %vm41, %v31, %v32
    %v49 = vsel %vm41, %v38, %v31
    %vm50 = vcmask 523264
    %51 = vst.msk [vmem:[#allocation5] sm:$0xff] %vm50, %v49
    %52 = vst.msk [vmem:[#allocation5 + $0x8] sm:$0xff] %vm50, %v48
    %53 = vst.msk [vmem:[#allocation5 + $0x10] sm:$0xff] %vm50, %v47
    %54 = vst.msk [vmem:[#allocation5 + $0x18] sm:$0xff] %vm50, %v46
    %55 = vst.msk [vmem:[#allocation5 + $0x20] sm:$0xff] %vm50, %v45
    %56 = vst.msk [vmem:[#allocation5 + $0x28] sm:$0xff] %vm50, %v44
    %57 = vst.msk [vmem:[#allocation5 + $0x30] sm:$0xff] %vm50, %v43
    %58 = vst.msk [vmem:[#allocation5 + $0x38] sm:$0xff] %vm50, %v42
    // Predicated region
    $region10: #{tpu_custom_call.1} parent=1 // pred_check
      _
    $region11: #{tpu_custom_call.1} parent=1 // pred_check_branch
      %60 = sbr.rel (0) target = $region13
    $region12: #{tpu_custom_call.1} parent=1 // pred_region
      %s62 = ssub.s32 1024, 1024
      %63 = vsyncadd [#allocation4], %s62
      %s64 = sshll.u32 [#allocation5], 4
      %s65 = int_to_ptr.vmem [resolvable:$true] %s64
      %70 = dma.vmem_to_hbm [thread:$0]  %s65, 1024, %s1, [#allocation4], 128, 128, 8
    $region13: #{tpu_custom_call.1} parent=1 // pred_fallthru
      _
    // Predicated region
    $region14: #{tpu_custom_call.1} parent=1 // pred_check
      _
    $region15: #{tpu_custom_call.1} parent=1 // pred_check_branch
      %72 = sbr.rel (0) target = $region17
    $region16: #{tpu_custom_call.1} parent=1 // pred_region
      %73 = dma.done [#allocation4], 1024
    $region17: #{tpu_custom_call.1} parent=1 // pred_fallthru
      _
    %74 = vsyncpa [#allocation3], 1
    %75 = vsyncpa [#allocation4], 1

// kernel: stableform_tts_forward.7
$region0: #{stableform_tts_forward.7}
  #allocation0 [shape = 'u32[]', space=smem, size = 0x4, offset = 0x4, fixed_abs, tag = 'smem constant byte address 0x4 - core index']
  #allocation1 [shape = 'u32[144,128]{1,0:T(1,128)}', space=vmem, size = 0x12000, scoped, tag = 'internal scratch']
  #allocation2 [shape = 'f32[1,1]{1,0:T(1,128)S(1)}', space=vmem, size = 0x200, scoped, tag = 'scoped memory for stableform_tts_forward.7']
  %s0 = inlined_call_operand.vmem [shape: bf16[2,8,32], index: 0, kind: input, shape index: {}]
  %s1 = inlined_call_operand.vmem [shape: f32[2,1,16], index: 1, kind: input, shape index: {}]
  %s2 = inlined_call_operand.vmem [shape: bf16[48,96], index: 2, kind: input, shape index: {}]
  %s3 = inlined_call_operand.vmem [shape: f32[1,32], index: 3, kind: input, shape index: {}]
  %s4 = inlined_call_operand.vmem [shape: bf16[32,96], index: 4, kind: input, shape index: {}]
  %s5 = inlined_call_operand.vmem [shape: f32[1,32], index: 5, kind: input, shape index: {}]
  %s6 = inlined_call_operand.vmem [shape: bf16[32,1], index: 6, kind: input, shape index: {}]
  %s7 = inlined_call_operand.<no memory space> [shape: f32[1,1], index: 7, kind: input, shape index: {}]
  %s8 = inlined_call_operand.vmem [shape: f32[2,8,1], index: 8, kind: output, shape index: {}]
  %s9 = sld [smem:[#allocation0]]
  $region65: #{stableform_tts_forward.7} parent=0
    _
  %s11 = ssub.s32 1, %s9
  %s12 = scalar_select 0, %s11, %s9
  %v13 = vstv %s7
  %14 = vst [vmem:[#allocation2] sm:$0x1] %v13
  loop: start=0, step=1, limit=4
  $region2: #{stableform_tts_forward.7} parent=0 // loop_pre_header
    _
  $region3: #{stableform_tts_forward.7} parent=0 // loop_header
    %s16 = sphi 0, %s20
    %p17 = scmp.ge.s32.totalorder %s16, 4
    %s26 = sphi 0, %s28
    %s29 = sphi 0, %s26
    %s30 = sphi 0, %s29
    %s46 = sphi 0, %s30
    %s52 = sphi 0, %s54
    %s55 = sphi 0, %s52
    %s56 = sphi 0, %s55
    %s72 = sphi 0, %s56
    %s76 = sphi 0, %s76
    %s78 = sphi 0, %s76
    %s79 = sphi 0, %s78
    %s93 = sphi 0, %s79
    %s97 = sphi 0, %s97
    %s99 = sphi 0, %s97
    %s100 = sphi 0, %s99
    %s114 = sphi 0, %s100
    %s118 = sphi 0, %s118
    %s120 = sphi 0, %s118
    %s121 = sphi 0, %s120
    %s135 = sphi 0, %s121
    %s139 = sphi 0, %s139
    %s141 = sphi 0, %s139
    %s142 = sphi 0, %s141
    %s156 = sphi 0, %s142
    %s160 = sphi 0, %s160
    %s162 = sphi 0, %s160
    %s163 = sphi 0, %s162
    %s177 = sphi 0, %s163
    %s181 = sphi 0, %s181
    %s183 = sphi 0, %s181
    %s184 = sphi 0, %s183
    %s198 = sphi 0, %s184
    %s204 = sphi 0, %s206
    %s207 = sphi 0, %s204
    %s208 = sphi 0, %s207
    %s224 = sphi 0, %s208
  $region4: #{stableform_tts_forward.7} parent=0 // loop_header_branch
    %19 = sbr.rel (%p17) target = $region8
  $region5: #{stableform_tts_forward.7} parent=0 // loop_body
    %s21 = ssub.s32 %s16, 1
    %s22 = ssub.s32 %s16, 2
    %s23 = sadd.s32 %s16, 1
    %s24 = ssub.s32 %s16, %s23
    %p25 = scmp.eq.s32.totalorder %s24, 0
    %s27 = sadd.s32 %s26, 1
    %s28 = scalar_select %p25, %s26, %s27
    %p31 = pneg %p25
    %p32 = scmp.eq.s32.totalorder %s16, 1
    %p33 = por %p31, %p32
    %p34 = scmp.ne.s32.totalorder %s26, %s29
    %p35 = scmp.eq.s32.totalorder %s16, 0
    %p36 = por %p34, %p35
    %p37 = scmp.ne.s32.totalorder %s26, %s29
    %p38 = scmp.eq.s32.totalorder %s21, 1
    %p39 = por %p37, %p38
    %p40 = scmp.ne.s32.totalorder %s29, %s30
    %p41 = scmp.eq.s32.totalorder %s21, 0
    %p42 = por %p40, %p41
    %p43 = scmp.ne.s32.totalorder %s29, %s30
    %p44 = scmp.eq.s32.totalorder %s22, 1
    %p45 = por %p43, %p44
    %p47 = scmp.ne.s32.totalorder %s30, %s46
    %p48 = scmp.eq.s32.totalorder %s22, 0
    %p49 = por %p47, %p48
    %s50 = ssub.s32 %s16, %s23
    %p51 = scmp.eq.s32.totalorder %s50, 0
    %s53 = sadd.s32 %s52, 1
    %s54 = scalar_select %p51, %s52, %s53
    %p57 = pneg %p51
    %p58 = scmp.eq.s32.totalorder %s16, 1
    %p59 = por %p57, %p58
    %p60 = scmp.ne.s32.totalorder %s52, %s55
    %p61 = scmp.eq.s32.totalorder %s16, 0
    %p62 = por %p60, %p61
    %p63 = scmp.ne.s32.totalorder %s52, %s55
    %p64 = scmp.eq.s32.totalorder %s21, 1
    %p65 = por %p63, %p64
    %p66 = scmp.ne.s32.totalorder %s55, %s56
    %p67 = scmp.eq.s32.totalorder %s21, 0
    %p68 = por %p66, %p67
    %p69 = scmp.ne.s32.totalorder %s55, %s56
    %p70 = scmp.eq.s32.totalorder %s22, 1
    %p71 = por %p69, %p70
    %p73 = scmp.ne.s32.totalorder %s56, %s72
    %p74 = scmp.eq.s32.totalorder %s22, 0
    %p75 = por %p73, %p74
    %s77 = sadd.s32 %s76, 1
    %p80 = scmp.eq.s32.totalorder %s16, 1
    %p81 = scmp.ne.s32.totalorder %s76, %s78
    %p82 = scmp.eq.s32.totalorder %s16, 0
    %p83 = por %p81, %p82
    %p84 = scmp.ne.s32.totalorder %s76, %s78
    %p85 = scmp.eq.s32.totalorder %s21, 1
    %p86 = por %p84, %p85
    %p87 = scmp.ne.s32.totalorder %s78, %s79
    %p88 = scmp.eq.s32.totalorder %s21, 0
    %p89 = por %p87, %p88
    %p90 = scmp.ne.s32.totalorder %s78, %s79
    %p91 = scmp.eq.s32.totalorder %s22, 1
    %p92 = por %p90, %p91
    %p94 = scmp.ne.s32.totalorder %s79, %s93
    %p95 = scmp.eq.s32.totalorder %s22, 0
    %p96 = por %p94, %p95
    %s98 = sadd.s32 %s97, 1
    %p101 = scmp.eq.s32.totalorder %s16, 1
    %p102 = scmp.ne.s32.totalorder %s97, %s99
    %p103 = scmp.eq.s32.totalorder %s16, 0
    %p104 = por %p102, %p103
    %p105 = scmp.ne.s32.totalorder %s97, %s99
    %p106 = scmp.eq.s32.totalorder %s21, 1
    %p107 = por %p105, %p106
    %p108 = scmp.ne.s32.totalorder %s99, %s100
    %p109 = scmp.eq.s32.totalorder %s21, 0
    %p110 = por %p108, %p109
    %p111 = scmp.ne.s32.totalorder %s99, %s100
    %p112 = scmp.eq.s32.totalorder %s22, 1
    %p113 = por %p111, %p112
    %p115 = scmp.ne.s32.totalorder %s100, %s114
    %p116 = scmp.eq.s32.totalorder %s22, 0
    %p117 = por %p115, %p116
    %s119 = sadd.s32 %s118, 1
    %p122 = scmp.eq.s32.totalorder %s16, 1
    %p123 = scmp.ne.s32.totalorder %s118, %s120
    %p124 = scmp.eq.s32.totalorder %s16, 0
    %p125 = por %p123, %p124
    %p126 = scmp.ne.s32.totalorder %s118, %s120
    %p127 = scmp.eq.s32.totalorder %s21, 1
    %p128 = por %p126, %p127
    %p129 = scmp.ne.s32.totalorder %s120, %s121
    %p130 = scmp.eq.s32.totalorder %s21, 0
    %p131 = por %p129, %p130
    %p132 = scmp.ne.s32.totalorder %s120, %s121
    %p133 = scmp.eq.s32.totalorder %s22, 1
    %p134 = por %p132, %p133
    %p136 = scmp.ne.s32.totalorder %s121, %s135
    %p137 = scmp.eq.s32.totalorder %s22, 0
    %p138 = por %p136, %p137
    %s140 = sadd.s32 %s139, 1
    %p143 = scmp.eq.s32.totalorder %s16, 1
    %p144 = scmp.ne.s32.totalorder %s139, %s141
    %p145 = scmp.eq.s32.totalorder %s16, 0
    %p146 = por %p144, %p145
    %p147 = scmp.ne.s32.totalorder %s139, %s141
    %p148 = scmp.eq.s32.totalorder %s21, 1
    %p149 = por %p147, %p148
    %p150 = scmp.ne.s32.totalorder %s141, %s142
    %p151 = scmp.eq.s32.totalorder %s21, 0
    %p152 = por %p150, %p151
    %p153 = scmp.ne.s32.totalorder %s141, %s142
    %p154 = scmp.eq.s32.totalorder %s22, 1
    %p155 = por %p153, %p154
    %p157 = scmp.ne.s32.totalorder %s142, %s156
    %p158 = scmp.eq.s32.totalorder %s22, 0
    %p159 = por %p157, %p158
    %s161 = sadd.s32 %s160, 1
    %p164 = scmp.eq.s32.totalorder %s16, 1
    %p165 = scmp.ne.s32.totalorder %s160, %s162
    %p166 = scmp.eq.s32.totalorder %s16, 0
    %p167 = por %p165, %p166
    %p168 = scmp.ne.s32.totalorder %s160, %s162
    %p169 = scmp.eq.s32.totalorder %s21, 1
    %p170 = por %p168, %p169
    %p171 = scmp.ne.s32.totalorder %s162, %s163
    %p172 = scmp.eq.s32.totalorder %s21, 0
    %p173 = por %p171, %p172
    %p174 = scmp.ne.s32.totalorder %s162, %s163
    %p175 = scmp.eq.s32.totalorder %s22, 1
    %p176 = por %p174, %p175
    %p178 = scmp.ne.s32.totalorder %s163, %s177
    %p179 = scmp.eq.s32.totalorder %s22, 0
    %p180 = por %p178, %p179
    %s182 = sadd.s32 %s181, 1
    %p185 = scmp.eq.s32.totalorder %s16, 1
    %p186 = scmp.ne.s32.totalorder %s181, %s183
    %p187 = scmp.eq.s32.totalorder %s16, 0
    %p188 = por %p186, %p187
    %p189 = scmp.ne.s32.totalorder %s181, %s183
    %p190 = scmp.eq.s32.totalorder %s21, 1
    %p191 = por %p189, %p190
    %p192 = scmp.ne.s32.totalorder %s183, %s184
    %p193 = scmp.eq.s32.totalorder %s21, 0
    %p194 = por %p192, %p193
    %p195 = scmp.ne.s32.totalorder %s183, %s184
    %p196 = scmp.eq.s32.totalorder %s22, 1
    %p197 = por %p195, %p196
    %p199 = scmp.ne.s32.totalorder %s184, %s198
    %p200 = scmp.eq.s32.totalorder %s22, 0
    %p201 = por %p199, %p200
    %s202 = ssub.s32 %s16, %s23
    %p203 = scmp.eq.s32.totalorder %s202, 0
    %s205 = sadd.s32 %s204, 1
    %s206 = scalar_select %p203, %s204, %s205
    %p209 = pneg %p203
    %p210 = scmp.eq.s32.totalorder %s16, 1
    %p211 = por %p209, %p210
    %p212 = scmp.ne.s32.totalorder %s204, %s207
    %p213 = scmp.eq.s32.totalorder %s16, 0
    %p214 = por %p212, %p213
    %p215 = scmp.ne.s32.totalorder %s204, %s207
    %p216 = scmp.eq.s32.totalorder %s21, 1
    %p217 = por %p215, %p216
    %p218 = scmp.ne.s32.totalorder %s207, %s208
    %p219 = scmp.eq.s32.totalorder %s21, 0
    %p220 = por %p218, %p219
    %p221 = scmp.ne.s32.totalorder %s207, %s208
    %p222 = scmp.eq.s32.totalorder %s22, 1
    %p223 = por %p221, %p222
    %p225 = scmp.ne.s32.totalorder %s208, %s224
    %p226 = scmp.eq.s32.totalorder %s22, 0
    %p227 = por %p225, %p226
    %p228 = scmp.le.s32.totalorder 1, %s16
    %p229 = scmp.lt.s32.totalorder %s16, 3
    %p230 = pnand %p228, %p229
    %p231 = pneg %p230
    // Predicated region
    $region9: #{stableform_tts_forward.7} parent=5 // pred_check
      _
    $region10: #{stableform_tts_forward.7} parent=5 // pred_check_branch
      %233 = sbr.rel (%p230) target = $region12
    $region11: #{stableform_tts_forward.7} parent=5 // pred_region
      %s234 = ssub.s32 %s16, 1
      // Predicated region
      $region13: #{stableform_tts_forward.7} parent=11 // pred_check
        %p235 = pneg %p89
      $region14: #{stableform_tts_forward.7} parent=11 // pred_check_branch
        %237 = sbr.rel (%p235) target = $region16
      $region15: #{stableform_tts_forward.7} parent=11 // pred_region
        _
      $region16: #{stableform_tts_forward.7} parent=11 // pred_fallthru
        _
      // Predicated region
      $region17: #{stableform_tts_forward.7} parent=11 // pred_check
        %p238 = pneg %p110
      $region18: #{stableform_tts_forward.7} parent=11 // pred_check_branch
        %240 = sbr.rel (%p238) target = $region20
      $region19: #{stableform_tts_forward.7} parent=11 // pred_region
        _
      $region20: #{stableform_tts_forward.7} parent=11 // pred_fallthru
        _
      // Predicated region
      $region21: #{stableform_tts_forward.7} parent=11 // pred_check
        %p241 = pneg %p131
      $region22: #{stableform_tts_forward.7} parent=11 // pred_check_branch
        %243 = sbr.rel (%p241) target = $region24
      $region23: #{stableform_tts_forward.7} parent=11 // pred_region
        _
      $region24: #{stableform_tts_forward.7} parent=11 // pred_fallthru
        _
      // Predicated region
      $region25: #{stableform_tts_forward.7} parent=11 // pred_check
        %p244 = pneg %p152
      $region26: #{stableform_tts_forward.7} parent=11 // pred_check_branch
        %246 = sbr.rel (%p244) target = $region28
      $region27: #{stableform_tts_forward.7} parent=11 // pred_region
        _
      $region28: #{stableform_tts_forward.7} parent=11 // pred_fallthru
        _
      // Predicated region
      $region29: #{stableform_tts_forward.7} parent=11 // pred_check
        %p247 = pneg %p173
      $region30: #{stableform_tts_forward.7} parent=11 // pred_check_branch
        %249 = sbr.rel (%p247) target = $region32
      $region31: #{stableform_tts_forward.7} parent=11 // pred_region
        _
      $region32: #{stableform_tts_forward.7} parent=11 // pred_fallthru
        _
      // Predicated region
      $region33: #{stableform_tts_forward.7} parent=11 // pred_check
        %p250 = pneg %p194
      $region34: #{stableform_tts_forward.7} parent=11 // pred_check_branch
        %252 = sbr.rel (%p250) target = $region36
      $region35: #{stableform_tts_forward.7} parent=11 // pred_region
        _
      $region36: #{stableform_tts_forward.7} parent=11 // pred_fallthru
        _
    $region12: #{stableform_tts_forward.7} parent=5 // pred_fallthru
      _
    %p253 = scmp.lt.s32.totalorder %s16, 2
    // Predicated region
    $region37: #{stableform_tts_forward.7} parent=5 // pred_check
      %p254 = pneg %p253
    $region38: #{stableform_tts_forward.7} parent=5 // pred_check_branch
      %256 = sbr.rel (%p254) target = $region40
    $region39: #{stableform_tts_forward.7} parent=5 // pred_region
      // Predicated region
      $region41: #{stableform_tts_forward.7} parent=39 // pred_check
        %p257 = pneg %p36
      $region42: #{stableform_tts_forward.7} parent=39 // pred_check_branch
        %259 = sbr.rel (%p257) target = $region44
      $region43: #{stableform_tts_forward.7} parent=39 // pred_region
        %p260 = scmp.lt.s32.totalorder %s16, 1
        %s261 = scalar_select %p260, %s16, 1
        %s262 = smul.addr %s261, 4
        %s263 = scalar_lea.vmem %s0, %s262
      $region44: #{stableform_tts_forward.7} parent=39 // pred_fallthru
        _
      // Predicated region
      $region45: #{stableform_tts_forward.7} parent=39 // pred_check
        %p264 = pneg %p62
      $region46: #{stableform_tts_forward.7} parent=39 // pred_check_branch
        %266 = sbr.rel (%p264) target = $region48
      $region47: #{stableform_tts_forward.7} parent=39 // pred_region
        %p267 = scmp.lt.s32.totalorder %s16, 1
        %s268 = scalar_select %p267, %s16, 1
        %s269 = scalar_lea.vmem %s1, %s268
      $region48: #{stableform_tts_forward.7} parent=39 // pred_fallthru
        _
    $region40: #{stableform_tts_forward.7} parent=5 // pred_fallthru
      _
    %p270 = scmp.le.s32.totalorder 1, %s16
    %p271 = scmp.lt.s32.totalorder %s16, 3
    %p272 = pnand %p270, %p271
    %p273 = pneg %p272
    // Predicated region
    $region49: #{stableform_tts_forward.7} parent=5 // pred_check
      _
    $region50: #{stableform_tts_forward.7} parent=5 // pred_check_branch
      %275 = sbr.rel (%p272) target = $region52
    $region51: #{stableform_tts_forward.7} parent=5 // pred_region
      %s276 = ssub.s32 %s16, 1
      %p277 = scmp.lt.s32.totalorder %s21, 1
      %s278 = scalar_select %p277, %s21, 1
      %s279 = smul.addr %s278, 4
      %s280 = scalar_lea.vmem %s0, %s279
      %p281 = pneg %p42
      %p282 = pneg %p39
      %p283 = scmp.lt.s32.totalorder %s21, 1
      %s284 = scalar_select %p283, %s21, 1
      %s285 = scalar_lea.vmem %s1, %s284
      %p286 = pneg %p68
      %p287 = pneg %p65
      %p288 = pneg %p89
      %p289 = pneg %p86
      %p290 = pneg %p110
      %p291 = pneg %p107
      %p292 = pneg %p131
      %p293 = pneg %p128
      %p294 = pneg %p152
      %p295 = pneg %p149
      %p296 = pneg %p173
      %p297 = pneg %p170
      %p298 = pneg %p194
      %p299 = pneg %p191
      %p300 = pneg %p220
      %p301 = pneg %p217
      %p302 = scmp.lt.s32.totalorder %s21, 1
      %s303 = scalar_select %p302, %s21, 1
      %s304 = smul.addr %s303, 8
      %s305 = scalar_lea.vmem %s8, %s304
      %p306 = scmp.lt.s32.totalorder %s21, 1
      %s307 = scalar_select %p306, %s21, 1
      %s308 = smul.addr %s307, 4
      %s309 = scalar_lea.vmem %s0, %s308
      %p310 = scmp.lt.s32.totalorder %s21, 1
      %s311 = scalar_select %p310, %s21, 1
      %s312 = scalar_lea.vmem %s1, %s311
      %p313 = scmp.lt.s32.totalorder %s21, 1
      %s314 = scalar_select %p313, %s21, 1
      %s315 = smul.addr %s314, 8
      %s316 = scalar_lea.vmem %s8, %s315
      %v318 = vld [vmem:[%s309] sm:$0xf]
      %v319 = vunpack.c.l.bf16 %v318
      %v320 = vld [vmem:[%s312] sm:$0x1]
      %v322 = vlaneseq
      %v323 = vshrl.u32 %v322, 7
      %v324 = vsub.s32 0, %v323
      %v325 = vrot.slane %v320, %v324
      %326 = vrot.lane.b32.xlu0 %v325, 32
      %v327 = vpop.permute.xlu0 %326
      %vm329 = vcmask 261120
      %v330 = vsel %vm329, %v319, %v327
      %v331 = vld [vmem:[%s2] sm:$0xf]
      %v332 = vld [vmem:[%s2 + $0x4] sm:$0xf]
      %v333 = vld [vmem:[%s2 + $0x8] sm:$0xf]
      %v334 = vld [vmem:[%s2 + $0xc] sm:$0xf]
      %v335 = vld [vmem:[%s2 + $0x10] sm:$0xf]
      %v336 = vld [vmem:[%s2 + $0x14] sm:$0xf]
      %v337 = vld [vmem:[%s3] sm:$0x1]
      %v338 = vpack.c.bf16 %v330, %v330
      %v345 = vunpack.c.l.b16 %v331
      %v346 = vunpack.c.l.b16 %v332
      %v347 = vunpack.c.l.b16 %v333
      %v348 = vunpack.c.l.b16 %v334
      %v349 = vunpack.c.l.b16 %v335
      %v350 = vunpack.c.l.b16 %v336
      %v351 = vpack.c.b16 %v346, %v345
      %v352 = vpack.c.b16 %v348, %v347
      %v353 = vpack.c.b16 %v350, %v349
      %vm357 = vcmask 392192
      %v359 = vsel %vm357, %v338, 0
      %361 = vmatprep.subr.bf16.mxu0 0
      %362 = vmatpush1.bf16.msra.mxu0 0
      %363 = vmatprep.subr.bf16.mxu0 0
      %364 = vmatpush1.bf16.msra.mxu0 0
      %365 = vmatprep.subr.bf16.mxu0 0
      %366 = vmatpush1.bf16.msra.mxu0 0
      %367 = vmatprep.subr.bf16.mxu0 0
      %368 = vmatpush1.bf16.msra.mxu0 0
      %369 = vmatprep.subr.bf16.mxu0 0
      %370 = vmatpush1.bf16.msra.mxu0 0
      %371 = vmatprep.subr.bf16.mxu0 0
      %372 = vmatpush1.bf16.msra.mxu0 %v353
      %373 = vmatprep.subr.bf16.mxu0 0
      %374 = vmatpush1.bf16.msra.mxu0 %v352
      %375 = vmatprep.subr.bf16.mxu0 0
      %376 = vmatpush1.bf16.msra.mxu0 %v351
      %377 = vmatprep.subr.bf16.mxu0 0
      %378 = vmatpush2.bf16.msra.mxu0 0
      %379 = vmatprep.subr.bf16.mxu0 0
      %380 = vmatpush2.bf16.msra.mxu0 0
      %381 = vmatprep.subr.bf16.mxu0 0
      %382 = vmatpush2.bf16.msra.mxu0 0
      %383 = vmatprep.subr.bf16.mxu0 0
      %384 = vmatpush2.bf16.msra.mxu0 0
      %385 = vmatprep.subr.bf16.mxu0 0
      %386 = vmatpush2.bf16.msra.mxu0 0
      %387 = vmatprep.subr.bf16.mxu0 0
      %388 = vmatpush2.bf16.msra.mxu0 0
      %389 = vmatprep.subr.bf16.mxu0 0
      %390 = vmatpush2.bf16.msra.mxu0 0
      %391 = vmatprep.subr.bf16.mxu0 0
      %392 = vmatpush2.bf16.msra.mxu0 0
      %393 = vmatprep.mubr.bf16.mxu0 0
      %394 = vmatmul.mubr.bf16.gmra.mxu0 %v359
      %v395 = vpop.f32.mrf.mxu0
      %v396 = vadd.f32 0.0, %v395
      %v397 = vpop.f32.mrf.mxu0
      %v398 = vpop.f32.mrf.mxu0
      %v399 = vpop.f32.mrf.mxu0
      %400 = vdwg.mxu0
      %v402 = vrot.slane %v396, 7
      %vm404 = vcmask 1040384
      %v405 = vsel %vm404, 0.0, %v402
      %406 = vrot.lane.b32.xlu0 %v396, 96
      %v407 = vpop.permute.xlu0 %406
      %v409 = vadd.f32 %v405, %v407
      %v410 = vrot.slane %v396, 1
      %vm412 = vcmask 1046528
      %v413 = vsel %vm412, %v410, 0.0
      %415 = vrot.lane.b32.xlu0 %v413, 64
      %v416 = vpop.permute.xlu0 %415
      %v418 = vadd.f32 %v409, %v416
      %v420 = vlaneseq
      %v421 = vshrl.u32 %v420, 7
      %v422 = vsub.s32 0, %v421
      %v423 = vrot.slane %v337, %v422
      %v425 = vadd.f32 %v418, %v423
      %v426 = vmax.f32 %v425, 0.0
      %v427 = vld [vmem:[%s4] sm:$0xf]
      %v428 = vld [vmem:[%s4 + $0x4] sm:$0xf]
      %v429 = vld [vmem:[%s4 + $0x8] sm:$0xf]
      %v430 = vld [vmem:[%s4 + $0xc] sm:$0xf]
      %v431 = vld [vmem:[%s5] sm:$0x1]
      %v432 = vpack.c.bf16 %v426, %v426
      %v437 = vunpack.c.l.b16 %v427
      %v438 = vunpack.c.l.b16 %v428
      %v439 = vunpack.c.l.b16 %v429
      %v440 = vunpack.c.l.b16 %v430
      %v441 = vpack.c.b16 %v438, %v437
      %v442 = vpack.c.b16 %v440, %v439
      %v446 = vsel %vm329, %v432, 0
      %448 = vmatprep.subr.bf16.mxu0 0
      %449 = vmatpush1.bf16.msra.mxu0 0
      %450 = vmatprep.subr.bf16.mxu0 0
      %451 = vmatpush1.bf16.msra.mxu0 0
      %452 = vmatprep.subr.bf16.mxu0 0
      %453 = vmatpush1.bf16.msra.mxu0 0
      %454 = vmatprep.subr.bf16.mxu0 0
      %455 = vmatpush1.bf16.msra.mxu0 0
      %456 = vmatprep.subr.bf16.mxu0 0
      %457 = vmatpush1.bf16.msra.mxu0 0
      %458 = vmatprep.subr.bf16.mxu0 0
      %459 = vmatpush1.bf16.msra.mxu0 0
      %460 = vmatprep.subr.bf16.mxu0 0
      %461 = vmatpush1.bf16.msra.mxu0 %v442
      %462 = vmatprep.subr.bf16.mxu0 0
      %463 = vmatpush1.bf16.msra.mxu0 %v441
      %464 = vmatprep.subr.bf16.mxu0 0
      %465 = vmatpush2.bf16.msra.mxu0 0
      %466 = vmatprep.subr.bf16.mxu0 0
      %467 = vmatpush2.bf16.msra.mxu0 0
      %468 = vmatprep.subr.bf16.mxu0 0
      %469 = vmatpush2.bf16.msra.mxu0 0
      %470 = vmatprep.subr.bf16.mxu0 0
      %471 = vmatpush2.bf16.msra.mxu0 0
      %472 = vmatprep.subr.bf16.mxu0 0
      %473 = vmatpush2.bf16.msra.mxu0 0
      %474 = vmatprep.subr.bf16.mxu0 0
      %475 = vmatpush2.bf16.msra.mxu0 0
      %476 = vmatprep.subr.bf16.mxu0 0
      %477 = vmatpush2.bf16.msra.mxu0 0
      %478 = vmatprep.subr.bf16.mxu0 0
      %479 = vmatpush2.bf16.msra.mxu0 0
      %480 = vmatprep.mubr.bf16.mxu0 0
      %481 = vmatmul.mubr.bf16.gmra.mxu0 %v446
      %v482 = vpop.f32.mrf.mxu0
      %v483 = vadd.f32 0.0, %v482
      %v484 = vpop.f32.mrf.mxu0
      %v485 = vpop.f32.mrf.mxu0
      %v486 = vpop.f32.mrf.mxu0
      %487 = vdwg.mxu0
      %v489 = vrot.slane %v483, 7
      %v491 = vsel %vm404, 0.0, %v489
      %492 = vrot.lane.b32.xlu0 %v483, 96
      %v493 = vpop.permute.xlu0 %492
      %v495 = vadd.f32 %v491, %v493
      %v496 = vrot.slane %v483, 1
      %v498 = vsel %vm412, %v496, 0.0
      %500 = vrot.lane.b32.xlu0 %v498, 64
      %v501 = vpop.permute.xlu0 %500
      %v503 = vadd.f32 %v495, %v501
      %v505 = vlaneseq
      %v506 = vshrl.u32 %v505, 7
      %v507 = vsub.s32 0, %v506
      %v508 = vrot.slane %v431, %v507
      %v510 = vadd.f32 %v503, %v508
      %v511 = vmax.f32 %v510, 0.0
      %v512 = vpack.c.bf16 %v511, %v511
      %v513 = vld [vmem:[%s6] sm:$0xf]
      %v514 = vld [vmem:[%s6 + $0x4] sm:$0xf]
      %v515 = vld [vmem:[%s6 + $0x8] sm:$0xf]
      %v516 = vld [vmem:[%s6 + $0xc] sm:$0xf]
      %v517 = vld [vmem:[#allocation2] sm:$0x1]
      %v519 = vlaneseq
      %v520 = vshrl.u32 %v519, 7
      %v521 = vsub.s32 0, %v520
      %v522 = vrot.slane %v517, %v521
      %v528 = vunpack.c.l.b16 %v513
      %v529 = vunpack.c.l.b16 %v514
      %v530 = vunpack.c.l.b16 %v515
      %v531 = vunpack.c.l.b16 %v516
      %v532 = vpack.c.b16 %v529, %v528
      %v533 = vpack.c.b16 %v531, %v530
      %v537 = vsel %vm329, %v512, 0
      %539 = vmatprep.subr.bf16.mxu0 0
      %540 = vmatpush1.bf16.msra.mxu0 0
      %541 = vmatprep.subr.bf16.mxu0 0
      %542 = vmatpush1.bf16.msra.mxu0 0
      %543 = vmatprep.subr.bf16.mxu0 0
      %544 = vmatpush1.bf16.msra.mxu0 0
      %545 = vmatprep.subr.bf16.mxu0 0
      %546 = vmatpush1.bf16.msra.mxu0 0
      %547 = vmatprep.subr.bf16.mxu0 0
      %548 = vmatpush1.bf16.msra.mxu0 0
      %549 = vmatprep.subr.bf16.mxu0 0
      %550 = vmatpush1.bf16.msra.mxu0 0
      %551 = vmatprep.subr.bf16.mxu0 0
      %552 = vmatpush1.bf16.msra.mxu0 %v533
      %553 = vmatprep.subr.bf16.mxu0 0
      %554 = vmatpush1.bf16.msra.mxu0 %v532
      %555 = vmatprep.subr.bf16.mxu0 0
      %556 = vmatpush2.bf16.msra.mxu0 0
      %557 = vmatprep.subr.bf16.mxu0 0
      %558 = vmatpush2.bf16.msra.mxu0 0
      %559 = vmatprep.subr.bf16.mxu0 0
      %560 = vmatpush2.bf16.msra.mxu0 0
      %561 = vmatprep.subr.bf16.mxu0 0
      %562 = vmatpush2.bf16.msra.mxu0 0
      %563 = vmatprep.subr.bf16.mxu0 0
      %564 = vmatpush2.bf16.msra.mxu0 0
      %565 = vmatprep.subr.bf16.mxu0 0
      %566 = vmatpush2.bf16.msra.mxu0 0
      %567 = vmatprep.subr.bf16.mxu0 0
      %568 = vmatpush2.bf16.msra.mxu0 0
      %569 = vmatprep.subr.bf16.mxu0 0
      %570 = vmatpush2.bf16.msra.mxu0 0
      %571 = vmatprep.mubr.bf16.mxu0 0
      %572 = vmatmul.mubr.bf16.gmra.mxu0 %v537
      %v573 = vpop.f32.mrf.mxu0
      %v574 = vadd.f32 %v522, %v573
      %v575 = vpop.f32.mrf.mxu0
      %v576 = vpop.f32.mrf.mxu0
      %v577 = vpop.f32.mrf.mxu0
      %578 = vdwg.mxu0
      %vm579 = vcmask 7168
      %580 = vst.msk [vmem:[%s316] sm:$0xff] %vm579, %v574
      %p581 = scmp.lt.s32.totalorder %s21, 1
      %s582 = scalar_select %p581, %s21, 1
      %s583 = smul.addr %s582, 8
      %s584 = scalar_lea.vmem %s8, %s583
      // Predicated region
      $region53: #{stableform_tts_forward.7} parent=51 // pred_check
        %p585 = pneg %p217
      $region54: #{stableform_tts_forward.7} parent=51 // pred_check_branch
        %587 = sbr.rel (%p585) target = $region56
      $region55: #{stableform_tts_forward.7} parent=51 // pred_region
        _
      $region56: #{stableform_tts_forward.7} parent=51 // pred_fallthru
        _
    $region52: #{stableform_tts_forward.7} parent=5 // pred_fallthru
      _
    %p588 = scmp.le.s32.totalorder 2, %s16
    // Predicated region
    $region57: #{stableform_tts_forward.7} parent=5 // pred_check
      %p589 = pneg %p588
    $region58: #{stableform_tts_forward.7} parent=5 // pred_check_branch
      %591 = sbr.rel (%p589) target = $region60
    $region59: #{stableform_tts_forward.7} parent=5 // pred_region
      %s592 = ssub.s32 %s16, 2
      // Predicated region
      $region61: #{stableform_tts_forward.7} parent=59 // pred_check
        %p593 = pneg %p223
      $region62: #{stableform_tts_forward.7} parent=59 // pred_check_branch
        %595 = sbr.rel (%p593) target = $region64
      $region63: #{stableform_tts_forward.7} parent=59 // pred_region
        %p596 = scmp.lt.s32.totalorder %s22, 1
        %s597 = scalar_select %p596, %s22, 1
        %s598 = smul.addr %s597, 8
        %s599 = scalar_lea.vmem %s8, %s598
      $region64: #{stableform_tts_forward.7} parent=59 // pred_fallthru
        _
    $region60: #{stableform_tts_forward.7} parent=5 // pred_fallthru
      _
  $region6: #{stableform_tts_forward.7} parent=0 // loop_footer
    %s20 = sadd.s32 1, %s16
  $region7: #{stableform_tts_forward.7} parent=0 // loop_footer_branch
    %15 = sbr.rel target = $region3
  $region8: #{stableform_tts_forward.7} parent=0 // loop_exit
    _

// kernel: stableform_tts_forward.6
$region0: #{stableform_tts_forward.6}
  #allocation0 [shape = 'u32[]', space=smem, size = 0x4, offset = 0x4, fixed_abs, tag = 'smem constant byte address 0x4 - core index']
  #allocation1 [shape = 'u32[144,128]{1,0:T(1,128)}', space=vmem, size = 0x12000, scoped, tag = 'internal scratch']
  #allocation2 [shape = 'f32[8,32]{1,0:T(8,128)}', space=vmem, size = 0x1000, scoped, tag = 'scratch operand']
  %s0 = inlined_call_operand.vmem [shape: bf16[2,8,32], index: 0, kind: input, shape index: {}]
  %s1 = inlined_call_operand.vmem [shape: f32[2,1,8], index: 1, kind: input, shape index: {}]
  %s2 = inlined_call_operand.vmem [shape: f32[2,8,1], index: 2, kind: input, shape index: {}]
  %s3 = inlined_call_operand.vmem [shape: f32[2,2,4,32], index: 3, kind: input, shape index: {}]
  %s4 = inlined_call_operand.vmem [shape: bf16[2,32,96], index: 4, kind: input, shape index: {}]
  %s5 = inlined_call_operand.vmem [shape: f32[2,1,96], index: 5, kind: input, shape index: {}]
  %s6 = inlined_call_operand.vmem [shape: bf16[2,32,32], index: 6, kind: input, shape index: {}]
  %s7 = inlined_call_operand.vmem [shape: f32[2,1,32], index: 7, kind: input, shape index: {}]
  %s8 = inlined_call_operand.vmem [shape: bf16[2,32,192], index: 8, kind: input, shape index: {}]
  %s9 = inlined_call_operand.vmem [shape: f32[2,1,64], index: 9, kind: input, shape index: {}]
  %s10 = inlined_call_operand.vmem [shape: bf16[2,64,96], index: 10, kind: input, shape index: {}]
  %s11 = inlined_call_operand.vmem [shape: f32[2,1,32], index: 11, kind: input, shape index: {}]
  %s12 = inlined_call_operand.vmem [shape: bf16[2,8,32], index: 12, kind: output, shape index: {}]
  %s13 = sld [smem:[#allocation0]]
  $region89: #{stableform_tts_forward.6} parent=0
    _
  %s15 = ssub.s32 1, %s13
  %s16 = scalar_select 0, %s15, %s13
  loop: start=0, step=1, limit=6
  $region2: #{stableform_tts_forward.6} parent=0 // loop_pre_header
    _
  $region3: #{stableform_tts_forward.6} parent=0 // loop_header
    %s18 = sphi 0, %s22
    %p19 = scmp.ge.s32.totalorder %s18, 6
    %s25 = sphi 0, %s37
    %s26 = sphi 0, %s33
    %s27 = sphi 0, %s25
    %s28 = sphi 0, %s26
    %s29 = sphi 0, %s27
    %s30 = sphi 0, %s28
    %s40 = sphi 0, %s42
    %s43 = sphi 0, %s40
    %s44 = sphi 0, %s43
    %s60 = sphi 0, %s44
    %s66 = sphi 0, %s68
    %s69 = sphi 0, %s66
    %s70 = sphi 0, %s69
    %s86 = sphi 0, %s70
    %s92 = sphi 0, %s94
    %s95 = sphi 0, %s92
    %s96 = sphi 0, %s95
    %s112 = sphi 0, %s96
    %s120 = sphi 0, %s122
    %s123 = sphi 0, %s120
    %s124 = sphi 0, %s123
    %s140 = sphi 0, %s124
    %s146 = sphi 0, %s148
    %s149 = sphi 0, %s146
    %s150 = sphi 0, %s149
    %s166 = sphi 0, %s150
    %s172 = sphi 0, %s174
    %s175 = sphi 0, %s172
    %s176 = sphi 0, %s175
    %s192 = sphi 0, %s176
    %s198 = sphi 0, %s200
    %s201 = sphi 0, %s198
    %s202 = sphi 0, %s201
    %s218 = sphi 0, %s202
    %s224 = sphi 0, %s226
    %s227 = sphi 0, %s224
    %s228 = sphi 0, %s227
    %s244 = sphi 0, %s228
    %s250 = sphi 0, %s252
    %s253 = sphi 0, %s250
    %s254 = sphi 0, %s253
    %s270 = sphi 0, %s254
    %s276 = sphi 0, %s278
    %s279 = sphi 0, %s276
    %s280 = sphi 0, %s279
    %s296 = sphi 0, %s280
    %s302 = sphi 0, %s304
    %s305 = sphi 0, %s302
    %s306 = sphi 0, %s305
    %s322 = sphi 0, %s306
    %s328 = sphi 0, %s330
    %s331 = sphi 0, %s328
    %s332 = sphi 0, %s331
    %s348 = sphi 0, %s332
    %s354 = sphi 0, %s356
    %s357 = sphi 0, %s354
    %s358 = sphi 0, %s357
    %s374 = sphi 0, %s358
  $region4: #{stableform_tts_forward.6} parent=0 // loop_header_branch
    %21 = sbr.rel (%p19) target = $region8
  $region5: #{stableform_tts_forward.6} parent=0 // loop_body
    %s23 = ssub.s32 %s18, 1
    %s24 = ssub.s32 %s18, 2
    %s31 = sadd.s32 1, %s26
    %p32 = scmp.ge.s32.totalorder %s31, 2
    %s33 = scalar_select %p32, 0, %s31
    %s34 = sadd.s32 1, %s25
    %s35 = scalar_select %p32, %s34, %s25
    %p36 = scmp.ge.s32.totalorder %s35, 2
    %s37 = scalar_select %p36, 0, %s35
    %s38 = ssub.s32 %s25, %s37
    %p39 = scmp.eq.s32.totalorder %s38, 0
    %s41 = sadd.s32 %s40, 1
    %s42 = scalar_select %p39, %s40, %s41
    %p45 = pneg %p39
    %p46 = scmp.eq.s32.totalorder %s18, 3
    %p47 = por %p45, %p46
    %p48 = scmp.ne.s32.totalorder %s40, %s43
    %p49 = scmp.eq.s32.totalorder %s18, 0
    %p50 = por %p48, %p49
    %p51 = scmp.ne.s32.totalorder %s40, %s43
    %p52 = scmp.eq.s32.totalorder %s23, 3
    %p53 = por %p51, %p52
    %p54 = scmp.ne.s32.totalorder %s43, %s44
    %p55 = scmp.eq.s32.totalorder %s23, 0
    %p56 = por %p54, %p55
    %p57 = scmp.ne.s32.totalorder %s43, %s44
    %p58 = scmp.eq.s32.totalorder %s24, 3
    %p59 = por %p57, %p58
    %p61 = scmp.ne.s32.totalorder %s44, %s60
    %p62 = scmp.eq.s32.totalorder %s24, 0
    %p63 = por %p61, %p62
    %s64 = ssub.s32 %s25, %s37
    %p65 = scmp.eq.s32.totalorder %s64, 0
    %s67 = sadd.s32 %s66, 1
    %s68 = scalar_select %p65, %s66, %s67
    %p71 = pneg %p65
    %p72 = scmp.eq.s32.totalorder %s18, 3
    %p73 = por %p71, %p72
    %p74 = scmp.ne.s32.totalorder %s66, %s69
    %p75 = scmp.eq.s32.totalorder %s18, 0
    %p76 = por %p74, %p75
    %p77 = scmp.ne.s32.totalorder %s66, %s69
    %p78 = scmp.eq.s32.totalorder %s23, 3
    %p79 = por %p77, %p78
    %p80 = scmp.ne.s32.totalorder %s69, %s70
    %p81 = scmp.eq.s32.totalorder %s23, 0
    %p82 = por %p80, %p81
    %p83 = scmp.ne.s32.totalorder %s69, %s70
    %p84 = scmp.eq.s32.totalorder %s24, 3
    %p85 = por %p83, %p84
    %p87 = scmp.ne.s32.totalorder %s70, %s86
    %p88 = scmp.eq.s32.totalorder %s24, 0
    %p89 = por %p87, %p88
    %s90 = ssub.s32 %s25, %s37
    %p91 = scmp.eq.s32.totalorder %s90, 0
    %s93 = sadd.s32 %s92, 1
    %s94 = scalar_select %p91, %s92, %s93
    %p97 = pneg %p91
    %p98 = scmp.eq.s32.totalorder %s18, 3
    %p99 = por %p97, %p98
    %p100 = scmp.ne.s32.totalorder %s92, %s95
    %p101 = scmp.eq.s32.totalorder %s18, 0
    %p102 = por %p100, %p101
    %p103 = scmp.ne.s32.totalorder %s92, %s95
    %p104 = scmp.eq.s32.totalorder %s23, 3
    %p105 = por %p103, %p104
    %p106 = scmp.ne.s32.totalorder %s95, %s96
    %p107 = scmp.eq.s32.totalorder %s23, 0
    %p108 = por %p106, %p107
    %p109 = scmp.ne.s32.totalorder %s95, %s96
    %p110 = scmp.eq.s32.totalorder %s24, 3
    %p111 = por %p109, %p110
    %p113 = scmp.ne.s32.totalorder %s96, %s112
    %p114 = scmp.eq.s32.totalorder %s24, 0
    %p115 = por %p113, %p114
    %s116 = ssub.s32 %s25, %s37
    %s117 = ssub.s32 %s26, %s33
    %s118 = sor.u32 %s116, %s117
    %p119 = scmp.eq.s32.totalorder %s118, 0
    %s121 = sadd.s32 %s120, 1
    %s122 = scalar_select %p119, %s120, %s121
    %p125 = pneg %p119
    %p126 = scmp.eq.s32.totalorder %s18, 3
    %p127 = por %p125, %p126
    %p128 = scmp.ne.s32.totalorder %s120, %s123
    %p129 = scmp.eq.s32.totalorder %s18, 0
    %p130 = por %p128, %p129
    %p131 = scmp.ne.s32.totalorder %s120, %s123
    %p132 = scmp.eq.s32.totalorder %s23, 3
    %p133 = por %p131, %p132
    %p134 = scmp.ne.s32.totalorder %s123, %s124
    %p135 = scmp.eq.s32.totalorder %s23, 0
    %p136 = por %p134, %p135
    %p137 = scmp.ne.s32.totalorder %s123, %s124
    %p138 = scmp.eq.s32.totalorder %s24, 3
    %p139 = por %p137, %p138
    %p141 = scmp.ne.s32.totalorder %s124, %s140
    %p142 = scmp.eq.s32.totalorder %s24, 0
    %p143 = por %p141, %p142
    %s144 = ssub.s32 %s26, %s33
    %p145 = scmp.eq.s32.totalorder %s144, 0
    %s147 = sadd.s32 %s146, 1
    %s148 = scalar_select %p145, %s146, %s147
    %p151 = pneg %p145
    %p152 = scmp.eq.s32.totalorder %s18, 3
    %p153 = por %p151, %p152
    %p154 = scmp.ne.s32.totalorder %s146, %s149
    %p155 = scmp.eq.s32.totalorder %s18, 0
    %p156 = por %p154, %p155
    %p157 = scmp.ne.s32.totalorder %s146, %s149
    %p158 = scmp.eq.s32.totalorder %s23, 3
    %p159 = por %p157, %p158
    %p160 = scmp.ne.s32.totalorder %s149, %s150
    %p161 = scmp.eq.s32.totalorder %s23, 0
    %p162 = por %p160, %p161
    %p163 = scmp.ne.s32.totalorder %s149, %s150
    %p164 = scmp.eq.s32.totalorder %s24, 3
    %p165 = por %p163, %p164
    %p167 = scmp.ne.s32.totalorder %s150, %s166
    %p168 = scmp.eq.s32.totalorder %s24, 0
    %p169 = por %p167, %p168
    %s170 = ssub.s32 %s26, %s33
    %p171 = scmp.eq.s32.totalorder %s170, 0
    %s173 = sadd.s32 %s172, 1
    %s174 = scalar_select %p171, %s172, %s173
    %p177 = pneg %p171
    %p178 = scmp.eq.s32.totalorder %s18, 3
    %p179 = por %p177, %p178
    %p180 = scmp.ne.s32.totalorder %s172, %s175
    %p181 = scmp.eq.s32.totalorder %s18, 0
    %p182 = por %p180, %p181
    %p183 = scmp.ne.s32.totalorder %s172, %s175
    %p184 = scmp.eq.s32.totalorder %s23, 3
    %p185 = por %p183, %p184
    %p186 = scmp.ne.s32.totalorder %s175, %s176
    %p187 = scmp.eq.s32.totalorder %s23, 0
    %p188 = por %p186, %p187
    %p189 = scmp.ne.s32.totalorder %s175, %s176
    %p190 = scmp.eq.s32.totalorder %s24, 3
    %p191 = por %p189, %p190
    %p193 = scmp.ne.s32.totalorder %s176, %s192
    %p194 = scmp.eq.s32.totalorder %s24, 0
    %p195 = por %p193, %p194
    %s196 = ssub.s32 %s26, %s33
    %p197 = scmp.eq.s32.totalorder %s196, 0
    %s199 = sadd.s32 %s198, 1
    %s200 = scalar_select %p197, %s198, %s199
    %p203 = pneg %p197
    %p204 = scmp.eq.s32.totalorder %s18, 3
    %p205 = por %p203, %p204
    %p206 = scmp.ne.s32.totalorder %s198, %s201
    %p207 = scmp.eq.s32.totalorder %s18, 0
    %p208 = por %p206, %p207
    %p209 = scmp.ne.s32.totalorder %s198, %s201
    %p210 = scmp.eq.s32.totalorder %s23, 3
    %p211 = por %p209, %p210
    %p212 = scmp.ne.s32.totalorder %s201, %s202
    %p213 = scmp.eq.s32.totalorder %s23, 0
    %p214 = por %p212, %p213
    %p215 = scmp.ne.s32.totalorder %s201, %s202
    %p216 = scmp.eq.s32.totalorder %s24, 3
    %p217 = por %p215, %p216
    %p219 = scmp.ne.s32.totalorder %s202, %s218
    %p220 = scmp.eq.s32.totalorder %s24, 0
    %p221 = por %p219, %p220
    %s222 = ssub.s32 %s26, %s33
    %p223 = scmp.eq.s32.totalorder %s222, 0
    %s225 = sadd.s32 %s224, 1
    %s226 = scalar_select %p223, %s224, %s225
    %p229 = pneg %p223
    %p230 = scmp.eq.s32.totalorder %s18, 3
    %p231 = por %p229, %p230
    %p232 = scmp.ne.s32.totalorder %s224, %s227
    %p233 = scmp.eq.s32.totalorder %s18, 0
    %p234 = por %p232, %p233
    %p235 = scmp.ne.s32.totalorder %s224, %s227
    %p236 = scmp.eq.s32.totalorder %s23, 3
    %p237 = por %p235, %p236
    %p238 = scmp.ne.s32.totalorder %s227, %s228
    %p239 = scmp.eq.s32.totalorder %s23, 0
    %p240 = por %p238, %p239
    %p241 = scmp.ne.s32.totalorder %s227, %s228
    %p242 = scmp.eq.s32.totalorder %s24, 3
    %p243 = por %p241, %p242
    %p245 = scmp.ne.s32.totalorder %s228, %s244
    %p246 = scmp.eq.s32.totalorder %s24, 0
    %p247 = por %p245, %p246
    %s248 = ssub.s32 %s26, %s33
    %p249 = scmp.eq.s32.totalorder %s248, 0
    %s251 = sadd.s32 %s250, 1
    %s252 = scalar_select %p249, %s250, %s251
    %p255 = pneg %p249
    %p256 = scmp.eq.s32.totalorder %s18, 3
    %p257 = por %p255, %p256
    %p258 = scmp.ne.s32.totalorder %s250, %s253
    %p259 = scmp.eq.s32.totalorder %s18, 0
    %p260 = por %p258, %p259
    %p261 = scmp.ne.s32.totalorder %s250, %s253
    %p262 = scmp.eq.s32.totalorder %s23, 3
    %p263 = por %p261, %p262
    %p264 = scmp.ne.s32.totalorder %s253, %s254
    %p265 = scmp.eq.s32.totalorder %s23, 0
    %p266 = por %p264, %p265
    %p267 = scmp.ne.s32.totalorder %s253, %s254
    %p268 = scmp.eq.s32.totalorder %s24, 3
    %p269 = por %p267, %p268
    %p271 = scmp.ne.s32.totalorder %s254, %s270
    %p272 = scmp.eq.s32.totalorder %s24, 0
    %p273 = por %p271, %p272
    %s274 = ssub.s32 %s26, %s33
    %p275 = scmp.eq.s32.totalorder %s274, 0
    %s277 = sadd.s32 %s276, 1
    %s278 = scalar_select %p275, %s276, %s277
    %p281 = pneg %p275
    %p282 = scmp.eq.s32.totalorder %s18, 3
    %p283 = por %p281, %p282
    %p284 = scmp.ne.s32.totalorder %s276, %s279
    %p285 = scmp.eq.s32.totalorder %s18, 0
    %p286 = por %p284, %p285
    %p287 = scmp.ne.s32.totalorder %s276, %s279
    %p288 = scmp.eq.s32.totalorder %s23, 3
    %p289 = por %p287, %p288
    %p290 = scmp.ne.s32.totalorder %s279, %s280
    %p291 = scmp.eq.s32.totalorder %s23, 0
    %p292 = por %p290, %p291
    %p293 = scmp.ne.s32.totalorder %s279, %s280
    %p294 = scmp.eq.s32.totalorder %s24, 3
    %p295 = por %p293, %p294
    %p297 = scmp.ne.s32.totalorder %s280, %s296
    %p298 = scmp.eq.s32.totalorder %s24, 0
    %p299 = por %p297, %p298
    %s300 = ssub.s32 %s26, %s33
    %p301 = scmp.eq.s32.totalorder %s300, 0
    %s303 = sadd.s32 %s302, 1
    %s304 = scalar_select %p301, %s302, %s303
    %p307 = pneg %p301
    %p308 = scmp.eq.s32.totalorder %s18, 3
    %p309 = por %p307, %p308
    %p310 = scmp.ne.s32.totalorder %s302, %s305
    %p311 = scmp.eq.s32.totalorder %s18, 0
    %p312 = por %p310, %p311
    %p313 = scmp.ne.s32.totalorder %s302, %s305
    %p314 = scmp.eq.s32.totalorder %s23, 3
    %p315 = por %p313, %p314
    %p316 = scmp.ne.s32.totalorder %s305, %s306
    %p317 = scmp.eq.s32.totalorder %s23, 0
    %p318 = por %p316, %p317
    %p319 = scmp.ne.s32.totalorder %s305, %s306
    %p320 = scmp.eq.s32.totalorder %s24, 3
    %p321 = por %p319, %p320
    %p323 = scmp.ne.s32.totalorder %s306, %s322
    %p324 = scmp.eq.s32.totalorder %s24, 0
    %p325 = por %p323, %p324
    %s326 = ssub.s32 %s26, %s33
    %p327 = scmp.eq.s32.totalorder %s326, 0
    %s329 = sadd.s32 %s328, 1
    %s330 = scalar_select %p327, %s328, %s329
    %p333 = pneg %p327
    %p334 = scmp.eq.s32.totalorder %s18, 3
    %p335 = por %p333, %p334
    %p336 = scmp.ne.s32.totalorder %s328, %s331
    %p337 = scmp.eq.s32.totalorder %s18, 0
    %p338 = por %p336, %p337
    %p339 = scmp.ne.s32.totalorder %s328, %s331
    %p340 = scmp.eq.s32.totalorder %s23, 3
    %p341 = por %p339, %p340
    %p342 = scmp.ne.s32.totalorder %s331, %s332
    %p343 = scmp.eq.s32.totalorder %s23, 0
    %p344 = por %p342, %p343
    %p345 = scmp.ne.s32.totalorder %s331, %s332
    %p346 = scmp.eq.s32.totalorder %s24, 3
    %p347 = por %p345, %p346
    %p349 = scmp.ne.s32.totalorder %s332, %s348
    %p350 = scmp.eq.s32.totalorder %s24, 0
    %p351 = por %p349, %p350
    %s352 = ssub.s32 %s25, %s37
    %p353 = scmp.eq.s32.totalorder %s352, 0
    %s355 = sadd.s32 %s354, 1
    %s356 = scalar_select %p353, %s354, %s355
    %p359 = pneg %p353
    %p360 = scmp.eq.s32.totalorder %s18, 3
    %p361 = por %p359, %p360
    %p362 = scmp.ne.s32.totalorder %s354, %s357
    %p363 = scmp.eq.s32.totalorder %s18, 0
    %p364 = por %p362, %p363
    %p365 = scmp.ne.s32.totalorder %s354, %s357
    %p366 = scmp.eq.s32.totalorder %s23, 3
    %p367 = por %p365, %p366
    %p368 = scmp.ne.s32.totalorder %s357, %s358
    %p369 = scmp.eq.s32.totalorder %s23, 0
    %p370 = por %p368, %p369
    %p371 = scmp.ne.s32.totalorder %s357, %s358
    %p372 = scmp.eq.s32.totalorder %s24, 3
    %p373 = por %p371, %p372
    %p375 = scmp.ne.s32.totalorder %s358, %s374
    %p376 = scmp.eq.s32.totalorder %s24, 0
    %p377 = por %p375, %p376
    %p378 = scmp.le.s32.totalorder 1, %s18
    %p379 = scmp.lt.s32.totalorder %s18, 5
    %p380 = pnand %p378, %p379
    %p381 = pneg %p380
    // Predicated region
    $region9: #{stableform_tts_forward.6} parent=5 // pred_check
      _
    $region10: #{stableform_tts_forward.6} parent=5 // pred_check_branch
      %383 = sbr.rel (%p380) target = $region12
    $region11: #{stableform_tts_forward.6} parent=5 // pred_region
      %s384 = ssub.s32 %s18, 1
    $region12: #{stableform_tts_forward.6} parent=5 // pred_fallthru
      _
    %p385 = scmp.lt.s32.totalorder %s18, 4
    // Predicated region
    $region13: #{stableform_tts_forward.6} parent=5 // pred_check
      %p386 = pneg %p385
    $region14: #{stableform_tts_forward.6} parent=5 // pred_check_branch
      %388 = sbr.rel (%p386) target = $region16
    $region15: #{stableform_tts_forward.6} parent=5 // pred_region
      // Predicated region
      $region17: #{stableform_tts_forward.6} parent=15 // pred_check
        %p389 = pneg %p50
      $region18: #{stableform_tts_forward.6} parent=15 // pred_check_branch
        %391 = sbr.rel (%p389) target = $region20
      $region19: #{stableform_tts_forward.6} parent=15 // pred_region
        %p392 = scmp.lt.s32.totalorder %s25, 1
        %s393 = scalar_select %p392, %s25, 1
        %s394 = smul.addr %s393, 4
        %s395 = scalar_lea.vmem %s0, %s394
      $region20: #{stableform_tts_forward.6} parent=15 // pred_fallthru
        _
      // Predicated region
      $region21: #{stableform_tts_forward.6} parent=15 // pred_check
        %p396 = pneg %p76
      $region22: #{stableform_tts_forward.6} parent=15 // pred_check_branch
        %398 = sbr.rel (%p396) target = $region24
      $region23: #{stableform_tts_forward.6} parent=15 // pred_region
        %p399 = scmp.lt.s32.totalorder %s25, 1
        %s400 = scalar_select %p399, %s25, 1
        %s401 = scalar_lea.vmem %s1, %s400
      $region24: #{stableform_tts_forward.6} parent=15 // pred_fallthru
        _
      // Predicated region
      $region25: #{stableform_tts_forward.6} parent=15 // pred_check
        %p402 = pneg %p102
      $region26: #{stableform_tts_forward.6} parent=15 // pred_check_branch
        %404 = sbr.rel (%p402) target = $region28
      $region27: #{stableform_tts_forward.6} parent=15 // pred_region
        %p405 = scmp.lt.s32.totalorder %s25, 1
        %s406 = scalar_select %p405, %s25, 1
        %s407 = smul.addr %s406, 8
        %s408 = scalar_lea.vmem %s2, %s407
      $region28: #{stableform_tts_forward.6} parent=15 // pred_fallthru
        _
      // Predicated region
      $region29: #{stableform_tts_forward.6} parent=15 // pred_check
        %p409 = pneg %p130
      $region30: #{stableform_tts_forward.6} parent=15 // pred_check_branch
        %411 = sbr.rel (%p409) target = $region32
      $region31: #{stableform_tts_forward.6} parent=15 // pred_region
        %p412 = scmp.lt.s32.totalorder %s25, 1
        %s413 = scalar_select %p412, %s25, 1
        %p414 = scmp.lt.s32.totalorder %s26, 1
        %s415 = scalar_select %p414, %s26, 1
        %s416 = smul.addr %s413, 2
        %s417 = sadd.s32 %s415, %s416
        %s418 = smul.addr %s417, 4
        %s419 = scalar_lea.vmem %s3, %s418
      $region32: #{stableform_tts_forward.6} parent=15 // pred_fallthru
        _
      // Predicated region
      $region33: #{stableform_tts_forward.6} parent=15 // pred_check
        %p420 = pneg %p156
      $region34: #{stableform_tts_forward.6} parent=15 // pred_check_branch
        %422 = sbr.rel (%p420) target = $region36
      $region35: #{stableform_tts_forward.6} parent=15 // pred_region
        %p423 = scmp.lt.s32.totalorder %s26, 1
        %s424 = scalar_select %p423, %s26, 1
        %s425 = smul.addr %s424, 4
        %s426 = smul.addr %s425, 4
        %s427 = scalar_lea.vmem %s4, %s426
      $region36: #{stableform_tts_forward.6} parent=15 // pred_fallthru
        _
      // Predicated region
      $region37: #{stableform_tts_forward.6} parent=15 // pred_check
        %p428 = pneg %p182
      $region38: #{stableform_tts_forward.6} parent=15 // pred_check_branch
        %430 = sbr.rel (%p428) target = $region40
      $region39: #{stableform_tts_forward.6} parent=15 // pred_region
        %p431 = scmp.lt.s32.totalorder %s26, 1
        %s432 = scalar_select %p431, %s26, 1
        %s433 = scalar_lea.vmem %s5, %s432
      $region40: #{stableform_tts_forward.6} parent=15 // pred_fallthru
        _
      // Predicated region
      $region41: #{stableform_tts_forward.6} parent=15 // pred_check
        %p434 = pneg %p208
      $region42: #{stableform_tts_forward.6} parent=15 // pred_check_branch
        %436 = sbr.rel (%p434) target = $region44
      $region43: #{stableform_tts_forward.6} parent=15 // pred_region
        %p437 = scmp.lt.s32.totalorder %s26, 1
        %s438 = scalar_select %p437, %s26, 1
        %s439 = smul.addr %s438, 4
        %s440 = smul.addr %s439, 4
        %s441 = scalar_lea.vmem %s6, %s440
      $region44: #{stableform_tts_forward.6} parent=15 // pred_fallthru
        _
      // Predicated region
      $region45: #{stableform_tts_forward.6} parent=15 // pred_check
        %p442 = pneg %p234
      $region46: #{stableform_tts_forward.6} parent=15 // pred_check_branch
        %444 = sbr.rel (%p442) target = $region48
      $region47: #{stableform_tts_forward.6} parent=15 // pred_region
        %p445 = scmp.lt.s32.totalorder %s26, 1
        %s446 = scalar_select %p445, %s26, 1
        %s447 = scalar_lea.vmem %s7, %s446
      $region48: #{stableform_tts_forward.6} parent=15 // pred_fallthru
        _
      // Predicated region
      $region49: #{stableform_tts_forward.6} parent=15 // pred_check
        %p448 = pneg %p260
      $region50: #{stableform_tts_forward.6} parent=15 // pred_check_branch
        %450 = sbr.rel (%p448) target = $region52
      $region51: #{stableform_tts_forward.6} parent=15 // pred_region
        %p451 = scmp.lt.s32.totalorder %s26, 1
        %s452 = scalar_select %p451, %s26, 1
        %s453 = smul.addr %s452, 8
        %s454 = smul.addr %s453, 4
        %s455 = scalar_lea.vmem %s8, %s454
      $region52: #{stableform_tts_forward.6} parent=15 // pred_fallthru
        _
      // Predicated region
      $region53: #{stableform_tts_forward.6} parent=15 // pred_check
        %p456 = pneg %p286
      $region54: #{stableform_tts_forward.6} parent=15 // pred_check_branch
        %458 = sbr.rel (%p456) target = $region56
      $region55: #{stableform_tts_forward.6} parent=15 // pred_region
        %p459 = scmp.lt.s32.totalorder %s26, 1
        %s460 = scalar_select %p459, %s26, 1
        %s461 = scalar_lea.vmem %s9, %s460
      $region56: #{stableform_tts_forward.6} parent=15 // pred_fallthru
        _
      // Predicated region
      $region57: #{stableform_tts_forward.6} parent=15 // pred_check
        %p462 = pneg %p312
      $region58: #{stableform_tts_forward.6} parent=15 // pred_check_branch
        %464 = sbr.rel (%p462) target = $region60
      $region59: #{stableform_tts_forward.6} parent=15 // pred_region
        %p465 = scmp.lt.s32.totalorder %s26, 1
        %s466 = scalar_select %p465, %s26, 1
        %s467 = smul.addr %s466, 8
        %s468 = smul.addr %s467, 4
        %s469 = scalar_lea.vmem %s10, %s468
      $region60: #{stableform_tts_forward.6} parent=15 // pred_fallthru
        _
      // Predicated region
      $region61: #{stableform_tts_forward.6} parent=15 // pred_check
        %p470 = pneg %p338
      $region62: #{stableform_tts_forward.6} parent=15 // pred_check_branch
        %472 = sbr.rel (%p470) target = $region64
      $region63: #{stableform_tts_forward.6} parent=15 // pred_region
        %p473 = scmp.lt.s32.totalorder %s26, 1
        %s474 = scalar_select %p473, %s26, 1
        %s475 = scalar_lea.vmem %s11, %s474
      $region64: #{stableform_tts_forward.6} parent=15 // pred_fallthru
        _
    $region16: #{stableform_tts_forward.6} parent=5 // pred_fallthru
      _
    %p476 = scmp.le.s32.totalorder 1, %s18
    %p477 = scmp.lt.s32.totalorder %s18, 5
    %p478 = pnand %p476, %p477
    %p479 = pneg %p478
    // Predicated region
    $region65: #{stableform_tts_forward.6} parent=5 // pred_check
      _
    $region66: #{stableform_tts_forward.6} parent=5 // pred_check_branch
      %481 = sbr.rel (%p478) target = $region68
    $region67: #{stableform_tts_forward.6} parent=5 // pred_region
      %s482 = ssub.s32 %s18, 1
      %p483 = scmp.lt.s32.totalorder %s27, 1
      %s484 = scalar_select %p483, %s27, 1
      %s485 = smul.addr %s484, 4
      %s486 = scalar_lea.vmem %s0, %s485
      %p487 = pneg %p56
      %p488 = pneg %p53
      %p489 = scmp.lt.s32.totalorder %s27, 1
      %s490 = scalar_select %p489, %s27, 1
      %s491 = scalar_lea.vmem %s1, %s490
      %p492 = pneg %p82
      %p493 = pneg %p79
      %p494 = scmp.lt.s32.totalorder %s27, 1
      %s495 = scalar_select %p494, %s27, 1
      %s496 = smul.addr %s495, 8
      %s497 = scalar_lea.vmem %s2, %s496
      %p498 = pneg %p108
      %p499 = pneg %p105
      %p500 = scmp.lt.s32.totalorder %s27, 1
      %s501 = scalar_select %p500, %s27, 1
      %p502 = scmp.lt.s32.totalorder %s28, 1
      %s503 = scalar_select %p502, %s28, 1
      %s504 = smul.addr %s501, 2
      %s505 = sadd.s32 %s503, %s504
      %s506 = smul.addr %s505, 4
      %s507 = scalar_lea.vmem %s3, %s506
      %p508 = pneg %p136
      %p509 = pneg %p133
      %p510 = scmp.lt.s32.totalorder %s28, 1
      %s511 = scalar_select %p510, %s28, 1
      %s512 = smul.addr %s511, 4
      %s513 = smul.addr %s512, 4
      %s514 = scalar_lea.vmem %s4, %s513
      %p515 = pneg %p162
      %p516 = pneg %p159
      %p517 = scmp.lt.s32.totalorder %s28, 1
      %s518 = scalar_select %p517, %s28, 1
      %s519 = scalar_lea.vmem %s5, %s518
      %p520 = pneg %p188
      %p521 = pneg %p185
      %p522 = scmp.lt.s32.totalorder %s28, 1
      %s523 = scalar_select %p522, %s28, 1
      %s524 = smul.addr %s523, 4
      %s525 = smul.addr %s524, 4
      %s526 = scalar_lea.vmem %s6, %s525
      %p527 = pneg %p214
      %p528 = pneg %p211
      %p529 = scmp.lt.s32.totalorder %s28, 1
      %s530 = scalar_select %p529, %s28, 1
      %s531 = scalar_lea.vmem %s7, %s530
      %p532 = pneg %p240
      %p533 = pneg %p237
      %p534 = scmp.lt.s32.totalorder %s28, 1
      %s535 = scalar_select %p534, %s28, 1
      %s536 = smul.addr %s535, 8
      %s537 = smul.addr %s536, 4
      %s538 = scalar_lea.vmem %s8, %s537
      %p539 = pneg %p266
      %p540 = pneg %p263
      %p541 = scmp.lt.s32.totalorder %s28, 1
      %s542 = scalar_select %p541, %s28, 1
      %s543 = scalar_lea.vmem %s9, %s542
      %p544 = pneg %p292
      %p545 = pneg %p289
      %p546 = scmp.lt.s32.totalorder %s28, 1
      %s547 = scalar_select %p546, %s28, 1
      %s548 = smul.addr %s547, 8
      %s549 = smul.addr %s548, 4
      %s550 = scalar_lea.vmem %s10, %s549
      %p551 = pneg %p318
      %p552 = pneg %p315
      %p553 = scmp.lt.s32.totalorder %s28, 1
      %s554 = scalar_select %p553, %s28, 1
      %s555 = scalar_lea.vmem %s11, %s554
      %p556 = pneg %p344
      %p557 = pneg %p341
      %p558 = pneg %p370
      %p559 = pneg %p367
      %p560 = scmp.lt.s32.totalorder %s27, 1
      %s561 = scalar_select %p560, %s27, 1
      %s562 = smul.addr %s561, 4
      %s563 = scalar_lea.vmem %s12, %s562
      %p564 = scmp.lt.s32.totalorder %s27, 1
      %s565 = scalar_select %p564, %s27, 1
      %s566 = smul.addr %s565, 4
      %s567 = scalar_lea.vmem %s0, %s566
      %p568 = scmp.lt.s32.totalorder %s27, 1
      %s569 = scalar_select %p568, %s27, 1
      %s570 = scalar_lea.vmem %s1, %s569
      %p571 = scmp.lt.s32.totalorder %s27, 1
      %s572 = scalar_select %p571, %s27, 1
      %s573 = smul.addr %s572, 8
      %s574 = scalar_lea.vmem %s2, %s573
      %p575 = scmp.lt.s32.totalorder %s27, 1
      %s576 = scalar_select %p575, %s27, 1
      %p577 = scmp.lt.s32.totalorder %s28, 1
      %s578 = scalar_select %p577, %s28, 1
      %s579 = smul.addr %s576, 2
      %s580 = sadd.s32 %s578, %s579
      %s581 = smul.addr %s580, 4
      %s582 = scalar_lea.vmem %s3, %s581
      %p583 = scmp.lt.s32.totalorder %s28, 1
      %s584 = scalar_select %p583, %s28, 1
      %s585 = smul.addr %s584, 4
      %s586 = smul.addr %s585, 4
      %s587 = scalar_lea.vmem %s4, %s586
      %p588 = scmp.lt.s32.totalorder %s28, 1
      %s589 = scalar_select %p588, %s28, 1
      %s590 = scalar_lea.vmem %s5, %s589
      %p591 = scmp.lt.s32.totalorder %s28, 1
      %s592 = scalar_select %p591, %s28, 1
      %s593 = smul.addr %s592, 4
      %s594 = smul.addr %s593, 4
      %s595 = scalar_lea.vmem %s6, %s594
      %p596 = scmp.lt.s32.totalorder %s28, 1
      %s597 = scalar_select %p596, %s28, 1
      %s598 = scalar_lea.vmem %s7, %s597
      %p599 = scmp.lt.s32.totalorder %s28, 1
      %s600 = scalar_select %p599, %s28, 1
      %s601 = smul.addr %s600, 8
      %s602 = smul.addr %s601, 4
      %s603 = scalar_lea.vmem %s8, %s602
      %p604 = scmp.lt.s32.totalorder %s28, 1
      %s605 = scalar_select %p604, %s28, 1
      %s606 = scalar_lea.vmem %s9, %s605
      %p607 = scmp.lt.s32.totalorder %s28, 1
      %s608 = scalar_select %p607, %s28, 1
      %s609 = smul.addr %s608, 8
      %s610 = smul.addr %s609, 4
      %s611 = scalar_lea.vmem %s10, %s610
      %p612 = scmp.lt.s32.totalorder %s28, 1
      %s613 = scalar_select %p612, %s28, 1
      %s614 = scalar_lea.vmem %s11, %s613
      %p615 = scmp.lt.s32.totalorder %s27, 1
      %s616 = scalar_select %p615, %s27, 1
      %s617 = smul.addr %s616, 4
      %s618 = scalar_lea.vmem %s12, %s617
      %p620 = scmp.eq.s32.totalorder %s28, 0
      // Predicated region
      $region69: #{stableform_tts_forward.6} parent=67 // pred_check
        %p621 = pneg %p620
      $region70: #{stableform_tts_forward.6} parent=67 // pred_check_branch
        %623 = sbr.rel (%p621) target = $region72
      $region71: #{stableform_tts_forward.6} parent=67 // pred_region
        %v624 = vld [vmem:[%s567] sm:$0xf]
        %v625 = vunpack.c.l.bf16 %v624
        %vm626 = vcmask 261120
        %627 = vst.msk [vmem:[#allocation2] sm:$0xff] %vm626, %v625
      $region72: #{stableform_tts_forward.6} parent=67 // pred_fallthru
        _
      %v628 = vld [vmem:[#allocation2] sm:$0xff]
      %v629 = vld [vmem:[%s570] sm:$0x1]
      %v630 = vld [vmem:[%s574] sm:$0xff]
      %v631 = vld [vmem:[%s582] sm:$0xf]
      %vm632 = vcmask 261120
      %v633 = vsel %vm632, %v628, 0.0
      %634 = vadd.xlane.f32.xlu0 %v633
      %v635 = vpop.xlane.xlu0 %634
      %v636 = vrcp.pop 32.0
      %v637 = vmul.f32 %v635, %v636
      %v638 = vsub.f32 %v628, %v637
      %v639 = vmul.f32 %v638, %v638
      %v640 = vsel %vm632, %v639, 0.0
      %641 = vadd.xlane.f32.xlu0 %v640
      %v642 = vpop.xlane.xlu0 %641
      %v643 = vmul.f32 %v642, %v636
      %v644 = vadd.f32 %v643, 1e-05
      %v645 = vrsqrt.pop %v644
      %v646 = vmul.f32 %v638, %v645
      %v647 = vadd.f32 %v631, 1.0
      %v648 = vlaneseq
      %v649 = vshrl.u32 %v648, 7
      %v650 = vsub.s32 0, %v649
      %v651 = vrot.slane %v647, %v650
      %v652 = vmul.f32 %v646, %v651
      %v653 = vlaneseq
      %v654 = vshrl.u32 %v653, 7
      %v655 = vsub.s32 1, %v654
      %v656 = vrot.slane %v631, %v655
      %v657 = vadd.f32 %v652, %v656
      %v658 = vpack.c.bf16 %v657, %v657
      %v659 = vld [vmem:[%s587] sm:$0xf]
      %v660 = vld [vmem:[%s587 + $0x4] sm:$0xf]
      %v661 = vld [vmem:[%s587 + $0x8] sm:$0xf]
      %v662 = vld [vmem:[%s587 + $0xc] sm:$0xf]
      %v663 = vld [vmem:[%s590] sm:$0x1]
      %v665 = vlaneseq
      %v666 = vshrl.u32 %v665, 7
      %v667 = vsub.s32 0, %v666
      %v668 = vrot.slane %v663, %v667
      %v674 = vunpack.c.l.b16 %v659
      %v675 = vunpack.c.l.b16 %v660
      %v676 = vunpack.c.l.b16 %v661
      %v677 = vunpack.c.l.b16 %v662
      %v678 = vpack.c.b16 %v675, %v674
      %v679 = vpack.c.b16 %v677, %v676
      %v683 = vsel %vm632, %v658, 0
      %685 = vmatprep.subr.bf16.mxu0 0
      %686 = vmatpush1.bf16.msra.mxu0 0
      %687 = vmatprep.subr.bf16.mxu0 0
      %688 = vmatpush1.bf16.msra.mxu0 0
      %689 = vmatprep.subr.bf16.mxu0 0
      %690 = vmatpush1.bf16.msra.mxu0 0
      %691 = vmatprep.subr.bf16.mxu0 0
      %692 = vmatpush1.bf16.msra.mxu0 0
      %693 = vmatprep.subr.bf16.mxu0 0
      %694 = vmatpush1.bf16.msra.mxu0 0
      %695 = vmatprep.subr.bf16.mxu0 0
      %696 = vmatpush1.bf16.msra.mxu0 0
      %697 = vmatprep.subr.bf16.mxu0 0
      %698 = vmatpush1.bf16.msra.mxu0 %v679
      %699 = vmatprep.subr.bf16.mxu0 0
      %700 = vmatpush1.bf16.msra.mxu0 %v678
      %701 = vmatprep.subr.bf16.mxu0 0
      %702 = vmatpush2.bf16.msra.mxu0 0
      %703 = vmatprep.subr.bf16.mxu0 0
      %704 = vmatpush2.bf16.msra.mxu0 0
      %705 = vmatprep.subr.bf16.mxu0 0
      %706 = vmatpush2.bf16.msra.mxu0 0
      %707 = vmatprep.subr.bf16.mxu0 0
      %708 = vmatpush2.bf16.msra.mxu0 0
      %709 = vmatprep.subr.bf16.mxu0 0
      %710 = vmatpush2.bf16.msra.mxu0 0
      %711 = vmatprep.subr.bf16.mxu0 0
      %712 = vmatpush2.bf16.msra.mxu0 0
      %713 = vmatprep.subr.bf16.mxu0 0
      %714 = vmatpush2.bf16.msra.mxu0 0
      %715 = vmatprep.subr.bf16.mxu0 0
      %716 = vmatpush2.bf16.msra.mxu0 0
      %717 = vmatprep.mubr.bf16.mxu0 0
      %718 = vmatmul.mubr.bf16.gmra.mxu0 %v683
      %v719 = vpop.f32.mrf.mxu0
      %v720 = vadd.f32 %v668, %v719
      %v721 = vpop.f32.mrf.mxu0
      %v722 = vpop.f32.mrf.mxu0
      %v723 = vpop.f32.mrf.mxu0
      %724 = vdwg.mxu0
      %v725 = vld [vmem:[%s595] sm:$0xf]
      %v726 = vld [vmem:[%s595 + $0x4] sm:$0xf]
      %v727 = vld [vmem:[%s595 + $0x8] sm:$0xf]
      %v728 = vld [vmem:[%s595 + $0xc] sm:$0xf]
      %v729 = vpack.c.bf16 %v720, %v720
      %731 = vrot.lane.b32.xlu0 %v729, 96
      %v732 = vpop.permute.xlu0 %731
      %vm733 = vcmask 130048
      %v735 = vsel %vm733, %v729, 0
      %v738 = vsel %vm733, %v732, 0
      %740 = vmatprep.subr.bf16.mxu0 0
      %741 = vmatpush1.bf16.xpose.msra.mxu0 0
      %742 = vmatprep.subr.bf16.mxu0 0
      %743 = vmatpush1.bf16.xpose.msra.mxu0 0
      %744 = vmatprep.subr.bf16.mxu0 0
      %745 = vmatpush1.bf16.xpose.msra.mxu0 0
      %746 = vmatprep.subr.bf16.mxu0 0
      %747 = vmatpush1.bf16.xpose.msra.mxu0 0
      %748 = vmatprep.subr.bf16.mxu0 0
      %749 = vmatpush1.bf16.xpose.msra.mxu0 0
      %750 = vmatprep.subr.bf16.mxu0 0
      %751 = vmatpush1.bf16.xpose.msra.mxu0 0
      %752 = vmatprep.subr.bf16.mxu0 0
      %753 = vmatpush1.bf16.xpose.msra.mxu0 0
      %754 = vmatprep.subr.bf16.mxu0 0
      %755 = vmatpush1.bf16.xpose.msra.mxu0 %v738
      %756 = vmatprep.subr.bf16.mxu0 0
      %757 = vmatpush2.bf16.xpose.msra.mxu0 0
      %758 = vmatprep.subr.bf16.mxu0 0
      %759 = vmatpush2.bf16.xpose.msra.mxu0 0
      %760 = vmatprep.subr.bf16.mxu0 0
      %761 = vmatpush2.bf16.xpose.msra.mxu0 0
      %762 = vmatprep.subr.bf16.mxu0 0
      %763 = vmatpush2.bf16.xpose.msra.mxu0 0
      %764 = vmatprep.subr.bf16.mxu0 0
      %765 = vmatpush2.bf16.xpose.msra.mxu0 0
      %766 = vmatprep.subr.bf16.mxu0 0
      %767 = vmatpush2.bf16.xpose.msra.mxu0 0
      %768 = vmatprep.subr.bf16.mxu0 0
      %769 = vmatpush2.bf16.xpose.msra.mxu0 0
      %770 = vmatprep.subr.bf16.mxu0 0
      %771 = vmatpush2.bf16.xpose.msra.mxu0 0
      %772 = vmatprep.mubr.bf16.mxu0 0
      %773 = vmatmul.mubr.bf16.gmra.mxu0 %v735
      %v774 = vpop.f32.mrf.mxu0
      %v775 = vadd.f32 0.0, %v774
      %v776 = vpop.f32.mrf.mxu0
      %v777 = vpop.f32.mrf.mxu0
      %v778 = vpop.f32.mrf.mxu0
      %779 = vdwg.mxu0
      %v780 = vmul.f32 %v775, 0.25
      %vm781 = vcmp.gt.f32.partialorder %v629, 0.5
      %v782 = vsel %vm781, 1, 0
      %v783 = vlaneseq
      %v784 = vshrl.u32 %v783, 7
      %v785 = vsub.s32 0, %v784
      %v786 = vrot.slane %v782, %v785
      %vm787 = vcmp.eq.s32.totalorder %v786, 1
      %v788 = vsel %vm787, %v780, -1e+09
      %vm789 = vcmask 64512
      %v790 = vsel %vm789, %v788, -inf
      %791 = vmax.xlane.f32.xlu0 %v790
      %v792 = vpop.xlane.xlu0 %791
      %v793 = vsub.f32 %v788, %v792
      %v794 = vmul.f32 %v793, 1.442695
      %v795 = vpow.pop %v794
      %v796 = vsel %vm789, %v795, 0.0
      %797 = vadd.xlane.f32.xlu0 %v796
      %v798 = vpop.xlane.xlu0 %797
      %v799 = vrcp.pop %v798
      %v800 = vmul.f32 %v795, %v799
      %v801 = vpack.c.bf16 %v800, %v800
      %802 = vrot.lane.b32.xlu0 %v729, 64
      %v803 = vpop.permute.xlu0 %802
      %v805 = vsel %vm789, %v801, 0
      %vm807 = vcmask 1043456
      %v809 = vsel %vm807, %v803, 0
      %811 = vmatprep.subr.bf16.mxu0 0
      %812 = vmatpush1.bf16.msra.mxu0 0
      %813 = vmatprep.subr.bf16.mxu0 0
      %814 = vmatpush1.bf16.msra.mxu0 0
      %815 = vmatprep.subr.bf16.mxu0 0
      %816 = vmatpush1.bf16.msra.mxu0 0
      %817 = vmatprep.subr.bf16.mxu0 0
      %818 = vmatpush1.bf16.msra.mxu0 0
      %819 = vmatprep.subr.bf16.mxu0 0
      %820 = vmatpush1.bf16.msra.mxu0 0
      %821 = vmatprep.subr.bf16.mxu0 0
      %822 = vmatpush1.bf16.msra.mxu0 0
      %823 = vmatprep.subr.bf16.mxu0 0
      %824 = vmatpush1.bf16.msra.mxu0 0
      %825 = vmatprep.subr.bf16.mxu0 0
      %826 = vmatpush1.bf16.msra.mxu0 %v809
      %827 = vmatprep.subr.bf16.mxu0 0
      %828 = vmatpush2.bf16.msra.mxu0 0
      %829 = vmatprep.subr.bf16.mxu0 0
      %830 = vmatpush2.bf16.msra.mxu0 0
      %831 = vmatprep.subr.bf16.mxu0 0
      %832 = vmatpush2.bf16.msra.mxu0 0
      %833 = vmatprep.subr.bf16.mxu0 0
      %834 = vmatpush2.bf16.msra.mxu0 0
      %835 = vmatprep.subr.bf16.mxu0 0
      %836 = vmatpush2.bf16.msra.mxu0 0
      %837 = vmatprep.subr.bf16.mxu0 0
      %838 = vmatpush2.bf16.msra.mxu0 0
      %839 = vmatprep.subr.bf16.mxu0 0
      %840 = vmatpush2.bf16.msra.mxu0 0
      %841 = vmatprep.subr.bf16.mxu0 0
      %842 = vmatpush2.bf16.msra.mxu0 0
      %843 = vmatprep.mubr.bf16.mxu0 0
      %844 = vmatmul.mubr.bf16.gmra.mxu0 %v805
      %v845 = vpop.f32.mrf.mxu0
      %v846 = vadd.f32 0.0, %v845
      %v847 = vpop.f32.mrf.mxu0
      %v848 = vpop.f32.mrf.mxu0
      %v849 = vpop.f32.mrf.mxu0
      %850 = vdwg.mxu0
      %v851 = vpack.c.bf16 %v846, %v846
      %852 = vrot.lane.b32.xlu0 %v729, 112
      %v853 = vpop.permute.xlu0 %852
      %854 = vrot.lane.b32.xlu0 %v729, 80
      %v855 = vpop.permute.xlu0 %854
      %v857 = vsel %vm733, %v853, 0
      %v860 = vsel %vm733, %v855, 0
      %862 = vmatprep.subr.bf16.mxu0 0
      %863 = vmatpush1.bf16.xpose.msra.mxu0 0
      %864 = vmatprep.subr.bf16.mxu0 0
      %865 = vmatpush1.bf16.xpose.msra.mxu0 0
      %866 = vmatprep.subr.bf16.mxu0 0
      %867 = vmatpush1.bf16.xpose.msra.mxu0 0
      %868 = vmatprep.subr.bf16.mxu0 0
      %869 = vmatpush1.bf16.xpose.msra.mxu0 0
      %870 = vmatprep.subr.bf16.mxu0 0
      %871 = vmatpush1.bf16.xpose.msra.mxu0 0
      %872 = vmatprep.subr.bf16.mxu0 0
      %873 = vmatpush1.bf16.xpose.msra.mxu0 0
      %874 = vmatprep.subr.bf16.mxu0 0
      %875 = vmatpush1.bf16.xpose.msra.mxu0 0
      %876 = vmatprep.subr.bf16.mxu0 0
      %877 = vmatpush1.bf16.xpose.msra.mxu0 %v860
      %878 = vmatprep.subr.bf16.mxu0 0
      %879 = vmatpush2.bf16.xpose.msra.mxu0 0
      %880 = vmatprep.subr.bf16.mxu0 0
      %881 = vmatpush2.bf16.xpose.msra.mxu0 0
      %882 = vmatprep.subr.bf16.mxu0 0
      %883 = vmatpush2.bf16.xpose.msra.mxu0 0
      %884 = vmatprep.subr.bf16.mxu0 0
      %885 = vmatpush2.bf16.xpose.msra.mxu0 0
      %886 = vmatprep.subr.bf16.mxu0 0
      %887 = vmatpush2.bf16.xpose.msra.mxu0 0
      %888 = vmatprep.subr.bf16.mxu0 0
      %889 = vmatpush2.bf16.xpose.msra.mxu0 0
      %890 = vmatprep.subr.bf16.mxu0 0
      %891 = vmatpush2.bf16.xpose.msra.mxu0 0
      %892 = vmatprep.subr.bf16.mxu0 0
      %893 = vmatpush2.bf16.xpose.msra.mxu0 0
      %894 = vmatprep.mubr.bf16.mxu0 0
      %895 = vmatmul.mubr.bf16.gmra.mxu0 %v857
      %v896 = vpop.f32.mrf.mxu0
      %v897 = vadd.f32 0.0, %v896
      %v898 = vpop.f32.mrf.mxu0
      %v899 = vpop.f32.mrf.mxu0
      %v900 = vpop.f32.mrf.mxu0
      %901 = vdwg.mxu0
      %v902 = vmul.f32 %v897, 0.25
      %v903 = vsel %vm787, %v902, -1e+09
      %v904 = vsel %vm789, %v903, -inf
      %905 = vmax.xlane.f32.xlu0 %v904
      %v906 = vpop.xlane.xlu0 %905
      %v907 = vsub.f32 %v903, %v906
      %v908 = vmul.f32 %v907, 1.442695
      %v909 = vpow.pop %v908
      %v910 = vsel %vm789, %v909, 0.0
      %911 = vadd.xlane.f32.xlu0 %v910
      %v912 = vpop.xlane.xlu0 %911
      %v913 = vrcp.pop %v912
      %v914 = vmul.f32 %v909, %v913
      %v915 = vpack.c.bf16 %v914, %v914
      %916 = vrot.lane.b32.xlu0 %v729, 48
      %v917 = vpop.permute.xlu0 %916
      %v919 = vsel %vm789, %v915, 0
      %v922 = vsel %vm807, %v917, 0
      %924 = vmatprep.subr.bf16.mxu0 0
      %925 = vmatpush1.bf16.msra.mxu0 0
      %926 = vmatprep.subr.bf16.mxu0 0
      %927 = vmatpush1.bf16.msra.mxu0 0
      %928 = vmatprep.subr.bf16.mxu0 0
      %929 = vmatpush1.bf16.msra.mxu0 0
      %930 = vmatprep.subr.bf16.mxu0 0
      %931 = vmatpush1.bf16.msra.mxu0 0
      %932 = vmatprep.subr.bf16.mxu0 0
      %933 = vmatpush1.bf16.msra.mxu0 0
      %934 = vmatprep.subr.bf16.mxu0 0
      %935 = vmatpush1.bf16.msra.mxu0 0
      %936 = vmatprep.subr.bf16.mxu0 0
      %937 = vmatpush1.bf16.msra.mxu0 0
      %938 = vmatprep.subr.bf16.mxu0 0
      %939 = vmatpush1.bf16.msra.mxu0 %v922
      %940 = vmatprep.subr.bf16.mxu0 0
      %941 = vmatpush2.bf16.msra.mxu0 0
      %942 = vmatprep.subr.bf16.mxu0 0
      %943 = vmatpush2.bf16.msra.mxu0 0
      %944 = vmatprep.subr.bf16.mxu0 0
      %945 = vmatpush2.bf16.msra.mxu0 0
      %946 = vmatprep.subr.bf16.mxu0 0
      %947 = vmatpush2.bf16.msra.mxu0 0
      %948 = vmatprep.subr.bf16.mxu0 0
      %949 = vmatpush2.bf16.msra.mxu0 0
      %950 = vmatprep.subr.bf16.mxu0 0
      %951 = vmatpush2.bf16.msra.mxu0 0
      %952 = vmatprep.subr.bf16.mxu0 0
      %953 = vmatpush2.bf16.msra.mxu0 0
      %954 = vmatprep.subr.bf16.mxu0 0
      %955 = vmatpush2.bf16.msra.mxu0 0
      %956 = vmatprep.mubr.bf16.mxu0 0
      %957 = vmatmul.mubr.bf16.gmra.mxu0 %v919
      %v958 = vpop.f32.mrf.mxu0
      %v959 = vadd.f32 0.0, %v958
      %v960 = vpop.f32.mrf.mxu0
      %v961 = vpop.f32.mrf.mxu0
      %v962 = vpop.f32.mrf.mxu0
      %963 = vdwg.mxu0
      %v964 = vpack.c.bf16 %v959, %v959
      %v967 = vunpack.c.l.b16 %v727
      %v968 = vunpack.c.l.b16 %v728
      %v969 = vpack.c.b16 %v968, %v967
      %v972 = vsel %vm733, %v964, 0
      %974 = vmatprep.subr.bf16.mxu0 0
      %975 = vmatpush1.bf16.msra.mxu0 0
      %976 = vmatprep.subr.bf16.mxu0 0
      %977 = vmatpush1.bf16.msra.mxu0 0
      %978 = vmatprep.subr.bf16.mxu0 0
      %979 = vmatpush1.bf16.msra.mxu0 0
      %980 = vmatprep.subr.bf16.mxu0 0
      %981 = vmatpush1.bf16.msra.mxu0 0
      %982 = vmatprep.subr.bf16.mxu0 0
      %983 = vmatpush1.bf16.msra.mxu0 0
      %984 = vmatprep.subr.bf16.mxu0 0
      %985 = vmatpush1.bf16.msra.mxu0 0
      %986 = vmatprep.subr.bf16.mxu0 0
      %987 = vmatpush1.bf16.msra.mxu0 0
      %988 = vmatprep.subr.bf16.mxu0 0
      %989 = vmatpush1.bf16.msra.mxu0 %v969
      %990 = vmatprep.subr.bf16.mxu0 0
      %991 = vmatpush2.bf16.msra.mxu0 0
      %992 = vmatprep.subr.bf16.mxu0 0
      %993 = vmatpush2.bf16.msra.mxu0 0
      %994 = vmatprep.subr.bf16.mxu0 0
      %995 = vmatpush2.bf16.msra.mxu0 0
      %996 = vmatprep.subr.bf16.mxu0 0
      %997 = vmatpush2.bf16.msra.mxu0 0
      %998 = vmatprep.subr.bf16.mxu0 0
      %999 = vmatpush2.bf16.msra.mxu0 0
      %1000 = vmatprep.subr.bf16.mxu0 0
      %1001 = vmatpush2.bf16.msra.mxu0 0
      %1002 = vmatprep.subr.bf16.mxu0 0
      %1003 = vmatpush2.bf16.msra.mxu0 0
      %1004 = vmatprep.subr.bf16.mxu0 0
      %1005 = vmatpush2.bf16.msra.mxu0 0
      %1006 = vmatprep.mubr.bf16.mxu0 0
      %1007 = vmatmul.mubr.bf16.gmra.mxu0 %v972
      %v1008 = vpop.f32.mrf.mxu0
      %v1009 = vadd.f32 0.0, %v1008
      %v1010 = vpop.f32.mrf.mxu0
      %v1011 = vpop.f32.mrf.mxu0
      %v1012 = vpop.f32.mrf.mxu0
      %1013 = vdwg.mxu0
      %v1016 = vunpack.c.l.b16 %v725
      %v1017 = vunpack.c.l.b16 %v726
      %v1018 = vpack.c.b16 %v1017, %v1016
      %v1021 = vsel %vm733, %v851, 0
      %1023 = vmatprep.subr.bf16.mxu0 0
      %1024 = vmatpush1.bf16.msra.mxu0 0
      %1025 = vmatprep.subr.bf16.mxu0 0
      %1026 = vmatpush1.bf16.msra.mxu0 0
      %1027 = vmatprep.subr.bf16.mxu0 0
      %1028 = vmatpush1.bf16.msra.mxu0 0
      %1029 = vmatprep.subr.bf16.mxu0 0
      %1030 = vmatpush1.bf16.msra.mxu0 0
      %1031 = vmatprep.subr.bf16.mxu0 0
      %1032 = vmatpush1.bf16.msra.mxu0 0
      %1033 = vmatprep.subr.bf16.mxu0 0
      %1034 = vmatpush1.bf16.msra.mxu0 0
      %1035 = vmatprep.subr.bf16.mxu0 0
      %1036 = vmatpush1.bf16.msra.mxu0 0
      %1037 = vmatprep.subr.bf16.mxu0 0
      %1038 = vmatpush1.bf16.msra.mxu0 %v1018
      %1039 = vmatprep.subr.bf16.mxu0 0
      %1040 = vmatpush2.bf16.msra.mxu0 0
      %1041 = vmatprep.subr.bf16.mxu0 0
      %1042 = vmatpush2.bf16.msra.mxu0 0
      %1043 = vmatprep.subr.bf16.mxu0 0
      %1044 = vmatpush2.bf16.msra.mxu0 0
      %1045 = vmatprep.subr.bf16.mxu0 0
      %1046 = vmatpush2.bf16.msra.mxu0 0
      %1047 = vmatprep.subr.bf16.mxu0 0
      %1048 = vmatpush2.bf16.msra.mxu0 0
      %1049 = vmatprep.subr.bf16.mxu0 0
      %1050 = vmatpush2.bf16.msra.mxu0 0
      %1051 = vmatprep.subr.bf16.mxu0 0
      %1052 = vmatpush2.bf16.msra.mxu0 0
      %1053 = vmatprep.subr.bf16.mxu0 0
      %1054 = vmatpush2.bf16.msra.mxu0 0
      %1055 = vmatprep.mubr.bf16.mxu0 0
      %1056 = vmatmul.mubr.bf16.gmra.mxu0 %v1021
      %v1057 = vpop.f32.mrf.mxu0
      %v1058 = vadd.f32 %v1009, %v1057
      %v1059 = vpop.f32.mrf.mxu0
      %v1060 = vpop.f32.mrf.mxu0
      %v1061 = vpop.f32.mrf.mxu0
      %1062 = vdwg.mxu0
      %v1063 = vadd.f32 %v628, %v1058
      %v1064 = vld [vmem:[%s598] sm:$0x1]
      %v1066 = vlaneseq
      %v1067 = vshrl.u32 %v1066, 7
      %v1068 = vsub.s32 0, %v1067
      %v1069 = vrot.slane %v1064, %v1068
      %v1071 = vadd.f32 %v1063, %v1069
      %v1072 = vsel %vm632, %v1071, 0.0
      %1073 = vadd.xlane.f32.xlu0 %v1072
      %v1074 = vpop.xlane.xlu0 %1073
      %v1075 = vmul.f32 %v1074, %v636
      %v1076 = vsub.f32 %v1071, %v1075
      %v1077 = vmul.f32 %v1076, %v1076
      %v1078 = vsel %vm632, %v1077, 0.0
      %1079 = vadd.xlane.f32.xlu0 %v1078
      %v1080 = vpop.xlane.xlu0 %1079
      %v1081 = vmul.f32 %v1080, %v636
      %v1082 = vadd.f32 %v1081, 1e-05
      %v1083 = vrsqrt.pop %v1082
      %v1084 = vmul.f32 %v1076, %v1083
      %v1085 = vlaneseq
      %v1086 = vshrl.u32 %v1085, 7
      %v1087 = vsub.s32 2, %v1086
      %v1088 = vrot.slane %v647, %v1087
      %v1089 = vmul.f32 %v1084, %v1088
      %v1090 = vlaneseq
      %v1091 = vshrl.u32 %v1090, 7
      %v1092 = vsub.s32 3, %v1091
      %v1093 = vrot.slane %v631, %v1092
      %v1094 = vadd.f32 %v1089, %v1093
      %v1095 = vld [vmem:[%s603] sm:$0xff]
      %v1096 = vld [vmem:[%s603 + $0x8] sm:$0xff]
      %v1097 = vld [vmem:[%s603 + $0x10] sm:$0xff]
      %v1098 = vld [vmem:[%s603 + $0x18] sm:$0xff]
      %v1099 = vld [vmem:[%s606] sm:$0x1]
      %v1100 = vpack.c.bf16 %v1094, %v1094
      %v1105 = vunpack.c.l.b16 %v1095
      %v1106 = vunpack.c.h.b16 %v1095
      %v1107 = vunpack.c.l.b16 %v1096
      %v1108 = vunpack.c.h.b16 %v1096
      %v1109 = vunpack.c.l.b16 %v1097
      %v1110 = vunpack.c.h.b16 %v1097
      %v1111 = vunpack.c.l.b16 %v1098
      %v1112 = vunpack.c.h.b16 %v1098
      %v1113 = vpack.c.b16 %v1107, %v1105
      %v1114 = vpack.c.b16 %v1108, %v1106
      %v1115 = vpack.c.b16 %v1111, %v1109
      %v1116 = vpack.c.b16 %v1112, %v1110
      %v1122 = vsel %vm632, %v1100, 0
      %1124 = vmatprep.subr.bf16.mxu0 0
      %1125 = vmatpush1.bf16.msra.mxu0 0
      %1126 = vmatprep.subr.bf16.mxu0 0
      %1127 = vmatpush1.bf16.msra.mxu0 0
      %1128 = vmatprep.subr.bf16.mxu0 0
      %1129 = vmatpush1.bf16.msra.mxu0 0
      %1130 = vmatprep.subr.bf16.mxu0 0
      %1131 = vmatpush1.bf16.msra.mxu0 0
      %1132 = vmatprep.subr.bf16.mxu0 0
      %1133 = vmatpush1.bf16.msra.mxu0 0
      %1134 = vmatprep.subr.bf16.mxu0 0
      %1135 = vmatpush1.bf16.msra.mxu0 0
      %1136 = vmatprep.subr.bf16.mxu0 %v1116
      %1137 = vmatpush1.bf16.msra.mxu0 %v1115
      %1138 = vmatprep.subr.bf16.mxu0 %v1114
      %1139 = vmatpush1.bf16.msra.mxu0 %v1113
      %1140 = vmatprep.subr.bf16.mxu0 0
      %1141 = vmatpush2.bf16.msra.mxu0 0
      %1142 = vmatprep.subr.bf16.mxu0 0
      %1143 = vmatpush2.bf16.msra.mxu0 0
      %1144 = vmatprep.subr.bf16.mxu0 0
      %1145 = vmatpush2.bf16.msra.mxu0 0
      %1146 = vmatprep.subr.bf16.mxu0 0
      %1147 = vmatpush2.bf16.msra.mxu0 0
      %1148 = vmatprep.subr.bf16.mxu0 0
      %1149 = vmatpush2.bf16.msra.mxu0 0
      %1150 = vmatprep.subr.bf16.mxu0 0
      %1151 = vmatpush2.bf16.msra.mxu0 0
      %1152 = vmatprep.subr.bf16.mxu0 0
      %1153 = vmatpush2.bf16.msra.mxu0 0
      %1154 = vmatprep.subr.bf16.mxu0 0
      %1155 = vmatpush2.bf16.msra.mxu0 0
      %1156 = vmatprep.mubr.bf16.mxu0 0
      %1157 = vmatmul.mubr.bf16.gmra.mxu0 %v1122
      %v1158 = vpop.f32.mrf.mxu0
      %v1159 = vadd.f32 0.0, %v1158
      %v1160 = vpop.f32.mrf.mxu0
      %v1161 = vadd.f32 0.0, %v1160
      %v1162 = vpop.f32.mrf.mxu0
      %v1163 = vpop.f32.mrf.mxu0
      %1164 = vdwg.mxu0
      %v1166 = vrot.slane %v1159, 7
      %vm1168 = vcmask 1040384
      %v1169 = vsel %vm1168, 0.0, %v1166
      %1170 = vrot.lane.b32.xlu0 %v1159, 64
      %v1171 = vpop.permute.xlu0 %1170
      %v1173 = vadd.f32 %v1169, %v1171
      %v1175 = vrot.slane %v1161, 1
      %vm1177 = vcmask 1046528
      %v1178 = vsel %vm1177, %v1175, 0.0
      %v1179 = vadd.f32 %v1173, %v1178
      %v1181 = vlaneseq
      %v1182 = vshrl.u32 %v1181, 7
      %v1183 = vsub.s32 0, %v1182
      %v1184 = vrot.slane %v1099, %v1183
      %v1186 = vadd.f32 %v1179, %v1184
      %v1187 = vmax.f32 %v1186, 0.0
      %v1188 = vld [vmem:[%s611] sm:$0xf]
      %v1189 = vld [vmem:[%s611 + $0x4] sm:$0xf]
      %v1190 = vld [vmem:[%s611 + $0x8] sm:$0xf]
      %v1191 = vld [vmem:[%s611 + $0xc] sm:$0xf]
      %v1192 = vld [vmem:[%s611 + $0x10] sm:$0xf]
      %v1193 = vld [vmem:[%s611 + $0x14] sm:$0xf]
      %v1194 = vld [vmem:[%s611 + $0x18] sm:$0xf]
      %v1195 = vld [vmem:[%s611 + $0x1c] sm:$0xf]
      %v1196 = vld [vmem:[%s614] sm:$0x1]
      %v1197 = vpack.c.bf16 %v1187, %v1187
      %v1206 = vunpack.c.l.b16 %v1188
      %v1207 = vunpack.c.l.b16 %v1189
      %v1208 = vunpack.c.l.b16 %v1190
      %v1209 = vunpack.c.l.b16 %v1191
      %v1210 = vunpack.c.l.b16 %v1192
      %v1211 = vunpack.c.l.b16 %v1193
      %v1212 = vunpack.c.l.b16 %v1194
      %v1213 = vunpack.c.l.b16 %v1195
      %v1214 = vpack.c.b16 %v1207, %v1206
      %v1215 = vpack.c.b16 %v1209, %v1208
      %v1216 = vpack.c.b16 %v1211, %v1210
      %v1217 = vpack.c.b16 %v1213, %v1212
      %vm1222 = vcmask 523264
      %v1224 = vsel %vm1222, %v1197, 0
      %1226 = vmatprep.subr.bf16.mxu0 0
      %1227 = vmatpush1.bf16.msra.mxu0 0
      %1228 = vmatprep.subr.bf16.mxu0 0
      %1229 = vmatpush1.bf16.msra.mxu0 0
      %1230 = vmatprep.subr.bf16.mxu0 0
      %1231 = vmatpush1.bf16.msra.mxu0 0
      %1232 = vmatprep.subr.bf16.mxu0 0
      %1233 = vmatpush1.bf16.msra.mxu0 0
      %1234 = vmatprep.subr.bf16.mxu0 0
      %1235 = vmatpush1.bf16.msra.mxu0 %v1217
      %1236 = vmatprep.subr.bf16.mxu0 0
      %1237 = vmatpush1.bf16.msra.mxu0 %v1216
      %1238 = vmatprep.subr.bf16.mxu0 0
      %1239 = vmatpush1.bf16.msra.mxu0 %v1215
      %1240 = vmatprep.subr.bf16.mxu0 0
      %1241 = vmatpush1.bf16.msra.mxu0 %v1214
      %1242 = vmatprep.subr.bf16.mxu0 0
      %1243 = vmatpush2.bf16.msra.mxu0 0
      %1244 = vmatprep.subr.bf16.mxu0 0
      %1245 = vmatpush2.bf16.msra.mxu0 0
      %1246 = vmatprep.subr.bf16.mxu0 0
      %1247 = vmatpush2.bf16.msra.mxu0 0
      %1248 = vmatprep.subr.bf16.mxu0 0
      %1249 = vmatpush2.bf16.msra.mxu0 0
      %1250 = vmatprep.subr.bf16.mxu0 0
      %1251 = vmatpush2.bf16.msra.mxu0 0
      %1252 = vmatprep.subr.bf16.mxu0 0
      %1253 = vmatpush2.bf16.msra.mxu0 0
      %1254 = vmatprep.subr.bf16.mxu0 0
      %1255 = vmatpush2.bf16.msra.mxu0 0
      %1256 = vmatprep.subr.bf16.mxu0 0
      %1257 = vmatpush2.bf16.msra.mxu0 0
      %1258 = vmatprep.mubr.bf16.mxu0 0
      %1259 = vmatmul.mubr.bf16.gmra.mxu0 %v1224
      %v1260 = vpop.f32.mrf.mxu0
      %v1261 = vadd.f32 0.0, %v1260
      %v1262 = vpop.f32.mrf.mxu0
      %v1263 = vpop.f32.mrf.mxu0
      %v1264 = vpop.f32.mrf.mxu0
      %1265 = vdwg.mxu0
      %v1267 = vrot.slane %v1261, 7
      %v1269 = vsel %vm1168, 0.0, %v1267
      %1270 = vrot.lane.b32.xlu0 %v1261, 96
      %v1271 = vpop.permute.xlu0 %1270
      %v1273 = vadd.f32 %v1269, %v1271
      %v1274 = vrot.slane %v1261, 1
      %v1276 = vsel %vm1177, %v1274, 0.0
      %1278 = vrot.lane.b32.xlu0 %v1276, 64
      %v1279 = vpop.permute.xlu0 %1278
      %v1281 = vadd.f32 %v1273, %v1279
      %v1283 = vlaneseq
      %v1284 = vshrl.u32 %v1283, 7
      %v1285 = vsub.s32 0, %v1284
      %v1286 = vrot.slane %v1196, %v1285
      %v1288 = vadd.f32 %v1281, %v1286
      %v1289 = vadd.f32 %v1071, %v1288
      %1291 = vset.pattern.permute.xlu0 0
      %1292 = vperm.xlu0 %1291, %v630
      %v1293 = vpop.permute.xlu0 %1292
      %v1295 = vmul.f32 %v1289, %v1293
      %1296 = vst.msk [vmem:[#allocation2] sm:$0xff] %vm632, %v1295
      %p1297 = scmp.eq.s32.totalorder %s28, 1
      // Predicated region
      $region73: #{stableform_tts_forward.6} parent=67 // pred_check
        %p1298 = pneg %p1297
      $region74: #{stableform_tts_forward.6} parent=67 // pred_check_branch
        %1300 = sbr.rel (%p1298) target = $region76
      $region75: #{stableform_tts_forward.6} parent=67 // pred_region
        %v1301 = vpack.c.bf16 %v1295, %v1295
        %vm1302 = vcmask 257024
        %1303 = vst.msk [vmem:[%s618] sm:$0xf] %vm1302, %v1301
      $region76: #{stableform_tts_forward.6} parent=67 // pred_fallthru
        _
      %p1304 = scmp.lt.s32.totalorder %s27, 1
      %s1305 = scalar_select %p1304, %s27, 1
      %s1306 = smul.addr %s1305, 4
      %s1307 = scalar_lea.vmem %s12, %s1306
      // Predicated region
      $region77: #{stableform_tts_forward.6} parent=67 // pred_check
        %p1308 = pneg %p367
      $region78: #{stableform_tts_forward.6} parent=67 // pred_check_branch
        %1310 = sbr.rel (%p1308) target = $region80
      $region79: #{stableform_tts_forward.6} parent=67 // pred_region
        _
      $region80: #{stableform_tts_forward.6} parent=67 // pred_fallthru
        _
    $region68: #{stableform_tts_forward.6} parent=5 // pred_fallthru
      _
    %p1311 = scmp.le.s32.totalorder 2, %s18
    // Predicated region
    $region81: #{stableform_tts_forward.6} parent=5 // pred_check
      %p1312 = pneg %p1311
    $region82: #{stableform_tts_forward.6} parent=5 // pred_check_branch
      %1314 = sbr.rel (%p1312) target = $region84
    $region83: #{stableform_tts_forward.6} parent=5 // pred_region
      %s1315 = ssub.s32 %s18, 2
      // Predicated region
      $region85: #{stableform_tts_forward.6} parent=83 // pred_check
        %p1316 = pneg %p373
      $region86: #{stableform_tts_forward.6} parent=83 // pred_check_branch
        %1318 = sbr.rel (%p1316) target = $region88
      $region87: #{stableform_tts_forward.6} parent=83 // pred_region
        %p1319 = scmp.lt.s32.totalorder %s29, 1
        %s1320 = scalar_select %p1319, %s29, 1
        %s1321 = smul.addr %s1320, 4
        %s1322 = scalar_lea.vmem %s12, %s1321
      $region88: #{stableform_tts_forward.6} parent=83 // pred_fallthru
        _
    $region84: #{stableform_tts_forward.6} parent=5 // pred_fallthru
      _
  $region6: #{stableform_tts_forward.6} parent=0 // loop_footer
    %s22 = sadd.s32 1, %s18
  $region7: #{stableform_tts_forward.6} parent=0 // loop_footer_branch
    %17 = sbr.rel target = $region3
  $region8: #{stableform_tts_forward.6} parent=0 // loop_exit
    _

// kernel: stableform_tts_forward.8
$region0: #{stableform_tts_forward.8}
  #allocation0 [shape = 'u32[]', space=smem, size = 0x4, offset = 0x4, fixed_abs, tag = 'smem constant byte address 0x4 - core index']
  #allocation1 [shape = 'u32[144,128]{1,0:T(1,128)}', space=vmem, size = 0x12000, scoped, tag = 'internal scratch']
  %s0 = inlined_call_operand.vmem [shape: bf16[2,8,32], index: 0, kind: input, shape index: {}]
  %s1 = inlined_call_operand.vmem [shape: bf16[2,64,192], index: 1, kind: input, shape index: {}]
  %s2 = inlined_call_operand.vmem [shape: f32[2,1,64], index: 2, kind: input, shape index: {}]
  %s3 = inlined_call_operand.vmem [shape: f32[2,1,64], index: 3, kind: input, shape index: {}]
  %s4 = inlined_call_operand.vmem [shape: f32[2,1,64], index: 4, kind: input, shape index: {}]
  %s5 = inlined_call_operand.vmem [shape: bf16[64,2], index: 5, kind: input, shape index: {}]
  %s6 = inlined_call_operand.vmem [shape: f32[1,2], index: 6, kind: input, shape index: {}]
  %s7 = inlined_call_operand.vmem [shape: f32[2,8,2], index: 7, kind: output, shape index: {}]
  %s8 = sld [smem:[#allocation0]]
  $region61: #{stableform_tts_forward.8} parent=0
    _
  %s10 = ssub.s32 1, %s8
  %s11 = scalar_select 0, %s10, %s8
  loop: start=0, step=1, limit=4
  $region2: #{stableform_tts_forward.8} parent=0 // loop_pre_header
    _
  $region3: #{stableform_tts_forward.8} parent=0 // loop_header
    %s13 = sphi 0, %s17
    %p14 = scmp.ge.s32.totalorder %s13, 4
    %s23 = sphi 0, %s25
    %s26 = sphi 0, %s23
    %s27 = sphi 0, %s26
    %s43 = sphi 0, %s27
    %s47 = sphi 0, %s47
    %s49 = sphi 0, %s47
    %s50 = sphi 0, %s49
    %s64 = sphi 0, %s50
    %s68 = sphi 0, %s68
    %s70 = sphi 0, %s68
    %s71 = sphi 0, %s70
    %s85 = sphi 0, %s71
    %s89 = sphi 0, %s89
    %s91 = sphi 0, %s89
    %s92 = sphi 0, %s91
    %s106 = sphi 0, %s92
    %s110 = sphi 0, %s110
    %s112 = sphi 0, %s110
    %s113 = sphi 0, %s112
    %s127 = sphi 0, %s113
    %s131 = sphi 0, %s131
    %s133 = sphi 0, %s131
    %s134 = sphi 0, %s133
    %s148 = sphi 0, %s134
    %s152 = sphi 0, %s152
    %s154 = sphi 0, %s152
    %s155 = sphi 0, %s154
    %s169 = sphi 0, %s155
    %s175 = sphi 0, %s177
    %s178 = sphi 0, %s175
    %s179 = sphi 0, %s178
    %s195 = sphi 0, %s179
  $region4: #{stableform_tts_forward.8} parent=0 // loop_header_branch
    %16 = sbr.rel (%p14) target = $region8
  $region5: #{stableform_tts_forward.8} parent=0 // loop_body
    %s18 = ssub.s32 %s13, 1
    %s19 = ssub.s32 %s13, 2
    %s20 = sadd.s32 %s13, 1
    %s21 = ssub.s32 %s13, %s20
    %p22 = scmp.eq.s32.totalorder %s21, 0
    %s24 = sadd.s32 %s23, 1
    %s25 = scalar_select %p22, %s23, %s24
    %p28 = pneg %p22
    %p29 = scmp.eq.s32.totalorder %s13, 1
    %p30 = por %p28, %p29
    %p31 = scmp.ne.s32.totalorder %s23, %s26
    %p32 = scmp.eq.s32.totalorder %s13, 0
    %p33 = por %p31, %p32
    %p34 = scmp.ne.s32.totalorder %s23, %s26
    %p35 = scmp.eq.s32.totalorder %s18, 1
    %p36 = por %p34, %p35
    %p37 = scmp.ne.s32.totalorder %s26, %s27
    %p38 = scmp.eq.s32.totalorder %s18, 0
    %p39 = por %p37, %p38
    %p40 = scmp.ne.s32.totalorder %s26, %s27
    %p41 = scmp.eq.s32.totalorder %s19, 1
    %p42 = por %p40, %p41
    %p44 = scmp.ne.s32.totalorder %s27, %s43
    %p45 = scmp.eq.s32.totalorder %s19, 0
    %p46 = por %p44, %p45
    %s48 = sadd.s32 %s47, 1
    %p51 = scmp.eq.s32.totalorder %s13, 1
    %p52 = scmp.ne.s32.totalorder %s47, %s49
    %p53 = scmp.eq.s32.totalorder %s13, 0
    %p54 = por %p52, %p53
    %p55 = scmp.ne.s32.totalorder %s47, %s49
    %p56 = scmp.eq.s32.totalorder %s18, 1
    %p57 = por %p55, %p56
    %p58 = scmp.ne.s32.totalorder %s49, %s50
    %p59 = scmp.eq.s32.totalorder %s18, 0
    %p60 = por %p58, %p59
    %p61 = scmp.ne.s32.totalorder %s49, %s50
    %p62 = scmp.eq.s32.totalorder %s19, 1
    %p63 = por %p61, %p62
    %p65 = scmp.ne.s32.totalorder %s50, %s64
    %p66 = scmp.eq.s32.totalorder %s19, 0
    %p67 = por %p65, %p66
    %s69 = sadd.s32 %s68, 1
    %p72 = scmp.eq.s32.totalorder %s13, 1
    %p73 = scmp.ne.s32.totalorder %s68, %s70
    %p74 = scmp.eq.s32.totalorder %s13, 0
    %p75 = por %p73, %p74
    %p76 = scmp.ne.s32.totalorder %s68, %s70
    %p77 = scmp.eq.s32.totalorder %s18, 1
    %p78 = por %p76, %p77
    %p79 = scmp.ne.s32.totalorder %s70, %s71
    %p80 = scmp.eq.s32.totalorder %s18, 0
    %p81 = por %p79, %p80
    %p82 = scmp.ne.s32.totalorder %s70, %s71
    %p83 = scmp.eq.s32.totalorder %s19, 1
    %p84 = por %p82, %p83
    %p86 = scmp.ne.s32.totalorder %s71, %s85
    %p87 = scmp.eq.s32.totalorder %s19, 0
    %p88 = por %p86, %p87
    %s90 = sadd.s32 %s89, 1
    %p93 = scmp.eq.s32.totalorder %s13, 1
    %p94 = scmp.ne.s32.totalorder %s89, %s91
    %p95 = scmp.eq.s32.totalorder %s13, 0
    %p96 = por %p94, %p95
    %p97 = scmp.ne.s32.totalorder %s89, %s91
    %p98 = scmp.eq.s32.totalorder %s18, 1
    %p99 = por %p97, %p98
    %p100 = scmp.ne.s32.totalorder %s91, %s92
    %p101 = scmp.eq.s32.totalorder %s18, 0
    %p102 = por %p100, %p101
    %p103 = scmp.ne.s32.totalorder %s91, %s92
    %p104 = scmp.eq.s32.totalorder %s19, 1
    %p105 = por %p103, %p104
    %p107 = scmp.ne.s32.totalorder %s92, %s106
    %p108 = scmp.eq.s32.totalorder %s19, 0
    %p109 = por %p107, %p108
    %s111 = sadd.s32 %s110, 1
    %p114 = scmp.eq.s32.totalorder %s13, 1
    %p115 = scmp.ne.s32.totalorder %s110, %s112
    %p116 = scmp.eq.s32.totalorder %s13, 0
    %p117 = por %p115, %p116
    %p118 = scmp.ne.s32.totalorder %s110, %s112
    %p119 = scmp.eq.s32.totalorder %s18, 1
    %p120 = por %p118, %p119
    %p121 = scmp.ne.s32.totalorder %s112, %s113
    %p122 = scmp.eq.s32.totalorder %s18, 0
    %p123 = por %p121, %p122
    %p124 = scmp.ne.s32.totalorder %s112, %s113
    %p125 = scmp.eq.s32.totalorder %s19, 1
    %p126 = por %p124, %p125
    %p128 = scmp.ne.s32.totalorder %s113, %s127
    %p129 = scmp.eq.s32.totalorder %s19, 0
    %p130 = por %p128, %p129
    %s132 = sadd.s32 %s131, 1
    %p135 = scmp.eq.s32.totalorder %s13, 1
    %p136 = scmp.ne.s32.totalorder %s131, %s133
    %p137 = scmp.eq.s32.totalorder %s13, 0
    %p138 = por %p136, %p137
    %p139 = scmp.ne.s32.totalorder %s131, %s133
    %p140 = scmp.eq.s32.totalorder %s18, 1
    %p141 = por %p139, %p140
    %p142 = scmp.ne.s32.totalorder %s133, %s134
    %p143 = scmp.eq.s32.totalorder %s18, 0
    %p144 = por %p142, %p143
    %p145 = scmp.ne.s32.totalorder %s133, %s134
    %p146 = scmp.eq.s32.totalorder %s19, 1
    %p147 = por %p145, %p146
    %p149 = scmp.ne.s32.totalorder %s134, %s148
    %p150 = scmp.eq.s32.totalorder %s19, 0
    %p151 = por %p149, %p150
    %s153 = sadd.s32 %s152, 1
    %p156 = scmp.eq.s32.totalorder %s13, 1
    %p157 = scmp.ne.s32.totalorder %s152, %s154
    %p158 = scmp.eq.s32.totalorder %s13, 0
    %p159 = por %p157, %p158
    %p160 = scmp.ne.s32.totalorder %s152, %s154
    %p161 = scmp.eq.s32.totalorder %s18, 1
    %p162 = por %p160, %p161
    %p163 = scmp.ne.s32.totalorder %s154, %s155
    %p164 = scmp.eq.s32.totalorder %s18, 0
    %p165 = por %p163, %p164
    %p166 = scmp.ne.s32.totalorder %s154, %s155
    %p167 = scmp.eq.s32.totalorder %s19, 1
    %p168 = por %p166, %p167
    %p170 = scmp.ne.s32.totalorder %s155, %s169
    %p171 = scmp.eq.s32.totalorder %s19, 0
    %p172 = por %p170, %p171
    %s173 = ssub.s32 %s13, %s20
    %p174 = scmp.eq.s32.totalorder %s173, 0
    %s176 = sadd.s32 %s175, 1
    %s177 = scalar_select %p174, %s175, %s176
    %p180 = pneg %p174
    %p181 = scmp.eq.s32.totalorder %s13, 1
    %p182 = por %p180, %p181
    %p183 = scmp.ne.s32.totalorder %s175, %s178
    %p184 = scmp.eq.s32.totalorder %s13, 0
    %p185 = por %p183, %p184
    %p186 = scmp.ne.s32.totalorder %s175, %s178
    %p187 = scmp.eq.s32.totalorder %s18, 1
    %p188 = por %p186, %p187
    %p189 = scmp.ne.s32.totalorder %s178, %s179
    %p190 = scmp.eq.s32.totalorder %s18, 0
    %p191 = por %p189, %p190
    %p192 = scmp.ne.s32.totalorder %s178, %s179
    %p193 = scmp.eq.s32.totalorder %s19, 1
    %p194 = por %p192, %p193
    %p196 = scmp.ne.s32.totalorder %s179, %s195
    %p197 = scmp.eq.s32.totalorder %s19, 0
    %p198 = por %p196, %p197
    %p199 = scmp.le.s32.totalorder 1, %s13
    %p200 = scmp.lt.s32.totalorder %s13, 3
    %p201 = pnand %p199, %p200
    %p202 = pneg %p201
    // Predicated region
    $region9: #{stableform_tts_forward.8} parent=5 // pred_check
      _
    $region10: #{stableform_tts_forward.8} parent=5 // pred_check_branch
      %204 = sbr.rel (%p201) target = $region12
    $region11: #{stableform_tts_forward.8} parent=5 // pred_region
      %s205 = ssub.s32 %s13, 1
      // Predicated region
      $region13: #{stableform_tts_forward.8} parent=11 // pred_check
        %p206 = pneg %p60
      $region14: #{stableform_tts_forward.8} parent=11 // pred_check_branch
        %208 = sbr.rel (%p206) target = $region16
      $region15: #{stableform_tts_forward.8} parent=11 // pred_region
        _
      $region16: #{stableform_tts_forward.8} parent=11 // pred_fallthru
        _
      // Predicated region
      $region17: #{stableform_tts_forward.8} parent=11 // pred_check
        %p209 = pneg %p81
      $region18: #{stableform_tts_forward.8} parent=11 // pred_check_branch
        %211 = sbr.rel (%p209) target = $region20
      $region19: #{stableform_tts_forward.8} parent=11 // pred_region
        _
      $region20: #{stableform_tts_forward.8} parent=11 // pred_fallthru
        _
      // Predicated region
      $region21: #{stableform_tts_forward.8} parent=11 // pred_check
        %p212 = pneg %p102
      $region22: #{stableform_tts_forward.8} parent=11 // pred_check_branch
        %214 = sbr.rel (%p212) target = $region24
      $region23: #{stableform_tts_forward.8} parent=11 // pred_region
        _
      $region24: #{stableform_tts_forward.8} parent=11 // pred_fallthru
        _
      // Predicated region
      $region25: #{stableform_tts_forward.8} parent=11 // pred_check
        %p215 = pneg %p123
      $region26: #{stableform_tts_forward.8} parent=11 // pred_check_branch
        %217 = sbr.rel (%p215) target = $region28
      $region27: #{stableform_tts_forward.8} parent=11 // pred_region
        _
      $region28: #{stableform_tts_forward.8} parent=11 // pred_fallthru
        _
      // Predicated region
      $region29: #{stableform_tts_forward.8} parent=11 // pred_check
        %p218 = pneg %p144
      $region30: #{stableform_tts_forward.8} parent=11 // pred_check_branch
        %220 = sbr.rel (%p218) target = $region32
      $region31: #{stableform_tts_forward.8} parent=11 // pred_region
        _
      $region32: #{stableform_tts_forward.8} parent=11 // pred_fallthru
        _
      // Predicated region
      $region33: #{stableform_tts_forward.8} parent=11 // pred_check
        %p221 = pneg %p165
      $region34: #{stableform_tts_forward.8} parent=11 // pred_check_branch
        %223 = sbr.rel (%p221) target = $region36
      $region35: #{stableform_tts_forward.8} parent=11 // pred_region
        _
      $region36: #{stableform_tts_forward.8} parent=11 // pred_fallthru
        _
    $region12: #{stableform_tts_forward.8} parent=5 // pred_fallthru
      _
    %p224 = scmp.lt.s32.totalorder %s13, 2
    // Predicated region
    $region37: #{stableform_tts_forward.8} parent=5 // pred_check
      %p225 = pneg %p224
    $region38: #{stableform_tts_forward.8} parent=5 // pred_check_branch
      %227 = sbr.rel (%p225) target = $region40
    $region39: #{stableform_tts_forward.8} parent=5 // pred_region
      // Predicated region
      $region41: #{stableform_tts_forward.8} parent=39 // pred_check
        %p228 = pneg %p33
      $region42: #{stableform_tts_forward.8} parent=39 // pred_check_branch
        %230 = sbr.rel (%p228) target = $region44
      $region43: #{stableform_tts_forward.8} parent=39 // pred_region
        %p231 = scmp.lt.s32.totalorder %s13, 1
        %s232 = scalar_select %p231, %s13, 1
        %s233 = smul.addr %s232, 4
        %s234 = scalar_lea.vmem %s0, %s233
      $region44: #{stableform_tts_forward.8} parent=39 // pred_fallthru
        _
    $region40: #{stableform_tts_forward.8} parent=5 // pred_fallthru
      _
    %p235 = scmp.le.s32.totalorder 1, %s13
    %p236 = scmp.lt.s32.totalorder %s13, 3
    %p237 = pnand %p235, %p236
    %p238 = pneg %p237
    // Predicated region
    $region45: #{stableform_tts_forward.8} parent=5 // pred_check
      _
    $region46: #{stableform_tts_forward.8} parent=5 // pred_check_branch
      %240 = sbr.rel (%p237) target = $region48
    $region47: #{stableform_tts_forward.8} parent=5 // pred_region
      %s241 = ssub.s32 %s13, 1
      %p242 = scmp.lt.s32.totalorder %s18, 1
      %s243 = scalar_select %p242, %s18, 1
      %s244 = smul.addr %s243, 4
      %s245 = scalar_lea.vmem %s0, %s244
      %p246 = pneg %p39
      %p247 = pneg %p36
      %p248 = pneg %p60
      %p249 = pneg %p57
      %p250 = pneg %p81
      %p251 = pneg %p78
      %p252 = pneg %p102
      %p253 = pneg %p99
      %p254 = pneg %p123
      %p255 = pneg %p120
      %p256 = pneg %p144
      %p257 = pneg %p141
      %p258 = pneg %p165
      %p259 = pneg %p162
      %p260 = pneg %p191
      %p261 = pneg %p188
      %p262 = scmp.lt.s32.totalorder %s18, 1
      %s263 = scalar_select %p262, %s18, 1
      %s264 = smul.addr %s263, 8
      %s265 = scalar_lea.vmem %s7, %s264
      %p266 = scmp.lt.s32.totalorder %s18, 1
      %s267 = scalar_select %p266, %s18, 1
      %s268 = smul.addr %s267, 4
      %s269 = scalar_lea.vmem %s0, %s268
      %p270 = scmp.lt.s32.totalorder %s18, 1
      %s271 = scalar_select %p270, %s18, 1
      %s272 = smul.addr %s271, 8
      %s273 = scalar_lea.vmem %s7, %s272
      %v275 = vld [vmem:[%s269] sm:$0xf]
      %v276 = vunpack.c.l.bf16 %v275
      %278 = vrot.lane.b32.xlu0 %v276, 32
      %v279 = vpop.permute.xlu0 %278
      %vm281 = vcmask 261120
      %v282 = vsel %vm281, %v276, %v279
      %v283 = vld [vmem:[%s1] sm:$0xff]
      %v284 = vld [vmem:[%s1 + $0x8] sm:$0xff]
      %v285 = vld [vmem:[%s1 + $0x10] sm:$0xff]
      %v286 = vld [vmem:[%s1 + $0x18] sm:$0xff]
      %v287 = vld [vmem:[%s1 + $0x20] sm:$0xff]
      %v288 = vld [vmem:[%s1 + $0x28] sm:$0xff]
      %v289 = vld [vmem:[%s1 + $0x30] sm:$0xff]
      %v290 = vld [vmem:[%s1 + $0x38] sm:$0xff]
      %v291 = vld [vmem:[%s2] sm:$0x1]
      %v292 = vpack.c.bf16 %v282, %v282
      %v301 = vunpack.c.l.b16 %v283
      %v302 = vunpack.c.h.b16 %v283
      %v303 = vunpack.c.l.b16 %v284
      %v304 = vunpack.c.h.b16 %v284
      %v305 = vunpack.c.l.b16 %v285
      %v306 = vunpack.c.h.b16 %v285
      %v307 = vunpack.c.l.b16 %v286
      %v308 = vunpack.c.h.b16 %v286
      %v309 = vunpack.c.l.b16 %v287
      %v310 = vunpack.c.h.b16 %v287
      %v311 = vunpack.c.l.b16 %v288
      %v312 = vunpack.c.h.b16 %v288
      %v313 = vunpack.c.l.b16 %v289
      %v314 = vunpack.c.h.b16 %v289
      %v315 = vunpack.c.l.b16 %v290
      %v316 = vunpack.c.h.b16 %v290
      %v317 = vpack.c.b16 %v303, %v301
      %v318 = vpack.c.b16 %v304, %v302
      %v319 = vpack.c.b16 %v307, %v305
      %v320 = vpack.c.b16 %v308, %v306
      %v321 = vpack.c.b16 %v311, %v309
      %v322 = vpack.c.b16 %v312, %v310
      %v323 = vpack.c.b16 %v315, %v313
      %v324 = vpack.c.b16 %v316, %v314
      %vm333 = vcmask 523264
      %v335 = vsel %vm333, %v292, 0
      %337 = vmatprep.subr.bf16.mxu0 0
      %338 = vmatpush1.bf16.msra.mxu0 0
      %339 = vmatprep.subr.bf16.mxu0 0
      %340 = vmatpush1.bf16.msra.mxu0 0
      %341 = vmatprep.subr.bf16.mxu0 0
      %342 = vmatpush1.bf16.msra.mxu0 0
      %343 = vmatprep.subr.bf16.mxu0 0
      %344 = vmatpush1.bf16.msra.mxu0 0
      %345 = vmatprep.subr.bf16.mxu0 %v324
      %346 = vmatpush1.bf16.msra.mxu0 %v323
      %347 = vmatprep.subr.bf16.mxu0 %v322
      %348 = vmatpush1.bf16.msra.mxu0 %v321
      %349 = vmatprep.subr.bf16.mxu0 %v320
      %350 = vmatpush1.bf16.msra.mxu0 %v319
      %351 = vmatprep.subr.bf16.mxu0 %v318
      %352 = vmatpush1.bf16.msra.mxu0 %v317
      %353 = vmatprep.subr.bf16.mxu0 0
      %354 = vmatpush2.bf16.msra.mxu0 0
      %355 = vmatprep.subr.bf16.mxu0 0
      %356 = vmatpush2.bf16.msra.mxu0 0
      %357 = vmatprep.subr.bf16.mxu0 0
      %358 = vmatpush2.bf16.msra.mxu0 0
      %359 = vmatprep.subr.bf16.mxu0 0
      %360 = vmatpush2.bf16.msra.mxu0 0
      %361 = vmatprep.subr.bf16.mxu0 0
      %362 = vmatpush2.bf16.msra.mxu0 0
      %363 = vmatprep.subr.bf16.mxu0 0
      %364 = vmatpush2.bf16.msra.mxu0 0
      %365 = vmatprep.subr.bf16.mxu0 0
      %366 = vmatpush2.bf16.msra.mxu0 0
      %367 = vmatprep.subr.bf16.mxu0 0
      %368 = vmatpush2.bf16.msra.mxu0 0
      %369 = vmatprep.mubr.bf16.mxu0 0
      %370 = vmatmul.mubr.bf16.gmra.mxu0 %v335
      %v371 = vpop.f32.mrf.mxu0
      %v372 = vadd.f32 0.0, %v371
      %v373 = vpop.f32.mrf.mxu0
      %v374 = vadd.f32 0.0, %v373
      %v375 = vpop.f32.mrf.mxu0
      %v376 = vpop.f32.mrf.mxu0
      %377 = vdwg.mxu0
      %v379 = vrot.slane %v372, 7
      %vm381 = vcmask 1040384
      %v382 = vsel %vm381, 0.0, %v379
      %383 = vrot.lane.b32.xlu0 %v372, 64
      %v384 = vpop.permute.xlu0 %383
      %v386 = vadd.f32 %v382, %v384
      %v388 = vrot.slane %v374, 1
      %vm390 = vcmask 1046528
      %v391 = vsel %vm390, %v388, 0.0
      %v392 = vadd.f32 %v386, %v391
      %v394 = vlaneseq
      %v395 = vshrl.u32 %v394, 7
      %v396 = vsub.s32 0, %v395
      %v397 = vrot.slane %v291, %v396
      %v399 = vadd.f32 %v392, %v397
      %v400 = vmax.f32 %v399, 0.0
      %v401 = vld [vmem:[%s3] sm:$0x1]
      %v402 = vld [vmem:[%s4] sm:$0x1]
      %v403 = vsel %vm281, %v400, 0.0
      %404 = vadd.xlane.f32.xlu0 %v403
      %v405 = vpop.xlane.xlu0 %404
      %v406 = vrcp.pop 32.0
      %v407 = vmul.f32 %v405, %v406
      %v408 = vsub.f32 %v400, %v407
      %v409 = vmul.f32 %v408, %v408
      %v410 = vsel %vm281, %v409, 0.0
      %411 = vadd.xlane.f32.xlu0 %v410
      %v412 = vpop.xlane.xlu0 %411
      %v413 = vmul.f32 %v412, %v406
      %v414 = vadd.f32 %v413, 1e-05
      %v415 = vrsqrt.pop %v414
      %v416 = vmul.f32 %v408, %v415
      %v418 = vlaneseq
      %v419 = vshrl.u32 %v418, 7
      %v420 = vsub.s32 0, %v419
      %v421 = vrot.slane %v401, %v420
      %v423 = vmul.f32 %v416, %v421
      %v425 = vlaneseq
      %v426 = vshrl.u32 %v425, 7
      %v427 = vsub.s32 0, %v426
      %v428 = vrot.slane %v402, %v427
      %v430 = vadd.f32 %v423, %v428
      %432 = vrot.lane.b32.xlu0 %v400, 96
      %v433 = vpop.permute.xlu0 %432
      %v435 = vsel %vm281, %v433, 0.0
      %436 = vadd.xlane.f32.xlu0 %v435
      %v437 = vpop.xlane.xlu0 %436
      %v438 = vmul.f32 %v437, %v406
      %v439 = vsub.f32 %v400, %v438
      %v440 = vmul.f32 %v439, %v439
      %442 = vrot.lane.b32.xlu0 %v440, 96
      %v443 = vpop.permute.xlu0 %442
      %v445 = vsel %vm281, %v443, 0.0
      %446 = vadd.xlane.f32.xlu0 %v445
      %v447 = vpop.xlane.xlu0 %446
      %v448 = vmul.f32 %v447, %v406
      %v449 = vadd.f32 %v448, 1e-05
      %v450 = vrsqrt.pop %v449
      %v451 = vmul.f32 %v439, %v450
      %v452 = vmul.f32 %v451, %v421
      %v453 = vadd.f32 %v452, %v428
      %v454 = vsel %vm281, %v430, %v453
      %s455 = scalar_lea.vmem %s1, 64
      %v456 = vld [vmem:[%s455] sm:$0xff]
      %v457 = vld [vmem:[%s455 + $0x8] sm:$0xff]
      %v458 = vld [vmem:[%s455 + $0x10] sm:$0xff]
      %v459 = vld [vmem:[%s455 + $0x18] sm:$0xff]
      %v460 = vld [vmem:[%s455 + $0x20] sm:$0xff]
      %v461 = vld [vmem:[%s455 + $0x28] sm:$0xff]
      %v462 = vld [vmem:[%s455 + $0x30] sm:$0xff]
      %v463 = vld [vmem:[%s455 + $0x38] sm:$0xff]
      %s464 = scalar_lea.vmem %s2, 1
      %v465 = vld [vmem:[%s464] sm:$0x1]
      %v466 = vpack.c.bf16 %v454, %v454
      %v475 = vunpack.c.l.b16 %v456
      %v476 = vunpack.c.h.b16 %v456
      %v477 = vunpack.c.l.b16 %v457
      %v478 = vunpack.c.h.b16 %v457
      %v479 = vunpack.c.l.b16 %v458
      %v480 = vunpack.c.h.b16 %v458
      %v481 = vunpack.c.l.b16 %v459
      %v482 = vunpack.c.h.b16 %v459
      %v483 = vunpack.c.l.b16 %v460
      %v484 = vunpack.c.h.b16 %v460
      %v485 = vunpack.c.l.b16 %v461
      %v486 = vunpack.c.h.b16 %v461
      %v487 = vunpack.c.l.b16 %v462
      %v488 = vunpack.c.h.b16 %v462
      %v489 = vunpack.c.l.b16 %v463
      %v490 = vunpack.c.h.b16 %v463
      %v491 = vpack.c.b16 %v477, %v475
      %v492 = vpack.c.b16 %v478, %v476
      %v493 = vpack.c.b16 %v481, %v479
      %v494 = vpack.c.b16 %v482, %v480
      %v495 = vpack.c.b16 %v485, %v483
      %v496 = vpack.c.b16 %v486, %v484
      %v497 = vpack.c.b16 %v489, %v487
      %v498 = vpack.c.b16 %v490, %v488
      %v508 = vsel %vm333, %v466, 0
      %510 = vmatprep.subr.bf16.mxu0 0
      %511 = vmatpush1.bf16.msra.mxu0 0
      %512 = vmatprep.subr.bf16.mxu0 0
      %513 = vmatpush1.bf16.msra.mxu0 0
      %514 = vmatprep.subr.bf16.mxu0 0
      %515 = vmatpush1.bf16.msra.mxu0 0
      %516 = vmatprep.subr.bf16.mxu0 0
      %517 = vmatpush1.bf16.msra.mxu0 0
      %518 = vmatprep.subr.bf16.mxu0 %v498
      %519 = vmatpush1.bf16.msra.mxu0 %v497
      %520 = vmatprep.subr.bf16.mxu0 %v496
      %521 = vmatpush1.bf16.msra.mxu0 %v495
      %522 = vmatprep.subr.bf16.mxu0 %v494
      %523 = vmatpush1.bf16.msra.mxu0 %v493
      %524 = vmatprep.subr.bf16.mxu0 %v492
      %525 = vmatpush1.bf16.msra.mxu0 %v491
      %526 = vmatprep.subr.bf16.mxu0 0
      %527 = vmatpush2.bf16.msra.mxu0 0
      %528 = vmatprep.subr.bf16.mxu0 0
      %529 = vmatpush2.bf16.msra.mxu0 0
      %530 = vmatprep.subr.bf16.mxu0 0
      %531 = vmatpush2.bf16.msra.mxu0 0
      %532 = vmatprep.subr.bf16.mxu0 0
      %533 = vmatpush2.bf16.msra.mxu0 0
      %534 = vmatprep.subr.bf16.mxu0 0
      %535 = vmatpush2.bf16.msra.mxu0 0
      %536 = vmatprep.subr.bf16.mxu0 0
      %537 = vmatpush2.bf16.msra.mxu0 0
      %538 = vmatprep.subr.bf16.mxu0 0
      %539 = vmatpush2.bf16.msra.mxu0 0
      %540 = vmatprep.subr.bf16.mxu0 0
      %541 = vmatpush2.bf16.msra.mxu0 0
      %542 = vmatprep.mubr.bf16.mxu0 0
      %543 = vmatmul.mubr.bf16.gmra.mxu0 %v508
      %v544 = vpop.f32.mrf.mxu0
      %v545 = vadd.f32 0.0, %v544
      %v546 = vpop.f32.mrf.mxu0
      %v547 = vadd.f32 0.0, %v546
      %v548 = vpop.f32.mrf.mxu0
      %v549 = vpop.f32.mrf.mxu0
      %550 = vdwg.mxu0
      %v552 = vrot.slane %v545, 7
      %v554 = vsel %vm381, 0.0, %v552
      %555 = vrot.lane.b32.xlu0 %v545, 64
      %v556 = vpop.permute.xlu0 %555
      %v558 = vadd.f32 %v554, %v556
      %v560 = vrot.slane %v547, 1
      %v562 = vsel %vm390, %v560, 0.0
      %v563 = vadd.f32 %v558, %v562
      %v565 = vlaneseq
      %v566 = vshrl.u32 %v565, 7
      %v567 = vsub.s32 0, %v566
      %v568 = vrot.slane %v465, %v567
      %v570 = vadd.f32 %v563, %v568
      %v571 = vmax.f32 %v570, 0.0
      %s572 = scalar_lea.vmem %s3, 1
      %v573 = vld [vmem:[%s572] sm:$0x1]
      %s574 = scalar_lea.vmem %s4, 1
      %v575 = vld [vmem:[%s574] sm:$0x1]
      %v576 = vsel %vm281, %v571, 0.0
      %577 = vadd.xlane.f32.xlu0 %v576
      %v578 = vpop.xlane.xlu0 %577
      %v579 = vmul.f32 %v578, %v406
      %v580 = vsub.f32 %v571, %v579
      %v581 = vmul.f32 %v580, %v580
      %v582 = vsel %vm281, %v581, 0.0
      %583 = vadd.xlane.f32.xlu0 %v582
      %v584 = vpop.xlane.xlu0 %583
      %v585 = vmul.f32 %v584, %v406
      %v586 = vadd.f32 %v585, 1e-05
      %v587 = vrsqrt.pop %v586
      %v588 = vmul.f32 %v580, %v587
      %v590 = vlaneseq
      %v591 = vshrl.u32 %v590, 7
      %v592 = vsub.s32 0, %v591
      %v593 = vrot.slane %v573, %v592
      %v595 = vmul.f32 %v588, %v593
      %v597 = vlaneseq
      %v598 = vshrl.u32 %v597, 7
      %v599 = vsub.s32 0, %v598
      %v600 = vrot.slane %v575, %v599
      %v602 = vadd.f32 %v595, %v600
      %604 = vrot.lane.b32.xlu0 %v571, 96
      %v605 = vpop.permute.xlu0 %604
      %v607 = vsel %vm281, %v605, 0.0
      %608 = vadd.xlane.f32.xlu0 %v607
      %v609 = vpop.xlane.xlu0 %608
      %v610 = vmul.f32 %v609, %v406
      %v611 = vsub.f32 %v571, %v610
      %v612 = vmul.f32 %v611, %v611
      %614 = vrot.lane.b32.xlu0 %v612, 96
      %v615 = vpop.permute.xlu0 %614
      %v617 = vsel %vm281, %v615, 0.0
      %618 = vadd.xlane.f32.xlu0 %v617
      %v619 = vpop.xlane.xlu0 %618
      %v620 = vmul.f32 %v619, %v406
      %v621 = vadd.f32 %v620, 1e-05
      %v622 = vrsqrt.pop %v621
      %v623 = vmul.f32 %v611, %v622
      %v624 = vmul.f32 %v623, %v593
      %v625 = vadd.f32 %v624, %v600
      %v626 = vsel %vm281, %v602, %v625
      %v627 = vpack.c.bf16 %v626, %v626
      %v628 = vld [vmem:[%s5] sm:$0xf]
      %v629 = vld [vmem:[%s5 + $0x4] sm:$0xf]
      %v630 = vld [vmem:[%s5 + $0x8] sm:$0xf]
      %v631 = vld [vmem:[%s5 + $0xc] sm:$0xf]
      %v632 = vld [vmem:[%s5 + $0x10] sm:$0xf]
      %v633 = vld [vmem:[%s5 + $0x14] sm:$0xf]
      %v634 = vld [vmem:[%s5 + $0x18] sm:$0xf]
      %v635 = vld [vmem:[%s5 + $0x1c] sm:$0xf]
      %v636 = vld [vmem:[%s6] sm:$0x1]
      %v638 = vlaneseq
      %v639 = vshrl.u32 %v638, 7
      %v640 = vsub.s32 0, %v639
      %v641 = vrot.slane %v636, %v640
      %v651 = vunpack.c.l.b16 %v628
      %v652 = vunpack.c.l.b16 %v629
      %v653 = vunpack.c.l.b16 %v630
      %v654 = vunpack.c.l.b16 %v631
      %v655 = vunpack.c.l.b16 %v632
      %v656 = vunpack.c.l.b16 %v633
      %v657 = vunpack.c.l.b16 %v634
      %v658 = vunpack.c.l.b16 %v635
      %v659 = vpack.c.b16 %v652, %v651
      %v660 = vpack.c.b16 %v654, %v653
      %v661 = vpack.c.b16 %v656, %v655
      %v662 = vpack.c.b16 %v658, %v657
      %v668 = vsel %vm333, %v627, 0
      %670 = vmatprep.subr.bf16.mxu0 0
      %671 = vmatpush1.bf16.msra.mxu0 0
      %672 = vmatprep.subr.bf16.mxu0 0
      %673 = vmatpush1.bf16.msra.mxu0 0
      %674 = vmatprep.subr.bf16.mxu0 0
      %675 = vmatpush1.bf16.msra.mxu0 0
      %676 = vmatprep.subr.bf16.mxu0 0
      %677 = vmatpush1.bf16.msra.mxu0 0
      %678 = vmatprep.subr.bf16.mxu0 0
      %679 = vmatpush1.bf16.msra.mxu0 %v662
      %680 = vmatprep.subr.bf16.mxu0 0
      %681 = vmatpush1.bf16.msra.mxu0 %v661
      %682 = vmatprep.subr.bf16.mxu0 0
      %683 = vmatpush1.bf16.msra.mxu0 %v660
      %684 = vmatprep.subr.bf16.mxu0 0
      %685 = vmatpush1.bf16.msra.mxu0 %v659
      %686 = vmatprep.subr.bf16.mxu0 0
      %687 = vmatpush2.bf16.msra.mxu0 0
      %688 = vmatprep.subr.bf16.mxu0 0
      %689 = vmatpush2.bf16.msra.mxu0 0
      %690 = vmatprep.subr.bf16.mxu0 0
      %691 = vmatpush2.bf16.msra.mxu0 0
      %692 = vmatprep.subr.bf16.mxu0 0
      %693 = vmatpush2.bf16.msra.mxu0 0
      %694 = vmatprep.subr.bf16.mxu0 0
      %695 = vmatpush2.bf16.msra.mxu0 0
      %696 = vmatprep.subr.bf16.mxu0 0
      %697 = vmatpush2.bf16.msra.mxu0 0
      %698 = vmatprep.subr.bf16.mxu0 0
      %699 = vmatpush2.bf16.msra.mxu0 0
      %700 = vmatprep.subr.bf16.mxu0 0
      %701 = vmatpush2.bf16.msra.mxu0 0
      %702 = vmatprep.mubr.bf16.mxu0 0
      %703 = vmatmul.mubr.bf16.gmra.mxu0 %v668
      %v704 = vpop.f32.mrf.mxu0
      %v705 = vadd.f32 %v641, %v704
      %v706 = vpop.f32.mrf.mxu0
      %v707 = vpop.f32.mrf.mxu0
      %v708 = vpop.f32.mrf.mxu0
      %709 = vdwg.mxu0
      %vm710 = vcmask 15360
      %711 = vst.msk [vmem:[%s273] sm:$0xff] %vm710, %v705
      %p712 = scmp.lt.s32.totalorder %s18, 1
      %s713 = scalar_select %p712, %s18, 1
      %s714 = smul.addr %s713, 8
      %s715 = scalar_lea.vmem %s7, %s714
      // Predicated region
      $region49: #{stableform_tts_forward.8} parent=47 // pred_check
        %p716 = pneg %p188
      $region50: #{stableform_tts_forward.8} parent=47 // pred_check_branch
        %718 = sbr.rel (%p716) target = $region52
      $region51: #{stableform_tts_forward.8} parent=47 // pred_region
        _
      $region52: #{stableform_tts_forward.8} parent=47 // pred_fallthru
        _
    $region48: #{stableform_tts_forward.8} parent=5 // pred_fallthru
      _
    %p719 = scmp.le.s32.totalorder 2, %s13
    // Predicated region
    $region53: #{stableform_tts_forward.8} parent=5 // pred_check
      %p720 = pneg %p719
    $region54: #{stableform_tts_forward.8} parent=5 // pred_check_branch
      %722 = sbr.rel (%p720) target = $region56
    $region55: #{stableform_tts_forward.8} parent=5 // pred_region
      %s723 = ssub.s32 %s13, 2
      // Predicated region
      $region57: #{stableform_tts_forward.8} parent=55 // pred_check
        %p724 = pneg %p194
      $region58: #{stableform_tts_forward.8} parent=55 // pred_check_branch
        %726 = sbr.rel (%p724) target = $region60
      $region59: #{stableform_tts_forward.8} parent=55 // pred_region
        %p727 = scmp.lt.s32.totalorder %s19, 1
        %s728 = scalar_select %p727, %s19, 1
        %s729 = smul.addr %s728, 8
        %s730 = scalar_lea.vmem %s7, %s729
      $region60: #{stableform_tts_forward.8} parent=55 // pred_fallthru
        _
    $region56: #{stableform_tts_forward.8} parent=5 // pred_fallthru
      _
  $region6: #{stableform_tts_forward.8} parent=0 // loop_footer
    %s17 = sadd.s32 1, %s13
  $region7: #{stableform_tts_forward.8} parent=0 // loop_footer_branch
    %12 = sbr.rel target = $region3
  $region8: #{stableform_tts_forward.8} parent=0 // loop_exit
    _

// kernel: stableform_tts_forward.11
$region0: #{stableform_tts_forward.11}
  #allocation0 [shape = 'u32[]', space=smem, size = 0x4, offset = 0x4, fixed_abs, tag = 'smem constant byte address 0x4 - core index']
  #allocation1 [shape = 'u32[144,128]{1,0:T(1,128)}', space=vmem, size = 0x12000, scoped, tag = 'internal scratch']
  #allocation2 [shape = 'f32[64,16]{1,0:T(8,128)}', space=vmem, size = 0x8000, scoped, tag = 'scratch operand']
  #allocation3 [shape = 'f32[64,64]{1,0:T(8,128)}', space=vmem, size = 0x8000, scoped, tag = 'scratch operand']
  %s0 = inlined_call_operand.vmem [shape: f32[2,64,16], index: 0, kind: input, shape index: {}]
  %s1 = inlined_call_operand.vmem [shape: f32[2,64,16], index: 1, kind: input, shape index: {}]
  %s2 = inlined_call_operand.vmem [shape: f32[2,64,16], index: 2, kind: input, shape index: {}]
  %s3 = inlined_call_operand.vmem [shape: f32[2,1,16], index: 3, kind: input, shape index: {}]
  %s4 = inlined_call_operand.vmem [shape: f32[2,64,1], index: 4, kind: input, shape index: {}]
  %s5 = inlined_call_operand.vmem [shape: f32[1,8], index: 5, kind: input, shape index: {}]
  %s6 = inlined_call_operand.vmem [shape: bf16[32,192], index: 6, kind: input, shape index: {}]
  %s7 = inlined_call_operand.vmem [shape: bf16[48,192], index: 7, kind: input, shape index: {}]
  %s8 = inlined_call_operand.vmem [shape: f32[1,64], index: 8, kind: input, shape index: {}]
  %s9 = inlined_call_operand.vmem [shape: bf16[64,192], index: 9, kind: input, shape index: {}]
  %s10 = inlined_call_operand.vmem [shape: f32[1,64], index: 10, kind: input, shape index: {}]
  %s11 = inlined_call_operand.vmem [shape: bf16[64,16], index: 11, kind: input, shape index: {}]
  %s12 = inlined_call_operand.vmem [shape: f32[1,16], index: 12, kind: input, shape index: {}]
  %s13 = inlined_call_operand.vmem [shape: f32[2,64,16], index: 13, kind: output, shape index: {}]
  %s14 = sld [smem:[#allocation0]]
  $region93: #{stableform_tts_forward.11} parent=0
    _
  %s16 = ssub.s32 1, %s14
  %s17 = scalar_select 0, %s16, %s14
  loop: start=0, step=1, limit=10
  $region2: #{stableform_tts_forward.11} parent=0 // loop_pre_header
    _
  $region3: #{stableform_tts_forward.11} parent=0 // loop_header
    %s19 = sphi 0, %s23
    %p20 = scmp.ge.s32.totalorder %s19, 10
    %s26 = sphi 0, %s38
    %s27 = sphi 0, %s34
    %s28 = sphi 0, %s26
    %s29 = sphi 0, %s27
    %s30 = sphi 0, %s28
    %s31 = sphi 0, %s29
    %s41 = sphi 0, %s43
    %s44 = sphi 0, %s41
    %s45 = sphi 0, %s44
    %s61 = sphi 0, %s45
    %s67 = sphi 0, %s69
    %s70 = sphi 0, %s67
    %s71 = sphi 0, %s70
    %s87 = sphi 0, %s71
    %s93 = sphi 0, %s95
    %s96 = sphi 0, %s93
    %s97 = sphi 0, %s96
    %s113 = sphi 0, %s97
    %s119 = sphi 0, %s121
    %s122 = sphi 0, %s119
    %s123 = sphi 0, %s122
    %s139 = sphi 0, %s123
    %s145 = sphi 0, %s147
    %s148 = sphi 0, %s145
    %s149 = sphi 0, %s148
    %s165 = sphi 0, %s149
    %s169 = sphi 0, %s169
    %s171 = sphi 0, %s169
    %s172 = sphi 0, %s171
    %s186 = sphi 0, %s172
    %s190 = sphi 0, %s190
    %s192 = sphi 0, %s190
    %s193 = sphi 0, %s192
    %s207 = sphi 0, %s193
    %s211 = sphi 0, %s211
    %s213 = sphi 0, %s211
    %s214 = sphi 0, %s213
    %s228 = sphi 0, %s214
    %s232 = sphi 0, %s232
    %s234 = sphi 0, %s232
    %s235 = sphi 0, %s234
    %s249 = sphi 0, %s235
    %s253 = sphi 0, %s253
    %s255 = sphi 0, %s253
    %s256 = sphi 0, %s255
    %s270 = sphi 0, %s256
    %s274 = sphi 0, %s274
    %s276 = sphi 0, %s274
    %s277 = sphi 0, %s276
    %s291 = sphi 0, %s277
    %s295 = sphi 0, %s295
    %s297 = sphi 0, %s295
    %s298 = sphi 0, %s297
    %s312 = sphi 0, %s298
    %s316 = sphi 0, %s316
    %s318 = sphi 0, %s316
    %s319 = sphi 0, %s318
    %s333 = sphi 0, %s319
    %s339 = sphi 0, %s341
    %s342 = sphi 0, %s339
    %s343 = sphi 0, %s342
    %s359 = sphi 0, %s343
  $region4: #{stableform_tts_forward.11} parent=0 // loop_header_branch
    %22 = sbr.rel (%p20) target = $region8
  $region5: #{stableform_tts_forward.11} parent=0 // loop_body
    %s24 = ssub.s32 %s19, 1
    %s25 = ssub.s32 %s19, 2
    %s32 = sadd.s32 1, %s27
    %p33 = scmp.ge.s32.totalorder %s32, 4
    %s34 = scalar_select %p33, 0, %s32
    %s35 = sadd.s32 1, %s26
    %s36 = scalar_select %p33, %s35, %s26
    %p37 = scmp.ge.s32.totalorder %s36, 2
    %s38 = scalar_select %p37, 0, %s36
    %s39 = ssub.s32 %s26, %s38
    %p40 = scmp.eq.s32.totalorder %s39, 0
    %s42 = sadd.s32 %s41, 1
    %s43 = scalar_select %p40, %s41, %s42
    %p46 = pneg %p40
    %p47 = scmp.eq.s32.totalorder %s19, 7
    %p48 = por %p46, %p47
    %p49 = scmp.ne.s32.totalorder %s41, %s44
    %p50 = scmp.eq.s32.totalorder %s19, 0
    %p51 = por %p49, %p50
    %p52 = scmp.ne.s32.totalorder %s41, %s44
    %p53 = scmp.eq.s32.totalorder %s24, 7
    %p54 = por %p52, %p53
    %p55 = scmp.ne.s32.totalorder %s44, %s45
    %p56 = scmp.eq.s32.totalorder %s24, 0
    %p57 = por %p55, %p56
    %p58 = scmp.ne.s32.totalorder %s44, %s45
    %p59 = scmp.eq.s32.totalorder %s25, 7
    %p60 = por %p58, %p59
    %p62 = scmp.ne.s32.totalorder %s45, %s61
    %p63 = scmp.eq.s32.totalorder %s25, 0
    %p64 = por %p62, %p63
    %s65 = ssub.s32 %s26, %s38
    %p66 = scmp.eq.s32.totalorder %s65, 0
    %s68 = sadd.s32 %s67, 1
    %s69 = scalar_select %p66, %s67, %s68
    %p72 = pneg %p66
    %p73 = scmp.eq.s32.totalorder %s19, 7
    %p74 = por %p72, %p73
    %p75 = scmp.ne.s32.totalorder %s67, %s70
    %p76 = scmp.eq.s32.totalorder %s19, 0
    %p77 = por %p75, %p76
    %p78 = scmp.ne.s32.totalorder %s67, %s70
    %p79 = scmp.eq.s32.totalorder %s24, 7
    %p80 = por %p78, %p79
    %p81 = scmp.ne.s32.totalorder %s70, %s71
    %p82 = scmp.eq.s32.totalorder %s24, 0
    %p83 = por %p81, %p82
    %p84 = scmp.ne.s32.totalorder %s70, %s71
    %p85 = scmp.eq.s32.totalorder %s25, 7
    %p86 = por %p84, %p85
    %p88 = scmp.ne.s32.totalorder %s71, %s87
    %p89 = scmp.eq.s32.totalorder %s25, 0
    %p90 = por %p88, %p89
    %s91 = ssub.s32 %s26, %s38
    %p92 = scmp.eq.s32.totalorder %s91, 0
    %s94 = sadd.s32 %s93, 1
    %s95 = scalar_select %p92, %s93, %s94
    %p98 = pneg %p92
    %p99 = scmp.eq.s32.totalorder %s19, 7
    %p100 = por %p98, %p99
    %p101 = scmp.ne.s32.totalorder %s93, %s96
    %p102 = scmp.eq.s32.totalorder %s19, 0
    %p103 = por %p101, %p102
    %p104 = scmp.ne.s32.totalorder %s93, %s96
    %p105 = scmp.eq.s32.totalorder %s24, 7
    %p106 = por %p104, %p105
    %p107 = scmp.ne.s32.totalorder %s96, %s97
    %p108 = scmp.eq.s32.totalorder %s24, 0
    %p109 = por %p107, %p108
    %p110 = scmp.ne.s32.totalorder %s96, %s97
    %p111 = scmp.eq.s32.totalorder %s25, 7
    %p112 = por %p110, %p111
    %p114 = scmp.ne.s32.totalorder %s97, %s113
    %p115 = scmp.eq.s32.totalorder %s25, 0
    %p116 = por %p114, %p115
    %s117 = ssub.s32 %s26, %s38
    %p118 = scmp.eq.s32.totalorder %s117, 0
    %s120 = sadd.s32 %s119, 1
    %s121 = scalar_select %p118, %s119, %s120
    %p124 = pneg %p118
    %p125 = scmp.eq.s32.totalorder %s19, 7
    %p126 = por %p124, %p125
    %p127 = scmp.ne.s32.totalorder %s119, %s122
    %p128 = scmp.eq.s32.totalorder %s19, 0
    %p129 = por %p127, %p128
    %p130 = scmp.ne.s32.totalorder %s119, %s122
    %p131 = scmp.eq.s32.totalorder %s24, 7
    %p132 = por %p130, %p131
    %p133 = scmp.ne.s32.totalorder %s122, %s123
    %p134 = scmp.eq.s32.totalorder %s24, 0
    %p135 = por %p133, %p134
    %p136 = scmp.ne.s32.totalorder %s122, %s123
    %p137 = scmp.eq.s32.totalorder %s25, 7
    %p138 = por %p136, %p137
    %p140 = scmp.ne.s32.totalorder %s123, %s139
    %p141 = scmp.eq.s32.totalorder %s25, 0
    %p142 = por %p140, %p141
    %s143 = ssub.s32 %s26, %s38
    %p144 = scmp.eq.s32.totalorder %s143, 0
    %s146 = sadd.s32 %s145, 1
    %s147 = scalar_select %p144, %s145, %s146
    %p150 = pneg %p144
    %p151 = scmp.eq.s32.totalorder %s19, 7
    %p152 = por %p150, %p151
    %p153 = scmp.ne.s32.totalorder %s145, %s148
    %p154 = scmp.eq.s32.totalorder %s19, 0
    %p155 = por %p153, %p154
    %p156 = scmp.ne.s32.totalorder %s145, %s148
    %p157 = scmp.eq.s32.totalorder %s24, 7
    %p158 = por %p156, %p157
    %p159 = scmp.ne.s32.totalorder %s148, %s149
    %p160 = scmp.eq.s32.totalorder %s24, 0
    %p161 = por %p159, %p160
    %p162 = scmp.ne.s32.totalorder %s148, %s149
    %p163 = scmp.eq.s32.totalorder %s25, 7
    %p164 = por %p162, %p163
    %p166 = scmp.ne.s32.totalorder %s149, %s165
    %p167 = scmp.eq.s32.totalorder %s25, 0
    %p168 = por %p166, %p167
    %s170 = sadd.s32 %s169, 1
    %p173 = scmp.eq.s32.totalorder %s19, 7
    %p174 = scmp.ne.s32.totalorder %s169, %s171
    %p175 = scmp.eq.s32.totalorder %s19, 0
    %p176 = por %p174, %p175
    %p177 = scmp.ne.s32.totalorder %s169, %s171
    %p178 = scmp.eq.s32.totalorder %s24, 7
    %p179 = por %p177, %p178
    %p180 = scmp.ne.s32.totalorder %s171, %s172
    %p181 = scmp.eq.s32.totalorder %s24, 0
    %p182 = por %p180, %p181
    %p183 = scmp.ne.s32.totalorder %s171, %s172
    %p184 = scmp.eq.s32.totalorder %s25, 7
    %p185 = por %p183, %p184
    %p187 = scmp.ne.s32.totalorder %s172, %s186
    %p188 = scmp.eq.s32.totalorder %s25, 0
    %p189 = por %p187, %p188
    %s191 = sadd.s32 %s190, 1
    %p194 = scmp.eq.s32.totalorder %s19, 7
    %p195 = scmp.ne.s32.totalorder %s190, %s192
    %p196 = scmp.eq.s32.totalorder %s19, 0
    %p197 = por %p195, %p196
    %p198 = scmp.ne.s32.totalorder %s190, %s192
    %p199 = scmp.eq.s32.totalorder %s24, 7
    %p200 = por %p198, %p199
    %p201 = scmp.ne.s32.totalorder %s192, %s193
    %p202 = scmp.eq.s32.totalorder %s24, 0
    %p203 = por %p201, %p202
    %p204 = scmp.ne.s32.totalorder %s192, %s193
    %p205 = scmp.eq.s32.totalorder %s25, 7
    %p206 = por %p204, %p205
    %p208 = scmp.ne.s32.totalorder %s193, %s207
    %p209 = scmp.eq.s32.totalorder %s25, 0
    %p210 = por %p208, %p209
    %s212 = sadd.s32 %s211, 1
    %p215 = scmp.eq.s32.totalorder %s19, 7
    %p216 = scmp.ne.s32.totalorder %s211, %s213
    %p217 = scmp.eq.s32.totalorder %s19, 0
    %p218 = por %p216, %p217
    %p219 = scmp.ne.s32.totalorder %s211, %s213
    %p220 = scmp.eq.s32.totalorder %s24, 7
    %p221 = por %p219, %p220
    %p222 = scmp.ne.s32.totalorder %s213, %s214
    %p223 = scmp.eq.s32.totalorder %s24, 0
    %p224 = por %p222, %p223
    %p225 = scmp.ne.s32.totalorder %s213, %s214
    %p226 = scmp.eq.s32.totalorder %s25, 7
    %p227 = por %p225, %p226
    %p229 = scmp.ne.s32.totalorder %s214, %s228
    %p230 = scmp.eq.s32.totalorder %s25, 0
    %p231 = por %p229, %p230
    %s233 = sadd.s32 %s232, 1
    %p236 = scmp.eq.s32.totalorder %s19, 7
    %p237 = scmp.ne.s32.totalorder %s232, %s234
    %p238 = scmp.eq.s32.totalorder %s19, 0
    %p239 = por %p237, %p238
    %p240 = scmp.ne.s32.totalorder %s232, %s234
    %p241 = scmp.eq.s32.totalorder %s24, 7
    %p242 = por %p240, %p241
    %p243 = scmp.ne.s32.totalorder %s234, %s235
    %p244 = scmp.eq.s32.totalorder %s24, 0
    %p245 = por %p243, %p244
    %p246 = scmp.ne.s32.totalorder %s234, %s235
    %p247 = scmp.eq.s32.totalorder %s25, 7
    %p248 = por %p246, %p247
    %p250 = scmp.ne.s32.totalorder %s235, %s249
    %p251 = scmp.eq.s32.totalorder %s25, 0
    %p252 = por %p250, %p251
    %s254 = sadd.s32 %s253, 1
    %p257 = scmp.eq.s32.totalorder %s19, 7
    %p258 = scmp.ne.s32.totalorder %s253, %s255
    %p259 = scmp.eq.s32.totalorder %s19, 0
    %p260 = por %p258, %p259
    %p261 = scmp.ne.s32.totalorder %s253, %s255
    %p262 = scmp.eq.s32.totalorder %s24, 7
    %p263 = por %p261, %p262
    %p264 = scmp.ne.s32.totalorder %s255, %s256
    %p265 = scmp.eq.s32.totalorder %s24, 0
    %p266 = por %p264, %p265
    %p267 = scmp.ne.s32.totalorder %s255, %s256
    %p268 = scmp.eq.s32.totalorder %s25, 7
    %p269 = por %p267, %p268
    %p271 = scmp.ne.s32.totalorder %s256, %s270
    %p272 = scmp.eq.s32.totalorder %s25, 0
    %p273 = por %p271, %p272
    %s275 = sadd.s32 %s274, 1
    %p278 = scmp.eq.s32.totalorder %s19, 7
    %p279 = scmp.ne.s32.totalorder %s274, %s276
    %p280 = scmp.eq.s32.totalorder %s19, 0
    %p281 = por %p279, %p280
    %p282 = scmp.ne.s32.totalorder %s274, %s276
    %p283 = scmp.eq.s32.totalorder %s24, 7
    %p284 = por %p282, %p283
    %p285 = scmp.ne.s32.totalorder %s276, %s277
    %p286 = scmp.eq.s32.totalorder %s24, 0
    %p287 = por %p285, %p286
    %p288 = scmp.ne.s32.totalorder %s276, %s277
    %p289 = scmp.eq.s32.totalorder %s25, 7
    %p290 = por %p288, %p289
    %p292 = scmp.ne.s32.totalorder %s277, %s291
    %p293 = scmp.eq.s32.totalorder %s25, 0
    %p294 = por %p292, %p293
    %s296 = sadd.s32 %s295, 1
    %p299 = scmp.eq.s32.totalorder %s19, 7
    %p300 = scmp.ne.s32.totalorder %s295, %s297
    %p301 = scmp.eq.s32.totalorder %s19, 0
    %p302 = por %p300, %p301
    %p303 = scmp.ne.s32.totalorder %s295, %s297
    %p304 = scmp.eq.s32.totalorder %s24, 7
    %p305 = por %p303, %p304
    %p306 = scmp.ne.s32.totalorder %s297, %s298
    %p307 = scmp.eq.s32.totalorder %s24, 0
    %p308 = por %p306, %p307
    %p309 = scmp.ne.s32.totalorder %s297, %s298
    %p310 = scmp.eq.s32.totalorder %s25, 7
    %p311 = por %p309, %p310
    %p313 = scmp.ne.s32.totalorder %s298, %s312
    %p314 = scmp.eq.s32.totalorder %s25, 0
    %p315 = por %p313, %p314
    %s317 = sadd.s32 %s316, 1
    %p320 = scmp.eq.s32.totalorder %s19, 7
    %p321 = scmp.ne.s32.totalorder %s316, %s318
    %p322 = scmp.eq.s32.totalorder %s19, 0
    %p323 = por %p321, %p322
    %p324 = scmp.ne.s32.totalorder %s316, %s318
    %p325 = scmp.eq.s32.totalorder %s24, 7
    %p326 = por %p324, %p325
    %p327 = scmp.ne.s32.totalorder %s318, %s319
    %p328 = scmp.eq.s32.totalorder %s24, 0
    %p329 = por %p327, %p328
    %p330 = scmp.ne.s32.totalorder %s318, %s319
    %p331 = scmp.eq.s32.totalorder %s25, 7
    %p332 = por %p330, %p331
    %p334 = scmp.ne.s32.totalorder %s319, %s333
    %p335 = scmp.eq.s32.totalorder %s25, 0
    %p336 = por %p334, %p335
    %s337 = ssub.s32 %s26, %s38
    %p338 = scmp.eq.s32.totalorder %s337, 0
    %s340 = sadd.s32 %s339, 1
    %s341 = scalar_select %p338, %s339, %s340
    %p344 = pneg %p338
    %p345 = scmp.eq.s32.totalorder %s19, 7
    %p346 = por %p344, %p345
    %p347 = scmp.ne.s32.totalorder %s339, %s342
    %p348 = scmp.eq.s32.totalorder %s19, 0
    %p349 = por %p347, %p348
    %p350 = scmp.ne.s32.totalorder %s339, %s342
    %p351 = scmp.eq.s32.totalorder %s24, 7
    %p352 = por %p350, %p351
    %p353 = scmp.ne.s32.totalorder %s342, %s343
    %p354 = scmp.eq.s32.totalorder %s24, 0
    %p355 = por %p353, %p354
    %p356 = scmp.ne.s32.totalorder %s342, %s343
    %p357 = scmp.eq.s32.totalorder %s25, 7
    %p358 = por %p356, %p357
    %p360 = scmp.ne.s32.totalorder %s343, %s359
    %p361 = scmp.eq.s32.totalorder %s25, 0
    %p362 = por %p360, %p361
    %p363 = scmp.le.s32.totalorder 1, %s19
    %p364 = scmp.lt.s32.totalorder %s19, 9
    %p365 = pnand %p363, %p364
    %p366 = pneg %p365
    // Predicated region
    $region9: #{stableform_tts_forward.11} parent=5 // pred_check
      _
    $region10: #{stableform_tts_forward.11} parent=5 // pred_check_branch
      %368 = sbr.rel (%p365) target = $region12
    $region11: #{stableform_tts_forward.11} parent=5 // pred_region
      %s369 = ssub.s32 %s19, 1
      // Predicated region
      $region13: #{stableform_tts_forward.11} parent=11 // pred_check
        %p370 = pneg %p182
      $region14: #{stableform_tts_forward.11} parent=11 // pred_check_branch
        %372 = sbr.rel (%p370) target = $region16
      $region15: #{stableform_tts_forward.11} parent=11 // pred_region
        _
      $region16: #{stableform_tts_forward.11} parent=11 // pred_fallthru
        _
      // Predicated region
      $region17: #{stableform_tts_forward.11} parent=11 // pred_check
        %p373 = pneg %p203
      $region18: #{stableform_tts_forward.11} parent=11 // pred_check_branch
        %375 = sbr.rel (%p373) target = $region20
      $region19: #{stableform_tts_forward.11} parent=11 // pred_region
        _
      $region20: #{stableform_tts_forward.11} parent=11 // pred_fallthru
        _
      // Predicated region
      $region21: #{stableform_tts_forward.11} parent=11 // pred_check
        %p376 = pneg %p224
      $region22: #{stableform_tts_forward.11} parent=11 // pred_check_branch
        %378 = sbr.rel (%p376) target = $region24
      $region23: #{stableform_tts_forward.11} parent=11 // pred_region
        _
      $region24: #{stableform_tts_forward.11} parent=11 // pred_fallthru
        _
      // Predicated region
      $region25: #{stableform_tts_forward.11} parent=11 // pred_check
        %p379 = pneg %p245
      $region26: #{stableform_tts_forward.11} parent=11 // pred_check_branch
        %381 = sbr.rel (%p379) target = $region28
      $region27: #{stableform_tts_forward.11} parent=11 // pred_region
        _
      $region28: #{stableform_tts_forward.11} parent=11 // pred_fallthru
        _
      // Predicated region
      $region29: #{stableform_tts_forward.11} parent=11 // pred_check
        %p382 = pneg %p266
      $region30: #{stableform_tts_forward.11} parent=11 // pred_check_branch
        %384 = sbr.rel (%p382) target = $region32
      $region31: #{stableform_tts_forward.11} parent=11 // pred_region
        _
      $region32: #{stableform_tts_forward.11} parent=11 // pred_fallthru
        _
      // Predicated region
      $region33: #{stableform_tts_forward.11} parent=11 // pred_check
        %p385 = pneg %p287
      $region34: #{stableform_tts_forward.11} parent=11 // pred_check_branch
        %387 = sbr.rel (%p385) target = $region36
      $region35: #{stableform_tts_forward.11} parent=11 // pred_region
        _
      $region36: #{stableform_tts_forward.11} parent=11 // pred_fallthru
        _
      // Predicated region
      $region37: #{stableform_tts_forward.11} parent=11 // pred_check
        %p388 = pneg %p308
      $region38: #{stableform_tts_forward.11} parent=11 // pred_check_branch
        %390 = sbr.rel (%p388) target = $region40
      $region39: #{stableform_tts_forward.11} parent=11 // pred_region
        _
      $region40: #{stableform_tts_forward.11} parent=11 // pred_fallthru
        _
      // Predicated region
      $region41: #{stableform_tts_forward.11} parent=11 // pred_check
        %p391 = pneg %p329
      $region42: #{stableform_tts_forward.11} parent=11 // pred_check_branch
        %393 = sbr.rel (%p391) target = $region44
      $region43: #{stableform_tts_forward.11} parent=11 // pred_region
        _
      $region44: #{stableform_tts_forward.11} parent=11 // pred_fallthru
        _
    $region12: #{stableform_tts_forward.11} parent=5 // pred_fallthru
      _
    %p394 = scmp.lt.s32.totalorder %s19, 8
    // Predicated region
    $region45: #{stableform_tts_forward.11} parent=5 // pred_check
      %p395 = pneg %p394
    $region46: #{stableform_tts_forward.11} parent=5 // pred_check_branch
      %397 = sbr.rel (%p395) target = $region48
    $region47: #{stableform_tts_forward.11} parent=5 // pred_region
      // Predicated region
      $region49: #{stableform_tts_forward.11} parent=47 // pred_check
        %p398 = pneg %p51
      $region50: #{stableform_tts_forward.11} parent=47 // pred_check_branch
        %400 = sbr.rel (%p398) target = $region52
      $region51: #{stableform_tts_forward.11} parent=47 // pred_region
        %p401 = scmp.lt.s32.totalorder %s26, 1
        %s402 = scalar_select %p401, %s26, 1
        %s403 = smul.addr %s402, 8
        %s404 = smul.addr %s403, 8
        %s405 = scalar_lea.vmem %s0, %s404
      $region52: #{stableform_tts_forward.11} parent=47 // pred_fallthru
        _
      // Predicated region
      $region53: #{stableform_tts_forward.11} parent=47 // pred_check
        %p406 = pneg %p77
      $region54: #{stableform_tts_forward.11} parent=47 // pred_check_branch
        %408 = sbr.rel (%p406) target = $region56
      $region55: #{stableform_tts_forward.11} parent=47 // pred_region
        %p409 = scmp.lt.s32.totalorder %s26, 1
        %s410 = scalar_select %p409, %s26, 1
        %s411 = smul.addr %s410, 8
        %s412 = smul.addr %s411, 8
        %s413 = scalar_lea.vmem %s1, %s412
      $region56: #{stableform_tts_forward.11} parent=47 // pred_fallthru
        _
      // Predicated region
      $region57: #{stableform_tts_forward.11} parent=47 // pred_check
        %p414 = pneg %p103
      $region58: #{stableform_tts_forward.11} parent=47 // pred_check_branch
        %416 = sbr.rel (%p414) target = $region60
      $region59: #{stableform_tts_forward.11} parent=47 // pred_region
        %p417 = scmp.lt.s32.totalorder %s26, 1
        %s418 = scalar_select %p417, %s26, 1
        %s419 = smul.addr %s418, 8
        %s420 = smul.addr %s419, 8
        %s421 = scalar_lea.vmem %s2, %s420
      $region60: #{stableform_tts_forward.11} parent=47 // pred_fallthru
        _
      // Predicated region
      $region61: #{stableform_tts_forward.11} parent=47 // pred_check
        %p422 = pneg %p129
      $region62: #{stableform_tts_forward.11} parent=47 // pred_check_branch
        %424 = sbr.rel (%p422) target = $region64
      $region63: #{stableform_tts_forward.11} parent=47 // pred_region
        %p425 = scmp.lt.s32.totalorder %s26, 1
        %s426 = scalar_select %p425, %s26, 1
        %s427 = scalar_lea.vmem %s3, %s426
      $region64: #{stableform_tts_forward.11} parent=47 // pred_fallthru
        _
      // Predicated region
      $region65: #{stableform_tts_forward.11} parent=47 // pred_check
        %p428 = pneg %p155
      $region66: #{stableform_tts_forward.11} parent=47 // pred_check_branch
        %430 = sbr.rel (%p428) target = $region68
      $region67: #{stableform_tts_forward.11} parent=47 // pred_region
        %p431 = scmp.lt.s32.totalorder %s26, 1
        %s432 = scalar_select %p431, %s26, 1
        %s433 = smul.addr %s432, 8
        %s434 = smul.addr %s433, 8
        %s435 = scalar_lea.vmem %s4, %s434
      $region68: #{stableform_tts_forward.11} parent=47 // pred_fallthru
        _
    $region48: #{stableform_tts_forward.11} parent=5 // pred_fallthru
      _
    %p436 = scmp.le.s32.totalorder 1, %s19
    %p437 = scmp.lt.s32.totalorder %s19, 9
    %p438 = pnand %p436, %p437
    %p439 = pneg %p438
    // Predicated region
    $region69: #{stableform_tts_forward.11} parent=5 // pred_check
      _
    $region70: #{stableform_tts_forward.11} parent=5 // pred_check_branch
      %441 = sbr.rel (%p438) target = $region72
    $region71: #{stableform_tts_forward.11} parent=5 // pred_region
      %s442 = ssub.s32 %s19, 1
      %p443 = scmp.lt.s32.totalorder %s28, 1
      %s444 = scalar_select %p443, %s28, 1
      %s445 = smul.addr %s444, 8
      %s446 = smul.addr %s445, 8
      %s447 = scalar_lea.vmem %s0, %s446
      %p448 = pneg %p57
      %p449 = pneg %p54
      %p450 = scmp.lt.s32.totalorder %s28, 1
      %s451 = scalar_select %p450, %s28, 1
      %s452 = smul.addr %s451, 8
      %s453 = smul.addr %s452, 8
      %s454 = scalar_lea.vmem %s1, %s453
      %p455 = pneg %p83
      %p456 = pneg %p80
      %p457 = scmp.lt.s32.totalorder %s28, 1
      %s458 = scalar_select %p457, %s28, 1
      %s459 = smul.addr %s458, 8
      %s460 = smul.addr %s459, 8
      %s461 = scalar_lea.vmem %s2, %s460
      %p462 = pneg %p109
      %p463 = pneg %p106
      %p464 = scmp.lt.s32.totalorder %s28, 1
      %s465 = scalar_select %p464, %s28, 1
      %s466 = scalar_lea.vmem %s3, %s465
      %p467 = pneg %p135
      %p468 = pneg %p132
      %p469 = scmp.lt.s32.totalorder %s28, 1
      %s470 = scalar_select %p469, %s28, 1
      %s471 = smul.addr %s470, 8
      %s472 = smul.addr %s471, 8
      %s473 = scalar_lea.vmem %s4, %s472
      %p474 = pneg %p161
      %p475 = pneg %p158
      %p476 = pneg %p182
      %p477 = pneg %p179
      %p478 = pneg %p203
      %p479 = pneg %p200
      %p480 = pneg %p224
      %p481 = pneg %p221
      %p482 = pneg %p245
      %p483 = pneg %p242
      %p484 = pneg %p266
      %p485 = pneg %p263
      %p486 = pneg %p287
      %p487 = pneg %p284
      %p488 = pneg %p308
      %p489 = pneg %p305
      %p490 = pneg %p329
      %p491 = pneg %p326
      %p492 = pneg %p355
      %p493 = pneg %p352
      %p494 = scmp.lt.s32.totalorder %s28, 1
      %s495 = scalar_select %p494, %s28, 1
      %s496 = smul.addr %s495, 8
      %s497 = smul.addr %s496, 8
      %s498 = scalar_lea.vmem %s13, %s497
      %p499 = scmp.lt.s32.totalorder %s28, 1
      %s500 = scalar_select %p499, %s28, 1
      %s501 = smul.addr %s500, 8
      %s502 = smul.addr %s501, 8
      %s503 = scalar_lea.vmem %s0, %s502
      %p504 = scmp.lt.s32.totalorder %s28, 1
      %s505 = scalar_select %p504, %s28, 1
      %s506 = smul.addr %s505, 8
      %s507 = smul.addr %s506, 8
      %s508 = scalar_lea.vmem %s1, %s507
      %p509 = scmp.lt.s32.totalorder %s28, 1
      %s510 = scalar_select %p509, %s28, 1
      %s511 = smul.addr %s510, 8
      %s512 = smul.addr %s511, 8
      %s513 = scalar_lea.vmem %s2, %s512
      %p514 = scmp.lt.s32.totalorder %s28, 1
      %s515 = scalar_select %p514, %s28, 1
      %s516 = scalar_lea.vmem %s3, %s515
      %p517 = scmp.lt.s32.totalorder %s28, 1
      %s518 = scalar_select %p517, %s28, 1
      %s519 = smul.addr %s518, 8
      %s520 = smul.addr %s519, 8
      %s521 = scalar_lea.vmem %s4, %s520
      %p522 = scmp.lt.s32.totalorder %s28, 1
      %s523 = scalar_select %p522, %s28, 1
      %s524 = smul.addr %s523, 8
      %s525 = smul.addr %s524, 8
      %s526 = scalar_lea.vmem %s13, %s525
      %v528 = vld [vmem:[%s521] sm:$0xff]
      %v529 = vld [vmem:[%s521 + $0x8] sm:$0xff]
      %v530 = vld [vmem:[%s521 + $0x10] sm:$0xff]
      %v531 = vld [vmem:[%s521 + $0x18] sm:$0xff]
      %v532 = vld [vmem:[%s521 + $0x20] sm:$0xff]
      %v533 = vld [vmem:[%s521 + $0x28] sm:$0xff]
      %v534 = vld [vmem:[%s521 + $0x30] sm:$0xff]
      %v535 = vld [vmem:[%s521 + $0x38] sm:$0xff]
      %v536 = vld [vmem:[%s508] sm:$0xff]
      %v537 = vld [vmem:[%s508 + $0x8] sm:$0xff]
      %v538 = vld [vmem:[%s508 + $0x10] sm:$0xff]
      %v539 = vld [vmem:[%s508 + $0x18] sm:$0xff]
      %v540 = vld [vmem:[%s508 + $0x20] sm:$0xff]
      %v541 = vld [vmem:[%s508 + $0x28] sm:$0xff]
      %v542 = vld [vmem:[%s508 + $0x30] sm:$0xff]
      %v543 = vld [vmem:[%s508 + $0x38] sm:$0xff]
      %p544 = scmp.eq.s32.totalorder %s29, 0
      // Predicated region
      $region73: #{stableform_tts_forward.11} parent=71 // pred_check
        %p545 = pneg %p544
      $region74: #{stableform_tts_forward.11} parent=71 // pred_check_branch
        %547 = sbr.rel (%p545) target = $region76
      $region75: #{stableform_tts_forward.11} parent=71 // pred_region
        %v548 = vld [vmem:[%s503] sm:$0xff]
        %v549 = vld [vmem:[%s503 + $0x8] sm:$0xff]
        %v550 = vld [vmem:[%s503 + $0x10] sm:$0xff]
        %v551 = vld [vmem:[%s503 + $0x18] sm:$0xff]
        %v552 = vld [vmem:[%s503 + $0x20] sm:$0xff]
        %v553 = vld [vmem:[%s503 + $0x28] sm:$0xff]
        %v554 = vld [vmem:[%s503 + $0x30] sm:$0xff]
        %v555 = vld [vmem:[%s503 + $0x38] sm:$0xff]
        %557 = vset.pattern.permute.xlu0 0
        %558 = vperm.xlu0 %557, %v528
        %v559 = vpop.permute.xlu0 %558
        %562 = vset.pattern.permute.xlu0 0
        %563 = vperm.xlu0 %562, %v529
        %v564 = vpop.permute.xlu0 %563
        %567 = vset.pattern.permute.xlu0 0
        %568 = vperm.xlu0 %567, %v530
        %v569 = vpop.permute.xlu0 %568
        %572 = vset.pattern.permute.xlu0 0
        %573 = vperm.xlu0 %572, %v531
        %v574 = vpop.permute.xlu0 %573
        %577 = vset.pattern.permute.xlu0 0
        %578 = vperm.xlu0 %577, %v532
        %v579 = vpop.permute.xlu0 %578
        %582 = vset.pattern.permute.xlu0 0
        %583 = vperm.xlu0 %582, %v533
        %v584 = vpop.permute.xlu0 %583
        %587 = vset.pattern.permute.xlu0 0
        %588 = vperm.xlu0 %587, %v534
        %v589 = vpop.permute.xlu0 %588
        %592 = vset.pattern.permute.xlu0 0
        %593 = vperm.xlu0 %592, %v535
        %v594 = vpop.permute.xlu0 %593
        %v596 = vmul.f32 %v548, %v559
        %v597 = vmul.f32 %v549, %v564
        %v598 = vmul.f32 %v550, %v569
        %v599 = vmul.f32 %v551, %v574
        %v600 = vmul.f32 %v552, %v579
        %v601 = vmul.f32 %v553, %v584
        %v602 = vmul.f32 %v554, %v589
        %v603 = vmul.f32 %v555, %v594
        %vm604 = vcmask 130048
        %605 = vst.msk [vmem:[#allocation2] sm:$0xff] %vm604, %v596
        %606 = vst.msk [vmem:[#allocation2 + $0x8] sm:$0xff] %vm604, %v597
        %607 = vst.msk [vmem:[#allocation2 + $0x10] sm:$0xff] %vm604, %v598
        %608 = vst.msk [vmem:[#allocation2 + $0x18] sm:$0xff] %vm604, %v599
        %609 = vst.msk [vmem:[#allocation2 + $0x20] sm:$0xff] %vm604, %v600
        %610 = vst.msk [vmem:[#allocation2 + $0x28] sm:$0xff] %vm604, %v601
        %611 = vst.msk [vmem:[#allocation2 + $0x30] sm:$0xff] %vm604, %v602
        %612 = vst.msk [vmem:[#allocation2 + $0x38] sm:$0xff] %vm604, %v603
        %v613 = vld [vmem:[%s516] sm:$0x1]
        %v614 = vld [vmem:[%s513] sm:$0xff]
        %v615 = vld [vmem:[%s513 + $0x8] sm:$0xff]
        %v616 = vld [vmem:[%s513 + $0x10] sm:$0xff]
        %v617 = vld [vmem:[%s513 + $0x18] sm:$0xff]
        %v618 = vld [vmem:[%s513 + $0x20] sm:$0xff]
        %v619 = vld [vmem:[%s513 + $0x28] sm:$0xff]
        %v620 = vld [vmem:[%s513 + $0x30] sm:$0xff]
        %v621 = vld [vmem:[%s513 + $0x38] sm:$0xff]
        %v623 = vlaneseq
        %v624 = vshrl.u32 %v623, 7
        %v625 = vsub.s32 0, %v624
        %v626 = vrot.slane %v613, %v625
        %635 = vrot.lane.b32.xlu0 %v614, 16
        %v636 = vpop.permute.xlu0 %635
        %637 = vrot.lane.b32.xlu0 %v615, 16
        %v638 = vpop.permute.xlu0 %637
        %639 = vrot.lane.b32.xlu0 %v616, 16
        %v640 = vpop.permute.xlu0 %639
        %641 = vrot.lane.b32.xlu0 %v617, 16
        %v642 = vpop.permute.xlu0 %641
        %643 = vrot.lane.b32.xlu0 %v618, 16
        %v644 = vpop.permute.xlu0 %643
        %645 = vrot.lane.b32.xlu0 %v619, 16
        %v646 = vpop.permute.xlu0 %645
        %647 = vrot.lane.b32.xlu0 %v620, 16
        %v648 = vpop.permute.xlu0 %647
        %649 = vrot.lane.b32.xlu0 %v621, 16
        %v650 = vpop.permute.xlu0 %649
        %659 = vrot.lane.b32.xlu0 %v626, 32
        %v660 = vpop.permute.xlu0 %659
        %v662 = vsel %vm604, %v536, %v636
        %v663 = vsel %vm604, %v537, %v638
        %v664 = vsel %vm604, %v538, %v640
        %v665 = vsel %vm604, %v539, %v642
        %v666 = vsel %vm604, %v540, %v644
        %v667 = vsel %vm604, %v541, %v646
        %v668 = vsel %vm604, %v542, %v648
        %v669 = vsel %vm604, %v543, %v650
        %vm670 = vcmask 261120
        %v671 = vsel %vm670, %v662, %v660
        %v672 = vsel %vm670, %v663, %v660
        %v673 = vsel %vm670, %v664, %v660
        %v674 = vsel %vm670, %v665, %v660
        %v675 = vsel %vm670, %v666, %v660
        %v676 = vsel %vm670, %v667, %v660
        %v677 = vsel %vm670, %v668, %v660
        %v678 = vsel %vm670, %v669, %v660
        %v679 = vld [vmem:[%s7] sm:$0xff]
        %v680 = vld [vmem:[%s7 + $0x8] sm:$0xff]
        %v681 = vld [vmem:[%s7 + $0x10] sm:$0xff]
        %v682 = vld [vmem:[%s7 + $0x18] sm:$0xff]
        %v683 = vld [vmem:[%s7 + $0x20] sm:$0xff]
        %v684 = vld [vmem:[%s7 + $0x28] sm:$0xff]
        %v685 = vld [vmem:[%s8] sm:$0x1]
        %v686 = vpack.c.bf16 %v672, %v671
        %v687 = vpack.c.bf16 %v674, %v673
        %v688 = vpack.c.bf16 %v676, %v675
        %v689 = vpack.c.bf16 %v678, %v677
        %v696 = vunpack.c.l.b16 %v679
        %v697 = vunpack.c.h.b16 %v679
        %v698 = vunpack.c.l.b16 %v680
        %v699 = vunpack.c.h.b16 %v680
        %v700 = vunpack.c.l.b16 %v681
        %v701 = vunpack.c.h.b16 %v681
        %v702 = vunpack.c.l.b16 %v682
        %v703 = vunpack.c.h.b16 %v682
        %v704 = vunpack.c.l.b16 %v683
        %v705 = vunpack.c.h.b16 %v683
        %v706 = vunpack.c.l.b16 %v684
        %v707 = vunpack.c.h.b16 %v684
        %v708 = vpack.c.b16 %v698, %v696
        %v709 = vpack.c.b16 %v699, %v697
        %v710 = vpack.c.b16 %v702, %v700
        %v711 = vpack.c.b16 %v703, %v701
        %v712 = vpack.c.b16 %v706, %v704
        %v713 = vpack.c.b16 %v707, %v705
        %vm720 = vcmask 392192
        %v722 = vsel %vm720, %v686, 0
        %v725 = vsel %vm720, %v687, 0
        %v728 = vsel %vm720, %v688, 0
        %v731 = vsel %vm720, %v689, 0
        %733 = vmatprep.subr.bf16.mxu0 0
        %734 = vmatpush1.bf16.msra.mxu0 0
        %735 = vmatprep.subr.bf16.mxu0 0
        %736 = vmatpush1.bf16.msra.mxu0 0
        %737 = vmatprep.subr.bf16.mxu0 0
        %738 = vmatpush1.bf16.msra.mxu0 0
        %739 = vmatprep.subr.bf16.mxu0 0
        %740 = vmatpush1.bf16.msra.mxu0 0
        %741 = vmatprep.subr.bf16.mxu0 0
        %742 = vmatpush1.bf16.msra.mxu0 0
        %743 = vmatprep.subr.bf16.mxu0 %v713
        %744 = vmatpush1.bf16.msra.mxu0 %v712
        %745 = vmatprep.subr.bf16.mxu0 %v711
        %746 = vmatpush1.bf16.msra.mxu0 %v710
        %747 = vmatprep.subr.bf16.mxu0 %v709
        %748 = vmatpush1.bf16.msra.mxu0 %v708
        %749 = vmatprep.subr.bf16.mxu0 0
        %750 = vmatpush2.bf16.msra.mxu0 0
        %751 = vmatprep.subr.bf16.mxu0 0
        %752 = vmatpush2.bf16.msra.mxu0 0
        %753 = vmatprep.subr.bf16.mxu0 0
        %754 = vmatpush2.bf16.msra.mxu0 0
        %755 = vmatprep.subr.bf16.mxu0 0
        %756 = vmatpush2.bf16.msra.mxu0 0
        %757 = vmatprep.subr.bf16.mxu0 0
        %758 = vmatpush2.bf16.msra.mxu0 0
        %759 = vmatprep.subr.bf16.mxu0 0
        %760 = vmatpush2.bf16.msra.mxu0 0
        %761 = vmatprep.subr.bf16.mxu0 0
        %762 = vmatpush2.bf16.msra.mxu0 0
        %763 = vmatprep.subr.bf16.mxu0 0
        %764 = vmatpush2.bf16.msra.mxu0 0
        %765 = vmatprep.mubr.bf16.mxu0 0
        %766 = vmatmul.mubr.bf16.gmra.mxu0 %v722
        %v767 = vpop.f32.mrf.mxu0
        %v768 = vadd.f32 0.0, %v767
        %v769 = vpop.f32.mrf.mxu0
        %v770 = vadd.f32 0.0, %v769
        %v771 = vpop.f32.mrf.mxu0
        %v772 = vadd.f32 0.0, %v771
        %v773 = vpop.f32.mrf.mxu0
        %v774 = vadd.f32 0.0, %v773
        %775 = vmatprep.mubr.bf16.mxu0 0
        %776 = vmatmul.mubr.bf16.gmra.mxu0 %v725
        %v777 = vpop.f32.mrf.mxu0
        %v778 = vadd.f32 0.0, %v777
        %v779 = vpop.f32.mrf.mxu0
        %v780 = vadd.f32 0.0, %v779
        %v781 = vpop.f32.mrf.mxu0
        %v782 = vadd.f32 0.0, %v781
        %v783 = vpop.f32.mrf.mxu0
        %v784 = vadd.f32 0.0, %v783
        %785 = vmatprep.mubr.bf16.mxu0 0
        %786 = vmatmul.mubr.bf16.gmra.mxu0 %v728
        %v787 = vpop.f32.mrf.mxu0
        %v788 = vadd.f32 0.0, %v787
        %v789 = vpop.f32.mrf.mxu0
        %v790 = vadd.f32 0.0, %v789
        %v791 = vpop.f32.mrf.mxu0
        %v792 = vadd.f32 0.0, %v791
        %v793 = vpop.f32.mrf.mxu0
        %v794 = vadd.f32 0.0, %v793
        %795 = vmatprep.mubr.bf16.mxu0 0
        %796 = vmatmul.mubr.bf16.gmra.mxu0 %v731
        %v797 = vpop.f32.mrf.mxu0
        %v798 = vadd.f32 0.0, %v797
        %v799 = vpop.f32.mrf.mxu0
        %v800 = vadd.f32 0.0, %v799
        %v801 = vpop.f32.mrf.mxu0
        %v802 = vadd.f32 0.0, %v801
        %v803 = vpop.f32.mrf.mxu0
        %v804 = vadd.f32 0.0, %v803
        %805 = vdwg.mxu0
        %vm814 = vcmask 1040384
        %v815 = vrot.slane %v768, 7
        %v816 = vrot.slane %v772, 7
        %v817 = vsel %vm814, %v815, %v816
        %v818 = vrot.slane %v778, 7
        %v819 = vsel %vm814, %v816, %v818
        %v820 = vrot.slane %v782, 7
        %v821 = vsel %vm814, %v818, %v820
        %v822 = vrot.slane %v788, 7
        %v823 = vsel %vm814, %v820, %v822
        %v824 = vrot.slane %v792, 7
        %v825 = vsel %vm814, %v822, %v824
        %v826 = vrot.slane %v798, 7
        %v827 = vsel %vm814, %v824, %v826
        %v828 = vrot.slane %v802, 7
        %v829 = vsel %vm814, %v826, %v828
        %v838 = vsel %vm814, 0.0, %v815
        %839 = vrot.lane.b32.xlu0 %v768, 64
        %v840 = vpop.permute.xlu0 %839
        %841 = vrot.lane.b32.xlu0 %v772, 64
        %v842 = vpop.permute.xlu0 %841
        %843 = vrot.lane.b32.xlu0 %v778, 64
        %v844 = vpop.permute.xlu0 %843
        %845 = vrot.lane.b32.xlu0 %v782, 64
        %v846 = vpop.permute.xlu0 %845
        %847 = vrot.lane.b32.xlu0 %v788, 64
        %v848 = vpop.permute.xlu0 %847
        %849 = vrot.lane.b32.xlu0 %v792, 64
        %v850 = vpop.permute.xlu0 %849
        %851 = vrot.lane.b32.xlu0 %v798, 64
        %v852 = vpop.permute.xlu0 %851
        %853 = vrot.lane.b32.xlu0 %v802, 64
        %v854 = vpop.permute.xlu0 %853
        %v863 = vadd.f32 %v838, %v840
        %v864 = vadd.f32 %v817, %v842
        %v865 = vadd.f32 %v819, %v844
        %v866 = vadd.f32 %v821, %v846
        %v867 = vadd.f32 %v823, %v848
        %v868 = vadd.f32 %v825, %v850
        %v869 = vadd.f32 %v827, %v852
        %v870 = vadd.f32 %v829, %v854
        %vm879 = vcmask 1046528
        %v880 = vrot.slane %v770, 1
        %v881 = vrot.slane %v774, 1
        %v882 = vsel %vm879, %v880, %v881
        %v883 = vrot.slane %v780, 1
        %v884 = vsel %vm879, %v881, %v883
        %v885 = vrot.slane %v784, 1
        %v886 = vsel %vm879, %v883, %v885
        %v887 = vrot.slane %v790, 1
        %v888 = vsel %vm879, %v885, %v887
        %v889 = vrot.slane %v794, 1
        %v890 = vsel %vm879, %v887, %v889
        %v891 = vrot.slane %v800, 1
        %v892 = vsel %vm879, %v889, %v891
        %v893 = vrot.slane %v804, 1
        %v894 = vsel %vm879, %v891, %v893
        %v903 = vsel %vm879, %v893, 0.0
        %v904 = vadd.f32 %v863, %v882
        %v905 = vadd.f32 %v864, %v884
        %v906 = vadd.f32 %v865, %v886
        %v907 = vadd.f32 %v866, %v888
        %v908 = vadd.f32 %v867, %v890
        %v909 = vadd.f32 %v868, %v892
        %v910 = vadd.f32 %v869, %v894
        %v911 = vadd.f32 %v870, %v903
        %v913 = vlaneseq
        %v914 = vshrl.u32 %v913, 7
        %v915 = vsub.s32 0, %v914
        %v916 = vrot.slane %v685, %v915
        %v918 = vadd.f32 %v904, %v916
        %v919 = vadd.f32 %v905, %v916
        %v920 = vadd.f32 %v906, %v916
        %v921 = vadd.f32 %v907, %v916
        %v922 = vadd.f32 %v908, %v916
        %v923 = vadd.f32 %v909, %v916
        %v924 = vadd.f32 %v910, %v916
        %v925 = vadd.f32 %v911, %v916
        %vm926 = vcmask 523264
        %927 = vst.msk [vmem:[#allocation3] sm:$0xff] %vm926, %v918
        %928 = vst.msk [vmem:[#allocation3 + $0x8] sm:$0xff] %vm926, %v919
        %929 = vst.msk [vmem:[#allocation3 + $0x10] sm:$0xff] %vm926, %v920
        %930 = vst.msk [vmem:[#allocation3 + $0x18] sm:$0xff] %vm926, %v921
        %931 = vst.msk [vmem:[#allocation3 + $0x20] sm:$0xff] %vm926, %v922
        %932 = vst.msk [vmem:[#allocation3 + $0x28] sm:$0xff] %vm926, %v923
        %933 = vst.msk [vmem:[#allocation3 + $0x30] sm:$0xff] %vm926, %v924
        %934 = vst.msk [vmem:[#allocation3 + $0x38] sm:$0xff] %vm926, %v925
      $region76: #{stableform_tts_forward.11} parent=71 // pred_fallthru
        _
      %v935 = vld [vmem:[#allocation2] sm:$0xff]
      %v936 = vld [vmem:[#allocation2 + $0x8] sm:$0xff]
      %v937 = vld [vmem:[#allocation2 + $0x10] sm:$0xff]
      %v938 = vld [vmem:[#allocation2 + $0x18] sm:$0xff]
      %v939 = vld [vmem:[#allocation2 + $0x20] sm:$0xff]
      %v940 = vld [vmem:[#allocation2 + $0x28] sm:$0xff]
      %v941 = vld [vmem:[#allocation2 + $0x30] sm:$0xff]
      %v942 = vld [vmem:[#allocation2 + $0x38] sm:$0xff]
      %s943 = scvt.s32.f32 %s29
      %s944 = sadd.f32 %s943, 0.5
      %s945 = smul.f32 %s944, 0.25
      %s946 = ssub.f32 1.0, %s945
      %s947 = smul.f32 %s946, 19.95
      %s948 = sadd.f32 %s947, 0.05
      %s949 = smul.f32 %s946, 1000.0
      %v950 = vld [vmem:[%s5] sm:$0x1]
      %v951 = vstv %s949
      %v952 = vmul.f32 %v951, %v950
      %v953 = vand.u32 2147483647, %v952
      %vm954 = vcmp.le.f32.partialorder %v953, 0.7853982
      %vm955 = vcmp.lt.s32.totalorder %v952, 0
      %v956 = vand.u32 %v952, 2139095040
      %v957 = vshrl.u32 %v956, 23
      %v958 = vsub.s32 %v957, 127
      %v959 = vand.u32 2147483647, %v952
      %v960 = vand.u32 %v959, 8388607
      %v961 = vor.u32 %v960, 8388608
      %v962 = vsub.s32 0, %v961
      %v963 = vadd.s32 %v958, 1
      %vm964 = vcmp.gt.s32.totalorder %v963, 0
      %v965 = vsel %vm964, %v963, 0
      %v966 = vshrl.u32 %v965, 5
      %v967 = vand.u32 %v965, 31
      %v968 = vsub.s32 32, %v967
      %v969 = vshrl.u32 683565275, %v968
      %v970 = vshll.u32 683565275, %v967
      %v971 = vshrl.u32 2475754826, %v968
      %v972 = vor.u32 %v970, %v971
      %v973 = vshll.u32 2475754826, %v967
      %v974 = vshrl.u32 2131351028, %v968
      %v975 = vor.u32 %v973, %v974
      %v976 = vshll.u32 2131351028, %v967
      %v977 = vshrl.u32 2102212464, %v968
      %v978 = vor.u32 %v976, %v977
      %v979 = vshll.u32 2102212464, %v967
      %v980 = vshrl.u32 920167782, %v968
      %v981 = vor.u32 %v979, %v980
      %v982 = vshll.u32 920167782, %v967
      %v983 = vshrl.u32 1326507024, %v968
      %v984 = vor.u32 %v982, %v983
      %vm985 = vcmp.lt.s32.totalorder %v966, 1
      %vm986 = vcmp.lt.s32.totalorder %v966, 2
      %vm987 = vcmp.lt.s32.totalorder %v966, 3
      %vm988 = vcmp.lt.s32.totalorder %v966, 4
      %v989 = vsel %vm985, %v969, %v972
      %v990 = vsel %vm988, %v978, 2102212464
      %v991 = vsel %vm987, %v975, %v990
      %v992 = vsel %vm986, %v989, %v991
      %v993 = vsel %vm985, %v972, %v975
      %v994 = vsel %vm988, %v981, 920167782
      %v995 = vsel %vm987, %v978, %v994
      %v996 = vsel %vm986, %v993, %v995
      %v997 = vsel %vm985, %v975, %v978
      %v998 = vsel %vm988, %v984, 1326507024
      %v999 = vsel %vm987, %v981, %v998
      %v1000 = vsel %vm986, %v997, %v999
      %v1001 = vshll.u32 %v961, 8
      %v1002 = vmul.u32.u64.compose %v1001, %v1000
      %v1003 = vextract.low.u32 %v1002
      %v1004 = vextract.high.u32 %v1002
      %v1005 = vmul.u32.u64.compose %v1001, %v996
      %v1006 = vextract.low.u32 %v1005
      %v1007 = vextract.high.u32 %v1005
      %v1008 = vmul.u32 %v1001, %v992
      %v1009 = vadd.s32 %v1004, %v1006
      %vm1010 = vc.u32 %v1004, %v1006
      %v1011 = vadd.s32 %v1007, 1
      %v1012 = vsel %vm1010, %v1011, %v1007
      %v1013 = vadd.s32 %v1008, %v1012
      %v1014 = vadd.s32 %v1013, 536870912
      %v1015 = vshrl.u32 %v1014, 30
      %v1016 = vshll.u32 %v1015, 30
      %v1017 = vsub.s32 %v1013, %v1016
      %vm1018 = vcmp.lt.s32.totalorder %v1017, 0
      %v1019 = vsub.s32 0, %v1017
      %v1020 = vsel %vm1018, %v1019, %v1017
      %v1021 = vclz %v1020
      %v1022 = vsub.s32 %v1021, 2
      %vm1023 = vcmp.gt.s32.totalorder 0, %v1022
      %v1024 = vsel %vm1023, 0, %v1022
      %v1025 = vsub.s32 32, %v1024
      %v1026 = vshll.u32 %v1017, %v1024
      %v1027 = vshrl.u32 %v1009, %v1025
      %v1028 = vor.u32 %v1026, %v1027
      %v1029 = vsub.s32 4294967266, %v1024
      %v1030 = vadd.s32 %v1029, 127
      %v1031 = vshll.u32 %v1030, 23
      %v1032 = vor.u32 4788187, %v1031
      %v1033 = vand.u32 2147483647, %v1032
      %v1035 = vcvt.s32.f32 %v1028
      %v1036 = vmul.f32 %v1035, %v1033
      %v1037 = vxor.u32 %v1036, 2147483648
      %v1038 = vsel %vm955, %v1037, %v1036
      %v1039 = vsub.s32 4, %v1015
      %v1040 = vsel %vm955, %v1039, %v1015
      %v1041 = vsel %vm954, %v952, %v1038
      %v1042 = vsel %vm954, 0, %v1040
      %v1043 = vcosq.f32.pop %v1041
      %v1044 = vsinq.f32.pop %v1041
      %vm1045 = vweird.f32 %v952
      %v1046 = vadd.s32 %v1042, 3
      %v1047 = vand.u32 %v1046, 3
      %vm1048 = vcmp.lt.s32.totalorder %v1047, 2
      %vm1049 = vcmp.eq.s32.totalorder %v1047, 0
      %v1050 = vxor.u32 %v1044, 2147483648
      %v1051 = vsel %vm1049, %v1043, %v1050
      %vm1052 = vcmp.eq.s32.totalorder %v1047, 2
      %v1053 = vxor.u32 %v1043, 2147483648
      %v1054 = vsel %vm1052, %v1053, %v1044
      %v1055 = vsel %vm1048, %v1051, %v1054
      %v1056 = vsel %vm1045, nan, %v1055
      %v1057 = vand.u32 2147483647, %v952
      %vm1058 = vcmp.le.f32.partialorder %v1057, 0.7853982
      %vm1059 = vcmp.lt.s32.totalorder %v952, 0
      %v1060 = vand.u32 %v952, 2139095040
      %v1061 = vshrl.u32 %v1060, 23
      %v1062 = vsub.s32 %v1061, 127
      %v1063 = vand.u32 2147483647, %v952
      %v1064 = vand.u32 %v1063, 8388607
      %v1065 = vor.u32 %v1064, 8388608
      %v1066 = vsub.s32 0, %v1065
      %v1067 = vadd.s32 %v1062, 1
      %vm1068 = vcmp.gt.s32.totalorder %v1067, 0
      %v1069 = vsel %vm1068, %v1067, 0
      %v1070 = vshrl.u32 %v1069, 5
      %v1071 = vand.u32 %v1069, 31
      %v1072 = vsub.s32 32, %v1071
      %v1073 = vshrl.u32 683565275, %v1072
      %v1074 = vshll.u32 683565275, %v1071
      %v1075 = vshrl.u32 2475754826, %v1072
      %v1076 = vor.u32 %v1074, %v1075
      %v1077 = vshll.u32 2475754826, %v1071
      %v1078 = vshrl.u32 2131351028, %v1072
      %v1079 = vor.u32 %v1077, %v1078
      %v1080 = vshll.u32 2131351028, %v1071
      %v1081 = vshrl.u32 2102212464, %v1072
      %v1082 = vor.u32 %v1080, %v1081
      %v1083 = vshll.u32 2102212464, %v1071
      %v1084 = vshrl.u32 920167782, %v1072
      %v1085 = vor.u32 %v1083, %v1084
      %v1086 = vshll.u32 920167782, %v1071
      %v1087 = vshrl.u32 1326507024, %v1072
      %v1088 = vor.u32 %v1086, %v1087
      %vm1089 = vcmp.lt.s32.totalorder %v1070, 1
      %vm1090 = vcmp.lt.s32.totalorder %v1070, 2
      %vm1091 = vcmp.lt.s32.totalorder %v1070, 3
      %vm1092 = vcmp.lt.s32.totalorder %v1070, 4
      %v1093 = vsel %vm1089, %v1073, %v1076
      %v1094 = vsel %vm1092, %v1082, 2102212464
      %v1095 = vsel %vm1091, %v1079, %v1094
      %v1096 = vsel %vm1090, %v1093, %v1095
      %v1097 = vsel %vm1089, %v1076, %v1079
      %v1098 = vsel %vm1092, %v1085, 920167782
      %v1099 = vsel %vm1091, %v1082, %v1098
      %v1100 = vsel %vm1090, %v1097, %v1099
      %v1101 = vsel %vm1089, %v1079, %v1082
      %v1102 = vsel %vm1092, %v1088, 1326507024
      %v1103 = vsel %vm1091, %v1085, %v1102
      %v1104 = vsel %vm1090, %v1101, %v1103
      %v1105 = vshll.u32 %v1065, 8
      %v1106 = vmul.u32.u64.compose %v1105, %v1104
      %v1107 = vextract.low.u32 %v1106
      %v1108 = vextract.high.u32 %v1106
      %v1109 = vmul.u32.u64.compose %v1105, %v1100
      %v1110 = vextract.low.u32 %v1109
      %v1111 = vextract.high.u32 %v1109
      %v1112 = vmul.u32 %v1105, %v1096
      %v1113 = vadd.s32 %v1108, %v1110
      %vm1114 = vc.u32 %v1108, %v1110
      %v1115 = vadd.s32 %v1111, 1
      %v1116 = vsel %vm1114, %v1115, %v1111
      %v1117 = vadd.s32 %v1112, %v1116
      %v1118 = vadd.s32 %v1117, 536870912
      %v1119 = vshrl.u32 %v1118, 30
      %v1120 = vshll.u32 %v1119, 30
      %v1121 = vsub.s32 %v1117, %v1120
      %vm1122 = vcmp.lt.s32.totalorder %v1121, 0
      %v1123 = vsub.s32 0, %v1121
      %v1124 = vsel %vm1122, %v1123, %v1121
      %v1125 = vclz %v1124
      %v1126 = vsub.s32 %v1125, 2
      %vm1127 = vcmp.gt.s32.totalorder 0, %v1126
      %v1128 = vsel %vm1127, 0, %v1126
      %v1129 = vsub.s32 32, %v1128
      %v1130 = vshll.u32 %v1121, %v1128
      %v1131 = vshrl.u32 %v1113, %v1129
      %v1132 = vor.u32 %v1130, %v1131
      %v1133 = vsub.s32 4294967266, %v1128
      %v1134 = vadd.s32 %v1133, 127
      %v1135 = vshll.u32 %v1134, 23
      %v1136 = vor.u32 4788187, %v1135
      %v1137 = vand.u32 2147483647, %v1136
      %v1139 = vcvt.s32.f32 %v1132
      %v1140 = vmul.f32 %v1139, %v1137
      %v1141 = vxor.u32 %v1140, 2147483648
      %v1142 = vsel %vm1059, %v1141, %v1140
      %v1143 = vsub.s32 4, %v1119
      %v1144 = vsel %vm1059, %v1143, %v1119
      %v1145 = vsel %vm1058, %v952, %v1142
      %v1146 = vsel %vm1058, 0, %v1144
      %v1147 = vcosq.f32.pop %v1145
      %v1148 = vsinq.f32.pop %v1145
      %vm1149 = vweird.f32 %v952
      %v1150 = vand.u32 %v1146, 3
      %vm1151 = vcmp.lt.s32.totalorder %v1150, 2
      %vm1152 = vcmp.eq.s32.totalorder %v1150, 0
      %v1153 = vxor.u32 %v1148, 2147483648
      %v1154 = vsel %vm1152, %v1147, %v1153
      %vm1155 = vcmp.eq.s32.totalorder %v1150, 2
      %v1156 = vxor.u32 %v1147, 2147483648
      %v1157 = vsel %vm1155, %v1156, %v1148
      %v1158 = vsel %vm1151, %v1154, %v1157
      %v1159 = vsel %vm1149, nan, %v1158
      %v1161 = vlaneseq
      %v1162 = vshrl.u32 %v1161, 7
      %v1163 = vsub.s32 0, %v1162
      %v1164 = vrot.slane %v1159, %v1163
      %1165 = vrot.lane.b32.xlu0 %v1164, 8
      %v1166 = vpop.permute.xlu0 %1165
      %vm1168 = vcmask 64512
      %v1169 = vsel %vm1168, %v1056, %v1166
      %v1170 = vlaneseq
      %v1171 = vshrl.u32 %v1170, 7
      %v1172 = vsub.s32 0, %v1171
      %v1173 = vrot.slane %v1169, %v1172
      %1175 = vrot.lane.b32.xlu0 %v1173, 16
      %v1176 = vpop.permute.xlu0 %1175
      %vm1178 = vcmask 130048
      %v1179 = vsel %vm1178, %v935, %v1176
      %v1180 = vsel %vm1178, %v936, %v1176
      %v1181 = vsel %vm1178, %v937, %v1176
      %v1182 = vsel %vm1178, %v938, %v1176
      %v1183 = vsel %vm1178, %v939, %v1176
      %v1184 = vsel %vm1178, %v940, %v1176
      %v1185 = vsel %vm1178, %v941, %v1176
      %v1186 = vsel %vm1178, %v942, %v1176
      %v1187 = vld [vmem:[#allocation3] sm:$0xff]
      %v1188 = vld [vmem:[#allocation3 + $0x8] sm:$0xff]
      %v1189 = vld [vmem:[#allocation3 + $0x10] sm:$0xff]
      %v1190 = vld [vmem:[#allocation3 + $0x18] sm:$0xff]
      %v1191 = vld [vmem:[#allocation3 + $0x20] sm:$0xff]
      %v1192 = vld [vmem:[#allocation3 + $0x28] sm:$0xff]
      %v1193 = vld [vmem:[#allocation3 + $0x30] sm:$0xff]
      %v1194 = vld [vmem:[#allocation3 + $0x38] sm:$0xff]
      %v1195 = vld [vmem:[%s6] sm:$0xff]
      %v1196 = vld [vmem:[%s6 + $0x8] sm:$0xff]
      %v1197 = vld [vmem:[%s6 + $0x10] sm:$0xff]
      %v1198 = vld [vmem:[%s6 + $0x18] sm:$0xff]
      %v1199 = vpack.c.bf16 %v1180, %v1179
      %v1200 = vpack.c.bf16 %v1182, %v1181
      %v1201 = vpack.c.bf16 %v1184, %v1183
      %v1202 = vpack.c.bf16 %v1186, %v1185
      %v1207 = vunpack.c.l.b16 %v1195
      %v1208 = vunpack.c.h.b16 %v1195
      %v1209 = vunpack.c.l.b16 %v1196
      %v1210 = vunpack.c.h.b16 %v1196
      %v1211 = vunpack.c.l.b16 %v1197
      %v1212 = vunpack.c.h.b16 %v1197
      %v1213 = vunpack.c.l.b16 %v1198
      %v1214 = vunpack.c.h.b16 %v1198
      %v1215 = vpack.c.b16 %v1209, %v1207
      %v1216 = vpack.c.b16 %v1210, %v1208
      %v1217 = vpack.c.b16 %v1213, %v1211
      %v1218 = vpack.c.b16 %v1214, %v1212
      %vm1223 = vcmask 261120
      %v1225 = vsel %vm1223, %v1199, 0
      %v1228 = vsel %vm1223, %v1200, 0
      %v1231 = vsel %vm1223, %v1201, 0
      %v1234 = vsel %vm1223, %v1202, 0
      %1236 = vmatprep.subr.bf16.mxu0 0
      %1237 = vmatpush1.bf16.msra.mxu0 0
      %1238 = vmatprep.subr.bf16.mxu0 0
      %1239 = vmatpush1.bf16.msra.mxu0 0
      %1240 = vmatprep.subr.bf16.mxu0 0
      %1241 = vmatpush1.bf16.msra.mxu0 0
      %1242 = vmatprep.subr.bf16.mxu0 0
      %1243 = vmatpush1.bf16.msra.mxu0 0
      %1244 = vmatprep.subr.bf16.mxu0 0
      %1245 = vmatpush1.bf16.msra.mxu0 0
      %1246 = vmatprep.subr.bf16.mxu0 0
      %1247 = vmatpush1.bf16.msra.mxu0 0
      %1248 = vmatprep.subr.bf16.mxu0 %v1218
      %1249 = vmatpush1.bf16.msra.mxu0 %v1217
      %1250 = vmatprep.subr.bf16.mxu0 %v1216
      %1251 = vmatpush1.bf16.msra.mxu0 %v1215
      %1252 = vmatprep.subr.bf16.mxu0 0
      %1253 = vmatpush2.bf16.msra.mxu0 0
      %1254 = vmatprep.subr.bf16.mxu0 0
      %1255 = vmatpush2.bf16.msra.mxu0 0
      %1256 = vmatprep.subr.bf16.mxu0 0
      %1257 = vmatpush2.bf16.msra.mxu0 0
      %1258 = vmatprep.subr.bf16.mxu0 0
      %1259 = vmatpush2.bf16.msra.mxu0 0
      %1260 = vmatprep.subr.bf16.mxu0 0
      %1261 = vmatpush2.bf16.msra.mxu0 0
      %1262 = vmatprep.subr.bf16.mxu0 0
      %1263 = vmatpush2.bf16.msra.mxu0 0
      %1264 = vmatprep.subr.bf16.mxu0 0
      %1265 = vmatpush2.bf16.msra.mxu0 0
      %1266 = vmatprep.subr.bf16.mxu0 0
      %1267 = vmatpush2.bf16.msra.mxu0 0
      %1268 = vmatprep.mubr.bf16.mxu0 0
      %1269 = vmatmul.mubr.bf16.gmra.mxu0 %v1225
      %v1270 = vpop.f32.mrf.mxu0
      %v1271 = vadd.f32 0.0, %v1270
      %v1272 = vpop.f32.mrf.mxu0
      %v1273 = vadd.f32 0.0, %v1272
      %v1274 = vpop.f32.mrf.mxu0
      %v1275 = vadd.f32 0.0, %v1274
      %v1276 = vpop.f32.mrf.mxu0
      %v1277 = vadd.f32 0.0, %v1276
      %1278 = vmatprep.mubr.bf16.mxu0 0
      %1279 = vmatmul.mubr.bf16.gmra.mxu0 %v1228
      %v1280 = vpop.f32.mrf.mxu0
      %v1281 = vadd.f32 0.0, %v1280
      %v1282 = vpop.f32.mrf.mxu0
      %v1283 = vadd.f32 0.0, %v1282
      %v1284 = vpop.f32.mrf.mxu0
      %v1285 = vadd.f32 0.0, %v1284
      %v1286 = vpop.f32.mrf.mxu0
      %v1287 = vadd.f32 0.0, %v1286
      %1288 = vmatprep.mubr.bf16.mxu0 0
      %1289 = vmatmul.mubr.bf16.gmra.mxu0 %v1231
      %v1290 = vpop.f32.mrf.mxu0
      %v1291 = vadd.f32 0.0, %v1290
      %v1292 = vpop.f32.mrf.mxu0
      %v1293 = vadd.f32 0.0, %v1292
      %v1294 = vpop.f32.mrf.mxu0
      %v1295 = vadd.f32 0.0, %v1294
      %v1296 = vpop.f32.mrf.mxu0
      %v1297 = vadd.f32 0.0, %v1296
      %1298 = vmatprep.mubr.bf16.mxu0 0
      %1299 = vmatmul.mubr.bf16.gmra.mxu0 %v1234
      %v1300 = vpop.f32.mrf.mxu0
      %v1301 = vadd.f32 0.0, %v1300
      %v1302 = vpop.f32.mrf.mxu0
      %v1303 = vadd.f32 0.0, %v1302
      %v1304 = vpop.f32.mrf.mxu0
      %v1305 = vadd.f32 0.0, %v1304
      %v1306 = vpop.f32.mrf.mxu0
      %v1307 = vadd.f32 0.0, %v1306
      %1308 = vdwg.mxu0
      %vm1317 = vcmask 1040384
      %v1318 = vrot.slane %v1271, 7
      %v1319 = vrot.slane %v1275, 7
      %v1320 = vsel %vm1317, %v1318, %v1319
      %v1321 = vrot.slane %v1281, 7
      %v1322 = vsel %vm1317, %v1319, %v1321
      %v1323 = vrot.slane %v1285, 7
      %v1324 = vsel %vm1317, %v1321, %v1323
      %v1325 = vrot.slane %v1291, 7
      %v1326 = vsel %vm1317, %v1323, %v1325
      %v1327 = vrot.slane %v1295, 7
      %v1328 = vsel %vm1317, %v1325, %v1327
      %v1329 = vrot.slane %v1301, 7
      %v1330 = vsel %vm1317, %v1327, %v1329
      %v1331 = vrot.slane %v1305, 7
      %v1332 = vsel %vm1317, %v1329, %v1331
      %v1341 = vsel %vm1317, 0.0, %v1318
      %1342 = vrot.lane.b32.xlu0 %v1271, 64
      %v1343 = vpop.permute.xlu0 %1342
      %1344 = vrot.lane.b32.xlu0 %v1275, 64
      %v1345 = vpop.permute.xlu0 %1344
      %1346 = vrot.lane.b32.xlu0 %v1281, 64
      %v1347 = vpop.permute.xlu0 %1346
      %1348 = vrot.lane.b32.xlu0 %v1285, 64
      %v1349 = vpop.permute.xlu0 %1348
      %1350 = vrot.lane.b32.xlu0 %v1291, 64
      %v1351 = vpop.permute.xlu0 %1350
      %1352 = vrot.lane.b32.xlu0 %v1295, 64
      %v1353 = vpop.permute.xlu0 %1352
      %1354 = vrot.lane.b32.xlu0 %v1301, 64
      %v1355 = vpop.permute.xlu0 %1354
      %1356 = vrot.lane.b32.xlu0 %v1305, 64
      %v1357 = vpop.permute.xlu0 %1356
      %v1366 = vadd.f32 %v1341, %v1343
      %v1367 = vadd.f32 %v1320, %v1345
      %v1368 = vadd.f32 %v1322, %v1347
      %v1369 = vadd.f32 %v1324, %v1349
      %v1370 = vadd.f32 %v1326, %v1351
      %v1371 = vadd.f32 %v1328, %v1353
      %v1372 = vadd.f32 %v1330, %v1355
      %v1373 = vadd.f32 %v1332, %v1357
      %vm1382 = vcmask 1046528
      %v1383 = vrot.slane %v1273, 1
      %v1384 = vrot.slane %v1277, 1
      %v1385 = vsel %vm1382, %v1383, %v1384
      %v1386 = vrot.slane %v1283, 1
      %v1387 = vsel %vm1382, %v1384, %v1386
      %v1388 = vrot.slane %v1287, 1
      %v1389 = vsel %vm1382, %v1386, %v1388
      %v1390 = vrot.slane %v1293, 1
      %v1391 = vsel %vm1382, %v1388, %v1390
      %v1392 = vrot.slane %v1297, 1
      %v1393 = vsel %vm1382, %v1390, %v1392
      %v1394 = vrot.slane %v1303, 1
      %v1395 = vsel %vm1382, %v1392, %v1394
      %v1396 = vrot.slane %v1307, 1
      %v1397 = vsel %vm1382, %v1394, %v1396
      %v1406 = vsel %vm1382, %v1396, 0.0
      %v1407 = vadd.f32 %v1366, %v1385
      %v1408 = vadd.f32 %v1367, %v1387
      %v1409 = vadd.f32 %v1368, %v1389
      %v1410 = vadd.f32 %v1369, %v1391
      %v1411 = vadd.f32 %v1370, %v1393
      %v1412 = vadd.f32 %v1371, %v1395
      %v1413 = vadd.f32 %v1372, %v1397
      %v1414 = vadd.f32 %v1373, %v1406
      %v1415 = vadd.f32 %v1187, %v1407
      %v1416 = vadd.f32 %v1188, %v1408
      %v1417 = vadd.f32 %v1189, %v1409
      %v1418 = vadd.f32 %v1190, %v1410
      %v1419 = vadd.f32 %v1191, %v1411
      %v1420 = vadd.f32 %v1192, %v1412
      %v1421 = vadd.f32 %v1193, %v1413
      %v1422 = vadd.f32 %v1194, %v1414
      %v1423 = vmax.f32 %v1415, 0.0
      %v1424 = vmax.f32 %v1416, 0.0
      %v1425 = vmax.f32 %v1417, 0.0
      %v1426 = vmax.f32 %v1418, 0.0
      %v1427 = vmax.f32 %v1419, 0.0
      %v1428 = vmax.f32 %v1420, 0.0
      %v1429 = vmax.f32 %v1421, 0.0
      %v1430 = vmax.f32 %v1422, 0.0
      %v1431 = vld [vmem:[%s9] sm:$0xff]
      %v1432 = vld [vmem:[%s9 + $0x8] sm:$0xff]
      %v1433 = vld [vmem:[%s9 + $0x10] sm:$0xff]
      %v1434 = vld [vmem:[%s9 + $0x18] sm:$0xff]
      %v1435 = vld [vmem:[%s9 + $0x20] sm:$0xff]
      %v1436 = vld [vmem:[%s9 + $0x28] sm:$0xff]
      %v1437 = vld [vmem:[%s9 + $0x30] sm:$0xff]
      %v1438 = vld [vmem:[%s9 + $0x38] sm:$0xff]
      %v1439 = vld [vmem:[%s10] sm:$0x1]
      %v1440 = vpack.c.bf16 %v1424, %v1423
      %v1441 = vpack.c.bf16 %v1426, %v1425
      %v1442 = vpack.c.bf16 %v1428, %v1427
      %v1443 = vpack.c.bf16 %v1430, %v1429
      %v1452 = vunpack.c.l.b16 %v1431
      %v1453 = vunpack.c.h.b16 %v1431
      %v1454 = vunpack.c.l.b16 %v1432
      %v1455 = vunpack.c.h.b16 %v1432
      %v1456 = vunpack.c.l.b16 %v1433
      %v1457 = vunpack.c.h.b16 %v1433
      %v1458 = vunpack.c.l.b16 %v1434
      %v1459 = vunpack.c.h.b16 %v1434
      %v1460 = vunpack.c.l.b16 %v1435
      %v1461 = vunpack.c.h.b16 %v1435
      %v1462 = vunpack.c.l.b16 %v1436
      %v1463 = vunpack.c.h.b16 %v1436
      %v1464 = vunpack.c.l.b16 %v1437
      %v1465 = vunpack.c.h.b16 %v1437
      %v1466 = vunpack.c.l.b16 %v1438
      %v1467 = vunpack.c.h.b16 %v1438
      %v1468 = vpack.c.b16 %v1454, %v1452
      %v1469 = vpack.c.b16 %v1455, %v1453
      %v1470 = vpack.c.b16 %v1458, %v1456
      %v1471 = vpack.c.b16 %v1459, %v1457
      %v1472 = vpack.c.b16 %v1462, %v1460
      %v1473 = vpack.c.b16 %v1463, %v1461
      %v1474 = vpack.c.b16 %v1466, %v1464
      %v1475 = vpack.c.b16 %v1467, %v1465
      %vm1484 = vcmask 523264
      %v1486 = vsel %vm1484, %v1440, 0
      %v1489 = vsel %vm1484, %v1441, 0
      %v1492 = vsel %vm1484, %v1442, 0
      %v1495 = vsel %vm1484, %v1443, 0
      %1497 = vmatprep.subr.bf16.mxu0 0
      %1498 = vmatpush1.bf16.msra.mxu0 0
      %1499 = vmatprep.subr.bf16.mxu0 0
      %1500 = vmatpush1.bf16.msra.mxu0 0
      %1501 = vmatprep.subr.bf16.mxu0 0
      %1502 = vmatpush1.bf16.msra.mxu0 0
      %1503 = vmatprep.subr.bf16.mxu0 0
      %1504 = vmatpush1.bf16.msra.mxu0 0
      %1505 = vmatprep.subr.bf16.mxu0 %v1475
      %1506 = vmatpush1.bf16.msra.mxu0 %v1474
      %1507 = vmatprep.subr.bf16.mxu0 %v1473
      %1508 = vmatpush1.bf16.msra.mxu0 %v1472
      %1509 = vmatprep.subr.bf16.mxu0 %v1471
      %1510 = vmatpush1.bf16.msra.mxu0 %v1470
      %1511 = vmatprep.subr.bf16.mxu0 %v1469
      %1512 = vmatpush1.bf16.msra.mxu0 %v1468
      %1513 = vmatprep.subr.bf16.mxu0 0
      %1514 = vmatpush2.bf16.msra.mxu0 0
      %1515 = vmatprep.subr.bf16.mxu0 0
      %1516 = vmatpush2.bf16.msra.mxu0 0
      %1517 = vmatprep.subr.bf16.mxu0 0
      %1518 = vmatpush2.bf16.msra.mxu0 0
      %1519 = vmatprep.subr.bf16.mxu0 0
      %1520 = vmatpush2.bf16.msra.mxu0 0
      %1521 = vmatprep.subr.bf16.mxu0 0
      %1522 = vmatpush2.bf16.msra.mxu0 0
      %1523 = vmatprep.subr.bf16.mxu0 0
      %1524 = vmatpush2.bf16.msra.mxu0 0
      %1525 = vmatprep.subr.bf16.mxu0 0
      %1526 = vmatpush2.bf16.msra.mxu0 0
      %1527 = vmatprep.subr.bf16.mxu0 0
      %1528 = vmatpush2.bf16.msra.mxu0 0
      %1529 = vmatprep.mubr.bf16.mxu0 0
      %1530 = vmatmul.mubr.bf16.gmra.mxu0 %v1486
      %v1531 = vpop.f32.mrf.mxu0
      %v1532 = vadd.f32 0.0, %v1531
      %v1533 = vpop.f32.mrf.mxu0
      %v1534 = vadd.f32 0.0, %v1533
      %v1535 = vpop.f32.mrf.mxu0
      %v1536 = vadd.f32 0.0, %v1535
      %v1537 = vpop.f32.mrf.mxu0
      %v1538 = vadd.f32 0.0, %v1537
      %1539 = vmatprep.mubr.bf16.mxu0 0
      %1540 = vmatmul.mubr.bf16.gmra.mxu0 %v1489
      %v1541 = vpop.f32.mrf.mxu0
      %v1542 = vadd.f32 0.0, %v1541
      %v1543 = vpop.f32.mrf.mxu0
      %v1544 = vadd.f32 0.0, %v1543
      %v1545 = vpop.f32.mrf.mxu0
      %v1546 = vadd.f32 0.0, %v1545
      %v1547 = vpop.f32.mrf.mxu0
      %v1548 = vadd.f32 0.0, %v1547
      %1549 = vmatprep.mubr.bf16.mxu0 0
      %1550 = vmatmul.mubr.bf16.gmra.mxu0 %v1492
      %v1551 = vpop.f32.mrf.mxu0
      %v1552 = vadd.f32 0.0, %v1551
      %v1553 = vpop.f32.mrf.mxu0
      %v1554 = vadd.f32 0.0, %v1553
      %v1555 = vpop.f32.mrf.mxu0
      %v1556 = vadd.f32 0.0, %v1555
      %v1557 = vpop.f32.mrf.mxu0
      %v1558 = vadd.f32 0.0, %v1557
      %1559 = vmatprep.mubr.bf16.mxu0 0
      %1560 = vmatmul.mubr.bf16.gmra.mxu0 %v1495
      %v1561 = vpop.f32.mrf.mxu0
      %v1562 = vadd.f32 0.0, %v1561
      %v1563 = vpop.f32.mrf.mxu0
      %v1564 = vadd.f32 0.0, %v1563
      %v1565 = vpop.f32.mrf.mxu0
      %v1566 = vadd.f32 0.0, %v1565
      %v1567 = vpop.f32.mrf.mxu0
      %v1568 = vadd.f32 0.0, %v1567
      %1569 = vdwg.mxu0
      %v1578 = vrot.slane %v1532, 7
      %v1579 = vrot.slane %v1536, 7
      %v1580 = vsel %vm1317, %v1578, %v1579
      %v1581 = vrot.slane %v1542, 7
      %v1582 = vsel %vm1317, %v1579, %v1581
      %v1583 = vrot.slane %v1546, 7
      %v1584 = vsel %vm1317, %v1581, %v1583
      %v1585 = vrot.slane %v1552, 7
      %v1586 = vsel %vm1317, %v1583, %v1585
      %v1587 = vrot.slane %v1556, 7
      %v1588 = vsel %vm1317, %v1585, %v1587
      %v1589 = vrot.slane %v1562, 7
      %v1590 = vsel %vm1317, %v1587, %v1589
      %v1591 = vrot.slane %v1566, 7
      %v1592 = vsel %vm1317, %v1589, %v1591
      %v1601 = vsel %vm1317, 0.0, %v1578
      %1602 = vrot.lane.b32.xlu0 %v1532, 64
      %v1603 = vpop.permute.xlu0 %1602
      %1604 = vrot.lane.b32.xlu0 %v1536, 64
      %v1605 = vpop.permute.xlu0 %1604
      %1606 = vrot.lane.b32.xlu0 %v1542, 64
      %v1607 = vpop.permute.xlu0 %1606
      %1608 = vrot.lane.b32.xlu0 %v1546, 64
      %v1609 = vpop.permute.xlu0 %1608
      %1610 = vrot.lane.b32.xlu0 %v1552, 64
      %v1611 = vpop.permute.xlu0 %1610
      %1612 = vrot.lane.b32.xlu0 %v1556, 64
      %v1613 = vpop.permute.xlu0 %1612
      %1614 = vrot.lane.b32.xlu0 %v1562, 64
      %v1615 = vpop.permute.xlu0 %1614
      %1616 = vrot.lane.b32.xlu0 %v1566, 64
      %v1617 = vpop.permute.xlu0 %1616
      %v1626 = vadd.f32 %v1601, %v1603
      %v1627 = vadd.f32 %v1580, %v1605
      %v1628 = vadd.f32 %v1582, %v1607
      %v1629 = vadd.f32 %v1584, %v1609
      %v1630 = vadd.f32 %v1586, %v1611
      %v1631 = vadd.f32 %v1588, %v1613
      %v1632 = vadd.f32 %v1590, %v1615
      %v1633 = vadd.f32 %v1592, %v1617
      %v1642 = vrot.slane %v1534, 1
      %v1643 = vrot.slane %v1538, 1
      %v1644 = vsel %vm1382, %v1642, %v1643
      %v1645 = vrot.slane %v1544, 1
      %v1646 = vsel %vm1382, %v1643, %v1645
      %v1647 = vrot.slane %v1548, 1
      %v1648 = vsel %vm1382, %v1645, %v1647
      %v1649 = vrot.slane %v1554, 1
      %v1650 = vsel %vm1382, %v1647, %v1649
      %v1651 = vrot.slane %v1558, 1
      %v1652 = vsel %vm1382, %v1649, %v1651
      %v1653 = vrot.slane %v1564, 1
      %v1654 = vsel %vm1382, %v1651, %v1653
      %v1655 = vrot.slane %v1568, 1
      %v1656 = vsel %vm1382, %v1653, %v1655
      %v1665 = vsel %vm1382, %v1655, 0.0
      %v1666 = vadd.f32 %v1626, %v1644
      %v1667 = vadd.f32 %v1627, %v1646
      %v1668 = vadd.f32 %v1628, %v1648
      %v1669 = vadd.f32 %v1629, %v1650
      %v1670 = vadd.f32 %v1630, %v1652
      %v1671 = vadd.f32 %v1631, %v1654
      %v1672 = vadd.f32 %v1632, %v1656
      %v1673 = vadd.f32 %v1633, %v1665
      %v1675 = vlaneseq
      %v1676 = vshrl.u32 %v1675, 7
      %v1677 = vsub.s32 0, %v1676
      %v1678 = vrot.slane %v1439, %v1677
      %v1680 = vadd.f32 %v1666, %v1678
      %v1681 = vadd.f32 %v1667, %v1678
      %v1682 = vadd.f32 %v1668, %v1678
      %v1683 = vadd.f32 %v1669, %v1678
      %v1684 = vadd.f32 %v1670, %v1678
      %v1685 = vadd.f32 %v1671, %v1678
      %v1686 = vadd.f32 %v1672, %v1678
      %v1687 = vadd.f32 %v1673, %v1678
      %v1688 = vmax.f32 %v1680, 0.0
      %v1689 = vmax.f32 %v1681, 0.0
      %v1690 = vmax.f32 %v1682, 0.0
      %v1691 = vmax.f32 %v1683, 0.0
      %v1692 = vmax.f32 %v1684, 0.0
      %v1693 = vmax.f32 %v1685, 0.0
      %v1694 = vmax.f32 %v1686, 0.0
      %v1695 = vmax.f32 %v1687, 0.0
      %v1696 = vpack.c.bf16 %v1689, %v1688
      %v1697 = vpack.c.bf16 %v1691, %v1690
      %v1698 = vpack.c.bf16 %v1693, %v1692
      %v1699 = vpack.c.bf16 %v1695, %v1694
      %v1700 = vld [vmem:[%s11] sm:$0xf]
      %v1701 = vld [vmem:[%s11 + $0x4] sm:$0xf]
      %v1702 = vld [vmem:[%s11 + $0x8] sm:$0xf]
      %v1703 = vld [vmem:[%s11 + $0xc] sm:$0xf]
      %v1704 = vld [vmem:[%s11 + $0x10] sm:$0xf]
      %v1705 = vld [vmem:[%s11 + $0x14] sm:$0xf]
      %v1706 = vld [vmem:[%s11 + $0x18] sm:$0xf]
      %v1707 = vld [vmem:[%s11 + $0x1c] sm:$0xf]
      %v1708 = vld [vmem:[%s12] sm:$0x1]
      %v1710 = vlaneseq
      %v1711 = vshrl.u32 %v1710, 7
      %v1712 = vsub.s32 0, %v1711
      %v1713 = vrot.slane %v1708, %v1712
      %v1723 = vunpack.c.l.b16 %v1700
      %v1724 = vunpack.c.l.b16 %v1701
      %v1725 = vunpack.c.l.b16 %v1702
      %v1726 = vunpack.c.l.b16 %v1703
      %v1727 = vunpack.c.l.b16 %v1704
      %v1728 = vunpack.c.l.b16 %v1705
      %v1729 = vunpack.c.l.b16 %v1706
      %v1730 = vunpack.c.l.b16 %v1707
      %v1731 = vpack.c.b16 %v1724, %v1723
      %v1732 = vpack.c.b16 %v1726, %v1725
      %v1733 = vpack.c.b16 %v1728, %v1727
      %v1734 = vpack.c.b16 %v1730, %v1729
      %v1740 = vsel %vm1484, %v1696, 0
      %v1743 = vsel %vm1484, %v1697, 0
      %v1746 = vsel %vm1484, %v1698, 0
      %v1749 = vsel %vm1484, %v1699, 0
      %1751 = vmatprep.subr.bf16.mxu0 0
      %1752 = vmatpush1.bf16.msra.mxu0 0
      %1753 = vmatprep.subr.bf16.mxu0 0
      %1754 = vmatpush1.bf16.msra.mxu0 0
      %1755 = vmatprep.subr.bf16.mxu0 0
      %1756 = vmatpush1.bf16.msra.mxu0 0
      %1757 = vmatprep.subr.bf16.mxu0 0
      %1758 = vmatpush1.bf16.msra.mxu0 0
      %1759 = vmatprep.subr.bf16.mxu0 0
      %1760 = vmatpush1.bf16.msra.mxu0 %v1734
      %1761 = vmatprep.subr.bf16.mxu0 0
      %1762 = vmatpush1.bf16.msra.mxu0 %v1733
      %1763 = vmatprep.subr.bf16.mxu0 0
      %1764 = vmatpush1.bf16.msra.mxu0 %v1732
      %1765 = vmatprep.subr.bf16.mxu0 0
      %1766 = vmatpush1.bf16.msra.mxu0 %v1731
      %1767 = vmatprep.subr.bf16.mxu0 0
      %1768 = vmatpush2.bf16.msra.mxu0 0
      %1769 = vmatprep.subr.bf16.mxu0 0
      %1770 = vmatpush2.bf16.msra.mxu0 0
      %1771 = vmatprep.subr.bf16.mxu0 0
      %1772 = vmatpush2.bf16.msra.mxu0 0
      %1773 = vmatprep.subr.bf16.mxu0 0
      %1774 = vmatpush2.bf16.msra.mxu0 0
      %1775 = vmatprep.subr.bf16.mxu0 0
      %1776 = vmatpush2.bf16.msra.mxu0 0
      %1777 = vmatprep.subr.bf16.mxu0 0
      %1778 = vmatpush2.bf16.msra.mxu0 0
      %1779 = vmatprep.subr.bf16.mxu0 0
      %1780 = vmatpush2.bf16.msra.mxu0 0
      %1781 = vmatprep.subr.bf16.mxu0 0
      %1782 = vmatpush2.bf16.msra.mxu0 0
      %1783 = vmatprep.mubr.bf16.mxu0 0
      %1784 = vmatmul.mubr.bf16.gmra.mxu0 %v1740
      %v1785 = vpop.f32.mrf.mxu0
      %v1786 = vadd.f32 %v1713, %v1785
      %v1787 = vpop.f32.mrf.mxu0
      %v1788 = vpop.f32.mrf.mxu0
      %v1789 = vadd.f32 %v1713, %v1788
      %v1790 = vpop.f32.mrf.mxu0
      %1791 = vmatprep.mubr.bf16.mxu0 0
      %1792 = vmatmul.mubr.bf16.gmra.mxu0 %v1743
      %v1793 = vpop.f32.mrf.mxu0
      %v1794 = vadd.f32 %v1713, %v1793
      %v1795 = vpop.f32.mrf.mxu0
      %v1796 = vpop.f32.mrf.mxu0
      %v1797 = vadd.f32 %v1713, %v1796
      %v1798 = vpop.f32.mrf.mxu0
      %1799 = vmatprep.mubr.bf16.mxu0 0
      %1800 = vmatmul.mubr.bf16.gmra.mxu0 %v1746
      %v1801 = vpop.f32.mrf.mxu0
      %v1802 = vadd.f32 %v1713, %v1801
      %v1803 = vpop.f32.mrf.mxu0
      %v1804 = vpop.f32.mrf.mxu0
      %v1805 = vadd.f32 %v1713, %v1804
      %v1806 = vpop.f32.mrf.mxu0
      %1807 = vmatprep.mubr.bf16.mxu0 0
      %1808 = vmatmul.mubr.bf16.gmra.mxu0 %v1749
      %v1809 = vpop.f32.mrf.mxu0
      %v1810 = vadd.f32 %v1713, %v1809
      %v1811 = vpop.f32.mrf.mxu0
      %v1812 = vpop.f32.mrf.mxu0
      %v1813 = vadd.f32 %v1713, %v1812
      %v1814 = vpop.f32.mrf.mxu0
      %1815 = vdwg.mxu0
      %1817 = vset.pattern.permute.xlu0 0
      %1818 = vperm.xlu0 %1817, %v528
      %v1819 = vpop.permute.xlu0 %1818
      %1822 = vset.pattern.permute.xlu0 0
      %1823 = vperm.xlu0 %1822, %v529
      %v1824 = vpop.permute.xlu0 %1823
      %1827 = vset.pattern.permute.xlu0 0
      %1828 = vperm.xlu0 %1827, %v530
      %v1829 = vpop.permute.xlu0 %1828
      %1832 = vset.pattern.permute.xlu0 0
      %1833 = vperm.xlu0 %1832, %v531
      %v1834 = vpop.permute.xlu0 %1833
      %1837 = vset.pattern.permute.xlu0 0
      %1838 = vperm.xlu0 %1837, %v532
      %v1839 = vpop.permute.xlu0 %1838
      %1842 = vset.pattern.permute.xlu0 0
      %1843 = vperm.xlu0 %1842, %v533
      %v1844 = vpop.permute.xlu0 %1843
      %1847 = vset.pattern.permute.xlu0 0
      %1848 = vperm.xlu0 %1847, %v534
      %v1849 = vpop.permute.xlu0 %1848
      %1852 = vset.pattern.permute.xlu0 0
      %1853 = vperm.xlu0 %1852, %v535
      %v1854 = vpop.permute.xlu0 %1853
      %v1856 = vmul.f32 %v1786, %v1819
      %v1857 = vmul.f32 %v1789, %v1824
      %v1858 = vmul.f32 %v1794, %v1829
      %v1859 = vmul.f32 %v1797, %v1834
      %v1860 = vmul.f32 %v1802, %v1839
      %v1861 = vmul.f32 %v1805, %v1844
      %v1862 = vmul.f32 %v1810, %v1849
      %v1863 = vmul.f32 %v1813, %v1854
      %v1864 = vsub.f32 %v536, %v935
      %v1865 = vsub.f32 %v537, %v936
      %v1866 = vsub.f32 %v538, %v937
      %v1867 = vsub.f32 %v539, %v938
      %v1868 = vsub.f32 %v540, %v939
      %v1869 = vsub.f32 %v541, %v940
      %v1870 = vsub.f32 %v542, %v941
      %v1871 = vsub.f32 %v543, %v942
      %v1872 = vsub.f32 %v1864, %v1856
      %v1873 = vsub.f32 %v1865, %v1857
      %v1874 = vsub.f32 %v1866, %v1858
      %v1875 = vsub.f32 %v1867, %v1859
      %v1876 = vsub.f32 %v1868, %v1860
      %v1877 = vsub.f32 %v1869, %v1861
      %v1878 = vsub.f32 %v1870, %v1862
      %v1879 = vsub.f32 %v1871, %v1863
      %v1880 = vmul.f32 %v1872, 0.5
      %v1881 = vmul.f32 %v1873, 0.5
      %v1882 = vmul.f32 %v1874, 0.5
      %v1883 = vmul.f32 %v1875, 0.5
      %v1884 = vmul.f32 %v1876, 0.5
      %v1885 = vmul.f32 %v1877, 0.5
      %v1886 = vmul.f32 %v1878, 0.5
      %v1887 = vmul.f32 %v1879, 0.5
      %s1888 = smul.f32 %s948, 0.25
      %v1889 = vstv %s1888
      %v1890 = vmul.f32 %v1880, %v1889
      %v1891 = vmul.f32 %v1881, %v1889
      %v1892 = vmul.f32 %v1882, %v1889
      %v1893 = vmul.f32 %v1883, %v1889
      %v1894 = vmul.f32 %v1884, %v1889
      %v1895 = vmul.f32 %v1885, %v1889
      %v1896 = vmul.f32 %v1886, %v1889
      %v1897 = vmul.f32 %v1887, %v1889
      %v1898 = vsub.f32 %v935, %v1890
      %v1899 = vsub.f32 %v936, %v1891
      %v1900 = vsub.f32 %v937, %v1892
      %v1901 = vsub.f32 %v938, %v1893
      %v1902 = vsub.f32 %v939, %v1894
      %v1903 = vsub.f32 %v940, %v1895
      %v1904 = vsub.f32 %v941, %v1896
      %v1905 = vsub.f32 %v942, %v1897
      %v1906 = vmul.f32 %v1898, %v1819
      %v1907 = vmul.f32 %v1899, %v1824
      %v1908 = vmul.f32 %v1900, %v1829
      %v1909 = vmul.f32 %v1901, %v1834
      %v1910 = vmul.f32 %v1902, %v1839
      %v1911 = vmul.f32 %v1903, %v1844
      %v1912 = vmul.f32 %v1904, %v1849
      %v1913 = vmul.f32 %v1905, %v1854
      %1914 = vst.msk [vmem:[#allocation2] sm:$0xff] %vm1178, %v1906
      %1915 = vst.msk [vmem:[#allocation2 + $0x8] sm:$0xff] %vm1178, %v1907
      %1916 = vst.msk [vmem:[#allocation2 + $0x10] sm:$0xff] %vm1178, %v1908
      %1917 = vst.msk [vmem:[#allocation2 + $0x18] sm:$0xff] %vm1178, %v1909
      %1918 = vst.msk [vmem:[#allocation2 + $0x20] sm:$0xff] %vm1178, %v1910
      %1919 = vst.msk [vmem:[#allocation2 + $0x28] sm:$0xff] %vm1178, %v1911
      %1920 = vst.msk [vmem:[#allocation2 + $0x30] sm:$0xff] %vm1178, %v1912
      %1921 = vst.msk [vmem:[#allocation2 + $0x38] sm:$0xff] %vm1178, %v1913
      %p1922 = scmp.eq.s32.totalorder %s29, 3
      // Predicated region
      $region77: #{stableform_tts_forward.11} parent=71 // pred_check
        %p1923 = pneg %p1922
      $region78: #{stableform_tts_forward.11} parent=71 // pred_check_branch
        %1925 = sbr.rel (%p1923) target = $region80
      $region79: #{stableform_tts_forward.11} parent=71 // pred_region
        %1926 = vst.msk [vmem:[%s526] sm:$0xff] %vm1178, %v1906
        %1927 = vst.msk [vmem:[%s526 + $0x8] sm:$0xff] %vm1178, %v1907
        %1928 = vst.msk [vmem:[%s526 + $0x10] sm:$0xff] %vm1178, %v1908
        %1929 = vst.msk [vmem:[%s526 + $0x18] sm:$0xff] %vm1178, %v1909
        %1930 = vst.msk [vmem:[%s526 + $0x20] sm:$0xff] %vm1178, %v1910
        %1931 = vst.msk [vmem:[%s526 + $0x28] sm:$0xff] %vm1178, %v1911
        %1932 = vst.msk [vmem:[%s526 + $0x30] sm:$0xff] %vm1178, %v1912
        %1933 = vst.msk [vmem:[%s526 + $0x38] sm:$0xff] %vm1178, %v1913
      $region80: #{stableform_tts_forward.11} parent=71 // pred_fallthru
        _
      %p1934 = scmp.lt.s32.totalorder %s28, 1
      %s1935 = scalar_select %p1934, %s28, 1
      %s1936 = smul.addr %s1935, 8
      %s1937 = smul.addr %s1936, 8
      %s1938 = scalar_lea.vmem %s13, %s1937
      // Predicated region
      $region81: #{stableform_tts_forward.11} parent=71 // pred_check
        %p1939 = pneg %p352
      $region82: #{stableform_tts_forward.11} parent=71 // pred_check_branch
        %1941 = sbr.rel (%p1939) target = $region84
      $region83: #{stableform_tts_forward.11} parent=71 // pred_region
        _
      $region84: #{stableform_tts_forward.11} parent=71 // pred_fallthru
        _
    $region72: #{stableform_tts_forward.11} parent=5 // pred_fallthru
      _
    %p1942 = scmp.le.s32.totalorder 2, %s19
    // Predicated region
    $region85: #{stableform_tts_forward.11} parent=5 // pred_check
      %p1943 = pneg %p1942
    $region86: #{stableform_tts_forward.11} parent=5 // pred_check_branch
      %1945 = sbr.rel (%p1943) target = $region88
    $region87: #{stableform_tts_forward.11} parent=5 // pred_region
      %s1946 = ssub.s32 %s19, 2
      // Predicated region
      $region89: #{stableform_tts_forward.11} parent=87 // pred_check
        %p1947 = pneg %p358
      $region90: #{stableform_tts_forward.11} parent=87 // pred_check_branch
        %1949 = sbr.rel (%p1947) target = $region92
      $region91: #{stableform_tts_forward.11} parent=87 // pred_region
        %p1950 = scmp.lt.s32.totalorder %s30, 1
        %s1951 = scalar_select %p1950, %s30, 1
        %s1952 = smul.addr %s1951, 8
        %s1953 = smul.addr %s1952, 8
        %s1954 = scalar_lea.vmem %s13, %s1953
      $region92: #{stableform_tts_forward.11} parent=87 // pred_fallthru
        _
    $region88: #{stableform_tts_forward.11} parent=5 // pred_fallthru
      _
  $region6: #{stableform_tts_forward.11} parent=0 // loop_footer
    %s23 = sadd.s32 1, %s19
  $region7: #{stableform_tts_forward.11} parent=0 // loop_footer_branch
    %18 = sbr.rel target = $region3
  $region8: #{stableform_tts_forward.11} parent=0 // loop_exit
    _

// kernel: stableform_tts_forward.10
$region0: #{stableform_tts_forward.10}
  #allocation0 [shape = 'u32[]', space=smem, size = 0x4, offset = 0x4, fixed_abs, tag = 'smem constant byte address 0x4 - core index']
  #allocation1 [shape = 'u32[144,128]{1,0:T(1,128)}', space=vmem, size = 0x12000, scoped, tag = 'internal scratch']
  #allocation2 [shape = 'f32[64,32]{1,0:T(8,128)}', space=vmem, size = 0x8000, scoped, tag = 'scratch operand']
  %s0 = inlined_call_operand.vmem [shape: bf16[2,64,32], index: 0, kind: input, shape index: {}]
  %s1 = inlined_call_operand.vmem [shape: f32[2,1,64], index: 1, kind: input, shape index: {}]
  %s2 = inlined_call_operand.vmem [shape: f32[2,64,1], index: 2, kind: input, shape index: {}]
  %s3 = inlined_call_operand.vmem [shape: f32[2,2,4,32], index: 3, kind: input, shape index: {}]
  %s4 = inlined_call_operand.vmem [shape: bf16[2,32,96], index: 4, kind: input, shape index: {}]
  %s5 = inlined_call_operand.vmem [shape: f32[2,1,96], index: 5, kind: input, shape index: {}]
  %s6 = inlined_call_operand.vmem [shape: bf16[2,32,32], index: 6, kind: input, shape index: {}]
  %s7 = inlined_call_operand.vmem [shape: f32[2,1,32], index: 7, kind: input, shape index: {}]
  %s8 = inlined_call_operand.vmem [shape: bf16[2,32,192], index: 8, kind: input, shape index: {}]
  %s9 = inlined_call_operand.vmem [shape: f32[2,1,64], index: 9, kind: input, shape index: {}]
  %s10 = inlined_call_operand.vmem [shape: bf16[2,64,96], index: 10, kind: input, shape index: {}]
  %s11 = inlined_call_operand.vmem [shape: f32[2,1,32], index: 11, kind: input, shape index: {}]
  %s12 = inlined_call_operand.vmem [shape: bf16[2,64,32], index: 12, kind: output, shape index: {}]
  %s13 = sld [smem:[#allocation0]]
  $region89: #{stableform_tts_forward.10} parent=0
    _
  %s15 = ssub.s32 1, %s13
  %s16 = scalar_select 0, %s15, %s13
  loop: start=0, step=1, limit=6
  $region2: #{stableform_tts_forward.10} parent=0 // loop_pre_header
    _
  $region3: #{stableform_tts_forward.10} parent=0 // loop_header
    %s18 = sphi 0, %s22
    %p19 = scmp.ge.s32.totalorder %s18, 6
    %s25 = sphi 0, %s37
    %s26 = sphi 0, %s33
    %s27 = sphi 0, %s25
    %s28 = sphi 0, %s26
    %s29 = sphi 0, %s27
    %s30 = sphi 0, %s28
    %s40 = sphi 0, %s42
    %s43 = sphi 0, %s40
    %s44 = sphi 0, %s43
    %s60 = sphi 0, %s44
    %s66 = sphi 0, %s68
    %s69 = sphi 0, %s66
    %s70 = sphi 0, %s69
    %s86 = sphi 0, %s70
    %s92 = sphi 0, %s94
    %s95 = sphi 0, %s92
    %s96 = sphi 0, %s95
    %s112 = sphi 0, %s96
    %s120 = sphi 0, %s122
    %s123 = sphi 0, %s120
    %s124 = sphi 0, %s123
    %s140 = sphi 0, %s124
    %s146 = sphi 0, %s148
    %s149 = sphi 0, %s146
    %s150 = sphi 0, %s149
    %s166 = sphi 0, %s150
    %s172 = sphi 0, %s174
    %s175 = sphi 0, %s172
    %s176 = sphi 0, %s175
    %s192 = sphi 0, %s176
    %s198 = sphi 0, %s200
    %s201 = sphi 0, %s198
    %s202 = sphi 0, %s201
    %s218 = sphi 0, %s202
    %s224 = sphi 0, %s226
    %s227 = sphi 0, %s224
    %s228 = sphi 0, %s227
    %s244 = sphi 0, %s228
    %s250 = sphi 0, %s252
    %s253 = sphi 0, %s250
    %s254 = sphi 0, %s253
    %s270 = sphi 0, %s254
    %s276 = sphi 0, %s278
    %s279 = sphi 0, %s276
    %s280 = sphi 0, %s279
    %s296 = sphi 0, %s280
    %s302 = sphi 0, %s304
    %s305 = sphi 0, %s302
    %s306 = sphi 0, %s305
    %s322 = sphi 0, %s306
    %s328 = sphi 0, %s330
    %s331 = sphi 0, %s328
    %s332 = sphi 0, %s331
    %s348 = sphi 0, %s332
    %s354 = sphi 0, %s356
    %s357 = sphi 0, %s354
    %s358 = sphi 0, %s357
    %s374 = sphi 0, %s358
  $region4: #{stableform_tts_forward.10} parent=0 // loop_header_branch
    %21 = sbr.rel (%p19) target = $region8
  $region5: #{stableform_tts_forward.10} parent=0 // loop_body
    %s23 = ssub.s32 %s18, 1
    %s24 = ssub.s32 %s18, 2
    %s31 = sadd.s32 1, %s26
    %p32 = scmp.ge.s32.totalorder %s31, 2
    %s33 = scalar_select %p32, 0, %s31
    %s34 = sadd.s32 1, %s25
    %s35 = scalar_select %p32, %s34, %s25
    %p36 = scmp.ge.s32.totalorder %s35, 2
    %s37 = scalar_select %p36, 0, %s35
    %s38 = ssub.s32 %s25, %s37
    %p39 = scmp.eq.s32.totalorder %s38, 0
    %s41 = sadd.s32 %s40, 1
    %s42 = scalar_select %p39, %s40, %s41
    %p45 = pneg %p39
    %p46 = scmp.eq.s32.totalorder %s18, 3
    %p47 = por %p45, %p46
    %p48 = scmp.ne.s32.totalorder %s40, %s43
    %p49 = scmp.eq.s32.totalorder %s18, 0
    %p50 = por %p48, %p49
    %p51 = scmp.ne.s32.totalorder %s40, %s43
    %p52 = scmp.eq.s32.totalorder %s23, 3
    %p53 = por %p51, %p52
    %p54 = scmp.ne.s32.totalorder %s43, %s44
    %p55 = scmp.eq.s32.totalorder %s23, 0
    %p56 = por %p54, %p55
    %p57 = scmp.ne.s32.totalorder %s43, %s44
    %p58 = scmp.eq.s32.totalorder %s24, 3
    %p59 = por %p57, %p58
    %p61 = scmp.ne.s32.totalorder %s44, %s60
    %p62 = scmp.eq.s32.totalorder %s24, 0
    %p63 = por %p61, %p62
    %s64 = ssub.s32 %s25, %s37
    %p65 = scmp.eq.s32.totalorder %s64, 0
    %s67 = sadd.s32 %s66, 1
    %s68 = scalar_select %p65, %s66, %s67
    %p71 = pneg %p65
    %p72 = scmp.eq.s32.totalorder %s18, 3
    %p73 = por %p71, %p72
    %p74 = scmp.ne.s32.totalorder %s66, %s69
    %p75 = scmp.eq.s32.totalorder %s18, 0
    %p76 = por %p74, %p75
    %p77 = scmp.ne.s32.totalorder %s66, %s69
    %p78 = scmp.eq.s32.totalorder %s23, 3
    %p79 = por %p77, %p78
    %p80 = scmp.ne.s32.totalorder %s69, %s70
    %p81 = scmp.eq.s32.totalorder %s23, 0
    %p82 = por %p80, %p81
    %p83 = scmp.ne.s32.totalorder %s69, %s70
    %p84 = scmp.eq.s32.totalorder %s24, 3
    %p85 = por %p83, %p84
    %p87 = scmp.ne.s32.totalorder %s70, %s86
    %p88 = scmp.eq.s32.totalorder %s24, 0
    %p89 = por %p87, %p88
    %s90 = ssub.s32 %s25, %s37
    %p91 = scmp.eq.s32.totalorder %s90, 0
    %s93 = sadd.s32 %s92, 1
    %s94 = scalar_select %p91, %s92, %s93
    %p97 = pneg %p91
    %p98 = scmp.eq.s32.totalorder %s18, 3
    %p99 = por %p97, %p98
    %p100 = scmp.ne.s32.totalorder %s92, %s95
    %p101 = scmp.eq.s32.totalorder %s18, 0
    %p102 = por %p100, %p101
    %p103 = scmp.ne.s32.totalorder %s92, %s95
    %p104 = scmp.eq.s32.totalorder %s23, 3
    %p105 = por %p103, %p104
    %p106 = scmp.ne.s32.totalorder %s95, %s96
    %p107 = scmp.eq.s32.totalorder %s23, 0
    %p108 = por %p106, %p107
    %p109 = scmp.ne.s32.totalorder %s95, %s96
    %p110 = scmp.eq.s32.totalorder %s24, 3
    %p111 = por %p109, %p110
    %p113 = scmp.ne.s32.totalorder %s96, %s112
    %p114 = scmp.eq.s32.totalorder %s24, 0
    %p115 = por %p113, %p114
    %s116 = ssub.s32 %s25, %s37
    %s117 = ssub.s32 %s26, %s33
    %s118 = sor.u32 %s116, %s117
    %p119 = scmp.eq.s32.totalorder %s118, 0
    %s121 = sadd.s32 %s120, 1
    %s122 = scalar_select %p119, %s120, %s121
    %p125 = pneg %p119
    %p126 = scmp.eq.s32.totalorder %s18, 3
    %p127 = por %p125, %p126
    %p128 = scmp.ne.s32.totalorder %s120, %s123
    %p129 = scmp.eq.s32.totalorder %s18, 0
    %p130 = por %p128, %p129
    %p131 = scmp.ne.s32.totalorder %s120, %s123
    %p132 = scmp.eq.s32.totalorder %s23, 3
    %p133 = por %p131, %p132
    %p134 = scmp.ne.s32.totalorder %s123, %s124
    %p135 = scmp.eq.s32.totalorder %s23, 0
    %p136 = por %p134, %p135
    %p137 = scmp.ne.s32.totalorder %s123, %s124
    %p138 = scmp.eq.s32.totalorder %s24, 3
    %p139 = por %p137, %p138
    %p141 = scmp.ne.s32.totalorder %s124, %s140
    %p142 = scmp.eq.s32.totalorder %s24, 0
    %p143 = por %p141, %p142
    %s144 = ssub.s32 %s26, %s33
    %p145 = scmp.eq.s32.totalorder %s144, 0
    %s147 = sadd.s32 %s146, 1
    %s148 = scalar_select %p145, %s146, %s147
    %p151 = pneg %p145
    %p152 = scmp.eq.s32.totalorder %s18, 3
    %p153 = por %p151, %p152
    %p154 = scmp.ne.s32.totalorder %s146, %s149
    %p155 = scmp.eq.s32.totalorder %s18, 0
    %p156 = por %p154, %p155
    %p157 = scmp.ne.s32.totalorder %s146, %s149
    %p158 = scmp.eq.s32.totalorder %s23, 3
    %p159 = por %p157, %p158
    %p160 = scmp.ne.s32.totalorder %s149, %s150
    %p161 = scmp.eq.s32.totalorder %s23, 0
    %p162 = por %p160, %p161
    %p163 = scmp.ne.s32.totalorder %s149, %s150
    %p164 = scmp.eq.s32.totalorder %s24, 3
    %p165 = por %p163, %p164
    %p167 = scmp.ne.s32.totalorder %s150, %s166
    %p168 = scmp.eq.s32.totalorder %s24, 0
    %p169 = por %p167, %p168
    %s170 = ssub.s32 %s26, %s33
    %p171 = scmp.eq.s32.totalorder %s170, 0
    %s173 = sadd.s32 %s172, 1
    %s174 = scalar_select %p171, %s172, %s173
    %p177 = pneg %p171
    %p178 = scmp.eq.s32.totalorder %s18, 3
    %p179 = por %p177, %p178
    %p180 = scmp.ne.s32.totalorder %s172, %s175
    %p181 = scmp.eq.s32.totalorder %s18, 0
    %p182 = por %p180, %p181
    %p183 = scmp.ne.s32.totalorder %s172, %s175
    %p184 = scmp.eq.s32.totalorder %s23, 3
    %p185 = por %p183, %p184
    %p186 = scmp.ne.s32.totalorder %s175, %s176
    %p187 = scmp.eq.s32.totalorder %s23, 0
    %p188 = por %p186, %p187
    %p189 = scmp.ne.s32.totalorder %s175, %s176
    %p190 = scmp.eq.s32.totalorder %s24, 3
    %p191 = por %p189, %p190
    %p193 = scmp.ne.s32.totalorder %s176, %s192
    %p194 = scmp.eq.s32.totalorder %s24, 0
    %p195 = por %p193, %p194
    %s196 = ssub.s32 %s26, %s33
    %p197 = scmp.eq.s32.totalorder %s196, 0
    %s199 = sadd.s32 %s198, 1
    %s200 = scalar_select %p197, %s198, %s199
    %p203 = pneg %p197
    %p204 = scmp.eq.s32.totalorder %s18, 3
    %p205 = por %p203, %p204
    %p206 = scmp.ne.s32.totalorder %s198, %s201
    %p207 = scmp.eq.s32.totalorder %s18, 0
    %p208 = por %p206, %p207
    %p209 = scmp.ne.s32.totalorder %s198, %s201
    %p210 = scmp.eq.s32.totalorder %s23, 3
    %p211 = por %p209, %p210
    %p212 = scmp.ne.s32.totalorder %s201, %s202
    %p213 = scmp.eq.s32.totalorder %s23, 0
    %p214 = por %p212, %p213
    %p215 = scmp.ne.s32.totalorder %s201, %s202
    %p216 = scmp.eq.s32.totalorder %s24, 3
    %p217 = por %p215, %p216
    %p219 = scmp.ne.s32.totalorder %s202, %s218
    %p220 = scmp.eq.s32.totalorder %s24, 0
    %p221 = por %p219, %p220
    %s222 = ssub.s32 %s26, %s33
    %p223 = scmp.eq.s32.totalorder %s222, 0
    %s225 = sadd.s32 %s224, 1
    %s226 = scalar_select %p223, %s224, %s225
    %p229 = pneg %p223
    %p230 = scmp.eq.s32.totalorder %s18, 3
    %p231 = por %p229, %p230
    %p232 = scmp.ne.s32.totalorder %s224, %s227
    %p233 = scmp.eq.s32.totalorder %s18, 0
    %p234 = por %p232, %p233
    %p235 = scmp.ne.s32.totalorder %s224, %s227
    %p236 = scmp.eq.s32.totalorder %s23, 3
    %p237 = por %p235, %p236
    %p238 = scmp.ne.s32.totalorder %s227, %s228
    %p239 = scmp.eq.s32.totalorder %s23, 0
    %p240 = por %p238, %p239
    %p241 = scmp.ne.s32.totalorder %s227, %s228
    %p242 = scmp.eq.s32.totalorder %s24, 3
    %p243 = por %p241, %p242
    %p245 = scmp.ne.s32.totalorder %s228, %s244
    %p246 = scmp.eq.s32.totalorder %s24, 0
    %p247 = por %p245, %p246
    %s248 = ssub.s32 %s26, %s33
    %p249 = scmp.eq.s32.totalorder %s248, 0
    %s251 = sadd.s32 %s250, 1
    %s252 = scalar_select %p249, %s250, %s251
    %p255 = pneg %p249
    %p256 = scmp.eq.s32.totalorder %s18, 3
    %p257 = por %p255, %p256
    %p258 = scmp.ne.s32.totalorder %s250, %s253
    %p259 = scmp.eq.s32.totalorder %s18, 0
    %p260 = por %p258, %p259
    %p261 = scmp.ne.s32.totalorder %s250, %s253
    %p262 = scmp.eq.s32.totalorder %s23, 3
    %p263 = por %p261, %p262
    %p264 = scmp.ne.s32.totalorder %s253, %s254
    %p265 = scmp.eq.s32.totalorder %s23, 0
    %p266 = por %p264, %p265
    %p267 = scmp.ne.s32.totalorder %s253, %s254
    %p268 = scmp.eq.s32.totalorder %s24, 3
    %p269 = por %p267, %p268
    %p271 = scmp.ne.s32.totalorder %s254, %s270
    %p272 = scmp.eq.s32.totalorder %s24, 0
    %p273 = por %p271, %p272
    %s274 = ssub.s32 %s26, %s33
    %p275 = scmp.eq.s32.totalorder %s274, 0
    %s277 = sadd.s32 %s276, 1
    %s278 = scalar_select %p275, %s276, %s277
    %p281 = pneg %p275
    %p282 = scmp.eq.s32.totalorder %s18, 3
    %p283 = por %p281, %p282
    %p284 = scmp.ne.s32.totalorder %s276, %s279
    %p285 = scmp.eq.s32.totalorder %s18, 0
    %p286 = por %p284, %p285
    %p287 = scmp.ne.s32.totalorder %s276, %s279
    %p288 = scmp.eq.s32.totalorder %s23, 3
    %p289 = por %p287, %p288
    %p290 = scmp.ne.s32.totalorder %s279, %s280
    %p291 = scmp.eq.s32.totalorder %s23, 0
    %p292 = por %p290, %p291
    %p293 = scmp.ne.s32.totalorder %s279, %s280
    %p294 = scmp.eq.s32.totalorder %s24, 3
    %p295 = por %p293, %p294
    %p297 = scmp.ne.s32.totalorder %s280, %s296
    %p298 = scmp.eq.s32.totalorder %s24, 0
    %p299 = por %p297, %p298
    %s300 = ssub.s32 %s26, %s33
    %p301 = scmp.eq.s32.totalorder %s300, 0
    %s303 = sadd.s32 %s302, 1
    %s304 = scalar_select %p301, %s302, %s303
    %p307 = pneg %p301
    %p308 = scmp.eq.s32.totalorder %s18, 3
    %p309 = por %p307, %p308
    %p310 = scmp.ne.s32.totalorder %s302, %s305
    %p311 = scmp.eq.s32.totalorder %s18, 0
    %p312 = por %p310, %p311
    %p313 = scmp.ne.s32.totalorder %s302, %s305
    %p314 = scmp.eq.s32.totalorder %s23, 3
    %p315 = por %p313, %p314
    %p316 = scmp.ne.s32.totalorder %s305, %s306
    %p317 = scmp.eq.s32.totalorder %s23, 0
    %p318 = por %p316, %p317
    %p319 = scmp.ne.s32.totalorder %s305, %s306
    %p320 = scmp.eq.s32.totalorder %s24, 3
    %p321 = por %p319, %p320
    %p323 = scmp.ne.s32.totalorder %s306, %s322
    %p324 = scmp.eq.s32.totalorder %s24, 0
    %p325 = por %p323, %p324
    %s326 = ssub.s32 %s26, %s33
    %p327 = scmp.eq.s32.totalorder %s326, 0
    %s329 = sadd.s32 %s328, 1
    %s330 = scalar_select %p327, %s328, %s329
    %p333 = pneg %p327
    %p334 = scmp.eq.s32.totalorder %s18, 3
    %p335 = por %p333, %p334
    %p336 = scmp.ne.s32.totalorder %s328, %s331
    %p337 = scmp.eq.s32.totalorder %s18, 0
    %p338 = por %p336, %p337
    %p339 = scmp.ne.s32.totalorder %s328, %s331
    %p340 = scmp.eq.s32.totalorder %s23, 3
    %p341 = por %p339, %p340
    %p342 = scmp.ne.s32.totalorder %s331, %s332
    %p343 = scmp.eq.s32.totalorder %s23, 0
    %p344 = por %p342, %p343
    %p345 = scmp.ne.s32.totalorder %s331, %s332
    %p346 = scmp.eq.s32.totalorder %s24, 3
    %p347 = por %p345, %p346
    %p349 = scmp.ne.s32.totalorder %s332, %s348
    %p350 = scmp.eq.s32.totalorder %s24, 0
    %p351 = por %p349, %p350
    %s352 = ssub.s32 %s25, %s37
    %p353 = scmp.eq.s32.totalorder %s352, 0
    %s355 = sadd.s32 %s354, 1
    %s356 = scalar_select %p353, %s354, %s355
    %p359 = pneg %p353
    %p360 = scmp.eq.s32.totalorder %s18, 3
    %p361 = por %p359, %p360
    %p362 = scmp.ne.s32.totalorder %s354, %s357
    %p363 = scmp.eq.s32.totalorder %s18, 0
    %p364 = por %p362, %p363
    %p365 = scmp.ne.s32.totalorder %s354, %s357
    %p366 = scmp.eq.s32.totalorder %s23, 3
    %p367 = por %p365, %p366
    %p368 = scmp.ne.s32.totalorder %s357, %s358
    %p369 = scmp.eq.s32.totalorder %s23, 0
    %p370 = por %p368, %p369
    %p371 = scmp.ne.s32.totalorder %s357, %s358
    %p372 = scmp.eq.s32.totalorder %s24, 3
    %p373 = por %p371, %p372
    %p375 = scmp.ne.s32.totalorder %s358, %s374
    %p376 = scmp.eq.s32.totalorder %s24, 0
    %p377 = por %p375, %p376
    %p378 = scmp.le.s32.totalorder 1, %s18
    %p379 = scmp.lt.s32.totalorder %s18, 5
    %p380 = pnand %p378, %p379
    %p381 = pneg %p380
    // Predicated region
    $region9: #{stableform_tts_forward.10} parent=5 // pred_check
      _
    $region10: #{stableform_tts_forward.10} parent=5 // pred_check_branch
      %383 = sbr.rel (%p380) target = $region12
    $region11: #{stableform_tts_forward.10} parent=5 // pred_region
      %s384 = ssub.s32 %s18, 1
    $region12: #{stableform_tts_forward.10} parent=5 // pred_fallthru
      _
    %p385 = scmp.lt.s32.totalorder %s18, 4
    // Predicated region
    $region13: #{stableform_tts_forward.10} parent=5 // pred_check
      %p386 = pneg %p385
    $region14: #{stableform_tts_forward.10} parent=5 // pred_check_branch
      %388 = sbr.rel (%p386) target = $region16
    $region15: #{stableform_tts_forward.10} parent=5 // pred_region
      // Predicated region
      $region17: #{stableform_tts_forward.10} parent=15 // pred_check
        %p389 = pneg %p50
      $region18: #{stableform_tts_forward.10} parent=15 // pred_check_branch
        %391 = sbr.rel (%p389) target = $region20
      $region19: #{stableform_tts_forward.10} parent=15 // pred_region
        %p392 = scmp.lt.s32.totalorder %s25, 1
        %s393 = scalar_select %p392, %s25, 1
        %s394 = smul.addr %s393, 8
        %s395 = smul.addr %s394, 4
        %s396 = scalar_lea.vmem %s0, %s395
      $region20: #{stableform_tts_forward.10} parent=15 // pred_fallthru
        _
      // Predicated region
      $region21: #{stableform_tts_forward.10} parent=15 // pred_check
        %p397 = pneg %p76
      $region22: #{stableform_tts_forward.10} parent=15 // pred_check_branch
        %399 = sbr.rel (%p397) target = $region24
      $region23: #{stableform_tts_forward.10} parent=15 // pred_region
        %p400 = scmp.lt.s32.totalorder %s25, 1
        %s401 = scalar_select %p400, %s25, 1
        %s402 = scalar_lea.vmem %s1, %s401
      $region24: #{stableform_tts_forward.10} parent=15 // pred_fallthru
        _
      // Predicated region
      $region25: #{stableform_tts_forward.10} parent=15 // pred_check
        %p403 = pneg %p102
      $region26: #{stableform_tts_forward.10} parent=15 // pred_check_branch
        %405 = sbr.rel (%p403) target = $region28
      $region27: #{stableform_tts_forward.10} parent=15 // pred_region
        %p406 = scmp.lt.s32.totalorder %s25, 1
        %s407 = scalar_select %p406, %s25, 1
        %s408 = smul.addr %s407, 8
        %s409 = smul.addr %s408, 8
        %s410 = scalar_lea.vmem %s2, %s409
      $region28: #{stableform_tts_forward.10} parent=15 // pred_fallthru
        _
      // Predicated region
      $region29: #{stableform_tts_forward.10} parent=15 // pred_check
        %p411 = pneg %p130
      $region30: #{stableform_tts_forward.10} parent=15 // pred_check_branch
        %413 = sbr.rel (%p411) target = $region32
      $region31: #{stableform_tts_forward.10} parent=15 // pred_region
        %p414 = scmp.lt.s32.totalorder %s25, 1
        %s415 = scalar_select %p414, %s25, 1
        %p416 = scmp.lt.s32.totalorder %s26, 1
        %s417 = scalar_select %p416, %s26, 1
        %s418 = smul.addr %s415, 2
        %s419 = sadd.s32 %s417, %s418
        %s420 = smul.addr %s419, 4
        %s421 = scalar_lea.vmem %s3, %s420
      $region32: #{stableform_tts_forward.10} parent=15 // pred_fallthru
        _
      // Predicated region
      $region33: #{stableform_tts_forward.10} parent=15 // pred_check
        %p422 = pneg %p156
      $region34: #{stableform_tts_forward.10} parent=15 // pred_check_branch
        %424 = sbr.rel (%p422) target = $region36
      $region35: #{stableform_tts_forward.10} parent=15 // pred_region
        %p425 = scmp.lt.s32.totalorder %s26, 1
        %s426 = scalar_select %p425, %s26, 1
        %s427 = smul.addr %s426, 4
        %s428 = smul.addr %s427, 4
        %s429 = scalar_lea.vmem %s4, %s428
      $region36: #{stableform_tts_forward.10} parent=15 // pred_fallthru
        _
      // Predicated region
      $region37: #{stableform_tts_forward.10} parent=15 // pred_check
        %p430 = pneg %p182
      $region38: #{stableform_tts_forward.10} parent=15 // pred_check_branch
        %432 = sbr.rel (%p430) target = $region40
      $region39: #{stableform_tts_forward.10} parent=15 // pred_region
        %p433 = scmp.lt.s32.totalorder %s26, 1
        %s434 = scalar_select %p433, %s26, 1
        %s435 = scalar_lea.vmem %s5, %s434
      $region40: #{stableform_tts_forward.10} parent=15 // pred_fallthru
        _
      // Predicated region
      $region41: #{stableform_tts_forward.10} parent=15 // pred_check
        %p436 = pneg %p208
      $region42: #{stableform_tts_forward.10} parent=15 // pred_check_branch
        %438 = sbr.rel (%p436) target = $region44
      $region43: #{stableform_tts_forward.10} parent=15 // pred_region
        %p439 = scmp.lt.s32.totalorder %s26, 1
        %s440 = scalar_select %p439, %s26, 1
        %s441 = smul.addr %s440, 4
        %s442 = smul.addr %s441, 4
        %s443 = scalar_lea.vmem %s6, %s442
      $region44: #{stableform_tts_forward.10} parent=15 // pred_fallthru
        _
      // Predicated region
      $region45: #{stableform_tts_forward.10} parent=15 // pred_check
        %p444 = pneg %p234
      $region46: #{stableform_tts_forward.10} parent=15 // pred_check_branch
        %446 = sbr.rel (%p444) target = $region48
      $region47: #{stableform_tts_forward.10} parent=15 // pred_region
        %p447 = scmp.lt.s32.totalorder %s26, 1
        %s448 = scalar_select %p447, %s26, 1
        %s449 = scalar_lea.vmem %s7, %s448
      $region48: #{stableform_tts_forward.10} parent=15 // pred_fallthru
        _
      // Predicated region
      $region49: #{stableform_tts_forward.10} parent=15 // pred_check
        %p450 = pneg %p260
      $region50: #{stableform_tts_forward.10} parent=15 // pred_check_branch
        %452 = sbr.rel (%p450) target = $region52
      $region51: #{stableform_tts_forward.10} parent=15 // pred_region
        %p453 = scmp.lt.s32.totalorder %s26, 1
        %s454 = scalar_select %p453, %s26, 1
        %s455 = smul.addr %s454, 8
        %s456 = smul.addr %s455, 4
        %s457 = scalar_lea.vmem %s8, %s456
      $region52: #{stableform_tts_forward.10} parent=15 // pred_fallthru
        _
      // Predicated region
      $region53: #{stableform_tts_forward.10} parent=15 // pred_check
        %p458 = pneg %p286
      $region54: #{stableform_tts_forward.10} parent=15 // pred_check_branch
        %460 = sbr.rel (%p458) target = $region56
      $region55: #{stableform_tts_forward.10} parent=15 // pred_region
        %p461 = scmp.lt.s32.totalorder %s26, 1
        %s462 = scalar_select %p461, %s26, 1
        %s463 = scalar_lea.vmem %s9, %s462
      $region56: #{stableform_tts_forward.10} parent=15 // pred_fallthru
        _
      // Predicated region
      $region57: #{stableform_tts_forward.10} parent=15 // pred_check
        %p464 = pneg %p312
      $region58: #{stableform_tts_forward.10} parent=15 // pred_check_branch
        %466 = sbr.rel (%p464) target = $region60
      $region59: #{stableform_tts_forward.10} parent=15 // pred_region
        %p467 = scmp.lt.s32.totalorder %s26, 1
        %s468 = scalar_select %p467, %s26, 1
        %s469 = smul.addr %s468, 8
        %s470 = smul.addr %s469, 4
        %s471 = scalar_lea.vmem %s10, %s470
      $region60: #{stableform_tts_forward.10} parent=15 // pred_fallthru
        _
      // Predicated region
      $region61: #{stableform_tts_forward.10} parent=15 // pred_check
        %p472 = pneg %p338
      $region62: #{stableform_tts_forward.10} parent=15 // pred_check_branch
        %474 = sbr.rel (%p472) target = $region64
      $region63: #{stableform_tts_forward.10} parent=15 // pred_region
        %p475 = scmp.lt.s32.totalorder %s26, 1
        %s476 = scalar_select %p475, %s26, 1
        %s477 = scalar_lea.vmem %s11, %s476
      $region64: #{stableform_tts_forward.10} parent=15 // pred_fallthru
        _
    $region16: #{stableform_tts_forward.10} parent=5 // pred_fallthru
      _
    %p478 = scmp.le.s32.totalorder 1, %s18
    %p479 = scmp.lt.s32.totalorder %s18, 5
    %p480 = pnand %p478, %p479
    %p481 = pneg %p480
    // Predicated region
    $region65: #{stableform_tts_forward.10} parent=5 // pred_check
      _
    $region66: #{stableform_tts_forward.10} parent=5 // pred_check_branch
      %483 = sbr.rel (%p480) target = $region68
    $region67: #{stableform_tts_forward.10} parent=5 // pred_region
      %s484 = ssub.s32 %s18, 1
      %p485 = scmp.lt.s32.totalorder %s27, 1
      %s486 = scalar_select %p485, %s27, 1
      %s487 = smul.addr %s486, 8
      %s488 = smul.addr %s487, 4
      %s489 = scalar_lea.vmem %s0, %s488
      %p490 = pneg %p56
      %p491 = pneg %p53
      %p492 = scmp.lt.s32.totalorder %s27, 1
      %s493 = scalar_select %p492, %s27, 1
      %s494 = scalar_lea.vmem %s1, %s493
      %p495 = pneg %p82
      %p496 = pneg %p79
      %p497 = scmp.lt.s32.totalorder %s27, 1
      %s498 = scalar_select %p497, %s27, 1
      %s499 = smul.addr %s498, 8
      %s500 = smul.addr %s499, 8
      %s501 = scalar_lea.vmem %s2, %s500
      %p502 = pneg %p108
      %p503 = pneg %p105
      %p504 = scmp.lt.s32.totalorder %s27, 1
      %s505 = scalar_select %p504, %s27, 1
      %p506 = scmp.lt.s32.totalorder %s28, 1
      %s507 = scalar_select %p506, %s28, 1
      %s508 = smul.addr %s505, 2
      %s509 = sadd.s32 %s507, %s508
      %s510 = smul.addr %s509, 4
      %s511 = scalar_lea.vmem %s3, %s510
      %p512 = pneg %p136
      %p513 = pneg %p133
      %p514 = scmp.lt.s32.totalorder %s28, 1
      %s515 = scalar_select %p514, %s28, 1
      %s516 = smul.addr %s515, 4
      %s517 = smul.addr %s516, 4
      %s518 = scalar_lea.vmem %s4, %s517
      %p519 = pneg %p162
      %p520 = pneg %p159
      %p521 = scmp.lt.s32.totalorder %s28, 1
      %s522 = scalar_select %p521, %s28, 1
      %s523 = scalar_lea.vmem %s5, %s522
      %p524 = pneg %p188
      %p525 = pneg %p185
      %p526 = scmp.lt.s32.totalorder %s28, 1
      %s527 = scalar_select %p526, %s28, 1
      %s528 = smul.addr %s527, 4
      %s529 = smul.addr %s528, 4
      %s530 = scalar_lea.vmem %s6, %s529
      %p531 = pneg %p214
      %p532 = pneg %p211
      %p533 = scmp.lt.s32.totalorder %s28, 1
      %s534 = scalar_select %p533, %s28, 1
      %s535 = scalar_lea.vmem %s7, %s534
      %p536 = pneg %p240
      %p537 = pneg %p237
      %p538 = scmp.lt.s32.totalorder %s28, 1
      %s539 = scalar_select %p538, %s28, 1
      %s540 = smul.addr %s539, 8
      %s541 = smul.addr %s540, 4
      %s542 = scalar_lea.vmem %s8, %s541
      %p543 = pneg %p266
      %p544 = pneg %p263
      %p545 = scmp.lt.s32.totalorder %s28, 1
      %s546 = scalar_select %p545, %s28, 1
      %s547 = scalar_lea.vmem %s9, %s546
      %p548 = pneg %p292
      %p549 = pneg %p289
      %p550 = scmp.lt.s32.totalorder %s28, 1
      %s551 = scalar_select %p550, %s28, 1
      %s552 = smul.addr %s551, 8
      %s553 = smul.addr %s552, 4
      %s554 = scalar_lea.vmem %s10, %s553
      %p555 = pneg %p318
      %p556 = pneg %p315
      %p557 = scmp.lt.s32.totalorder %s28, 1
      %s558 = scalar_select %p557, %s28, 1
      %s559 = scalar_lea.vmem %s11, %s558
      %p560 = pneg %p344
      %p561 = pneg %p341
      %p562 = pneg %p370
      %p563 = pneg %p367
      %p564 = scmp.lt.s32.totalorder %s27, 1
      %s565 = scalar_select %p564, %s27, 1
      %s566 = smul.addr %s565, 8
      %s567 = smul.addr %s566, 4
      %s568 = scalar_lea.vmem %s12, %s567
      %p569 = scmp.lt.s32.totalorder %s27, 1
      %s570 = scalar_select %p569, %s27, 1
      %s571 = smul.addr %s570, 8
      %s572 = smul.addr %s571, 4
      %s573 = scalar_lea.vmem %s0, %s572
      %p574 = scmp.lt.s32.totalorder %s27, 1
      %s575 = scalar_select %p574, %s27, 1
      %s576 = scalar_lea.vmem %s1, %s575
      %p577 = scmp.lt.s32.totalorder %s27, 1
      %s578 = scalar_select %p577, %s27, 1
      %s579 = smul.addr %s578, 8
      %s580 = smul.addr %s579, 8
      %s581 = scalar_lea.vmem %s2, %s580
      %p582 = scmp.lt.s32.totalorder %s27, 1
      %s583 = scalar_select %p582, %s27, 1
      %p584 = scmp.lt.s32.totalorder %s28, 1
      %s585 = scalar_select %p584, %s28, 1
      %s586 = smul.addr %s583, 2
      %s587 = sadd.s32 %s585, %s586
      %s588 = smul.addr %s587, 4
      %s589 = scalar_lea.vmem %s3, %s588
      %p590 = scmp.lt.s32.totalorder %s28, 1
      %s591 = scalar_select %p590, %s28, 1
      %s592 = smul.addr %s591, 4
      %s593 = smul.addr %s592, 4
      %s594 = scalar_lea.vmem %s4, %s593
      %p595 = scmp.lt.s32.totalorder %s28, 1
      %s596 = scalar_select %p595, %s28, 1
      %s597 = scalar_lea.vmem %s5, %s596
      %p598 = scmp.lt.s32.totalorder %s28, 1
      %s599 = scalar_select %p598, %s28, 1
      %s600 = smul.addr %s599, 4
      %s601 = smul.addr %s600, 4
      %s602 = scalar_lea.vmem %s6, %s601
      %p603 = scmp.lt.s32.totalorder %s28, 1
      %s604 = scalar_select %p603, %s28, 1
      %s605 = scalar_lea.vmem %s7, %s604
      %p606 = scmp.lt.s32.totalorder %s28, 1
      %s607 = scalar_select %p606, %s28, 1
      %s608 = smul.addr %s607, 8
      %s609 = smul.addr %s608, 4
      %s610 = scalar_lea.vmem %s8, %s609
      %p611 = scmp.lt.s32.totalorder %s28, 1
      %s612 = scalar_select %p611, %s28, 1
      %s613 = scalar_lea.vmem %s9, %s612
      %p614 = scmp.lt.s32.totalorder %s28, 1
      %s615 = scalar_select %p614, %s28, 1
      %s616 = smul.addr %s615, 8
      %s617 = smul.addr %s616, 4
      %s618 = scalar_lea.vmem %s10, %s617
      %p619 = scmp.lt.s32.totalorder %s28, 1
      %s620 = scalar_select %p619, %s28, 1
      %s621 = scalar_lea.vmem %s11, %s620
      %p622 = scmp.lt.s32.totalorder %s27, 1
      %s623 = scalar_select %p622, %s27, 1
      %s624 = smul.addr %s623, 8
      %s625 = smul.addr %s624, 4
      %s626 = scalar_lea.vmem %s12, %s625
      %p628 = scmp.eq.s32.totalorder %s28, 0
      // Predicated region
      $region69: #{stableform_tts_forward.10} parent=67 // pred_check
        %p629 = pneg %p628
      $region70: #{stableform_tts_forward.10} parent=67 // pred_check_branch
        %631 = sbr.rel (%p629) target = $region72
      $region71: #{stableform_tts_forward.10} parent=67 // pred_region
        %v632 = vld [vmem:[%s573] sm:$0xf]
        %v633 = vld [vmem:[%s573 + $0x4] sm:$0xf]
        %v634 = vld [vmem:[%s573 + $0x8] sm:$0xf]
        %v635 = vld [vmem:[%s573 + $0xc] sm:$0xf]
        %v636 = vld [vmem:[%s573 + $0x10] sm:$0xf]
        %v637 = vld [vmem:[%s573 + $0x14] sm:$0xf]
        %v638 = vld [vmem:[%s573 + $0x18] sm:$0xf]
        %v639 = vld [vmem:[%s573 + $0x1c] sm:$0xf]
        %v640 = vunpack.c.l.bf16 %v632
        %v641 = vunpack.c.l.bf16 %v633
        %v642 = vunpack.c.l.bf16 %v634
        %v643 = vunpack.c.l.bf16 %v635
        %v644 = vunpack.c.l.bf16 %v636
        %v645 = vunpack.c.l.bf16 %v637
        %v646 = vunpack.c.l.bf16 %v638
        %v647 = vunpack.c.l.bf16 %v639
        %vm648 = vcmask 261120
        %649 = vst.msk [vmem:[#allocation2] sm:$0xff] %vm648, %v640
        %650 = vst.msk [vmem:[#allocation2 + $0x8] sm:$0xff] %vm648, %v641
        %651 = vst.msk [vmem:[#allocation2 + $0x10] sm:$0xff] %vm648, %v642
        %652 = vst.msk [vmem:[#allocation2 + $0x18] sm:$0xff] %vm648, %v643
        %653 = vst.msk [vmem:[#allocation2 + $0x20] sm:$0xff] %vm648, %v644
        %654 = vst.msk [vmem:[#allocation2 + $0x28] sm:$0xff] %vm648, %v645
        %655 = vst.msk [vmem:[#allocation2 + $0x30] sm:$0xff] %vm648, %v646
        %656 = vst.msk [vmem:[#allocation2 + $0x38] sm:$0xff] %vm648, %v647
      $region72: #{stableform_tts_forward.10} parent=67 // pred_fallthru
        _
      %v657 = vld [vmem:[#allocation2] sm:$0xff]
      %v658 = vld [vmem:[#allocation2 + $0x8] sm:$0xff]
      %v659 = vld [vmem:[#allocation2 + $0x10] sm:$0xff]
      %v660 = vld [vmem:[#allocation2 + $0x18] sm:$0xff]
      %v661 = vld [vmem:[#allocation2 + $0x20] sm:$0xff]
      %v662 = vld [vmem:[#allocation2 + $0x28] sm:$0xff]
      %v663 = vld [vmem:[#allocation2 + $0x30] sm:$0xff]
      %v664 = vld [vmem:[#allocation2 + $0x38] sm:$0xff]
      %v665 = vld [vmem:[%s576] sm:$0x1]
      %v666 = vld [vmem:[%s581] sm:$0xff]
      %v667 = vld [vmem:[%s581 + $0x8] sm:$0xff]
      %v668 = vld [vmem:[%s581 + $0x10] sm:$0xff]
      %v669 = vld [vmem:[%s581 + $0x18] sm:$0xff]
      %v670 = vld [vmem:[%s581 + $0x20] sm:$0xff]
      %v671 = vld [vmem:[%s581 + $0x28] sm:$0xff]
      %v672 = vld [vmem:[%s581 + $0x30] sm:$0xff]
      %v673 = vld [vmem:[%s581 + $0x38] sm:$0xff]
      %v674 = vld [vmem:[%s589] sm:$0xf]
      %vm675 = vcmask 261120
      %v676 = vsel %vm675, %v657, 0.0
      %677 = vadd.xlane.f32.xlu0 %v676
      %v678 = vpop.xlane.xlu0 %677
      %v679 = vsel %vm675, %v658, 0.0
      %680 = vadd.xlane.f32.xlu0 %v679
      %v681 = vpop.xlane.xlu0 %680
      %v682 = vsel %vm675, %v659, 0.0
      %683 = vadd.xlane.f32.xlu0 %v682
      %v684 = vpop.xlane.xlu0 %683
      %v685 = vsel %vm675, %v660, 0.0
      %686 = vadd.xlane.f32.xlu0 %v685
      %v687 = vpop.xlane.xlu0 %686
      %v688 = vsel %vm675, %v661, 0.0
      %689 = vadd.xlane.f32.xlu0 %v688
      %v690 = vpop.xlane.xlu0 %689
      %v691 = vsel %vm675, %v662, 0.0
      %692 = vadd.xlane.f32.xlu0 %v691
      %v693 = vpop.xlane.xlu0 %692
      %v694 = vsel %vm675, %v663, 0.0
      %695 = vadd.xlane.f32.xlu0 %v694
      %v696 = vpop.xlane.xlu0 %695
      %v697 = vsel %vm675, %v664, 0.0
      %698 = vadd.xlane.f32.xlu0 %v697
      %v699 = vpop.xlane.xlu0 %698
      %v700 = vrcp.pop 32.0
      %v701 = vmul.f32 %v678, %v700
      %v702 = vmul.f32 %v681, %v700
      %v703 = vmul.f32 %v684, %v700
      %v704 = vmul.f32 %v687, %v700
      %v705 = vmul.f32 %v690, %v700
      %v706 = vmul.f32 %v693, %v700
      %v707 = vmul.f32 %v696, %v700
      %v708 = vmul.f32 %v699, %v700
      %v709 = vsub.f32 %v657, %v701
      %v710 = vsub.f32 %v658, %v702
      %v711 = vsub.f32 %v659, %v703
      %v712 = vsub.f32 %v660, %v704
      %v713 = vsub.f32 %v661, %v705
      %v714 = vsub.f32 %v662, %v706
      %v715 = vsub.f32 %v663, %v707
      %v716 = vsub.f32 %v664, %v708
      %v717 = vmul.f32 %v709, %v709
      %v718 = vmul.f32 %v710, %v710
      %v719 = vmul.f32 %v711, %v711
      %v720 = vmul.f32 %v712, %v712
      %v721 = vmul.f32 %v713, %v713
      %v722 = vmul.f32 %v714, %v714
      %v723 = vmul.f32 %v715, %v715
      %v724 = vmul.f32 %v716, %v716
      %v725 = vsel %vm675, %v717, 0.0
      %726 = vadd.xlane.f32.xlu0 %v725
      %v727 = vpop.xlane.xlu0 %726
      %v728 = vsel %vm675, %v718, 0.0
      %729 = vadd.xlane.f32.xlu0 %v728
      %v730 = vpop.xlane.xlu0 %729
      %v731 = vsel %vm675, %v719, 0.0
      %732 = vadd.xlane.f32.xlu0 %v731
      %v733 = vpop.xlane.xlu0 %732
      %v734 = vsel %vm675, %v720, 0.0
      %735 = vadd.xlane.f32.xlu0 %v734
      %v736 = vpop.xlane.xlu0 %735
      %v737 = vsel %vm675, %v721, 0.0
      %738 = vadd.xlane.f32.xlu0 %v737
      %v739 = vpop.xlane.xlu0 %738
      %v740 = vsel %vm675, %v722, 0.0
      %741 = vadd.xlane.f32.xlu0 %v740
      %v742 = vpop.xlane.xlu0 %741
      %v743 = vsel %vm675, %v723, 0.0
      %744 = vadd.xlane.f32.xlu0 %v743
      %v745 = vpop.xlane.xlu0 %744
      %v746 = vsel %vm675, %v724, 0.0
      %747 = vadd.xlane.f32.xlu0 %v746
      %v748 = vpop.xlane.xlu0 %747
      %v749 = vmul.f32 %v727, %v700
      %v750 = vmul.f32 %v730, %v700
      %v751 = vmul.f32 %v733, %v700
      %v752 = vmul.f32 %v736, %v700
      %v753 = vmul.f32 %v739, %v700
      %v754 = vmul.f32 %v742, %v700
      %v755 = vmul.f32 %v745, %v700
      %v756 = vmul.f32 %v748, %v700
      %v757 = vadd.f32 %v749, 1e-05
      %v758 = vadd.f32 %v750, 1e-05
      %v759 = vadd.f32 %v751, 1e-05
      %v760 = vadd.f32 %v752, 1e-05
      %v761 = vadd.f32 %v753, 1e-05
      %v762 = vadd.f32 %v754, 1e-05
      %v763 = vadd.f32 %v755, 1e-05
      %v764 = vadd.f32 %v756, 1e-05
      %v765 = vrsqrt.pop %v757
      %v766 = vrsqrt.pop %v758
      %v767 = vrsqrt.pop %v759
      %v768 = vrsqrt.pop %v760
      %v769 = vrsqrt.pop %v761
      %v770 = vrsqrt.pop %v762
      %v771 = vrsqrt.pop %v763
      %v772 = vrsqrt.pop %v764
      %v773 = vmul.f32 %v709, %v765
      %v774 = vmul.f32 %v710, %v766
      %v775 = vmul.f32 %v711, %v767
      %v776 = vmul.f32 %v712, %v768
      %v777 = vmul.f32 %v713, %v769
      %v778 = vmul.f32 %v714, %v770
      %v779 = vmul.f32 %v715, %v771
      %v780 = vmul.f32 %v716, %v772
      %v781 = vadd.f32 %v674, 1.0
      %v782 = vlaneseq
      %v783 = vshrl.u32 %v782, 7
      %v784 = vsub.s32 0, %v783
      %v785 = vrot.slane %v781, %v784
      %v786 = vmul.f32 %v773, %v785
      %v787 = vmul.f32 %v774, %v785
      %v788 = vmul.f32 %v775, %v785
      %v789 = vmul.f32 %v776, %v785
      %v790 = vmul.f32 %v777, %v785
      %v791 = vmul.f32 %v778, %v785
      %v792 = vmul.f32 %v779, %v785
      %v793 = vmul.f32 %v780, %v785
      %v794 = vlaneseq
      %v795 = vshrl.u32 %v794, 7
      %v796 = vsub.s32 1, %v795
      %v797 = vrot.slane %v674, %v796
      %v798 = vadd.f32 %v786, %v797
      %v799 = vadd.f32 %v787, %v797
      %v800 = vadd.f32 %v788, %v797
      %v801 = vadd.f32 %v789, %v797
      %v802 = vadd.f32 %v790, %v797
      %v803 = vadd.f32 %v791, %v797
      %v804 = vadd.f32 %v792, %v797
      %v805 = vadd.f32 %v793, %v797
      %v806 = vpack.c.bf16 %v799, %v798
      %v807 = vpack.c.bf16 %v801, %v800
      %v808 = vpack.c.bf16 %v803, %v802
      %v809 = vpack.c.bf16 %v805, %v804
      %v810 = vld [vmem:[%s594] sm:$0xf]
      %v811 = vld [vmem:[%s594 + $0x4] sm:$0xf]
      %v812 = vld [vmem:[%s594 + $0x8] sm:$0xf]
      %v813 = vld [vmem:[%s594 + $0xc] sm:$0xf]
      %v814 = vld [vmem:[%s597] sm:$0x1]
      %v816 = vlaneseq
      %v817 = vshrl.u32 %v816, 7
      %v818 = vsub.s32 0, %v817
      %v819 = vrot.slane %v814, %v818
      %v825 = vunpack.c.l.b16 %v810
      %v826 = vunpack.c.l.b16 %v811
      %v827 = vunpack.c.l.b16 %v812
      %v828 = vunpack.c.l.b16 %v813
      %v829 = vpack.c.b16 %v826, %v825
      %v830 = vpack.c.b16 %v828, %v827
      %v834 = vsel %vm675, %v806, 0
      %v837 = vsel %vm675, %v807, 0
      %v840 = vsel %vm675, %v808, 0
      %v843 = vsel %vm675, %v809, 0
      %845 = vmatprep.subr.bf16.mxu0 0
      %846 = vmatpush1.bf16.msra.mxu0 0
      %847 = vmatprep.subr.bf16.mxu0 0
      %848 = vmatpush1.bf16.msra.mxu0 0
      %849 = vmatprep.subr.bf16.mxu0 0
      %850 = vmatpush1.bf16.msra.mxu0 0
      %851 = vmatprep.subr.bf16.mxu0 0
      %852 = vmatpush1.bf16.msra.mxu0 0
      %853 = vmatprep.subr.bf16.mxu0 0
      %854 = vmatpush1.bf16.msra.mxu0 0
      %855 = vmatprep.subr.bf16.mxu0 0
      %856 = vmatpush1.bf16.msra.mxu0 0
      %857 = vmatprep.subr.bf16.mxu0 0
      %858 = vmatpush1.bf16.msra.mxu0 %v830
      %859 = vmatprep.subr.bf16.mxu0 0
      %860 = vmatpush1.bf16.msra.mxu0 %v829
      %861 = vmatprep.subr.bf16.mxu0 0
      %862 = vmatpush2.bf16.msra.mxu0 0
      %863 = vmatprep.subr.bf16.mxu0 0
      %864 = vmatpush2.bf16.msra.mxu0 0
      %865 = vmatprep.subr.bf16.mxu0 0
      %866 = vmatpush2.bf16.msra.mxu0 0
      %867 = vmatprep.subr.bf16.mxu0 0
      %868 = vmatpush2.bf16.msra.mxu0 0
      %869 = vmatprep.subr.bf16.mxu0 0
      %870 = vmatpush2.bf16.msra.mxu0 0
      %871 = vmatprep.subr.bf16.mxu0 0
      %872 = vmatpush2.bf16.msra.mxu0 0
      %873 = vmatprep.subr.bf16.mxu0 0
      %874 = vmatpush2.bf16.msra.mxu0 0
      %875 = vmatprep.subr.bf16.mxu0 0
      %876 = vmatpush2.bf16.msra.mxu0 0
      %877 = vmatprep.mubr.bf16.mxu0 0
      %878 = vmatmul.mubr.bf16.gmra.mxu0 %v834
      %v879 = vpop.f32.mrf.mxu0
      %v880 = vadd.f32 %v819, %v879
      %v881 = vpop.f32.mrf.mxu0
      %v882 = vpop.f32.mrf.mxu0
      %v883 = vadd.f32 %v819, %v882
      %v884 = vpop.f32.mrf.mxu0
      %885 = vmatprep.mubr.bf16.mxu0 0
      %886 = vmatmul.mubr.bf16.gmra.mxu0 %v837
      %v887 = vpop.f32.mrf.mxu0
      %v888 = vadd.f32 %v819, %v887
      %v889 = vpop.f32.mrf.mxu0
      %v890 = vpop.f32.mrf.mxu0
      %v891 = vadd.f32 %v819, %v890
      %v892 = vpop.f32.mrf.mxu0
      %893 = vmatprep.mubr.bf16.mxu0 0
      %894 = vmatmul.mubr.bf16.gmra.mxu0 %v840
      %v895 = vpop.f32.mrf.mxu0
      %v896 = vadd.f32 %v819, %v895
      %v897 = vpop.f32.mrf.mxu0
      %v898 = vpop.f32.mrf.mxu0
      %v899 = vadd.f32 %v819, %v898
      %v900 = vpop.f32.mrf.mxu0
      %901 = vmatprep.mubr.bf16.mxu0 0
      %902 = vmatmul.mubr.bf16.gmra.mxu0 %v843
      %v903 = vpop.f32.mrf.mxu0
      %v904 = vadd.f32 %v819, %v903
      %v905 = vpop.f32.mrf.mxu0
      %v906 = vpop.f32.mrf.mxu0
      %v907 = vadd.f32 %v819, %v906
      %v908 = vpop.f32.mrf.mxu0
      %909 = vdwg.mxu0
      %v910 = vld [vmem:[%s602] sm:$0xf]
      %v911 = vld [vmem:[%s602 + $0x4] sm:$0xf]
      %v912 = vld [vmem:[%s602 + $0x8] sm:$0xf]
      %v913 = vld [vmem:[%s602 + $0xc] sm:$0xf]
      %v914 = vpack.c.bf16 %v883, %v880
      %v915 = vpack.c.bf16 %v891, %v888
      %v916 = vpack.c.bf16 %v899, %v896
      %v917 = vpack.c.bf16 %v907, %v904
      %922 = vrot.lane.b32.xlu0 %v914, 96
      %v923 = vpop.permute.xlu0 %922
      %924 = vrot.lane.b32.xlu0 %v915, 96
      %v925 = vpop.permute.xlu0 %924
      %926 = vrot.lane.b32.xlu0 %v916, 96
      %v927 = vpop.permute.xlu0 %926
      %928 = vrot.lane.b32.xlu0 %v917, 96
      %v929 = vpop.permute.xlu0 %928
      %vm930 = vcmask 130048
      %v932 = vsel %vm930, %v914, 0
      %v935 = vsel %vm930, %v915, 0
      %v938 = vsel %vm930, %v916, 0
      %v941 = vsel %vm930, %v917, 0
      %v944 = vsel %vm930, %v923, 0
      %v947 = vsel %vm930, %v925, 0
      %v950 = vsel %vm930, %v927, 0
      %v953 = vsel %vm930, %v929, 0
      %955 = vmatprep.subr.bf16.mxu0 0
      %956 = vmatpush1.bf16.xpose.msra.mxu0 0
      %957 = vmatprep.subr.bf16.mxu0 0
      %958 = vmatpush1.bf16.xpose.msra.mxu0 0
      %959 = vmatprep.subr.bf16.mxu0 0
      %960 = vmatpush1.bf16.xpose.msra.mxu0 0
      %961 = vmatprep.subr.bf16.mxu0 0
      %962 = vmatpush1.bf16.xpose.msra.mxu0 0
      %963 = vmatprep.subr.bf16.mxu0 0
      %964 = vmatpush1.bf16.xpose.msra.mxu0 %v953
      %965 = vmatprep.subr.bf16.mxu0 0
      %966 = vmatpush1.bf16.xpose.msra.mxu0 %v950
      %967 = vmatprep.subr.bf16.mxu0 0
      %968 = vmatpush1.bf16.xpose.msra.mxu0 %v947
      %969 = vmatprep.subr.bf16.mxu0 0
      %970 = vmatpush1.bf16.xpose.msra.mxu0 %v944
      %971 = vmatprep.subr.bf16.mxu0 0
      %972 = vmatpush2.bf16.xpose.msra.mxu0 0
      %973 = vmatprep.subr.bf16.mxu0 0
      %974 = vmatpush2.bf16.xpose.msra.mxu0 0
      %975 = vmatprep.subr.bf16.mxu0 0
      %976 = vmatpush2.bf16.xpose.msra.mxu0 0
      %977 = vmatprep.subr.bf16.mxu0 0
      %978 = vmatpush2.bf16.xpose.msra.mxu0 0
      %979 = vmatprep.subr.bf16.mxu0 0
      %980 = vmatpush2.bf16.xpose.msra.mxu0 0
      %981 = vmatprep.subr.bf16.mxu0 0
      %982 = vmatpush2.bf16.xpose.msra.mxu0 0
      %983 = vmatprep.subr.bf16.mxu0 0
      %984 = vmatpush2.bf16.xpose.msra.mxu0 0
      %985 = vmatprep.subr.bf16.mxu0 0
      %986 = vmatpush2.bf16.xpose.msra.mxu0 0
      %987 = vmatprep.mubr.bf16.mxu0 0
      %988 = vmatmul.mubr.bf16.gmra.mxu0 %v932
      %v989 = vpop.f32.mrf.mxu0
      %v990 = vadd.f32 0.0, %v989
      %v991 = vpop.f32.mrf.mxu0
      %v992 = vpop.f32.mrf.mxu0
      %v993 = vadd.f32 0.0, %v992
      %v994 = vpop.f32.mrf.mxu0
      %995 = vmatprep.mubr.bf16.mxu0 0
      %996 = vmatmul.mubr.bf16.gmra.mxu0 %v935
      %v997 = vpop.f32.mrf.mxu0
      %v998 = vadd.f32 0.0, %v997
      %v999 = vpop.f32.mrf.mxu0
      %v1000 = vpop.f32.mrf.mxu0
      %v1001 = vadd.f32 0.0, %v1000
      %v1002 = vpop.f32.mrf.mxu0
      %1003 = vmatprep.mubr.bf16.mxu0 0
      %1004 = vmatmul.mubr.bf16.gmra.mxu0 %v938
      %v1005 = vpop.f32.mrf.mxu0
      %v1006 = vadd.f32 0.0, %v1005
      %v1007 = vpop.f32.mrf.mxu0
      %v1008 = vpop.f32.mrf.mxu0
      %v1009 = vadd.f32 0.0, %v1008
      %v1010 = vpop.f32.mrf.mxu0
      %1011 = vmatprep.mubr.bf16.mxu0 0
      %1012 = vmatmul.mubr.bf16.gmra.mxu0 %v941
      %v1013 = vpop.f32.mrf.mxu0
      %v1014 = vadd.f32 0.0, %v1013
      %v1015 = vpop.f32.mrf.mxu0
      %v1016 = vpop.f32.mrf.mxu0
      %v1017 = vadd.f32 0.0, %v1016
      %v1018 = vpop.f32.mrf.mxu0
      %1019 = vdwg.mxu0
      %v1020 = vmul.f32 %v990, 0.25
      %v1021 = vmul.f32 %v993, 0.25
      %v1022 = vmul.f32 %v998, 0.25
      %v1023 = vmul.f32 %v1001, 0.25
      %v1024 = vmul.f32 %v1006, 0.25
      %v1025 = vmul.f32 %v1009, 0.25
      %v1026 = vmul.f32 %v1014, 0.25
      %v1027 = vmul.f32 %v1017, 0.25
      %vm1028 = vcmp.gt.f32.partialorder %v665, 0.5
      %v1029 = vsel %vm1028, 1, 0
      %v1030 = vlaneseq
      %v1031 = vshrl.u32 %v1030, 7
      %v1032 = vsub.s32 0, %v1031
      %v1033 = vrot.slane %v1029, %v1032
      %vm1034 = vcmp.eq.s32.totalorder %v1033, 1
      %v1035 = vsel %vm1034, %v1020, -1e+09
      %v1036 = vsel %vm1034, %v1021, -1e+09
      %v1037 = vsel %vm1034, %v1022, -1e+09
      %v1038 = vsel %vm1034, %v1023, -1e+09
      %v1039 = vsel %vm1034, %v1024, -1e+09
      %v1040 = vsel %vm1034, %v1025, -1e+09
      %v1041 = vsel %vm1034, %v1026, -1e+09
      %v1042 = vsel %vm1034, %v1027, -1e+09
      %vm1043 = vcmask 523264
      %v1044 = vsel %vm1043, %v1035, -inf
      %1045 = vmax.xlane.f32.xlu0 %v1044
      %v1046 = vpop.xlane.xlu0 %1045
      %v1047 = vsel %vm1043, %v1036, -inf
      %1048 = vmax.xlane.f32.xlu0 %v1047
      %v1049 = vpop.xlane.xlu0 %1048
      %v1050 = vsel %vm1043, %v1037, -inf
      %1051 = vmax.xlane.f32.xlu0 %v1050
      %v1052 = vpop.xlane.xlu0 %1051
      %v1053 = vsel %vm1043, %v1038, -inf
      %1054 = vmax.xlane.f32.xlu0 %v1053
      %v1055 = vpop.xlane.xlu0 %1054
      %v1056 = vsel %vm1043, %v1039, -inf
      %1057 = vmax.xlane.f32.xlu0 %v1056
      %v1058 = vpop.xlane.xlu0 %1057
      %v1059 = vsel %vm1043, %v1040, -inf
      %1060 = vmax.xlane.f32.xlu0 %v1059
      %v1061 = vpop.xlane.xlu0 %1060
      %v1062 = vsel %vm1043, %v1041, -inf
      %1063 = vmax.xlane.f32.xlu0 %v1062
      %v1064 = vpop.xlane.xlu0 %1063
      %v1065 = vsel %vm1043, %v1042, -inf
      %1066 = vmax.xlane.f32.xlu0 %v1065
      %v1067 = vpop.xlane.xlu0 %1066
      %v1068 = vsub.f32 %v1035, %v1046
      %v1069 = vsub.f32 %v1036, %v1049
      %v1070 = vsub.f32 %v1037, %v1052
      %v1071 = vsub.f32 %v1038, %v1055
      %v1072 = vsub.f32 %v1039, %v1058
      %v1073 = vsub.f32 %v1040, %v1061
      %v1074 = vsub.f32 %v1041, %v1064
      %v1075 = vsub.f32 %v1042, %v1067
      %v1076 = vmul.f32 %v1068, 1.442695
      %v1077 = vpow.pop %v1076
      %v1078 = vmul.f32 %v1069, 1.442695
      %v1079 = vpow.pop %v1078
      %v1080 = vmul.f32 %v1070, 1.442695
      %v1081 = vpow.pop %v1080
      %v1082 = vmul.f32 %v1071, 1.442695
      %v1083 = vpow.pop %v1082
      %v1084 = vmul.f32 %v1072, 1.442695
      %v1085 = vpow.pop %v1084
      %v1086 = vmul.f32 %v1073, 1.442695
      %v1087 = vpow.pop %v1086
      %v1088 = vmul.f32 %v1074, 1.442695
      %v1089 = vpow.pop %v1088
      %v1090 = vmul.f32 %v1075, 1.442695
      %v1091 = vpow.pop %v1090
      %v1092 = vsel %vm1043, %v1077, 0.0
      %1093 = vadd.xlane.f32.xlu0 %v1092
      %v1094 = vpop.xlane.xlu0 %1093
      %v1095 = vsel %vm1043, %v1079, 0.0
      %1096 = vadd.xlane.f32.xlu0 %v1095
      %v1097 = vpop.xlane.xlu0 %1096
      %v1098 = vsel %vm1043, %v1081, 0.0
      %1099 = vadd.xlane.f32.xlu0 %v1098
      %v1100 = vpop.xlane.xlu0 %1099
      %v1101 = vsel %vm1043, %v1083, 0.0
      %1102 = vadd.xlane.f32.xlu0 %v1101
      %v1103 = vpop.xlane.xlu0 %1102
      %v1104 = vsel %vm1043, %v1085, 0.0
      %1105 = vadd.xlane.f32.xlu0 %v1104
      %v1106 = vpop.xlane.xlu0 %1105
      %v1107 = vsel %vm1043, %v1087, 0.0
      %1108 = vadd.xlane.f32.xlu0 %v1107
      %v1109 = vpop.xlane.xlu0 %1108
      %v1110 = vsel %vm1043, %v1089, 0.0
      %1111 = vadd.xlane.f32.xlu0 %v1110
      %v1112 = vpop.xlane.xlu0 %1111
      %v1113 = vsel %vm1043, %v1091, 0.0
      %1114 = vadd.xlane.f32.xlu0 %v1113
      %v1115 = vpop.xlane.xlu0 %1114
      %v1116 = vrcp.pop %v1094
      %v1117 = vrcp.pop %v1097
      %v1118 = vrcp.pop %v1100
      %v1119 = vrcp.pop %v1103
      %v1120 = vrcp.pop %v1106
      %v1121 = vrcp.pop %v1109
      %v1122 = vrcp.pop %v1112
      %v1123 = vrcp.pop %v1115
      %v1124 = vmul.f32 %v1077, %v1116
      %v1125 = vmul.f32 %v1079, %v1117
      %v1126 = vmul.f32 %v1081, %v1118
      %v1127 = vmul.f32 %v1083, %v1119
      %v1128 = vmul.f32 %v1085, %v1120
      %v1129 = vmul.f32 %v1087, %v1121
      %v1130 = vmul.f32 %v1089, %v1122
      %v1131 = vmul.f32 %v1091, %v1123
      %v1132 = vpack.c.bf16 %v1125, %v1124
      %v1133 = vpack.c.bf16 %v1127, %v1126
      %v1134 = vpack.c.bf16 %v1129, %v1128
      %v1135 = vpack.c.bf16 %v1131, %v1130
      %1136 = vrot.lane.b32.xlu0 %v914, 64
      %v1137 = vpop.permute.xlu0 %1136
      %1138 = vrot.lane.b32.xlu0 %v915, 64
      %v1139 = vpop.permute.xlu0 %1138
      %1140 = vrot.lane.b32.xlu0 %v916, 64
      %v1141 = vpop.permute.xlu0 %1140
      %1142 = vrot.lane.b32.xlu0 %v917, 64
      %v1143 = vpop.permute.xlu0 %1142
      %v1149 = vsel %vm1043, %v1132, 0
      %v1152 = vsel %vm1043, %v1133, 0
      %v1155 = vsel %vm1043, %v1134, 0
      %v1158 = vsel %vm1043, %v1135, 0
      %1160 = vmatprep.subr.bf16.mxu0 0
      %1161 = vmatpush1.bf16.msra.mxu0 0
      %1162 = vmatprep.subr.bf16.mxu0 0
      %1163 = vmatpush1.bf16.msra.mxu0 0
      %1164 = vmatprep.subr.bf16.mxu0 0
      %1165 = vmatpush1.bf16.msra.mxu0 0
      %1166 = vmatprep.subr.bf16.mxu0 0
      %1167 = vmatpush1.bf16.msra.mxu0 0
      %1168 = vmatprep.subr.bf16.mxu0 0
      %1169 = vmatpush1.bf16.msra.mxu0 %v1143
      %1170 = vmatprep.subr.bf16.mxu0 0
      %1171 = vmatpush1.bf16.msra.mxu0 %v1141
      %1172 = vmatprep.subr.bf16.mxu0 0
      %1173 = vmatpush1.bf16.msra.mxu0 %v1139
      %1174 = vmatprep.subr.bf16.mxu0 0
      %1175 = vmatpush1.bf16.msra.mxu0 %v1137
      %1176 = vmatprep.subr.bf16.mxu0 0
      %1177 = vmatpush2.bf16.msra.mxu0 0
      %1178 = vmatprep.subr.bf16.mxu0 0
      %1179 = vmatpush2.bf16.msra.mxu0 0
      %1180 = vmatprep.subr.bf16.mxu0 0
      %1181 = vmatpush2.bf16.msra.mxu0 0
      %1182 = vmatprep.subr.bf16.mxu0 0
      %1183 = vmatpush2.bf16.msra.mxu0 0
      %1184 = vmatprep.subr.bf16.mxu0 0
      %1185 = vmatpush2.bf16.msra.mxu0 0
      %1186 = vmatprep.subr.bf16.mxu0 0
      %1187 = vmatpush2.bf16.msra.mxu0 0
      %1188 = vmatprep.subr.bf16.mxu0 0
      %1189 = vmatpush2.bf16.msra.mxu0 0
      %1190 = vmatprep.subr.bf16.mxu0 0
      %1191 = vmatpush2.bf16.msra.mxu0 0
      %1192 = vmatprep.mubr.bf16.mxu0 0
      %1193 = vmatmul.mubr.bf16.gmra.mxu0 %v1149
      %v1194 = vpop.f32.mrf.mxu0
      %v1195 = vadd.f32 0.0, %v1194
      %v1196 = vpop.f32.mrf.mxu0
      %v1197 = vpop.f32.mrf.mxu0
      %v1198 = vadd.f32 0.0, %v1197
      %v1199 = vpop.f32.mrf.mxu0
      %1200 = vmatprep.mubr.bf16.mxu0 0
      %1201 = vmatmul.mubr.bf16.gmra.mxu0 %v1152
      %v1202 = vpop.f32.mrf.mxu0
      %v1203 = vadd.f32 0.0, %v1202
      %v1204 = vpop.f32.mrf.mxu0
      %v1205 = vpop.f32.mrf.mxu0
      %v1206 = vadd.f32 0.0, %v1205
      %v1207 = vpop.f32.mrf.mxu0
      %1208 = vmatprep.mubr.bf16.mxu0 0
      %1209 = vmatmul.mubr.bf16.gmra.mxu0 %v1155
      %v1210 = vpop.f32.mrf.mxu0
      %v1211 = vadd.f32 0.0, %v1210
      %v1212 = vpop.f32.mrf.mxu0
      %v1213 = vpop.f32.mrf.mxu0
      %v1214 = vadd.f32 0.0, %v1213
      %v1215 = vpop.f32.mrf.mxu0
      %1216 = vmatprep.mubr.bf16.mxu0 0
      %1217 = vmatmul.mubr.bf16.gmra.mxu0 %v1158
      %v1218 = vpop.f32.mrf.mxu0
      %v1219 = vadd.f32 0.0, %v1218
      %v1220 = vpop.f32.mrf.mxu0
      %v1221 = vpop.f32.mrf.mxu0
      %v1222 = vadd.f32 0.0, %v1221
      %v1223 = vpop.f32.mrf.mxu0
      %1224 = vdwg.mxu0
      %v1225 = vpack.c.bf16 %v1198, %v1195
      %v1226 = vpack.c.bf16 %v1206, %v1203
      %v1227 = vpack.c.bf16 %v1214, %v1211
      %v1228 = vpack.c.bf16 %v1222, %v1219
      %1229 = vrot.lane.b32.xlu0 %v914, 112
      %v1230 = vpop.permute.xlu0 %1229
      %1231 = vrot.lane.b32.xlu0 %v915, 112
      %v1232 = vpop.permute.xlu0 %1231
      %1233 = vrot.lane.b32.xlu0 %v916, 112
      %v1234 = vpop.permute.xlu0 %1233
      %1235 = vrot.lane.b32.xlu0 %v917, 112
      %v1236 = vpop.permute.xlu0 %1235
      %1237 = vrot.lane.b32.xlu0 %v914, 80
      %v1238 = vpop.permute.xlu0 %1237
      %1239 = vrot.lane.b32.xlu0 %v915, 80
      %v1240 = vpop.permute.xlu0 %1239
      %1241 = vrot.lane.b32.xlu0 %v916, 80
      %v1242 = vpop.permute.xlu0 %1241
      %1243 = vrot.lane.b32.xlu0 %v917, 80
      %v1244 = vpop.permute.xlu0 %1243
      %v1246 = vsel %vm930, %v1230, 0
      %v1249 = vsel %vm930, %v1232, 0
      %v1252 = vsel %vm930, %v1234, 0
      %v1255 = vsel %vm930, %v1236, 0
      %v1258 = vsel %vm930, %v1238, 0
      %v1261 = vsel %vm930, %v1240, 0
      %v1264 = vsel %vm930, %v1242, 0
      %v1267 = vsel %vm930, %v1244, 0
      %1269 = vmatprep.subr.bf16.mxu0 0
      %1270 = vmatpush1.bf16.xpose.msra.mxu0 0
      %1271 = vmatprep.subr.bf16.mxu0 0
      %1272 = vmatpush1.bf16.xpose.msra.mxu0 0
      %1273 = vmatprep.subr.bf16.mxu0 0
      %1274 = vmatpush1.bf16.xpose.msra.mxu0 0
      %1275 = vmatprep.subr.bf16.mxu0 0
      %1276 = vmatpush1.bf16.xpose.msra.mxu0 0
      %1277 = vmatprep.subr.bf16.mxu0 0
      %1278 = vmatpush1.bf16.xpose.msra.mxu0 %v1267
      %1279 = vmatprep.subr.bf16.mxu0 0
      %1280 = vmatpush1.bf16.xpose.msra.mxu0 %v1264
      %1281 = vmatprep.subr.bf16.mxu0 0
      %1282 = vmatpush1.bf16.xpose.msra.mxu0 %v1261
      %1283 = vmatprep.subr.bf16.mxu0 0
      %1284 = vmatpush1.bf16.xpose.msra.mxu0 %v1258
      %1285 = vmatprep.subr.bf16.mxu0 0
      %1286 = vmatpush2.bf16.xpose.msra.mxu0 0
      %1287 = vmatprep.subr.bf16.mxu0 0
      %1288 = vmatpush2.bf16.xpose.msra.mxu0 0
      %1289 = vmatprep.subr.bf16.mxu0 0
      %1290 = vmatpush2.bf16.xpose.msra.mxu0 0
      %1291 = vmatprep.subr.bf16.mxu0 0
      %1292 = vmatpush2.bf16.xpose.msra.mxu0 0
      %1293 = vmatprep.subr.bf16.mxu0 0
      %1294 = vmatpush2.bf16.xpose.msra.mxu0 0
      %1295 = vmatprep.subr.bf16.mxu0 0
      %1296 = vmatpush2.bf16.xpose.msra.mxu0 0
      %1297 = vmatprep.subr.bf16.mxu0 0
      %1298 = vmatpush2.bf16.xpose.msra.mxu0 0
      %1299 = vmatprep.subr.bf16.mxu0 0
      %1300 = vmatpush2.bf16.xpose.msra.mxu0 0
      %1301 = vmatprep.mubr.bf16.mxu0 0
      %1302 = vmatmul.mubr.bf16.gmra.mxu0 %v1246
      %v1303 = vpop.f32.mrf.mxu0
      %v1304 = vadd.f32 0.0, %v1303
      %v1305 = vpop.f32.mrf.mxu0
      %v1306 = vpop.f32.mrf.mxu0
      %v1307 = vadd.f32 0.0, %v1306
      %v1308 = vpop.f32.mrf.mxu0
      %1309 = vmatprep.mubr.bf16.mxu0 0
      %1310 = vmatmul.mubr.bf16.gmra.mxu0 %v1249
      %v1311 = vpop.f32.mrf.mxu0
      %v1312 = vadd.f32 0.0, %v1311
      %v1313 = vpop.f32.mrf.mxu0
      %v1314 = vpop.f32.mrf.mxu0
      %v1315 = vadd.f32 0.0, %v1314
      %v1316 = vpop.f32.mrf.mxu0
      %1317 = vmatprep.mubr.bf16.mxu0 0
      %1318 = vmatmul.mubr.bf16.gmra.mxu0 %v1252
      %v1319 = vpop.f32.mrf.mxu0
      %v1320 = vadd.f32 0.0, %v1319
      %v1321 = vpop.f32.mrf.mxu0
      %v1322 = vpop.f32.mrf.mxu0
      %v1323 = vadd.f32 0.0, %v1322
      %v1324 = vpop.f32.mrf.mxu0
      %1325 = vmatprep.mubr.bf16.mxu0 0
      %1326 = vmatmul.mubr.bf16.gmra.mxu0 %v1255
      %v1327 = vpop.f32.mrf.mxu0
      %v1328 = vadd.f32 0.0, %v1327
      %v1329 = vpop.f32.mrf.mxu0
      %v1330 = vpop.f32.mrf.mxu0
      %v1331 = vadd.f32 0.0, %v1330
      %v1332 = vpop.f32.mrf.mxu0
      %1333 = vdwg.mxu0
      %v1334 = vmul.f32 %v1304, 0.25
      %v1335 = vmul.f32 %v1307, 0.25
      %v1336 = vmul.f32 %v1312, 0.25
      %v1337 = vmul.f32 %v1315, 0.25
      %v1338 = vmul.f32 %v1320, 0.25
      %v1339 = vmul.f32 %v1323, 0.25
      %v1340 = vmul.f32 %v1328, 0.25
      %v1341 = vmul.f32 %v1331, 0.25
      %v1342 = vsel %vm1034, %v1334, -1e+09
      %v1343 = vsel %vm1034, %v1335, -1e+09
      %v1344 = vsel %vm1034, %v1336, -1e+09
      %v1345 = vsel %vm1034, %v1337, -1e+09
      %v1346 = vsel %vm1034, %v1338, -1e+09
      %v1347 = vsel %vm1034, %v1339, -1e+09
      %v1348 = vsel %vm1034, %v1340, -1e+09
      %v1349 = vsel %vm1034, %v1341, -1e+09
      %v1350 = vsel %vm1043, %v1342, -inf
      %1351 = vmax.xlane.f32.xlu0 %v1350
      %v1352 = vpop.xlane.xlu0 %1351
      %v1353 = vsel %vm1043, %v1343, -inf
      %1354 = vmax.xlane.f32.xlu0 %v1353
      %v1355 = vpop.xlane.xlu0 %1354
      %v1356 = vsel %vm1043, %v1344, -inf
      %1357 = vmax.xlane.f32.xlu0 %v1356
      %v1358 = vpop.xlane.xlu0 %1357
      %v1359 = vsel %vm1043, %v1345, -inf
      %1360 = vmax.xlane.f32.xlu0 %v1359
      %v1361 = vpop.xlane.xlu0 %1360
      %v1362 = vsel %vm1043, %v1346, -inf
      %1363 = vmax.xlane.f32.xlu0 %v1362
      %v1364 = vpop.xlane.xlu0 %1363
      %v1365 = vsel %vm1043, %v1347, -inf
      %1366 = vmax.xlane.f32.xlu0 %v1365
      %v1367 = vpop.xlane.xlu0 %1366
      %v1368 = vsel %vm1043, %v1348, -inf
      %1369 = vmax.xlane.f32.xlu0 %v1368
      %v1370 = vpop.xlane.xlu0 %1369
      %v1371 = vsel %vm1043, %v1349, -inf
      %1372 = vmax.xlane.f32.xlu0 %v1371
      %v1373 = vpop.xlane.xlu0 %1372
      %v1374 = vsub.f32 %v1342, %v1352
      %v1375 = vsub.f32 %v1343, %v1355
      %v1376 = vsub.f32 %v1344, %v1358
      %v1377 = vsub.f32 %v1345, %v1361
      %v1378 = vsub.f32 %v1346, %v1364
      %v1379 = vsub.f32 %v1347, %v1367
      %v1380 = vsub.f32 %v1348, %v1370
      %v1381 = vsub.f32 %v1349, %v1373
      %v1382 = vmul.f32 %v1374, 1.442695
      %v1383 = vpow.pop %v1382
      %v1384 = vmul.f32 %v1375, 1.442695
      %v1385 = vpow.pop %v1384
      %v1386 = vmul.f32 %v1376, 1.442695
      %v1387 = vpow.pop %v1386
      %v1388 = vmul.f32 %v1377, 1.442695
      %v1389 = vpow.pop %v1388
      %v1390 = vmul.f32 %v1378, 1.442695
      %v1391 = vpow.pop %v1390
      %v1392 = vmul.f32 %v1379, 1.442695
      %v1393 = vpow.pop %v1392
      %v1394 = vmul.f32 %v1380, 1.442695
      %v1395 = vpow.pop %v1394
      %v1396 = vmul.f32 %v1381, 1.442695
      %v1397 = vpow.pop %v1396
      %v1398 = vsel %vm1043, %v1383, 0.0
      %1399 = vadd.xlane.f32.xlu0 %v1398
      %v1400 = vpop.xlane.xlu0 %1399
      %v1401 = vsel %vm1043, %v1385, 0.0
      %1402 = vadd.xlane.f32.xlu0 %v1401
      %v1403 = vpop.xlane.xlu0 %1402
      %v1404 = vsel %vm1043, %v1387, 0.0
      %1405 = vadd.xlane.f32.xlu0 %v1404
      %v1406 = vpop.xlane.xlu0 %1405
      %v1407 = vsel %vm1043, %v1389, 0.0
      %1408 = vadd.xlane.f32.xlu0 %v1407
      %v1409 = vpop.xlane.xlu0 %1408
      %v1410 = vsel %vm1043, %v1391, 0.0
      %1411 = vadd.xlane.f32.xlu0 %v1410
      %v1412 = vpop.xlane.xlu0 %1411
      %v1413 = vsel %vm1043, %v1393, 0.0
      %1414 = vadd.xlane.f32.xlu0 %v1413
      %v1415 = vpop.xlane.xlu0 %1414
      %v1416 = vsel %vm1043, %v1395, 0.0
      %1417 = vadd.xlane.f32.xlu0 %v1416
      %v1418 = vpop.xlane.xlu0 %1417
      %v1419 = vsel %vm1043, %v1397, 0.0
      %1420 = vadd.xlane.f32.xlu0 %v1419
      %v1421 = vpop.xlane.xlu0 %1420
      %v1422 = vrcp.pop %v1400
      %v1423 = vrcp.pop %v1403
      %v1424 = vrcp.pop %v1406
      %v1425 = vrcp.pop %v1409
      %v1426 = vrcp.pop %v1412
      %v1427 = vrcp.pop %v1415
      %v1428 = vrcp.pop %v1418
      %v1429 = vrcp.pop %v1421
      %v1430 = vmul.f32 %v1383, %v1422
      %v1431 = vmul.f32 %v1385, %v1423
      %v1432 = vmul.f32 %v1387, %v1424
      %v1433 = vmul.f32 %v1389, %v1425
      %v1434 = vmul.f32 %v1391, %v1426
      %v1435 = vmul.f32 %v1393, %v1427
      %v1436 = vmul.f32 %v1395, %v1428
      %v1437 = vmul.f32 %v1397, %v1429
      %v1438 = vpack.c.bf16 %v1431, %v1430
      %v1439 = vpack.c.bf16 %v1433, %v1432
      %v1440 = vpack.c.bf16 %v1435, %v1434
      %v1441 = vpack.c.bf16 %v1437, %v1436
      %1442 = vrot.lane.b32.xlu0 %v914, 48
      %v1443 = vpop.permute.xlu0 %1442
      %1444 = vrot.lane.b32.xlu0 %v915, 48
      %v1445 = vpop.permute.xlu0 %1444
      %1446 = vrot.lane.b32.xlu0 %v916, 48
      %v1447 = vpop.permute.xlu0 %1446
      %1448 = vrot.lane.b32.xlu0 %v917, 48
      %v1449 = vpop.permute.xlu0 %1448
      %v1455 = vsel %vm1043, %v1438, 0
      %v1458 = vsel %vm1043, %v1439, 0
      %v1461 = vsel %vm1043, %v1440, 0
      %v1464 = vsel %vm1043, %v1441, 0
      %1466 = vmatprep.subr.bf16.mxu0 0
      %1467 = vmatpush1.bf16.msra.mxu0 0
      %1468 = vmatprep.subr.bf16.mxu0 0
      %1469 = vmatpush1.bf16.msra.mxu0 0
      %1470 = vmatprep.subr.bf16.mxu0 0
      %1471 = vmatpush1.bf16.msra.mxu0 0
      %1472 = vmatprep.subr.bf16.mxu0 0
      %1473 = vmatpush1.bf16.msra.mxu0 0
      %1474 = vmatprep.subr.bf16.mxu0 0
      %1475 = vmatpush1.bf16.msra.mxu0 %v1449
      %1476 = vmatprep.subr.bf16.mxu0 0
      %1477 = vmatpush1.bf16.msra.mxu0 %v1447
      %1478 = vmatprep.subr.bf16.mxu0 0
      %1479 = vmatpush1.bf16.msra.mxu0 %v1445
      %1480 = vmatprep.subr.bf16.mxu0 0
      %1481 = vmatpush1.bf16.msra.mxu0 %v1443
      %1482 = vmatprep.subr.bf16.mxu0 0
      %1483 = vmatpush2.bf16.msra.mxu0 0
      %1484 = vmatprep.subr.bf16.mxu0 0
      %1485 = vmatpush2.bf16.msra.mxu0 0
      %1486 = vmatprep.subr.bf16.mxu0 0
      %1487 = vmatpush2.bf16.msra.mxu0 0
      %1488 = vmatprep.subr.bf16.mxu0 0
      %1489 = vmatpush2.bf16.msra.mxu0 0
      %1490 = vmatprep.subr.bf16.mxu0 0
      %1491 = vmatpush2.bf16.msra.mxu0 0
      %1492 = vmatprep.subr.bf16.mxu0 0
      %1493 = vmatpush2.bf16.msra.mxu0 0
      %1494 = vmatprep.subr.bf16.mxu0 0
      %1495 = vmatpush2.bf16.msra.mxu0 0
      %1496 = vmatprep.subr.bf16.mxu0 0
      %1497 = vmatpush2.bf16.msra.mxu0 0
      %1498 = vmatprep.mubr.bf16.mxu0 0
      %1499 = vmatmul.mubr.bf16.gmra.mxu0 %v1455
      %v1500 = vpop.f32.mrf.mxu0
      %v1501 = vadd.f32 0.0, %v1500
      %v1502 = vpop.f32.mrf.mxu0
      %v1503 = vpop.f32.mrf.mxu0
      %v1504 = vadd.f32 0.0, %v1503
      %v1505 = vpop.f32.mrf.mxu0
      %1506 = vmatprep.mubr.bf16.mxu0 0
      %1507 = vmatmul.mubr.bf16.gmra.mxu0 %v1458
      %v1508 = vpop.f32.mrf.mxu0
      %v1509 = vadd.f32 0.0, %v1508
      %v1510 = vpop.f32.mrf.mxu0
      %v1511 = vpop.f32.mrf.mxu0
      %v1512 = vadd.f32 0.0, %v1511
      %v1513 = vpop.f32.mrf.mxu0
      %1514 = vmatprep.mubr.bf16.mxu0 0
      %1515 = vmatmul.mubr.bf16.gmra.mxu0 %v1461
      %v1516 = vpop.f32.mrf.mxu0
      %v1517 = vadd.f32 0.0, %v1516
      %v1518 = vpop.f32.mrf.mxu0
      %v1519 = vpop.f32.mrf.mxu0
      %v1520 = vadd.f32 0.0, %v1519
      %v1521 = vpop.f32.mrf.mxu0
      %1522 = vmatprep.mubr.bf16.mxu0 0
      %1523 = vmatmul.mubr.bf16.gmra.mxu0 %v1464
      %v1524 = vpop.f32.mrf.mxu0
      %v1525 = vadd.f32 0.0, %v1524
      %v1526 = vpop.f32.mrf.mxu0
      %v1527 = vpop.f32.mrf.mxu0
      %v1528 = vadd.f32 0.0, %v1527
      %v1529 = vpop.f32.mrf.mxu0
      %1530 = vdwg.mxu0
      %v1531 = vpack.c.bf16 %v1504, %v1501
      %v1532 = vpack.c.bf16 %v1512, %v1509
      %v1533 = vpack.c.bf16 %v1520, %v1517
      %v1534 = vpack.c.bf16 %v1528, %v1525
      %v1537 = vunpack.c.l.b16 %v912
      %v1538 = vunpack.c.l.b16 %v913
      %v1539 = vpack.c.b16 %v1538, %v1537
      %v1542 = vsel %vm930, %v1531, 0
      %v1545 = vsel %vm930, %v1532, 0
      %v1548 = vsel %vm930, %v1533, 0
      %v1551 = vsel %vm930, %v1534, 0
      %1553 = vmatprep.subr.bf16.mxu0 0
      %1554 = vmatpush1.bf16.msra.mxu0 0
      %1555 = vmatprep.subr.bf16.mxu0 0
      %1556 = vmatpush1.bf16.msra.mxu0 0
      %1557 = vmatprep.subr.bf16.mxu0 0
      %1558 = vmatpush1.bf16.msra.mxu0 0
      %1559 = vmatprep.subr.bf16.mxu0 0
      %1560 = vmatpush1.bf16.msra.mxu0 0
      %1561 = vmatprep.subr.bf16.mxu0 0
      %1562 = vmatpush1.bf16.msra.mxu0 0
      %1563 = vmatprep.subr.bf16.mxu0 0
      %1564 = vmatpush1.bf16.msra.mxu0 0
      %1565 = vmatprep.subr.bf16.mxu0 0
      %1566 = vmatpush1.bf16.msra.mxu0 0
      %1567 = vmatprep.subr.bf16.mxu0 0
      %1568 = vmatpush1.bf16.msra.mxu0 %v1539
      %1569 = vmatprep.subr.bf16.mxu0 0
      %1570 = vmatpush2.bf16.msra.mxu0 0
      %1571 = vmatprep.subr.bf16.mxu0 0
      %1572 = vmatpush2.bf16.msra.mxu0 0
      %1573 = vmatprep.subr.bf16.mxu0 0
      %1574 = vmatpush2.bf16.msra.mxu0 0
      %1575 = vmatprep.subr.bf16.mxu0 0
      %1576 = vmatpush2.bf16.msra.mxu0 0
      %1577 = vmatprep.subr.bf16.mxu0 0
      %1578 = vmatpush2.bf16.msra.mxu0 0
      %1579 = vmatprep.subr.bf16.mxu0 0
      %1580 = vmatpush2.bf16.msra.mxu0 0
      %1581 = vmatprep.subr.bf16.mxu0 0
      %1582 = vmatpush2.bf16.msra.mxu0 0
      %1583 = vmatprep.subr.bf16.mxu0 0
      %1584 = vmatpush2.bf16.msra.mxu0 0
      %1585 = vmatprep.mubr.bf16.mxu0 0
      %1586 = vmatmul.mubr.bf16.gmra.mxu0 %v1542
      %v1587 = vpop.f32.mrf.mxu0
      %v1588 = vadd.f32 0.0, %v1587
      %v1589 = vpop.f32.mrf.mxu0
      %v1590 = vpop.f32.mrf.mxu0
      %v1591 = vadd.f32 0.0, %v1590
      %v1592 = vpop.f32.mrf.mxu0
      %1593 = vmatprep.mubr.bf16.mxu0 0
      %1594 = vmatmul.mubr.bf16.gmra.mxu0 %v1545
      %v1595 = vpop.f32.mrf.mxu0
      %v1596 = vadd.f32 0.0, %v1595
      %v1597 = vpop.f32.mrf.mxu0
      %v1598 = vpop.f32.mrf.mxu0
      %v1599 = vadd.f32 0.0, %v1598
      %v1600 = vpop.f32.mrf.mxu0
      %1601 = vmatprep.mubr.bf16.mxu0 0
      %1602 = vmatmul.mubr.bf16.gmra.mxu0 %v1548
      %v1603 = vpop.f32.mrf.mxu0
      %v1604 = vadd.f32 0.0, %v1603
      %v1605 = vpop.f32.mrf.mxu0
      %v1606 = vpop.f32.mrf.mxu0
      %v1607 = vadd.f32 0.0, %v1606
      %v1608 = vpop.f32.mrf.mxu0
      %1609 = vmatprep.mubr.bf16.mxu0 0
      %1610 = vmatmul.mubr.bf16.gmra.mxu0 %v1551
      %v1611 = vpop.f32.mrf.mxu0
      %v1612 = vadd.f32 0.0, %v1611
      %v1613 = vpop.f32.mrf.mxu0
      %v1614 = vpop.f32.mrf.mxu0
      %v1615 = vadd.f32 0.0, %v1614
      %v1616 = vpop.f32.mrf.mxu0
      %1617 = vdwg.mxu0
      %v1620 = vunpack.c.l.b16 %v910
      %v1621 = vunpack.c.l.b16 %v911
      %v1622 = vpack.c.b16 %v1621, %v1620
      %v1625 = vsel %vm930, %v1225, 0
      %v1628 = vsel %vm930, %v1226, 0
      %v1631 = vsel %vm930, %v1227, 0
      %v1634 = vsel %vm930, %v1228, 0
      %1636 = vmatprep.subr.bf16.mxu0 0
      %1637 = vmatpush1.bf16.msra.mxu0 0
      %1638 = vmatprep.subr.bf16.mxu0 0
      %1639 = vmatpush1.bf16.msra.mxu0 0
      %1640 = vmatprep.subr.bf16.mxu0 0
      %1641 = vmatpush1.bf16.msra.mxu0 0
      %1642 = vmatprep.subr.bf16.mxu0 0
      %1643 = vmatpush1.bf16.msra.mxu0 0
      %1644 = vmatprep.subr.bf16.mxu0 0
      %1645 = vmatpush1.bf16.msra.mxu0 0
      %1646 = vmatprep.subr.bf16.mxu0 0
      %1647 = vmatpush1.bf16.msra.mxu0 0
      %1648 = vmatprep.subr.bf16.mxu0 0
      %1649 = vmatpush1.bf16.msra.mxu0 0
      %1650 = vmatprep.subr.bf16.mxu0 0
      %1651 = vmatpush1.bf16.msra.mxu0 %v1622
      %1652 = vmatprep.subr.bf16.mxu0 0
      %1653 = vmatpush2.bf16.msra.mxu0 0
      %1654 = vmatprep.subr.bf16.mxu0 0
      %1655 = vmatpush2.bf16.msra.mxu0 0
      %1656 = vmatprep.subr.bf16.mxu0 0
      %1657 = vmatpush2.bf16.msra.mxu0 0
      %1658 = vmatprep.subr.bf16.mxu0 0
      %1659 = vmatpush2.bf16.msra.mxu0 0
      %1660 = vmatprep.subr.bf16.mxu0 0
      %1661 = vmatpush2.bf16.msra.mxu0 0
      %1662 = vmatprep.subr.bf16.mxu0 0
      %1663 = vmatpush2.bf16.msra.mxu0 0
      %1664 = vmatprep.subr.bf16.mxu0 0
      %1665 = vmatpush2.bf16.msra.mxu0 0
      %1666 = vmatprep.subr.bf16.mxu0 0
      %1667 = vmatpush2.bf16.msra.mxu0 0
      %1668 = vmatprep.mubr.bf16.mxu0 0
      %1669 = vmatmul.mubr.bf16.gmra.mxu0 %v1625
      %v1670 = vpop.f32.mrf.mxu0
      %v1671 = vadd.f32 %v1588, %v1670
      %v1672 = vpop.f32.mrf.mxu0
      %v1673 = vpop.f32.mrf.mxu0
      %v1674 = vadd.f32 %v1591, %v1673
      %v1675 = vpop.f32.mrf.mxu0
      %1676 = vmatprep.mubr.bf16.mxu0 0
      %1677 = vmatmul.mubr.bf16.gmra.mxu0 %v1628
      %v1678 = vpop.f32.mrf.mxu0
      %v1679 = vadd.f32 %v1596, %v1678
      %v1680 = vpop.f32.mrf.mxu0
      %v1681 = vpop.f32.mrf.mxu0
      %v1682 = vadd.f32 %v1599, %v1681
      %v1683 = vpop.f32.mrf.mxu0
      %1684 = vmatprep.mubr.bf16.mxu0 0
      %1685 = vmatmul.mubr.bf16.gmra.mxu0 %v1631
      %v1686 = vpop.f32.mrf.mxu0
      %v1687 = vadd.f32 %v1604, %v1686
      %v1688 = vpop.f32.mrf.mxu0
      %v1689 = vpop.f32.mrf.mxu0
      %v1690 = vadd.f32 %v1607, %v1689
      %v1691 = vpop.f32.mrf.mxu0
      %1692 = vmatprep.mubr.bf16.mxu0 0
      %1693 = vmatmul.mubr.bf16.gmra.mxu0 %v1634
      %v1694 = vpop.f32.mrf.mxu0
      %v1695 = vadd.f32 %v1612, %v1694
      %v1696 = vpop.f32.mrf.mxu0
      %v1697 = vpop.f32.mrf.mxu0
      %v1698 = vadd.f32 %v1615, %v1697
      %v1699 = vpop.f32.mrf.mxu0
      %1700 = vdwg.mxu0
      %v1701 = vadd.f32 %v657, %v1671
      %v1702 = vadd.f32 %v658, %v1674
      %v1703 = vadd.f32 %v659, %v1679
      %v1704 = vadd.f32 %v660, %v1682
      %v1705 = vadd.f32 %v661, %v1687
      %v1706 = vadd.f32 %v662, %v1690
      %v1707 = vadd.f32 %v663, %v1695
      %v1708 = vadd.f32 %v664, %v1698
      %v1709 = vld [vmem:[%s605] sm:$0x1]
      %v1711 = vlaneseq
      %v1712 = vshrl.u32 %v1711, 7
      %v1713 = vsub.s32 0, %v1712
      %v1714 = vrot.slane %v1709, %v1713
      %v1716 = vadd.f32 %v1701, %v1714
      %v1717 = vadd.f32 %v1702, %v1714
      %v1718 = vadd.f32 %v1703, %v1714
      %v1719 = vadd.f32 %v1704, %v1714
      %v1720 = vadd.f32 %v1705, %v1714
      %v1721 = vadd.f32 %v1706, %v1714
      %v1722 = vadd.f32 %v1707, %v1714
      %v1723 = vadd.f32 %v1708, %v1714
      %v1724 = vsel %vm675, %v1716, 0.0
      %1725 = vadd.xlane.f32.xlu0 %v1724
      %v1726 = vpop.xlane.xlu0 %1725
      %v1727 = vsel %vm675, %v1717, 0.0
      %1728 = vadd.xlane.f32.xlu0 %v1727
      %v1729 = vpop.xlane.xlu0 %1728
      %v1730 = vsel %vm675, %v1718, 0.0
      %1731 = vadd.xlane.f32.xlu0 %v1730
      %v1732 = vpop.xlane.xlu0 %1731
      %v1733 = vsel %vm675, %v1719, 0.0
      %1734 = vadd.xlane.f32.xlu0 %v1733
      %v1735 = vpop.xlane.xlu0 %1734
      %v1736 = vsel %vm675, %v1720, 0.0
      %1737 = vadd.xlane.f32.xlu0 %v1736
      %v1738 = vpop.xlane.xlu0 %1737
      %v1739 = vsel %vm675, %v1721, 0.0
      %1740 = vadd.xlane.f32.xlu0 %v1739
      %v1741 = vpop.xlane.xlu0 %1740
      %v1742 = vsel %vm675, %v1722, 0.0
      %1743 = vadd.xlane.f32.xlu0 %v1742
      %v1744 = vpop.xlane.xlu0 %1743
      %v1745 = vsel %vm675, %v1723, 0.0
      %1746 = vadd.xlane.f32.xlu0 %v1745
      %v1747 = vpop.xlane.xlu0 %1746
      %v1748 = vmul.f32 %v1726, %v700
      %v1749 = vmul.f32 %v1729, %v700
      %v1750 = vmul.f32 %v1732, %v700
      %v1751 = vmul.f32 %v1735, %v700
      %v1752 = vmul.f32 %v1738, %v700
      %v1753 = vmul.f32 %v1741, %v700
      %v1754 = vmul.f32 %v1744, %v700
      %v1755 = vmul.f32 %v1747, %v700
      %v1756 = vsub.f32 %v1716, %v1748
      %v1757 = vsub.f32 %v1717, %v1749
      %v1758 = vsub.f32 %v1718, %v1750
      %v1759 = vsub.f32 %v1719, %v1751
      %v1760 = vsub.f32 %v1720, %v1752
      %v1761 = vsub.f32 %v1721, %v1753
      %v1762 = vsub.f32 %v1722, %v1754
      %v1763 = vsub.f32 %v1723, %v1755
      %v1764 = vmul.f32 %v1756, %v1756
      %v1765 = vmul.f32 %v1757, %v1757
      %v1766 = vmul.f32 %v1758, %v1758
      %v1767 = vmul.f32 %v1759, %v1759
      %v1768 = vmul.f32 %v1760, %v1760
      %v1769 = vmul.f32 %v1761, %v1761
      %v1770 = vmul.f32 %v1762, %v1762
      %v1771 = vmul.f32 %v1763, %v1763
      %v1772 = vsel %vm675, %v1764, 0.0
      %1773 = vadd.xlane.f32.xlu0 %v1772
      %v1774 = vpop.xlane.xlu0 %1773
      %v1775 = vsel %vm675, %v1765, 0.0
      %1776 = vadd.xlane.f32.xlu0 %v1775
      %v1777 = vpop.xlane.xlu0 %1776
      %v1778 = vsel %vm675, %v1766, 0.0
      %1779 = vadd.xlane.f32.xlu0 %v1778
      %v1780 = vpop.xlane.xlu0 %1779
      %v1781 = vsel %vm675, %v1767, 0.0
      %1782 = vadd.xlane.f32.xlu0 %v1781
      %v1783 = vpop.xlane.xlu0 %1782
      %v1784 = vsel %vm675, %v1768, 0.0
      %1785 = vadd.xlane.f32.xlu0 %v1784
      %v1786 = vpop.xlane.xlu0 %1785
      %v1787 = vsel %vm675, %v1769, 0.0
      %1788 = vadd.xlane.f32.xlu0 %v1787
      %v1789 = vpop.xlane.xlu0 %1788
      %v1790 = vsel %vm675, %v1770, 0.0
      %1791 = vadd.xlane.f32.xlu0 %v1790
      %v1792 = vpop.xlane.xlu0 %1791
      %v1793 = vsel %vm675, %v1771, 0.0
      %1794 = vadd.xlane.f32.xlu0 %v1793
      %v1795 = vpop.xlane.xlu0 %1794
      %v1796 = vmul.f32 %v1774, %v700
      %v1797 = vmul.f32 %v1777, %v700
      %v1798 = vmul.f32 %v1780, %v700
      %v1799 = vmul.f32 %v1783, %v700
      %v1800 = vmul.f32 %v1786, %v700
      %v1801 = vmul.f32 %v1789, %v700
      %v1802 = vmul.f32 %v1792, %v700
      %v1803 = vmul.f32 %v1795, %v700
      %v1804 = vadd.f32 %v1796, 1e-05
      %v1805 = vadd.f32 %v1797, 1e-05
      %v1806 = vadd.f32 %v1798, 1e-05
      %v1807 = vadd.f32 %v1799, 1e-05
      %v1808 = vadd.f32 %v1800, 1e-05
      %v1809 = vadd.f32 %v1801, 1e-05
      %v1810 = vadd.f32 %v1802, 1e-05
      %v1811 = vadd.f32 %v1803, 1e-05
      %v1812 = vrsqrt.pop %v1804
      %v1813 = vrsqrt.pop %v1805
      %v1814 = vrsqrt.pop %v1806
      %v1815 = vrsqrt.pop %v1807
      %v1816 = vrsqrt.pop %v1808
      %v1817 = vrsqrt.pop %v1809
      %v1818 = vrsqrt.pop %v1810
      %v1819 = vrsqrt.pop %v1811
      %v1820 = vmul.f32 %v1756, %v1812
      %v1821 = vmul.f32 %v1757, %v1813
      %v1822 = vmul.f32 %v1758, %v1814
      %v1823 = vmul.f32 %v1759, %v1815
      %v1824 = vmul.f32 %v1760, %v1816
      %v1825 = vmul.f32 %v1761, %v1817
      %v1826 = vmul.f32 %v1762, %v1818
      %v1827 = vmul.f32 %v1763, %v1819
      %v1828 = vlaneseq
      %v1829 = vshrl.u32 %v1828, 7
      %v1830 = vsub.s32 2, %v1829
      %v1831 = vrot.slane %v781, %v1830
      %v1832 = vmul.f32 %v1820, %v1831
      %v1833 = vmul.f32 %v1821, %v1831
      %v1834 = vmul.f32 %v1822, %v1831
      %v1835 = vmul.f32 %v1823, %v1831
      %v1836 = vmul.f32 %v1824, %v1831
      %v1837 = vmul.f32 %v1825, %v1831
      %v1838 = vmul.f32 %v1826, %v1831
      %v1839 = vmul.f32 %v1827, %v1831
      %v1840 = vlaneseq
      %v1841 = vshrl.u32 %v1840, 7
      %v1842 = vsub.s32 3, %v1841
      %v1843 = vrot.slane %v674, %v1842
      %v1844 = vadd.f32 %v1832, %v1843
      %v1845 = vadd.f32 %v1833, %v1843
      %v1846 = vadd.f32 %v1834, %v1843
      %v1847 = vadd.f32 %v1835, %v1843
      %v1848 = vadd.f32 %v1836, %v1843
      %v1849 = vadd.f32 %v1837, %v1843
      %v1850 = vadd.f32 %v1838, %v1843
      %v1851 = vadd.f32 %v1839, %v1843
      %v1852 = vld [vmem:[%s610] sm:$0xff]
      %v1853 = vld [vmem:[%s610 + $0x8] sm:$0xff]
      %v1854 = vld [vmem:[%s610 + $0x10] sm:$0xff]
      %v1855 = vld [vmem:[%s610 + $0x18] sm:$0xff]
      %v1856 = vld [vmem:[%s613] sm:$0x1]
      %v1857 = vpack.c.bf16 %v1845, %v1844
      %v1858 = vpack.c.bf16 %v1847, %v1846
      %v1859 = vpack.c.bf16 %v1849, %v1848
      %v1860 = vpack.c.bf16 %v1851, %v1850
      %v1865 = vunpack.c.l.b16 %v1852
      %v1866 = vunpack.c.h.b16 %v1852
      %v1867 = vunpack.c.l.b16 %v1853
      %v1868 = vunpack.c.h.b16 %v1853
      %v1869 = vunpack.c.l.b16 %v1854
      %v1870 = vunpack.c.h.b16 %v1854
      %v1871 = vunpack.c.l.b16 %v1855
      %v1872 = vunpack.c.h.b16 %v1855
      %v1873 = vpack.c.b16 %v1867, %v1865
      %v1874 = vpack.c.b16 %v1868, %v1866
      %v1875 = vpack.c.b16 %v1871, %v1869
      %v1876 = vpack.c.b16 %v1872, %v1870
      %v1882 = vsel %vm675, %v1857, 0
      %v1885 = vsel %vm675, %v1858, 0
      %v1888 = vsel %vm675, %v1859, 0
      %v1891 = vsel %vm675, %v1860, 0
      %1893 = vmatprep.subr.bf16.mxu0 0
      %1894 = vmatpush1.bf16.msra.mxu0 0
      %1895 = vmatprep.subr.bf16.mxu0 0
      %1896 = vmatpush1.bf16.msra.mxu0 0
      %1897 = vmatprep.subr.bf16.mxu0 0
      %1898 = vmatpush1.bf16.msra.mxu0 0
      %1899 = vmatprep.subr.bf16.mxu0 0
      %1900 = vmatpush1.bf16.msra.mxu0 0
      %1901 = vmatprep.subr.bf16.mxu0 0
      %1902 = vmatpush1.bf16.msra.mxu0 0
      %1903 = vmatprep.subr.bf16.mxu0 0
      %1904 = vmatpush1.bf16.msra.mxu0 0
      %1905 = vmatprep.subr.bf16.mxu0 %v1876
      %1906 = vmatpush1.bf16.msra.mxu0 %v1875
      %1907 = vmatprep.subr.bf16.mxu0 %v1874
      %1908 = vmatpush1.bf16.msra.mxu0 %v1873
      %1909 = vmatprep.subr.bf16.mxu0 0
      %1910 = vmatpush2.bf16.msra.mxu0 0
      %1911 = vmatprep.subr.bf16.mxu0 0
      %1912 = vmatpush2.bf16.msra.mxu0 0
      %1913 = vmatprep.subr.bf16.mxu0 0
      %1914 = vmatpush2.bf16.msra.mxu0 0
      %1915 = vmatprep.subr.bf16.mxu0 0
      %1916 = vmatpush2.bf16.msra.mxu0 0
      %1917 = vmatprep.subr.bf16.mxu0 0
      %1918 = vmatpush2.bf16.msra.mxu0 0
      %1919 = vmatprep.subr.bf16.mxu0 0
      %1920 = vmatpush2.bf16.msra.mxu0 0
      %1921 = vmatprep.subr.bf16.mxu0 0
      %1922 = vmatpush2.bf16.msra.mxu0 0
      %1923 = vmatprep.subr.bf16.mxu0 0
      %1924 = vmatpush2.bf16.msra.mxu0 0
      %1925 = vmatprep.mubr.bf16.mxu0 0
      %1926 = vmatmul.mubr.bf16.gmra.mxu0 %v1882
      %v1927 = vpop.f32.mrf.mxu0
      %v1928 = vadd.f32 0.0, %v1927
      %v1929 = vpop.f32.mrf.mxu0
      %v1930 = vadd.f32 0.0, %v1929
      %v1931 = vpop.f32.mrf.mxu0
      %v1932 = vadd.f32 0.0, %v1931
      %v1933 = vpop.f32.mrf.mxu0
      %v1934 = vadd.f32 0.0, %v1933
      %1935 = vmatprep.mubr.bf16.mxu0 0
      %1936 = vmatmul.mubr.bf16.gmra.mxu0 %v1885
      %v1937 = vpop.f32.mrf.mxu0
      %v1938 = vadd.f32 0.0, %v1937
      %v1939 = vpop.f32.mrf.mxu0
      %v1940 = vadd.f32 0.0, %v1939
      %v1941 = vpop.f32.mrf.mxu0
      %v1942 = vadd.f32 0.0, %v1941
      %v1943 = vpop.f32.mrf.mxu0
      %v1944 = vadd.f32 0.0, %v1943
      %1945 = vmatprep.mubr.bf16.mxu0 0
      %1946 = vmatmul.mubr.bf16.gmra.mxu0 %v1888
      %v1947 = vpop.f32.mrf.mxu0
      %v1948 = vadd.f32 0.0, %v1947
      %v1949 = vpop.f32.mrf.mxu0
      %v1950 = vadd.f32 0.0, %v1949
      %v1951 = vpop.f32.mrf.mxu0
      %v1952 = vadd.f32 0.0, %v1951
      %v1953 = vpop.f32.mrf.mxu0
      %v1954 = vadd.f32 0.0, %v1953
      %1955 = vmatprep.mubr.bf16.mxu0 0
      %1956 = vmatmul.mubr.bf16.gmra.mxu0 %v1891
      %v1957 = vpop.f32.mrf.mxu0
      %v1958 = vadd.f32 0.0, %v1957
      %v1959 = vpop.f32.mrf.mxu0
      %v1960 = vadd.f32 0.0, %v1959
      %v1961 = vpop.f32.mrf.mxu0
      %v1962 = vadd.f32 0.0, %v1961
      %v1963 = vpop.f32.mrf.mxu0
      %v1964 = vadd.f32 0.0, %v1963
      %1965 = vdwg.mxu0
      %vm1974 = vcmask 1040384
      %v1975 = vrot.slane %v1928, 7
      %v1976 = vrot.slane %v1932, 7
      %v1977 = vsel %vm1974, %v1975, %v1976
      %v1978 = vrot.slane %v1938, 7
      %v1979 = vsel %vm1974, %v1976, %v1978
      %v1980 = vrot.slane %v1942, 7
      %v1981 = vsel %vm1974, %v1978, %v1980
      %v1982 = vrot.slane %v1948, 7
      %v1983 = vsel %vm1974, %v1980, %v1982
      %v1984 = vrot.slane %v1952, 7
      %v1985 = vsel %vm1974, %v1982, %v1984
      %v1986 = vrot.slane %v1958, 7
      %v1987 = vsel %vm1974, %v1984, %v1986
      %v1988 = vrot.slane %v1962, 7
      %v1989 = vsel %vm1974, %v1986, %v1988
      %v1998 = vsel %vm1974, 0.0, %v1975
      %1999 = vrot.lane.b32.xlu0 %v1928, 64
      %v2000 = vpop.permute.xlu0 %1999
      %2001 = vrot.lane.b32.xlu0 %v1932, 64
      %v2002 = vpop.permute.xlu0 %2001
      %2003 = vrot.lane.b32.xlu0 %v1938, 64
      %v2004 = vpop.permute.xlu0 %2003
      %2005 = vrot.lane.b32.xlu0 %v1942, 64
      %v2006 = vpop.permute.xlu0 %2005
      %2007 = vrot.lane.b32.xlu0 %v1948, 64
      %v2008 = vpop.permute.xlu0 %2007
      %2009 = vrot.lane.b32.xlu0 %v1952, 64
      %v2010 = vpop.permute.xlu0 %2009
      %2011 = vrot.lane.b32.xlu0 %v1958, 64
      %v2012 = vpop.permute.xlu0 %2011
      %2013 = vrot.lane.b32.xlu0 %v1962, 64
      %v2014 = vpop.permute.xlu0 %2013
      %v2023 = vadd.f32 %v1998, %v2000
      %v2024 = vadd.f32 %v1977, %v2002
      %v2025 = vadd.f32 %v1979, %v2004
      %v2026 = vadd.f32 %v1981, %v2006
      %v2027 = vadd.f32 %v1983, %v2008
      %v2028 = vadd.f32 %v1985, %v2010
      %v2029 = vadd.f32 %v1987, %v2012
      %v2030 = vadd.f32 %v1989, %v2014
      %vm2039 = vcmask 1046528
      %v2040 = vrot.slane %v1930, 1
      %v2041 = vrot.slane %v1934, 1
      %v2042 = vsel %vm2039, %v2040, %v2041
      %v2043 = vrot.slane %v1940, 1
      %v2044 = vsel %vm2039, %v2041, %v2043
      %v2045 = vrot.slane %v1944, 1
      %v2046 = vsel %vm2039, %v2043, %v2045
      %v2047 = vrot.slane %v1950, 1
      %v2048 = vsel %vm2039, %v2045, %v2047
      %v2049 = vrot.slane %v1954, 1
      %v2050 = vsel %vm2039, %v2047, %v2049
      %v2051 = vrot.slane %v1960, 1
      %v2052 = vsel %vm2039, %v2049, %v2051
      %v2053 = vrot.slane %v1964, 1
      %v2054 = vsel %vm2039, %v2051, %v2053
      %v2063 = vsel %vm2039, %v2053, 0.0
      %v2064 = vadd.f32 %v2023, %v2042
      %v2065 = vadd.f32 %v2024, %v2044
      %v2066 = vadd.f32 %v2025, %v2046
      %v2067 = vadd.f32 %v2026, %v2048
      %v2068 = vadd.f32 %v2027, %v2050
      %v2069 = vadd.f32 %v2028, %v2052
      %v2070 = vadd.f32 %v2029, %v2054
      %v2071 = vadd.f32 %v2030, %v2063
      %v2073 = vlaneseq
      %v2074 = vshrl.u32 %v2073, 7
      %v2075 = vsub.s32 0, %v2074
      %v2076 = vrot.slane %v1856, %v2075
      %v2078 = vadd.f32 %v2064, %v2076
      %v2079 = vadd.f32 %v2065, %v2076
      %v2080 = vadd.f32 %v2066, %v2076
      %v2081 = vadd.f32 %v2067, %v2076
      %v2082 = vadd.f32 %v2068, %v2076
      %v2083 = vadd.f32 %v2069, %v2076
      %v2084 = vadd.f32 %v2070, %v2076
      %v2085 = vadd.f32 %v2071, %v2076
      %v2086 = vmax.f32 %v2078, 0.0
      %v2087 = vmax.f32 %v2079, 0.0
      %v2088 = vmax.f32 %v2080, 0.0
      %v2089 = vmax.f32 %v2081, 0.0
      %v2090 = vmax.f32 %v2082, 0.0
      %v2091 = vmax.f32 %v2083, 0.0
      %v2092 = vmax.f32 %v2084, 0.0
      %v2093 = vmax.f32 %v2085, 0.0
      %v2094 = vld [vmem:[%s618] sm:$0xf]
      %v2095 = vld [vmem:[%s618 + $0x4] sm:$0xf]
      %v2096 = vld [vmem:[%s618 + $0x8] sm:$0xf]
      %v2097 = vld [vmem:[%s618 + $0xc] sm:$0xf]
      %v2098 = vld [vmem:[%s618 + $0x10] sm:$0xf]
      %v2099 = vld [vmem:[%s618 + $0x14] sm:$0xf]
      %v2100 = vld [vmem:[%s618 + $0x18] sm:$0xf]
      %v2101 = vld [vmem:[%s618 + $0x1c] sm:$0xf]
      %v2102 = vld [vmem:[%s621] sm:$0x1]
      %v2103 = vpack.c.bf16 %v2087, %v2086
      %v2104 = vpack.c.bf16 %v2089, %v2088
      %v2105 = vpack.c.bf16 %v2091, %v2090
      %v2106 = vpack.c.bf16 %v2093, %v2092
      %v2115 = vunpack.c.l.b16 %v2094
      %v2116 = vunpack.c.l.b16 %v2095
      %v2117 = vunpack.c.l.b16 %v2096
      %v2118 = vunpack.c.l.b16 %v2097
      %v2119 = vunpack.c.l.b16 %v2098
      %v2120 = vunpack.c.l.b16 %v2099
      %v2121 = vunpack.c.l.b16 %v2100
      %v2122 = vunpack.c.l.b16 %v2101
      %v2123 = vpack.c.b16 %v2116, %v2115
      %v2124 = vpack.c.b16 %v2118, %v2117
      %v2125 = vpack.c.b16 %v2120, %v2119
      %v2126 = vpack.c.b16 %v2122, %v2121
      %v2132 = vsel %vm1043, %v2103, 0
      %v2135 = vsel %vm1043, %v2104, 0
      %v2138 = vsel %vm1043, %v2105, 0
      %v2141 = vsel %vm1043, %v2106, 0
      %2143 = vmatprep.subr.bf16.mxu0 0
      %2144 = vmatpush1.bf16.msra.mxu0 0
      %2145 = vmatprep.subr.bf16.mxu0 0
      %2146 = vmatpush1.bf16.msra.mxu0 0
      %2147 = vmatprep.subr.bf16.mxu0 0
      %2148 = vmatpush1.bf16.msra.mxu0 0
      %2149 = vmatprep.subr.bf16.mxu0 0
      %2150 = vmatpush1.bf16.msra.mxu0 0
      %2151 = vmatprep.subr.bf16.mxu0 0
      %2152 = vmatpush1.bf16.msra.mxu0 %v2126
      %2153 = vmatprep.subr.bf16.mxu0 0
      %2154 = vmatpush1.bf16.msra.mxu0 %v2125
      %2155 = vmatprep.subr.bf16.mxu0 0
      %2156 = vmatpush1.bf16.msra.mxu0 %v2124
      %2157 = vmatprep.subr.bf16.mxu0 0
      %2158 = vmatpush1.bf16.msra.mxu0 %v2123
      %2159 = vmatprep.subr.bf16.mxu0 0
      %2160 = vmatpush2.bf16.msra.mxu0 0
      %2161 = vmatprep.subr.bf16.mxu0 0
      %2162 = vmatpush2.bf16.msra.mxu0 0
      %2163 = vmatprep.subr.bf16.mxu0 0
      %2164 = vmatpush2.bf16.msra.mxu0 0
      %2165 = vmatprep.subr.bf16.mxu0 0
      %2166 = vmatpush2.bf16.msra.mxu0 0
      %2167 = vmatprep.subr.bf16.mxu0 0
      %2168 = vmatpush2.bf16.msra.mxu0 0
      %2169 = vmatprep.subr.bf16.mxu0 0
      %2170 = vmatpush2.bf16.msra.mxu0 0
      %2171 = vmatprep.subr.bf16.mxu0 0
      %2172 = vmatpush2.bf16.msra.mxu0 0
      %2173 = vmatprep.subr.bf16.mxu0 0
      %2174 = vmatpush2.bf16.msra.mxu0 0
      %2175 = vmatprep.mubr.bf16.mxu0 0
      %2176 = vmatmul.mubr.bf16.gmra.mxu0 %v2132
      %v2177 = vpop.f32.mrf.mxu0
      %v2178 = vadd.f32 0.0, %v2177
      %v2179 = vpop.f32.mrf.mxu0
      %v2180 = vpop.f32.mrf.mxu0
      %v2181 = vadd.f32 0.0, %v2180
      %v2182 = vpop.f32.mrf.mxu0
      %2183 = vmatprep.mubr.bf16.mxu0 0
      %2184 = vmatmul.mubr.bf16.gmra.mxu0 %v2135
      %v2185 = vpop.f32.mrf.mxu0
      %v2186 = vadd.f32 0.0, %v2185
      %v2187 = vpop.f32.mrf.mxu0
      %v2188 = vpop.f32.mrf.mxu0
      %v2189 = vadd.f32 0.0, %v2188
      %v2190 = vpop.f32.mrf.mxu0
      %2191 = vmatprep.mubr.bf16.mxu0 0
      %2192 = vmatmul.mubr.bf16.gmra.mxu0 %v2138
      %v2193 = vpop.f32.mrf.mxu0
      %v2194 = vadd.f32 0.0, %v2193
      %v2195 = vpop.f32.mrf.mxu0
      %v2196 = vpop.f32.mrf.mxu0
      %v2197 = vadd.f32 0.0, %v2196
      %v2198 = vpop.f32.mrf.mxu0
      %2199 = vmatprep.mubr.bf16.mxu0 0
      %2200 = vmatmul.mubr.bf16.gmra.mxu0 %v2141
      %v2201 = vpop.f32.mrf.mxu0
      %v2202 = vadd.f32 0.0, %v2201
      %v2203 = vpop.f32.mrf.mxu0
      %v2204 = vpop.f32.mrf.mxu0
      %v2205 = vadd.f32 0.0, %v2204
      %v2206 = vpop.f32.mrf.mxu0
      %2207 = vdwg.mxu0
      %v2216 = vrot.slane %v2178, 7
      %v2217 = vrot.slane %v2181, 7
      %v2218 = vsel %vm1974, %v2216, %v2217
      %v2219 = vrot.slane %v2186, 7
      %v2220 = vsel %vm1974, %v2217, %v2219
      %v2221 = vrot.slane %v2189, 7
      %v2222 = vsel %vm1974, %v2219, %v2221
      %v2223 = vrot.slane %v2194, 7
      %v2224 = vsel %vm1974, %v2221, %v2223
      %v2225 = vrot.slane %v2197, 7
      %v2226 = vsel %vm1974, %v2223, %v2225
      %v2227 = vrot.slane %v2202, 7
      %v2228 = vsel %vm1974, %v2225, %v2227
      %v2229 = vrot.slane %v2205, 7
      %v2230 = vsel %vm1974, %v2227, %v2229
      %v2239 = vsel %vm1974, 0.0, %v2216
      %2240 = vrot.lane.b32.xlu0 %v2178, 96
      %v2241 = vpop.permute.xlu0 %2240
      %2242 = vrot.lane.b32.xlu0 %v2181, 96
      %v2243 = vpop.permute.xlu0 %2242
      %2244 = vrot.lane.b32.xlu0 %v2186, 96
      %v2245 = vpop.permute.xlu0 %2244
      %2246 = vrot.lane.b32.xlu0 %v2189, 96
      %v2247 = vpop.permute.xlu0 %2246
      %2248 = vrot.lane.b32.xlu0 %v2194, 96
      %v2249 = vpop.permute.xlu0 %2248
      %2250 = vrot.lane.b32.xlu0 %v2197, 96
      %v2251 = vpop.permute.xlu0 %2250
      %2252 = vrot.lane.b32.xlu0 %v2202, 96
      %v2253 = vpop.permute.xlu0 %2252
      %2254 = vrot.lane.b32.xlu0 %v2205, 96
      %v2255 = vpop.permute.xlu0 %2254
      %v2264 = vadd.f32 %v2239, %v2241
      %v2265 = vadd.f32 %v2218, %v2243
      %v2266 = vadd.f32 %v2220, %v2245
      %v2267 = vadd.f32 %v2222, %v2247
      %v2268 = vadd.f32 %v2224, %v2249
      %v2269 = vadd.f32 %v2226, %v2251
      %v2270 = vadd.f32 %v2228, %v2253
      %v2271 = vadd.f32 %v2230, %v2255
      %v2272 = vrot.slane %v2178, 1
      %v2273 = vrot.slane %v2181, 1
      %v2274 = vsel %vm2039, %v2272, %v2273
      %v2275 = vrot.slane %v2186, 1
      %v2276 = vsel %vm2039, %v2273, %v2275
      %v2277 = vrot.slane %v2189, 1
      %v2278 = vsel %vm2039, %v2275, %v2277
      %v2279 = vrot.slane %v2194, 1
      %v2280 = vsel %vm2039, %v2277, %v2279
      %v2281 = vrot.slane %v2197, 1
      %v2282 = vsel %vm2039, %v2279, %v2281
      %v2283 = vrot.slane %v2202, 1
      %v2284 = vsel %vm2039, %v2281, %v2283
      %v2285 = vrot.slane %v2205, 1
      %v2286 = vsel %vm2039, %v2283, %v2285
      %v2288 = vsel %vm2039, %v2285, 0.0
      %2290 = vrot.lane.b32.xlu0 %v2274, 64
      %v2291 = vpop.permute.xlu0 %2290
      %2292 = vrot.lane.b32.xlu0 %v2276, 64
      %v2293 = vpop.permute.xlu0 %2292
      %2294 = vrot.lane.b32.xlu0 %v2278, 64
      %v2295 = vpop.permute.xlu0 %2294
      %2296 = vrot.lane.b32.xlu0 %v2280, 64
      %v2297 = vpop.permute.xlu0 %2296
      %2298 = vrot.lane.b32.xlu0 %v2282, 64
      %v2299 = vpop.permute.xlu0 %2298
      %2300 = vrot.lane.b32.xlu0 %v2284, 64
      %v2301 = vpop.permute.xlu0 %2300
      %2302 = vrot.lane.b32.xlu0 %v2286, 64
      %v2303 = vpop.permute.xlu0 %2302
      %2304 = vrot.lane.b32.xlu0 %v2288, 64
      %v2305 = vpop.permute.xlu0 %2304
      %v2314 = vadd.f32 %v2264, %v2291
      %v2315 = vadd.f32 %v2265, %v2293
      %v2316 = vadd.f32 %v2266, %v2295
      %v2317 = vadd.f32 %v2267, %v2297
      %v2318 = vadd.f32 %v2268, %v2299
      %v2319 = vadd.f32 %v2269, %v2301
      %v2320 = vadd.f32 %v2270, %v2303
      %v2321 = vadd.f32 %v2271, %v2305
      %v2323 = vlaneseq
      %v2324 = vshrl.u32 %v2323, 7
      %v2325 = vsub.s32 0, %v2324
      %v2326 = vrot.slane %v2102, %v2325
      %v2328 = vadd.f32 %v2314, %v2326
      %v2329 = vadd.f32 %v2315, %v2326
      %v2330 = vadd.f32 %v2316, %v2326
      %v2331 = vadd.f32 %v2317, %v2326
      %v2332 = vadd.f32 %v2318, %v2326
      %v2333 = vadd.f32 %v2319, %v2326
      %v2334 = vadd.f32 %v2320, %v2326
      %v2335 = vadd.f32 %v2321, %v2326
      %v2336 = vadd.f32 %v1716, %v2328
      %v2337 = vadd.f32 %v1717, %v2329
      %v2338 = vadd.f32 %v1718, %v2330
      %v2339 = vadd.f32 %v1719, %v2331
      %v2340 = vadd.f32 %v1720, %v2332
      %v2341 = vadd.f32 %v1721, %v2333
      %v2342 = vadd.f32 %v1722, %v2334
      %v2343 = vadd.f32 %v1723, %v2335
      %2345 = vset.pattern.permute.xlu0 0
      %2346 = vperm.xlu0 %2345, %v666
      %v2347 = vpop.permute.xlu0 %2346
      %2350 = vset.pattern.permute.xlu0 0
      %2351 = vperm.xlu0 %2350, %v667
      %v2352 = vpop.permute.xlu0 %2351
      %2355 = vset.pattern.permute.xlu0 0
      %2356 = vperm.xlu0 %2355, %v668
      %v2357 = vpop.permute.xlu0 %2356
      %2360 = vset.pattern.permute.xlu0 0
      %2361 = vperm.xlu0 %2360, %v669
      %v2362 = vpop.permute.xlu0 %2361
      %2365 = vset.pattern.permute.xlu0 0
      %2366 = vperm.xlu0 %2365, %v670
      %v2367 = vpop.permute.xlu0 %2366
      %2370 = vset.pattern.permute.xlu0 0
      %2371 = vperm.xlu0 %2370, %v671
      %v2372 = vpop.permute.xlu0 %2371
      %2375 = vset.pattern.permute.xlu0 0
      %2376 = vperm.xlu0 %2375, %v672
      %v2377 = vpop.permute.xlu0 %2376
      %2380 = vset.pattern.permute.xlu0 0
      %2381 = vperm.xlu0 %2380, %v673
      %v2382 = vpop.permute.xlu0 %2381
      %v2384 = vmul.f32 %v2336, %v2347
      %v2385 = vmul.f32 %v2337, %v2352
      %v2386 = vmul.f32 %v2338, %v2357
      %v2387 = vmul.f32 %v2339, %v2362
      %v2388 = vmul.f32 %v2340, %v2367
      %v2389 = vmul.f32 %v2341, %v2372
      %v2390 = vmul.f32 %v2342, %v2377
      %v2391 = vmul.f32 %v2343, %v2382
      %2392 = vst.msk [vmem:[#allocation2] sm:$0xff] %vm675, %v2384
      %2393 = vst.msk [vmem:[#allocation2 + $0x8] sm:$0xff] %vm675, %v2385
      %2394 = vst.msk [vmem:[#allocation2 + $0x10] sm:$0xff] %vm675, %v2386
      %2395 = vst.msk [vmem:[#allocation2 + $0x18] sm:$0xff] %vm675, %v2387
      %2396 = vst.msk [vmem:[#allocation2 + $0x20] sm:$0xff] %vm675, %v2388
      %2397 = vst.msk [vmem:[#allocation2 + $0x28] sm:$0xff] %vm675, %v2389
      %2398 = vst.msk [vmem:[#allocation2 + $0x30] sm:$0xff] %vm675, %v2390
      %2399 = vst.msk [vmem:[#allocation2 + $0x38] sm:$0xff] %vm675, %v2391
      %p2400 = scmp.eq.s32.totalorder %s28, 1
      // Predicated region
      $region73: #{stableform_tts_forward.10} parent=67 // pred_check
        %p2401 = pneg %p2400
      $region74: #{stableform_tts_forward.10} parent=67 // pred_check_branch
        %2403 = sbr.rel (%p2401) target = $region76
      $region75: #{stableform_tts_forward.10} parent=67 // pred_region
        %v2404 = vpack.c.bf16 %v2385, %v2384
        %v2405 = vpack.c.bf16 %v2387, %v2386
        %v2406 = vpack.c.bf16 %v2389, %v2388
        %v2407 = vpack.c.bf16 %v2391, %v2390
        %v2412 = vunpack.c.l.b16 %v2404
        %v2413 = vunpack.c.h.b16 %v2404
        %v2414 = vunpack.c.l.b16 %v2405
        %v2415 = vunpack.c.h.b16 %v2405
        %v2416 = vunpack.c.l.b16 %v2406
        %v2417 = vunpack.c.h.b16 %v2406
        %v2418 = vunpack.c.l.b16 %v2407
        %v2419 = vunpack.c.h.b16 %v2407
        %v2420 = vpack.c.b16 %v2412, %v2412
        %v2421 = vpack.c.b16 %v2413, %v2413
        %v2422 = vpack.c.b16 %v2414, %v2414
        %v2423 = vpack.c.b16 %v2415, %v2415
        %v2424 = vpack.c.b16 %v2416, %v2416
        %v2425 = vpack.c.b16 %v2417, %v2417
        %v2426 = vpack.c.b16 %v2418, %v2418
        %v2427 = vpack.c.b16 %v2419, %v2419
        %vm2436 = vcmask 257024
        %2437 = vst.msk [vmem:[%s626] sm:$0xf] %vm2436, %v2420
        %2438 = vst.msk [vmem:[%s626 + $0x4] sm:$0xf] %vm2436, %v2421
        %2439 = vst.msk [vmem:[%s626 + $0x8] sm:$0xf] %vm2436, %v2422
        %2440 = vst.msk [vmem:[%s626 + $0xc] sm:$0xf] %vm2436, %v2423
        %2441 = vst.msk [vmem:[%s626 + $0x10] sm:$0xf] %vm2436, %v2424
        %2442 = vst.msk [vmem:[%s626 + $0x14] sm:$0xf] %vm2436, %v2425
        %2443 = vst.msk [vmem:[%s626 + $0x18] sm:$0xf] %vm2436, %v2426
        %2444 = vst.msk [vmem:[%s626 + $0x1c] sm:$0xf] %vm2436, %v2427
      $region76: #{stableform_tts_forward.10} parent=67 // pred_fallthru
        _
      %p2445 = scmp.lt.s32.totalorder %s27, 1
      %s2446 = scalar_select %p2445, %s27, 1
      %s2447 = smul.addr %s2446, 8
      %s2448 = smul.addr %s2447, 4
      %s2449 = scalar_lea.vmem %s12, %s2448
      // Predicated region
      $region77: #{stableform_tts_forward.10} parent=67 // pred_check
        %p2450 = pneg %p367
      $region78: #{stableform_tts_forward.10} parent=67 // pred_check_branch
        %2452 = sbr.rel (%p2450) target = $region80
      $region79: #{stableform_tts_forward.10} parent=67 // pred_region
        _
      $region80: #{stableform_tts_forward.10} parent=67 // pred_fallthru
        _
    $region68: #{stableform_tts_forward.10} parent=5 // pred_fallthru
      _
    %p2453 = scmp.le.s32.totalorder 2, %s18
    // Predicated region
    $region81: #{stableform_tts_forward.10} parent=5 // pred_check
      %p2454 = pneg %p2453
    $region82: #{stableform_tts_forward.10} parent=5 // pred_check_branch
      %2456 = sbr.rel (%p2454) target = $region84
    $region83: #{stableform_tts_forward.10} parent=5 // pred_region
      %s2457 = ssub.s32 %s18, 2
      // Predicated region
      $region85: #{stableform_tts_forward.10} parent=83 // pred_check
        %p2458 = pneg %p373
      $region86: #{stableform_tts_forward.10} parent=83 // pred_check_branch
        %2460 = sbr.rel (%p2458) target = $region88
      $region87: #{stableform_tts_forward.10} parent=83 // pred_region
        %p2461 = scmp.lt.s32.totalorder %s29, 1
        %s2462 = scalar_select %p2461, %s29, 1
        %s2463 = smul.addr %s2462, 8
        %s2464 = smul.addr %s2463, 4
        %s2465 = scalar_lea.vmem %s12, %s2464
      $region88: #{stableform_tts_forward.10} parent=83 // pred_fallthru
        _
    $region84: #{stableform_tts_forward.10} parent=5 // pred_fallthru
      _
  $region6: #{stableform_tts_forward.10} parent=0 // loop_footer
    %s22 = sadd.s32 1, %s18
  $region7: #{stableform_tts_forward.10} parent=0 // loop_footer_branch
    %17 = sbr.rel target = $region3
  $region8: #{stableform_tts_forward.10} parent=0 // loop_exit
    _

</llo_original>
